<compile_context>
chip_gen: v6e
topology: v6e:2x2x1
jax: 0.10.0
libtpu: 0.0.40
codegen_flags: <defaults>
</compile_context>

<pallas_src>
import functools

import jax
import jax.numpy as jnp
from jax.experimental import pallas as pl
from jax.experimental.pallas import tpu as pltpu

LATENT_DIM = 8
IMG_SHAPE = (3, 16, 16)   # (C, H, W)
BATCH = 2


# ----------------------------------------------------------------------------
# Chip-aware grid-step policy (v7x: 2 TensorCores -> >=2 parallel steps on
# sizeable GEMMs; v5e/v6e: single TC -> one big step).
# ----------------------------------------------------------------------------
def _detect_num_tensorcores():
    try:
        dev = jax.devices()[0]
        kind = str(getattr(dev, "device_kind", "")).lower()
        if "v7" in kind:
            return 2
        nc = getattr(dev, "num_cores", None)
        if isinstance(nc, int) and nc > 0:
            return nc
    except Exception:
        pass
    return 1


_NUM_TC = _detect_num_tensorcores()


def _num_m_steps(m):
    # Split along M only when there are >=2 TensorCores to feed and the split
    # tile stays (8,128)-legal (TM = M/2 divisible by 8 -> M % 16 == 0).
    if _NUM_TC >= 2 and m >= 256 and m % 16 == 0:
        return 2
    return 1


def _round_up(x, m):
    return ((x + m - 1) // m) * m


# ----------------------------------------------------------------------------
# Pallas kernel: fused matmul + bias + activation (conv / dense hot path)
# ----------------------------------------------------------------------------
def _linear_kernel(x_ref, w_ref, b_ref, o_ref, *, act):
    # bf16 operands -> MXU, f32 accumulation, f32 epilogue (v5e-safe), bf16 store.
    acc = jnp.dot(x_ref[...], w_ref[...], preferred_element_type=jnp.float32)
    acc = acc + b_ref[...]
    if act == "lrelu":
        acc = jnp.maximum(acc, 0.2 * acc)
    elif act == "tanh":
        acc = jnp.tanh(acc)
    # act == "none": identity
    o_ref[...] = acc.astype(o_ref.dtype)


def pallas_linear(x, wp, bp, n_out, act="none"):
    """y = act(x @ W + b), bf16 out, with N-padded weights.

    x  : (M, K) activations (any float dtype; cast to bf16 here)
    wp : (K, Np) bf16 weight (true K, N zero-padded to 128 at init)
    bp : (1, Np) f32 bias (zero-padded at init)
    n_out : true output width (<= Np)
    """
    M, K = x.shape
    Kw, Np = wp.shape
    assert K == Kw and n_out <= Np

    xb = x.astype(jnp.bfloat16)
    steps = _num_m_steps(M)
    TM = M // steps

    # VMEM footprint per step is << 1 MiB at these sizes (far under the 64 MiB
    # v7x budget), so no vmem_limit_bytes override is needed.
    out = pl.pallas_call(
        functools.partial(_linear_kernel, act=act),
        out_shape=jax.ShapeDtypeStruct((M, Np), jnp.bfloat16),
        grid=(steps,),
        in_specs=[
            pl.BlockSpec((TM, K), lambda i: (i, 0)),    # true K: full-dim block
            pl.BlockSpec((K, Np), lambda i: (0, 0)),
            pl.BlockSpec((1, Np), lambda i: (0, 0)),
        ],
        out_specs=pl.BlockSpec((TM, Np), lambda i: (i, 0)),
        compiler_params=pltpu.CompilerParams(
            dimension_semantics=("parallel",)),
    )(xb, wp, bp)

    if n_out == Np:
        return out
    return out[:, :n_out]


# ----------------------------------------------------------------------------
# Conv2d = NHWC im2col (fused glue under jit) + Pallas matmul kernel
# ----------------------------------------------------------------------------
def _im2col_nhwc(x, kh, kw, stride, pad):
    """x: (N, H, W, C) -> (N*Ho*Wo, kh*kw*C), tap order (i, j, c)."""
    n, h, w, c = x.shape
    xp = jnp.pad(x, ((0, 0), (pad, pad), (pad, pad), (0, 0)))
    ho = (h + 2 * pad - kh) // stride + 1
    wo = (w + 2 * pad - kw) // stride + 1
    cols = []
    for i in range(kh):
        for j in range(kw):
            cols.append(
                xp[:, i:i + stride * ho:stride, j:j + stride * wo:stride, :])
    col = jnp.concatenate(cols, axis=-1)       # (N, Ho, Wo, kh*kw*C)
    return col.reshape(n * ho * wo, kh * kw * c), ho, wo


def conv2d_pallas(x_nhwc, layer, cout, k, stride, pad, act):
    n = x_nhwc.shape[0]
    # cast before im2col so the 9x-expanded column matrix is bf16, not f32
    col, ho, wo = _im2col_nhwc(x_nhwc.astype(jnp.bfloat16), k, k, stride, pad)
    out = pallas_linear(col, layer["w"], layer["b"], cout, act=act)
    return out.reshape(n, ho, wo, cout)


# ----------------------------------------------------------------------------
# Parameter initialization: weights N-padded / bf16-cast ONCE here
# ----------------------------------------------------------------------------
def _pad_matmul_weights(wm, b):
    """wm: (K, N) f32, b: (N,) f32 -> (K, Np) bf16 weight + (1, Np) f32 bias."""
    K, N = wm.shape
    Np = _round_up(N, 128)
    wp = jnp.zeros((K, Np), jnp.bfloat16).at[:, :N].set(wm.astype(jnp.bfloat16))
    bp = jnp.zeros((1, Np), jnp.float32).at[:, :N].set(
        b.reshape(1, N).astype(jnp.float32))
    return {"w": wp, "b": bp}


def _init_conv_raw(key, cout, cin, k):
    """Returns the conv weight in matmul form (kh*kw*cin, cout) + bias."""
    w = jax.random.normal(key, (cout, cin, k, k), jnp.float32) * 0.1
    b = jnp.zeros((cout,), jnp.float32)
    # (Cout, Cin, kh, kw) -> (kh, kw, Cin, Cout) -> (kh*kw*Cin, Cout), matching
    # the NHWC im2col tap order (i, j, c).
    wm = jnp.transpose(w, (2, 3, 1, 0)).reshape(k * k * cin, cout)
    return wm, b


def _init_conv(key, cout, cin, k):
    wm, b = _init_conv_raw(key, cout, cin, k)
    return _pad_matmul_weights(wm, b)


def _init_fc(key, din, dout):
    w = jax.random.normal(key, (din, dout), jnp.float32) * 0.05
    b = jnp.zeros((dout,), jnp.float32)
    return w, b


def _merge_blockdiag_taps(wm_a, wm_b, k, cin_each):
    """Merge two convs with disjoint input channels into one block-diagonal
    conv weight: input channels [0:cin_each] feed only wm_a's outputs and
    [cin_each:2*cin_each] feed only wm_b's outputs (im2col tap order (i,j,c)).
    """
    taps = k * k
    ca = wm_a.reshape(taps, cin_each, -1)
    cb = wm_b.reshape(taps, cin_each, -1)
    cout_a, cout_b = ca.shape[-1], cb.shape[-1]
    top = jnp.concatenate(
        [ca, jnp.zeros((taps, cin_each, cout_b), ca.dtype)], axis=-1)
    bot = jnp.concatenate(
        [jnp.zeros((taps, cin_each, cout_a), cb.dtype), cb], axis=-1)
    merged = jnp.concatenate([top, bot], axis=1)
    return merged.reshape(taps * 2 * cin_each, cout_a + cout_b)


def init_params(key):
    c, h, w = IMG_SHAPE
    keys = jax.random.split(key, 16)

    # merged mu / logvar head: one GEMM, slice afterwards
    flat_dim = 32 * (h // 4) * (w // 4)
    w_mu, b_mu = _init_fc(keys[2], flat_dim, LATENT_DIM)
    w_lv, b_lv = _init_fc(keys[3], flat_dim, LATENT_DIM)
    fc_merged = _pad_matmul_weights(
        jnp.concatenate([w_mu, w_lv], axis=1),
        jnp.concatenate([b_mu, b_lv], axis=0))

    enc = {
        "c1": _init_conv(keys[0], 16, c, 3),
        "c2": _init_conv(keys[1], 32, 16, 3),
        "fc": fc_merged,
    }
    gen = {
        "c1": _init_conv(keys[4], 32, c + LATENT_DIM, 3),
        "c2": _init_conv(keys[5], 32, 32, 3),
        "c3": _init_conv(keys[6], c, 32, 3),
    }

    # d_vae and d_lr merged along N (both run on the identical disc_in batch):
    #   first layer of each scale: cout 16+16 = 32 (independent feature sets)
    #   head of each scale       : block-diagonal (32 -> 2), col0 = vae, col1 = lr
    def merged_disc():
        s0a_v, b0a_v = _init_conv_raw(keys[7], 16, c, 3)
        s0a_l, b0a_l = _init_conv_raw(keys[11], 16, c, 3)
        s0b_v, b0b_v = _init_conv_raw(keys[8], 1, 16, 3)
        s0b_l, b0b_l = _init_conv_raw(keys[12], 1, 16, 3)
        s1a_v, b1a_v = _init_conv_raw(keys[9], 16, c, 3)
        s1a_l, b1a_l = _init_conv_raw(keys[13], 16, c, 3)
        s1b_v, b1b_v = _init_conv_raw(keys[10], 1, 16, 3)
        s1b_l, b1b_l = _init_conv_raw(keys[14], 1, 16, 3)
        return {
            "s0a": _pad_matmul_weights(jnp.concatenate([s0a_v, s0a_l], 1),
                                       jnp.concatenate([b0a_v, b0a_l], 0)),
            "s0b": _pad_matmul_weights(_merge_blockdiag_taps(s0b_v, s0b_l, 3, 16),
                                       jnp.concatenate([b0b_v, b0b_l], 0)),
            "s1a": _pad_matmul_weights(jnp.concatenate([s1a_v, s1a_l], 1),
                                       jnp.concatenate([b1a_v, b1a_l], 0)),
            "s1b": _pad_matmul_weights(_merge_blockdiag_taps(s1b_v, s1b_l, 3, 16),
                                       jnp.concatenate([b1b_v, b1b_l], 0)),
        }

    return {"enc": enc, "gen": gen, "disc": merged_disc()}


# ----------------------------------------------------------------------------
# Sub-networks (NHWC activations; all heavy compute in the Pallas kernel)
# ----------------------------------------------------------------------------
def encoder(p, x_nhwc):
    h = conv2d_pallas(x_nhwc, p["c1"], 16, 3, 2, 1, "lrelu")
    h = conv2d_pallas(h, p["c2"], 32, 3, 2, 1, "lrelu")
    n = h.shape[0]
    flat = h.reshape(n, -1)
    mulv = pallas_linear(flat, p["fc"]["w"], p["fc"]["b"],
                         2 * LATENT_DIM, act="none").astype(jnp.float32)
    return mulv[:, :LATENT_DIM], mulv[:, LATENT_DIM:]


def generator(p, x_nhwc, z):
    c = IMG_SHAPE[0]
    n, h, w, _ = x_nhwc.shape
    z_map = jnp.broadcast_to(z[:, None, None, :], (n, h, w, z.shape[1]))
    inp = jnp.concatenate([x_nhwc, z_map.astype(x_nhwc.dtype)], axis=-1)
    h1 = conv2d_pallas(inp, p["c1"], 32, 3, 1, 1, "lrelu")
    h2 = conv2d_pallas(h1, p["c2"], 32, 3, 1, 1, "lrelu")
    out = conv2d_pallas(h2, p["c3"], c, 3, 1, 1, "tanh")
    return out


def _avg_pool2_nhwc(x):
    n, h, w, c = x.shape
    return x.reshape(n, h // 2, 2, w // 2, 2, c).mean(axis=(2, 4))


def discriminators_merged(p, x_nhwc):
    """Both multi-resolution discriminators (vae + lr), merged along cout.

    Returns per-scale logits of shape (N, Ho, Wo, 2): channel 0 = d_vae,
    channel 1 = d_lr (block-diagonal head weights keep them independent).
    """
    h0 = conv2d_pallas(x_nhwc, p["s0a"], 32, 3, 2, 1, "lrelu")
    o0 = conv2d_pallas(h0, p["s0b"], 2, 3, 1, 1, "none")
    x_ds = _avg_pool2_nhwc(x_nhwc)
    h1 = conv2d_pallas(x_ds, p["s1a"], 32, 3, 2, 1, "lrelu")
    o1 = conv2d_pallas(h1, p["s1b"], 2, 3, 1, 1, "none")
    return o0, o1


# ----------------------------------------------------------------------------
# BiCycleGAN forward (jitted end-to-end)
# ----------------------------------------------------------------------------
def reparametrize(mu, logvar, key):
    std = jnp.exp(logvar / 2)
    eps = jax.random.normal(key, mu.shape, mu.dtype)
    return mu + std * eps          # == torch.normal(mu, std)


def bicycle_gan_forward(params, real_a, real_b, rng):
    k_eps, k_samp = jax.random.split(rng)
    bsz = real_a.shape[0]

    # NCHW -> NHWC once at the boundary.
    a_nhwc = jnp.transpose(real_a, (0, 2, 3, 1))
    b_nhwc = jnp.transpose(real_b, (0, 2, 3, 1))

    real_mu, real_log_var = encoder(params["enc"], b_nhwc)
    encoded_z = reparametrize(real_mu, real_log_var, k_eps)
    sampled_z = jax.random.uniform(
        k_samp, (bsz, LATENT_DIM), real_a.dtype)   # torch.rand (per reference)

    # Batch the two generator passes (identical weights, independent z).
    a2 = jnp.concatenate([a_nhwc, a_nhwc], axis=0)
    z2 = jnp.concatenate([encoded_z, sampled_z], axis=0)
    gen_out = generator(params["gen"], a2, z2)              # bf16 NHWC
    fake_b_nhwc, sampled_b_nhwc = gen_out[:bsz], gen_out[bsz:]

    fake_mu, fake_log_var = encoder(params["enc"], fake_b_nhwc)

    # Batch real_b / fake_b and both discriminators (d_vae || d_lr along cout).
    disc_in = jnp.concatenate(
        [b_nhwc.astype(jnp.bfloat16), fake_b_nhwc], axis=0)
    o0, o1 = discriminators_merged(params["disc"], disc_in)

    to_nchw = lambda t: jnp.transpose(t, (0, 3, 1, 2)).astype(jnp.float32)
    vae_real = (to_nchw(o0[:bsz, ..., 0:1]), to_nchw(o1[:bsz, ..., 0:1]))
    vae_fake = (to_nchw(o0[bsz:, ..., 0:1]), to_nchw(o1[bsz:, ..., 0:1]))
    lr_real = (to_nchw(o0[:bsz, ..., 1:2]), to_nchw(o1[:bsz, ..., 1:2]))
    lr_fake = (to_nchw(o0[bsz:, ..., 1:2]), to_nchw(o1[bsz:, ..., 1:2]))

    return {
        "real_mu": real_mu, "real_log_var": real_log_var,
        "encoded_z": encoded_z,
        "fake_mu": fake_mu, "fake_log_var": fake_log_var,
        "sampled_z": sampled_z,
        "sampled_b": to_nchw(sampled_b_nhwc),
        "fake_b": to_nchw(fake_b_nhwc),
        "vae_real": vae_real, "vae_fake": vae_fake,
        "lr_fake": lr_fake, "lr_real": lr_real,
    }


bicycle_gan_forward_jit = jax.jit(bicycle_gan_forward)


# ----------------------------------------------------------------------------
if __name__ == "__main__":
    key = jax.random.PRNGKey(0)
    k_params, k_a, k_b, k_fwd = jax.random.split(key, 4)

    params = init_params(k_params)
    c, h, w = IMG_SHAPE
    real_a = jax.random.normal(k_a, (BATCH, c, h, w), jnp.float32)
    real_b = jax.random.normal(k_b, (BATCH, c, h, w), jnp.float32)

    out = bicycle_gan_forward_jit(params, real_a, real_b, k_fwd)
    out = jax.tree_util.tree_map(lambda a: a.block_until_ready(), out)

    # basic shape sanity checks
    assert out["real_mu"].shape == (BATCH, LATENT_DIM)
    assert out["real_log_var"].shape == (BATCH, LATENT_DIM)
    assert out["fake_mu"].shape == (BATCH, LATENT_DIM)
    assert out["fake_b"].shape == (BATCH, c, h, w)
    assert out["sampled_b"].shape == (BATCH, c, h, w)
    assert out["sampled_z"].shape == (BATCH, LATENT_DIM)
    assert out["vae_real"][0].shape == (BATCH, 1, h // 2, w // 2)
    assert out["vae_real"][1].shape == (BATCH, 1, h // 4, w // 4)
    assert out["lr_fake"][0].shape == (BATCH, 1, h // 2, w // 2)
    assert out["lr_fake"][1].shape == (BATCH, 1, h // 4, w // 4)
    assert all(jnp.isfinite(v).all() for v in
               (out["fake_b"], out["sampled_b"], out["real_mu"]))

    print("KERNEL_OK")
</pallas_src>

<mosaic_0001>
module attributes {stable_mosaic.version = 11 : i64} {
  func.func @_linear_kernel(%arg0: i32, %arg1: memref<128x27xbf16, #tpu.memory_space<vmem>>, %arg2: memref<27x128xbf16, #tpu.memory_space<vmem>>, %arg3: memref<1x128xf32, #tpu.memory_space<vmem>>, %arg4: memref<128x128xbf16, #tpu.memory_space<vmem>>) attributes {dimension_semantics = [#tpu.dimension_semantics<parallel>], iteration_bounds = array<i64: 1>, scalar_prefetch = 0 : i64, scratch_operands = 0 : i64, tpu.core_type = #tpu.core_type<tc>, window_params = [{transform_indices = @transform_0, window_bounds = array<i64: 128, 27>}, {pipeline_mode = #tpu.pipeline_mode<synchronous>, transform_indices = @transform_1, window_bounds = array<i64: 27, 128>}, {pipeline_mode = #tpu.pipeline_mode<synchronous>, transform_indices = @transform_2, window_bounds = array<i64: 1, 128>}, {transform_indices = @transform_3, window_bounds = array<i64: 128, 128>}]} {
    %c0 = arith.constant 0 : index
    %c0_0 = arith.constant 0 : index
    %0 = vector.load %arg1[%c0, %c0_0] : memref<128x27xbf16, #tpu.memory_space<vmem>>, vector<128x27xbf16>
    %c0_1 = arith.constant 0 : index
    %c0_2 = arith.constant 0 : index
    %1 = vector.load %arg2[%c0_1, %c0_2] : memref<27x128xbf16, #tpu.memory_space<vmem>>, vector<27x128xbf16>
    %cst = arith.constant dense<0.000000e+00> : vector<128x128xf32>
    %2 = tpu.matmul %0, %1, %cst {dimension_numbers = #tpu.dot_dimension_numbers<[1], [0], [0], [1], [0, 0, 1, 1], [], []>} : vector<128x27xbf16>, vector<27x128xbf16>, vector<128x128xf32> -> vector<128x128xf32>
    %c0_3 = arith.constant 0 : index
    %c0_4 = arith.constant 0 : index
    %3 = vector.load %arg3[%c0_3, %c0_4] : memref<1x128xf32, #tpu.memory_space<vmem>>, vector<1x128xf32>
    %4 = vector.broadcast %3 : vector<1x128xf32> to vector<128x128xf32>
    %5 = arith.addf %2, %4 : vector<128x128xf32>
    %cst_5 = arith.constant 2.000000e-01 : f32
    %6 = vector.broadcast %cst_5 : f32 to vector<128x128xf32>
    %7 = arith.mulf %6, %5 : vector<128x128xf32>
    %8 = arith.maximumf %5, %7 : vector<128x128xf32>
    %9 = arith.truncf %8 : vector<128x128xf32> to vector<128x128xbf16>
    %c0_6 = arith.constant 0 : index
    %c0_7 = arith.constant 0 : index
    %10 = vector.load %arg4[%c0_6, %c0_7] : memref<128x128xbf16, #tpu.memory_space<vmem>>, vector<128x128xbf16>
    tpu.vector_store %arg4[%c0_6, %c0_7], %9 {strides = array<i32>} : memref<128x128xbf16, #tpu.memory_space<vmem>>, vector<128x128xbf16>,
    return
  }
  func.func @transform_0(%arg0: i32) -> (i32, i32) {
    %c0_i32 = arith.constant 0 : i32
    %c0_i32_0 = arith.constant 0 : i32
    return %arg0, %c0_i32 : i32, i32
  }
  func.func @transform_1(%arg0: i32) -> (i32, i32) {
    %c0_i32 = arith.constant 0 : i32
    %c0_i32_0 = arith.constant 0 : i32
    %c0_i32_1 = arith.constant 0 : i32
    return %c0_i32, %c0_i32_0 : i32, i32
  }
  func.func @transform_2(%arg0: i32) -> (i32, i32) {
    %c0_i32 = arith.constant 0 : i32
    %c0_i32_0 = arith.constant 0 : i32
    %c0_i32_1 = arith.constant 0 : i32
    return %c0_i32, %c0_i32_0 : i32, i32
  }
  func.func @transform_3(%arg0: i32) -> (i32, i32) {
    %c0_i32 = arith.constant 0 : i32
    %c0_i32_0 = arith.constant 0 : i32
    return %arg0, %c0_i32 : i32, i32
  }
}

module attributes {stable_mosaic.version = 11 : i64} {
  func.func @_linear_kernel(%arg0: i32, %arg1: memref<32x144xbf16, #tpu.memory_space<vmem>>, %arg2: memref<144x128xbf16, #tpu.memory_space<vmem>>, %arg3: memref<1x128xf32, #tpu.memory_space<vmem>>, %arg4: memref<32x128xbf16, #tpu.memory_space<vmem>>) attributes {dimension_semantics = [#tpu.dimension_semantics<parallel>], iteration_bounds = array<i64: 1>, scalar_prefetch = 0 : i64, scratch_operands = 0 : i64, tpu.core_type = #tpu.core_type<tc>, window_params = [{transform_indices = @transform_0, window_bounds = array<i64: 32, 144>}, {pipeline_mode = #tpu.pipeline_mode<synchronous>, transform_indices = @transform_1, window_bounds = array<i64: 144, 128>}, {pipeline_mode = #tpu.pipeline_mode<synchronous>, transform_indices = @transform_2, window_bounds = array<i64: 1, 128>}, {transform_indices = @transform_3, window_bounds = array<i64: 32, 128>}]} {
    %c0 = arith.constant 0 : index
    %c0_0 = arith.constant 0 : index
    %0 = vector.load %arg1[%c0, %c0_0] : memref<32x144xbf16, #tpu.memory_space<vmem>>, vector<32x144xbf16>
    %c0_1 = arith.constant 0 : index
    %c0_2 = arith.constant 0 : index
    %1 = vector.load %arg2[%c0_1, %c0_2] : memref<144x128xbf16, #tpu.memory_space<vmem>>, vector<144x128xbf16>
    %cst = arith.constant dense<0.000000e+00> : vector<32x128xf32>
    %2 = tpu.matmul %0, %1, %cst {dimension_numbers = #tpu.dot_dimension_numbers<[1], [0], [0], [1], [0, 0, 1, 1], [], []>} : vector<32x144xbf16>, vector<144x128xbf16>, vector<32x128xf32> -> vector<32x128xf32>
    %c0_3 = arith.constant 0 : index
    %c0_4 = arith.constant 0 : index
    %3 = vector.load %arg3[%c0_3, %c0_4] : memref<1x128xf32, #tpu.memory_space<vmem>>, vector<1x128xf32>
    %4 = vector.broadcast %3 : vector<1x128xf32> to vector<32x128xf32>
    %5 = arith.addf %2, %4 : vector<32x128xf32>
    %cst_5 = arith.constant 2.000000e-01 : f32
    %6 = vector.broadcast %cst_5 : f32 to vector<32x128xf32>
    %7 = arith.mulf %6, %5 : vector<32x128xf32>
    %8 = arith.maximumf %5, %7 : vector<32x128xf32>
    %9 = arith.truncf %8 : vector<32x128xf32> to vector<32x128xbf16>
    %c0_6 = arith.constant 0 : index
    %c0_7 = arith.constant 0 : index
    %10 = vector.load %arg4[%c0_6, %c0_7] : memref<32x128xbf16, #tpu.memory_space<vmem>>, vector<32x128xbf16>
    tpu.vector_store %arg4[%c0_6, %c0_7], %9 {strides = array<i32>} : memref<32x128xbf16, #tpu.memory_space<vmem>>, vector<32x128xbf16>,
    return
  }
  func.func @transform_0(%arg0: i32) -> (i32, i32) {
    %c0_i32 = arith.constant 0 : i32
    %c0_i32_0 = arith.constant 0 : i32
    return %arg0, %c0_i32 : i32, i32
  }
  func.func @transform_1(%arg0: i32) -> (i32, i32) {
    %c0_i32 = arith.constant 0 : i32
    %c0_i32_0 = arith.constant 0 : i32
    %c0_i32_1 = arith.constant 0 : i32
    return %c0_i32, %c0_i32_0 : i32, i32
  }
  func.func @transform_2(%arg0: i32) -> (i32, i32) {
    %c0_i32 = arith.constant 0 : i32
    %c0_i32_0 = arith.constant 0 : i32
    %c0_i32_1 = arith.constant 0 : i32
    return %c0_i32, %c0_i32_0 : i32, i32
  }
  func.func @transform_3(%arg0: i32) -> (i32, i32) {
    %c0_i32 = arith.constant 0 : i32
    %c0_i32_0 = arith.constant 0 : i32
    return %arg0, %c0_i32 : i32, i32
  }
}

module attributes {stable_mosaic.version = 11 : i64} {
  func.func @_linear_kernel(%arg0: i32, %arg1: memref<2x512xbf16, #tpu.memory_space<vmem>>, %arg2: memref<512x128xbf16, #tpu.memory_space<vmem>>, %arg3: memref<1x128xf32, #tpu.memory_space<vmem>>, %arg4: memref<2x128xbf16, #tpu.memory_space<vmem>>) attributes {dimension_semantics = [#tpu.dimension_semantics<parallel>], iteration_bounds = array<i64: 1>, scalar_prefetch = 0 : i64, scratch_operands = 0 : i64, tpu.core_type = #tpu.core_type<tc>, window_params = [{transform_indices = @transform_0, window_bounds = array<i64: 2, 512>}, {pipeline_mode = #tpu.pipeline_mode<synchronous>, transform_indices = @transform_1, window_bounds = array<i64: 512, 128>}, {pipeline_mode = #tpu.pipeline_mode<synchronous>, transform_indices = @transform_2, window_bounds = array<i64: 1, 128>}, {transform_indices = @transform_3, window_bounds = array<i64: 2, 128>}]} {
    %c0 = arith.constant 0 : index
    %c0_0 = arith.constant 0 : index
    %0 = vector.load %arg1[%c0, %c0_0] : memref<2x512xbf16, #tpu.memory_space<vmem>>, vector<2x512xbf16>
    %c0_1 = arith.constant 0 : index
    %c0_2 = arith.constant 0 : index
    %1 = vector.load %arg2[%c0_1, %c0_2] : memref<512x128xbf16, #tpu.memory_space<vmem>>, vector<512x128xbf16>
    %cst = arith.constant dense<0.000000e+00> : vector<2x128xf32>
    %2 = tpu.matmul %0, %1, %cst {dimension_numbers = #tpu.dot_dimension_numbers<[1], [0], [0], [1], [0, 0, 1, 1], [], []>} : vector<2x512xbf16>, vector<512x128xbf16>, vector<2x128xf32> -> vector<2x128xf32>
    %c0_3 = arith.constant 0 : index
    %c0_4 = arith.constant 0 : index
    %3 = vector.load %arg3[%c0_3, %c0_4] : memref<1x128xf32, #tpu.memory_space<vmem>>, vector<1x128xf32>
    %4 = vector.broadcast %3 : vector<1x128xf32> to vector<2x128xf32>
    %5 = arith.addf %2, %4 : vector<2x128xf32>
    %6 = arith.truncf %5 : vector<2x128xf32> to vector<2x128xbf16>
    %c0_5 = arith.constant 0 : index
    %c0_6 = arith.constant 0 : index
    %7 = vector.load %arg4[%c0_5, %c0_6] : memref<2x128xbf16, #tpu.memory_space<vmem>>, vector<2x128xbf16>
    tpu.vector_store %arg4[%c0_5, %c0_6], %6 {strides = array<i32>} : memref<2x128xbf16, #tpu.memory_space<vmem>>, vector<2x128xbf16>,
    return
  }
  func.func @transform_0(%arg0: i32) -> (i32, i32) {
    %c0_i32 = arith.constant 0 : i32
    %c0_i32_0 = arith.constant 0 : i32
    return %arg0, %c0_i32 : i32, i32
  }
  func.func @transform_1(%arg0: i32) -> (i32, i32) {
    %c0_i32 = arith.constant 0 : i32
    %c0_i32_0 = arith.constant 0 : i32
    %c0_i32_1 = arith.constant 0 : i32
    return %c0_i32, %c0_i32_0 : i32, i32
  }
  func.func @transform_2(%arg0: i32) -> (i32, i32) {
    %c0_i32 = arith.constant 0 : i32
    %c0_i32_0 = arith.constant 0 : i32
    %c0_i32_1 = arith.constant 0 : i32
    return %c0_i32, %c0_i32_0 : i32, i32
  }
  func.func @transform_3(%arg0: i32) -> (i32, i32) {
    %c0_i32 = arith.constant 0 : i32
    %c0_i32_0 = arith.constant 0 : i32
    return %arg0, %c0_i32 : i32, i32
  }
}

module attributes {stable_mosaic.version = 11 : i64} {
  func.func @_linear_kernel(%arg0: i32, %arg1: memref<1024x99xbf16, #tpu.memory_space<vmem>>, %arg2: memref<99x128xbf16, #tpu.memory_space<vmem>>, %arg3: memref<1x128xf32, #tpu.memory_space<vmem>>, %arg4: memref<1024x128xbf16, #tpu.memory_space<vmem>>) attributes {dimension_semantics = [#tpu.dimension_semantics<parallel>], iteration_bounds = array<i64: 1>, scalar_prefetch = 0 : i64, scratch_operands = 0 : i64, tpu.core_type = #tpu.core_type<tc>, window_params = [{transform_indices = @transform_0, window_bounds = array<i64: 1024, 99>}, {pipeline_mode = #tpu.pipeline_mode<synchronous>, transform_indices = @transform_1, window_bounds = array<i64: 99, 128>}, {pipeline_mode = #tpu.pipeline_mode<synchronous>, transform_indices = @transform_2, window_bounds = array<i64: 1, 128>}, {transform_indices = @transform_3, window_bounds = array<i64: 1024, 128>}]} {
    %c0 = arith.constant 0 : index
    %c0_0 = arith.constant 0 : index
    %0 = vector.load %arg1[%c0, %c0_0] : memref<1024x99xbf16, #tpu.memory_space<vmem>>, vector<1024x99xbf16>
    %c0_1 = arith.constant 0 : index
    %c0_2 = arith.constant 0 : index
    %1 = vector.load %arg2[%c0_1, %c0_2] : memref<99x128xbf16, #tpu.memory_space<vmem>>, vector<99x128xbf16>
    %cst = arith.constant dense<0.000000e+00> : vector<1024x128xf32>
    %2 = tpu.matmul %0, %1, %cst {dimension_numbers = #tpu.dot_dimension_numbers<[1], [0], [0], [1], [0, 0, 1, 1], [], []>} : vector<1024x99xbf16>, vector<99x128xbf16>, vector<1024x128xf32> -> vector<1024x128xf32>
    %c0_3 = arith.constant 0 : index
    %c0_4 = arith.constant 0 : index
    %3 = vector.load %arg3[%c0_3, %c0_4] : memref<1x128xf32, #tpu.memory_space<vmem>>, vector<1x128xf32>
    %4 = vector.broadcast %3 : vector<1x128xf32> to vector<1024x128xf32>
    %5 = arith.addf %2, %4 : vector<1024x128xf32>
    %cst_5 = arith.constant 2.000000e-01 : f32
    %6 = vector.broadcast %cst_5 : f32 to vector<1024x128xf32>
    %7 = arith.mulf %6, %5 : vector<1024x128xf32>
    %8 = arith.maximumf %5, %7 : vector<1024x128xf32>
    %9 = arith.truncf %8 : vector<1024x128xf32> to vector<1024x128xbf16>
    %c0_6 = arith.constant 0 : index
    %c0_7 = arith.constant 0 : index
    %10 = vector.load %arg4[%c0_6, %c0_7] : memref<1024x128xbf16, #tpu.memory_space<vmem>>, vector<1024x128xbf16>
    tpu.vector_store %arg4[%c0_6, %c0_7], %9 {strides = array<i32>} : memref<1024x128xbf16, #tpu.memory_space<vmem>>, vector<1024x128xbf16>,
    return
  }
  func.func @transform_0(%arg0: i32) -> (i32, i32) {
    %c0_i32 = arith.constant 0 : i32
    %c0_i32_0 = arith.constant 0 : i32
    return %arg0, %c0_i32 : i32, i32
  }
  func.func @transform_1(%arg0: i32) -> (i32, i32) {
    %c0_i32 = arith.constant 0 : i32
    %c0_i32_0 = arith.constant 0 : i32
    %c0_i32_1 = arith.constant 0 : i32
    return %c0_i32, %c0_i32_0 : i32, i32
  }
  func.func @transform_2(%arg0: i32) -> (i32, i32) {
    %c0_i32 = arith.constant 0 : i32
    %c0_i32_0 = arith.constant 0 : i32
    %c0_i32_1 = arith.constant 0 : i32
    return %c0_i32, %c0_i32_0 : i32, i32
  }
  func.func @transform_3(%arg0: i32) -> (i32, i32) {
    %c0_i32 = arith.constant 0 : i32
    %c0_i32_0 = arith.constant 0 : i32
    return %arg0, %c0_i32 : i32, i32
  }
}

module attributes {stable_mosaic.version = 11 : i64} {
  func.func @_linear_kernel(%arg0: i32, %arg1: memref<1024x288xbf16, #tpu.memory_space<vmem>>, %arg2: memref<288x128xbf16, #tpu.memory_space<vmem>>, %arg3: memref<1x128xf32, #tpu.memory_space<vmem>>, %arg4: memref<1024x128xbf16, #tpu.memory_space<vmem>>) attributes {dimension_semantics = [#tpu.dimension_semantics<parallel>], iteration_bounds = array<i64: 1>, scalar_prefetch = 0 : i64, scratch_operands = 0 : i64, tpu.core_type = #tpu.core_type<tc>, window_params = [{transform_indices = @transform_0, window_bounds = array<i64: 1024, 288>}, {pipeline_mode = #tpu.pipeline_mode<synchronous>, transform_indices = @transform_1, window_bounds = array<i64: 288, 128>}, {pipeline_mode = #tpu.pipeline_mode<synchronous>, transform_indices = @transform_2, window_bounds = array<i64: 1, 128>}, {transform_indices = @transform_3, window_bounds = array<i64: 1024, 128>}]} {
    %c0 = arith.constant 0 : index
    %c0_0 = arith.constant 0 : index
    %0 = vector.load %arg1[%c0, %c0_0] : memref<1024x288xbf16, #tpu.memory_space<vmem>>, vector<1024x288xbf16>
    %c0_1 = arith.constant 0 : index
    %c0_2 = arith.constant 0 : index
    %1 = vector.load %arg2[%c0_1, %c0_2] : memref<288x128xbf16, #tpu.memory_space<vmem>>, vector<288x128xbf16>
    %cst = arith.constant dense<0.000000e+00> : vector<1024x128xf32>
    %2 = tpu.matmul %0, %1, %cst {dimension_numbers = #tpu.dot_dimension_numbers<[1], [0], [0], [1], [0, 0, 1, 1], [], []>} : vector<1024x288xbf16>, vector<288x128xbf16>, vector<1024x128xf32> -> vector<1024x128xf32>
    %c0_3 = arith.constant 0 : index
    %c0_4 = arith.constant 0 : index
    %3 = vector.load %arg3[%c0_3, %c0_4] : memref<1x128xf32, #tpu.memory_space<vmem>>, vector<1x128xf32>
    %4 = vector.broadcast %3 : vector<1x128xf32> to vector<1024x128xf32>
    %5 = arith.addf %2, %4 : vector<1024x128xf32>
    %cst_5 = arith.constant 2.000000e-01 : f32
    %6 = vector.broadcast %cst_5 : f32 to vector<1024x128xf32>
    %7 = arith.mulf %6, %5 : vector<1024x128xf32>
    %8 = arith.maximumf %5, %7 : vector<1024x128xf32>
    %9 = arith.truncf %8 : vector<1024x128xf32> to vector<1024x128xbf16>
    %c0_6 = arith.constant 0 : index
    %c0_7 = arith.constant 0 : index
    %10 = vector.load %arg4[%c0_6, %c0_7] : memref<1024x128xbf16, #tpu.memory_space<vmem>>, vector<1024x128xbf16>
    tpu.vector_store %arg4[%c0_6, %c0_7], %9 {strides = array<i32>} : memref<1024x128xbf16, #tpu.memory_space<vmem>>, vector<1024x128xbf16>,
    return
  }
  func.func @transform_0(%arg0: i32) -> (i32, i32) {
    %c0_i32 = arith.constant 0 : i32
    %c0_i32_0 = arith.constant 0 : i32
    return %arg0, %c0_i32 : i32, i32
  }
  func.func @transform_1(%arg0: i32) -> (i32, i32) {
    %c0_i32 = arith.constant 0 : i32
    %c0_i32_0 = arith.constant 0 : i32
    %c0_i32_1 = arith.constant 0 : i32
    return %c0_i32, %c0_i32_0 : i32, i32
  }
  func.func @transform_2(%arg0: i32) -> (i32, i32) {
    %c0_i32 = arith.constant 0 : i32
    %c0_i32_0 = arith.constant 0 : i32
    %c0_i32_1 = arith.constant 0 : i32
    return %c0_i32, %c0_i32_0 : i32, i32
  }
  func.func @transform_3(%arg0: i32) -> (i32, i32) {
    %c0_i32 = arith.constant 0 : i32
    %c0_i32_0 = arith.constant 0 : i32
    return %arg0, %c0_i32 : i32, i32
  }
}

module attributes {stable_mosaic.version = 11 : i64} {
  func.func @_linear_kernel(%arg0: i32, %arg1: memref<1024x288xbf16, #tpu.memory_space<vmem>>, %arg2: memref<288x128xbf16, #tpu.memory_space<vmem>>, %arg3: memref<1x128xf32, #tpu.memory_space<vmem>>, %arg4: memref<1024x128xbf16, #tpu.memory_space<vmem>>) attributes {dimension_semantics = [#tpu.dimension_semantics<parallel>], iteration_bounds = array<i64: 1>, scalar_prefetch = 0 : i64, scratch_operands = 0 : i64, tpu.core_type = #tpu.core_type<tc>, window_params = [{transform_indices = @transform_0, window_bounds = array<i64: 1024, 288>}, {pipeline_mode = #tpu.pipeline_mode<synchronous>, transform_indices = @transform_1, window_bounds = array<i64: 288, 128>}, {pipeline_mode = #tpu.pipeline_mode<synchronous>, transform_indices = @transform_2, window_bounds = array<i64: 1, 128>}, {transform_indices = @transform_3, window_bounds = array<i64: 1024, 128>}]} {
    %c0 = arith.constant 0 : index
    %c0_0 = arith.constant 0 : index
    %0 = vector.load %arg1[%c0, %c0_0] : memref<1024x288xbf16, #tpu.memory_space<vmem>>, vector<1024x288xbf16>
    %c0_1 = arith.constant 0 : index
    %c0_2 = arith.constant 0 : index
    %1 = vector.load %arg2[%c0_1, %c0_2] : memref<288x128xbf16, #tpu.memory_space<vmem>>, vector<288x128xbf16>
    %cst = arith.constant dense<0.000000e+00> : vector<1024x128xf32>
    %2 = tpu.matmul %0, %1, %cst {dimension_numbers = #tpu.dot_dimension_numbers<[1], [0], [0], [1], [0, 0, 1, 1], [], []>} : vector<1024x288xbf16>, vector<288x128xbf16>, vector<1024x128xf32> -> vector<1024x128xf32>
    %c0_3 = arith.constant 0 : index
    %c0_4 = arith.constant 0 : index
    %3 = vector.load %arg3[%c0_3, %c0_4] : memref<1x128xf32, #tpu.memory_space<vmem>>, vector<1x128xf32>
    %4 = vector.broadcast %3 : vector<1x128xf32> to vector<1024x128xf32>
    %5 = arith.addf %2, %4 : vector<1024x128xf32>
    %6 = math.tanh %5 : vector<1024x128xf32>
    %7 = arith.truncf %6 : vector<1024x128xf32> to vector<1024x128xbf16>
    %c0_5 = arith.constant 0 : index
    %c0_6 = arith.constant 0 : index
    %8 = vector.load %arg4[%c0_5, %c0_6] : memref<1024x128xbf16, #tpu.memory_space<vmem>>, vector<1024x128xbf16>
    tpu.vector_store %arg4[%c0_5, %c0_6], %7 {strides = array<i32>} : memref<1024x128xbf16, #tpu.memory_space<vmem>>, vector<1024x128xbf16>,
    return
  }
  func.func @transform_0(%arg0: i32) -> (i32, i32) {
    %c0_i32 = arith.constant 0 : i32
    %c0_i32_0 = arith.constant 0 : i32
    return %arg0, %c0_i32 : i32, i32
  }
  func.func @transform_1(%arg0: i32) -> (i32, i32) {
    %c0_i32 = arith.constant 0 : i32
    %c0_i32_0 = arith.constant 0 : i32
    %c0_i32_1 = arith.constant 0 : i32
    return %c0_i32, %c0_i32_0 : i32, i32
  }
  func.func @transform_2(%arg0: i32) -> (i32, i32) {
    %c0_i32 = arith.constant 0 : i32
    %c0_i32_0 = arith.constant 0 : i32
    %c0_i32_1 = arith.constant 0 : i32
    return %c0_i32, %c0_i32_0 : i32, i32
  }
  func.func @transform_3(%arg0: i32) -> (i32, i32) {
    %c0_i32 = arith.constant 0 : i32
    %c0_i32_0 = arith.constant 0 : i32
    return %arg0, %c0_i32 : i32, i32
  }
}

module attributes {stable_mosaic.version = 11 : i64} {
  func.func @_linear_kernel(%arg0: i32, %arg1: memref<64x27xbf16, #tpu.memory_space<vmem>>, %arg2: memref<27x128xbf16, #tpu.memory_space<vmem>>, %arg3: memref<1x128xf32, #tpu.memory_space<vmem>>, %arg4: memref<64x128xbf16, #tpu.memory_space<vmem>>) attributes {dimension_semantics = [#tpu.dimension_semantics<parallel>], iteration_bounds = array<i64: 1>, scalar_prefetch = 0 : i64, scratch_operands = 0 : i64, tpu.core_type = #tpu.core_type<tc>, window_params = [{transform_indices = @transform_0, window_bounds = array<i64: 64, 27>}, {pipeline_mode = #tpu.pipeline_mode<synchronous>, transform_indices = @transform_1, window_bounds = array<i64: 27, 128>}, {pipeline_mode = #tpu.pipeline_mode<synchronous>, transform_indices = @transform_2, window_bounds = array<i64: 1, 128>}, {transform_indices = @transform_3, window_bounds = array<i64: 64, 128>}]} {
    %c0 = arith.constant 0 : index
    %c0_0 = arith.constant 0 : index
    %0 = vector.load %arg1[%c0, %c0_0] : memref<64x27xbf16, #tpu.memory_space<vmem>>, vector<64x27xbf16>
    %c0_1 = arith.constant 0 : index
    %c0_2 = arith.constant 0 : index
    %1 = vector.load %arg2[%c0_1, %c0_2] : memref<27x128xbf16, #tpu.memory_space<vmem>>, vector<27x128xbf16>
    %cst = arith.constant dense<0.000000e+00> : vector<64x128xf32>
    %2 = tpu.matmul %0, %1, %cst {dimension_numbers = #tpu.dot_dimension_numbers<[1], [0], [0], [1], [0, 0, 1, 1], [], []>} : vector<64x27xbf16>, vector<27x128xbf16>, vector<64x128xf32> -> vector<64x128xf32>
    %c0_3 = arith.constant 0 : index
    %c0_4 = arith.constant 0 : index
    %3 = vector.load %arg3[%c0_3, %c0_4] : memref<1x128xf32, #tpu.memory_space<vmem>>, vector<1x128xf32>
    %4 = vector.broadcast %3 : vector<1x128xf32> to vector<64x128xf32>
    %5 = arith.addf %2, %4 : vector<64x128xf32>
    %cst_5 = arith.constant 2.000000e-01 : f32
    %6 = vector.broadcast %cst_5 : f32 to vector<64x128xf32>
    %7 = arith.mulf %6, %5 : vector<64x128xf32>
    %8 = arith.maximumf %5, %7 : vector<64x128xf32>
    %9 = arith.truncf %8 : vector<64x128xf32> to vector<64x128xbf16>
    %c0_6 = arith.constant 0 : index
    %c0_7 = arith.constant 0 : index
    %10 = vector.load %arg4[%c0_6, %c0_7] : memref<64x128xbf16, #tpu.memory_space<vmem>>, vector<64x128xbf16>
    tpu.vector_store %arg4[%c0_6, %c0_7], %9 {strides = array<i32>} : memref<64x128xbf16, #tpu.memory_space<vmem>>, vector<64x128xbf16>,
    return
  }
  func.func @transform_0(%arg0: i32) -> (i32, i32) {
    %c0_i32 = arith.constant 0 : i32
    %c0_i32_0 = arith.constant 0 : i32
    return %arg0, %c0_i32 : i32, i32
  }
  func.func @transform_1(%arg0: i32) -> (i32, i32) {
    %c0_i32 = arith.constant 0 : i32
    %c0_i32_0 = arith.constant 0 : i32
    %c0_i32_1 = arith.constant 0 : i32
    return %c0_i32, %c0_i32_0 : i32, i32
  }
  func.func @transform_2(%arg0: i32) -> (i32, i32) {
    %c0_i32 = arith.constant 0 : i32
    %c0_i32_0 = arith.constant 0 : i32
    %c0_i32_1 = arith.constant 0 : i32
    return %c0_i32, %c0_i32_0 : i32, i32
  }
  func.func @transform_3(%arg0: i32) -> (i32, i32) {
    %c0_i32 = arith.constant 0 : i32
    %c0_i32_0 = arith.constant 0 : i32
    return %arg0, %c0_i32 : i32, i32
  }
}

module attributes {stable_mosaic.version = 11 : i64} {
  func.func @_linear_kernel(%arg0: i32, %arg1: memref<64x288xbf16, #tpu.memory_space<vmem>>, %arg2: memref<288x128xbf16, #tpu.memory_space<vmem>>, %arg3: memref<1x128xf32, #tpu.memory_space<vmem>>, %arg4: memref<64x128xbf16, #tpu.memory_space<vmem>>) attributes {dimension_semantics = [#tpu.dimension_semantics<parallel>], iteration_bounds = array<i64: 1>, scalar_prefetch = 0 : i64, scratch_operands = 0 : i64, tpu.core_type = #tpu.core_type<tc>, window_params = [{transform_indices = @transform_0, window_bounds = array<i64: 64, 288>}, {pipeline_mode = #tpu.pipeline_mode<synchronous>, transform_indices = @transform_1, window_bounds = array<i64: 288, 128>}, {pipeline_mode = #tpu.pipeline_mode<synchronous>, transform_indices = @transform_2, window_bounds = array<i64: 1, 128>}, {transform_indices = @transform_3, window_bounds = array<i64: 64, 128>}]} {
    %c0 = arith.constant 0 : index
    %c0_0 = arith.constant 0 : index
    %0 = vector.load %arg1[%c0, %c0_0] : memref<64x288xbf16, #tpu.memory_space<vmem>>, vector<64x288xbf16>
    %c0_1 = arith.constant 0 : index
    %c0_2 = arith.constant 0 : index
    %1 = vector.load %arg2[%c0_1, %c0_2] : memref<288x128xbf16, #tpu.memory_space<vmem>>, vector<288x128xbf16>
    %cst = arith.constant dense<0.000000e+00> : vector<64x128xf32>
    %2 = tpu.matmul %0, %1, %cst {dimension_numbers = #tpu.dot_dimension_numbers<[1], [0], [0], [1], [0, 0, 1, 1], [], []>} : vector<64x288xbf16>, vector<288x128xbf16>, vector<64x128xf32> -> vector<64x128xf32>
    %c0_3 = arith.constant 0 : index
    %c0_4 = arith.constant 0 : index
    %3 = vector.load %arg3[%c0_3, %c0_4] : memref<1x128xf32, #tpu.memory_space<vmem>>, vector<1x128xf32>
    %4 = vector.broadcast %3 : vector<1x128xf32> to vector<64x128xf32>
    %5 = arith.addf %2, %4 : vector<64x128xf32>
    %6 = arith.truncf %5 : vector<64x128xf32> to vector<64x128xbf16>
    %c0_5 = arith.constant 0 : index
    %c0_6 = arith.constant 0 : index
    %7 = vector.load %arg4[%c0_5, %c0_6] : memref<64x128xbf16, #tpu.memory_space<vmem>>, vector<64x128xbf16>
    tpu.vector_store %arg4[%c0_5, %c0_6], %6 {strides = array<i32>} : memref<64x128xbf16, #tpu.memory_space<vmem>>, vector<64x128xbf16>,
    return
  }
  func.func @transform_0(%arg0: i32) -> (i32, i32) {
    %c0_i32 = arith.constant 0 : i32
    %c0_i32_0 = arith.constant 0 : i32
    return %arg0, %c0_i32 : i32, i32
  }
  func.func @transform_1(%arg0: i32) -> (i32, i32) {
    %c0_i32 = arith.constant 0 : i32
    %c0_i32_0 = arith.constant 0 : i32
    %c0_i32_1 = arith.constant 0 : i32
    return %c0_i32, %c0_i32_0 : i32, i32
  }
  func.func @transform_2(%arg0: i32) -> (i32, i32) {
    %c0_i32 = arith.constant 0 : i32
    %c0_i32_0 = arith.constant 0 : i32
    %c0_i32_1 = arith.constant 0 : i32
    return %c0_i32, %c0_i32_0 : i32, i32
  }
  func.func @transform_3(%arg0: i32) -> (i32, i32) {
    %c0_i32 = arith.constant 0 : i32
    %c0_i32_0 = arith.constant 0 : i32
    return %arg0, %c0_i32 : i32, i32
  }
}

module attributes {stable_mosaic.version = 11 : i64} {
  func.func @_linear_kernel(%arg0: i32, %arg1: memref<256x27xbf16, #tpu.memory_space<vmem>>, %arg2: memref<27x128xbf16, #tpu.memory_space<vmem>>, %arg3: memref<1x128xf32, #tpu.memory_space<vmem>>, %arg4: memref<256x128xbf16, #tpu.memory_space<vmem>>) attributes {dimension_semantics = [#tpu.dimension_semantics<parallel>], iteration_bounds = array<i64: 1>, scalar_prefetch = 0 : i64, scratch_operands = 0 : i64, tpu.core_type = #tpu.core_type<tc>, window_params = [{transform_indices = @transform_0, window_bounds = array<i64: 256, 27>}, {pipeline_mode = #tpu.pipeline_mode<synchronous>, transform_indices = @transform_1, window_bounds = array<i64: 27, 128>}, {pipeline_mode = #tpu.pipeline_mode<synchronous>, transform_indices = @transform_2, window_bounds = array<i64: 1, 128>}, {transform_indices = @transform_3, window_bounds = array<i64: 256, 128>}]} {
    %c0 = arith.constant 0 : index
    %c0_0 = arith.constant 0 : index
    %0 = vector.load %arg1[%c0, %c0_0] : memref<256x27xbf16, #tpu.memory_space<vmem>>, vector<256x27xbf16>
    %c0_1 = arith.constant 0 : index
    %c0_2 = arith.constant 0 : index
    %1 = vector.load %arg2[%c0_1, %c0_2] : memref<27x128xbf16, #tpu.memory_space<vmem>>, vector<27x128xbf16>
    %cst = arith.constant dense<0.000000e+00> : vector<256x128xf32>
    %2 = tpu.matmul %0, %1, %cst {dimension_numbers = #tpu.dot_dimension_numbers<[1], [0], [0], [1], [0, 0, 1, 1], [], []>} : vector<256x27xbf16>, vector<27x128xbf16>, vector<256x128xf32> -> vector<256x128xf32>
    %c0_3 = arith.constant 0 : index
    %c0_4 = arith.constant 0 : index
    %3 = vector.load %arg3[%c0_3, %c0_4] : memref<1x128xf32, #tpu.memory_space<vmem>>, vector<1x128xf32>
    %4 = vector.broadcast %3 : vector<1x128xf32> to vector<256x128xf32>
    %5 = arith.addf %2, %4 : vector<256x128xf32>
    %cst_5 = arith.constant 2.000000e-01 : f32
    %6 = vector.broadcast %cst_5 : f32 to vector<256x128xf32>
    %7 = arith.mulf %6, %5 : vector<256x128xf32>
    %8 = arith.maximumf %5, %7 : vector<256x128xf32>
    %9 = arith.truncf %8 : vector<256x128xf32> to vector<256x128xbf16>
    %c0_6 = arith.constant 0 : index
    %c0_7 = arith.constant 0 : index
    %10 = vector.load %arg4[%c0_6, %c0_7] : memref<256x128xbf16, #tpu.memory_space<vmem>>, vector<256x128xbf16>
    tpu.vector_store %arg4[%c0_6, %c0_7], %9 {strides = array<i32>} : memref<256x128xbf16, #tpu.memory_space<vmem>>, vector<256x128xbf16>,
    return
  }
  func.func @transform_0(%arg0: i32) -> (i32, i32) {
    %c0_i32 = arith.constant 0 : i32
    %c0_i32_0 = arith.constant 0 : i32
    return %arg0, %c0_i32 : i32, i32
  }
  func.func @transform_1(%arg0: i32) -> (i32, i32) {
    %c0_i32 = arith.constant 0 : i32
    %c0_i32_0 = arith.constant 0 : i32
    %c0_i32_1 = arith.constant 0 : i32
    return %c0_i32, %c0_i32_0 : i32, i32
  }
  func.func @transform_2(%arg0: i32) -> (i32, i32) {
    %c0_i32 = arith.constant 0 : i32
    %c0_i32_0 = arith.constant 0 : i32
    %c0_i32_1 = arith.constant 0 : i32
    return %c0_i32, %c0_i32_0 : i32, i32
  }
  func.func @transform_3(%arg0: i32) -> (i32, i32) {
    %c0_i32 = arith.constant 0 : i32
    %c0_i32_0 = arith.constant 0 : i32
    return %arg0, %c0_i32 : i32, i32
  }
}

module attributes {stable_mosaic.version = 11 : i64} {
  func.func @_linear_kernel(%arg0: i32, %arg1: memref<256x288xbf16, #tpu.memory_space<vmem>>, %arg2: memref<288x128xbf16, #tpu.memory_space<vmem>>, %arg3: memref<1x128xf32, #tpu.memory_space<vmem>>, %arg4: memref<256x128xbf16, #tpu.memory_space<vmem>>) attributes {dimension_semantics = [#tpu.dimension_semantics<parallel>], iteration_bounds = array<i64: 1>, scalar_prefetch = 0 : i64, scratch_operands = 0 : i64, tpu.core_type = #tpu.core_type<tc>, window_params = [{transform_indices = @transform_0, window_bounds = array<i64: 256, 288>}, {pipeline_mode = #tpu.pipeline_mode<synchronous>, transform_indices = @transform_1, window_bounds = array<i64: 288, 128>}, {pipeline_mode = #tpu.pipeline_mode<synchronous>, transform_indices = @transform_2, window_bounds = array<i64: 1, 128>}, {transform_indices = @transform_3, window_bounds = array<i64: 256, 128>}]} {
    %c0 = arith.constant 0 : index
    %c0_0 = arith.constant 0 : index
    %0 = vector.load %arg1[%c0, %c0_0] : memref<256x288xbf16, #tpu.memory_space<vmem>>, vector<256x288xbf16>
    %c0_1 = arith.constant 0 : index
    %c0_2 = arith.constant 0 : index
    %1 = vector.load %arg2[%c0_1, %c0_2] : memref<288x128xbf16, #tpu.memory_space<vmem>>, vector<288x128xbf16>
    %cst = arith.constant dense<0.000000e+00> : vector<256x128xf32>
    %2 = tpu.matmul %0, %1, %cst {dimension_numbers = #tpu.dot_dimension_numbers<[1], [0], [0], [1], [0, 0, 1, 1], [], []>} : vector<256x288xbf16>, vector<288x128xbf16>, vector<256x128xf32> -> vector<256x128xf32>
    %c0_3 = arith.constant 0 : index
    %c0_4 = arith.constant 0 : index
    %3 = vector.load %arg3[%c0_3, %c0_4] : memref<1x128xf32, #tpu.memory_space<vmem>>, vector<1x128xf32>
    %4 = vector.broadcast %3 : vector<1x128xf32> to vector<256x128xf32>
    %5 = arith.addf %2, %4 : vector<256x128xf32>
    %6 = arith.truncf %5 : vector<256x128xf32> to vector<256x128xbf16>
    %c0_5 = arith.constant 0 : index
    %c0_6 = arith.constant 0 : index
    %7 = vector.load %arg4[%c0_5, %c0_6] : memref<256x128xbf16, #tpu.memory_space<vmem>>, vector<256x128xbf16>
    tpu.vector_store %arg4[%c0_5, %c0_6], %6 {strides = array<i32>} : memref<256x128xbf16, #tpu.memory_space<vmem>>, vector<256x128xbf16>,
    return
  }
  func.func @transform_0(%arg0: i32) -> (i32, i32) {
    %c0_i32 = arith.constant 0 : i32
    %c0_i32_0 = arith.constant 0 : i32
    return %arg0, %c0_i32 : i32, i32
  }
  func.func @transform_1(%arg0: i32) -> (i32, i32) {
    %c0_i32 = arith.constant 0 : i32
    %c0_i32_0 = arith.constant 0 : i32
    %c0_i32_1 = arith.constant 0 : i32
    return %c0_i32, %c0_i32_0 : i32, i32
  }
  func.func @transform_2(%arg0: i32) -> (i32, i32) {
    %c0_i32 = arith.constant 0 : i32
    %c0_i32_0 = arith.constant 0 : i32
    %c0_i32_1 = arith.constant 0 : i32
    return %c0_i32, %c0_i32_0 : i32, i32
  }
  func.func @transform_3(%arg0: i32) -> (i32, i32) {
    %c0_i32 = arith.constant 0 : i32
    %c0_i32_0 = arith.constant 0 : i32
    return %arg0, %c0_i32 : i32, i32
  }
}

</mosaic_0001>

<llo_original>
// kernel: bicycle_gan_forward.15
$region0: #{bicycle_gan_forward.15}
  #allocation0 [shape = 'u32[]', space=smem, size = 0x4, offset = 0x4, fixed_abs, tag = 'smem constant byte address 0x4 - core index']
  #allocation1 [shape = 'u32[144,128]{1,0:T(1,128)}', space=vmem, size = 0x12000, scoped, tag = 'internal scratch']
  %s0 = inlined_call_operand.vmem [shape: bf16[128,27], index: 0, kind: input, shape index: {}]
  %s1 = inlined_call_operand.vmem [shape: bf16[27,128], index: 1, kind: input, shape index: {}]
  %s2 = inlined_call_operand.vmem [shape: f32[1,128], index: 2, kind: input, shape index: {}]
  %s3 = inlined_call_operand.vmem [shape: bf16[128,128], index: 3, kind: output, shape index: {}]
  %s4 = sld [smem:[#allocation0]]
  $region22: #{bicycle_gan_forward.15} parent=0
    _
  %s6 = ssub.s32 1, %s4
  %s7 = scalar_select 0, %s6, %s4
  // Predicated region
  $region2: #{bicycle_gan_forward.15} parent=0 // pred_check
    _
  $region3: #{bicycle_gan_forward.15} parent=0 // pred_check_branch
    %9 = sbr.rel (0) target = $region5
  $region4: #{bicycle_gan_forward.15} parent=0 // pred_region
    _
  $region5: #{bicycle_gan_forward.15} parent=0 // pred_fallthru
    _
  // Predicated region
  $region6: #{bicycle_gan_forward.15} parent=0 // pred_check
    _
  $region7: #{bicycle_gan_forward.15} parent=0 // pred_check_branch
    %11 = sbr.rel (0) target = $region9
  $region8: #{bicycle_gan_forward.15} parent=0 // pred_region
    _
  $region9: #{bicycle_gan_forward.15} parent=0 // pred_fallthru
    _
  // Predicated region
  $region10: #{bicycle_gan_forward.15} parent=0 // pred_check
    _
  $region11: #{bicycle_gan_forward.15} parent=0 // pred_check_branch
    %13 = sbr.rel (0) target = $region13
  $region12: #{bicycle_gan_forward.15} parent=0 // pred_region
    _
  $region13: #{bicycle_gan_forward.15} parent=0 // pred_fallthru
    _
  %v15 = vld [vmem:[%s0] sm:$0xf]
  %v16 = vld [vmem:[%s0 + $0x4] sm:$0xf]
  %v17 = vld [vmem:[%s0 + $0x8] sm:$0xf]
  %v18 = vld [vmem:[%s0 + $0xc] sm:$0xf]
  %v19 = vld [vmem:[%s0 + $0x10] sm:$0xf]
  %v20 = vld [vmem:[%s0 + $0x14] sm:$0xf]
  %v21 = vld [vmem:[%s0 + $0x18] sm:$0xf]
  %v22 = vld [vmem:[%s0 + $0x1c] sm:$0xf]
  %v23 = vld [vmem:[%s0 + $0x20] sm:$0xf]
  %v24 = vld [vmem:[%s0 + $0x24] sm:$0xf]
  %v25 = vld [vmem:[%s0 + $0x28] sm:$0xf]
  %v26 = vld [vmem:[%s0 + $0x2c] sm:$0xf]
  %v27 = vld [vmem:[%s0 + $0x30] sm:$0xf]
  %v28 = vld [vmem:[%s0 + $0x34] sm:$0xf]
  %v29 = vld [vmem:[%s0 + $0x38] sm:$0xf]
  %v30 = vld [vmem:[%s0 + $0x3c] sm:$0xf]
  %v31 = vld [vmem:[%s1] sm:$0xf]
  %v32 = vld [vmem:[%s1 + $0x4] sm:$0xf]
  %v33 = vld [vmem:[%s1 + $0x8] sm:$0xf]
  %v34 = vld [vmem:[%s1 + $0xc] sm:$0x3]
  %v35 = vld [vmem:[%s2] sm:$0x1]
  %v37 = vlaneseq
  %v38 = vshrl.u32 %v37, 7
  %v39 = vsub.s32 0, %v38
  %v40 = vrot.slane %v35, %v39
  %v58 = vunpack.c.l.b16 %v15
  %v59 = vunpack.c.l.b16 %v16
  %v60 = vunpack.c.l.b16 %v17
  %v61 = vunpack.c.l.b16 %v18
  %v62 = vunpack.c.l.b16 %v19
  %v63 = vunpack.c.l.b16 %v20
  %v64 = vunpack.c.l.b16 %v21
  %v65 = vunpack.c.l.b16 %v22
  %v66 = vunpack.c.l.b16 %v23
  %v67 = vunpack.c.l.b16 %v24
  %v68 = vunpack.c.l.b16 %v25
  %v69 = vunpack.c.l.b16 %v26
  %v70 = vunpack.c.l.b16 %v27
  %v71 = vunpack.c.l.b16 %v28
  %v72 = vunpack.c.l.b16 %v29
  %v73 = vunpack.c.l.b16 %v30
  %v74 = vpack.c.b16 %v59, %v58
  %v75 = vpack.c.b16 %v61, %v60
  %v76 = vpack.c.b16 %v63, %v62
  %v77 = vpack.c.b16 %v65, %v64
  %v78 = vpack.c.b16 %v67, %v66
  %v79 = vpack.c.b16 %v69, %v68
  %v80 = vpack.c.b16 %v71, %v70
  %v81 = vpack.c.b16 %v73, %v72
  %v86 = vunpack.c.l.b16 %v31
  %v87 = vunpack.c.l.b16 %v32
  %v88 = vunpack.c.l.b16 %v33
  %v89 = vunpack.c.l.b16 %v34
  %v90 = vpack.c.b16 %v87, %v86
  %v91 = vpack.c.b16 %v89, %v88
  %vm93 = vcmask 220160
  %v95 = vsel %vm93, %v74, 0
  %v98 = vsel %vm93, %v75, 0
  %v101 = vsel %vm93, %v76, 0
  %v104 = vsel %vm93, %v77, 0
  %v107 = vsel %vm93, %v78, 0
  %v110 = vsel %vm93, %v79, 0
  %v113 = vsel %vm93, %v80, 0
  %v116 = vsel %vm93, %v81, 0
  %vm118 = vcmask 1044480
  %vm119 = vcmask 1045504
  %v120 = vsel %vm118, 4294967295, 65535
  %v121 = vsel %vm119, %v120, 0
  %v123 = vand.u32 %v91, %v121
  %125 = vmatprep.subr.bf16.mxu0 0
  %126 = vmatpush1.bf16.msra.mxu0 0
  %127 = vmatprep.subr.bf16.mxu0 0
  %128 = vmatpush1.bf16.msra.mxu0 0
  %129 = vmatprep.subr.bf16.mxu0 0
  %130 = vmatpush1.bf16.msra.mxu0 0
  %131 = vmatprep.subr.bf16.mxu0 0
  %132 = vmatpush1.bf16.msra.mxu0 0
  %133 = vmatprep.subr.bf16.mxu0 0
  %134 = vmatpush1.bf16.msra.mxu0 0
  %135 = vmatprep.subr.bf16.mxu0 0
  %136 = vmatpush1.bf16.msra.mxu0 0
  %137 = vmatprep.subr.bf16.mxu0 0
  %138 = vmatpush1.bf16.msra.mxu0 %v123
  %139 = vmatprep.subr.bf16.mxu0 0
  %140 = vmatpush1.bf16.msra.mxu0 %v90
  %141 = vmatprep.subr.bf16.mxu0 0
  %142 = vmatpush2.bf16.msra.mxu0 0
  %143 = vmatprep.subr.bf16.mxu0 0
  %144 = vmatpush2.bf16.msra.mxu0 0
  %145 = vmatprep.subr.bf16.mxu0 0
  %146 = vmatpush2.bf16.msra.mxu0 0
  %147 = vmatprep.subr.bf16.mxu0 0
  %148 = vmatpush2.bf16.msra.mxu0 0
  %149 = vmatprep.subr.bf16.mxu0 0
  %150 = vmatpush2.bf16.msra.mxu0 0
  %151 = vmatprep.subr.bf16.mxu0 0
  %152 = vmatpush2.bf16.msra.mxu0 0
  %153 = vmatprep.subr.bf16.mxu0 0
  %154 = vmatpush2.bf16.msra.mxu0 0
  %155 = vmatprep.subr.bf16.mxu0 0
  %156 = vmatpush2.bf16.msra.mxu0 0
  %157 = vmatprep.mubr.bf16.mxu0 0
  %158 = vmatmul.mubr.bf16.gmra.mxu0 %v95
  %v159 = vpop.f32.mrf.mxu0
  %v160 = vadd.f32 %v40, %v159
  %v161 = vpop.f32.mrf.mxu0
  %v162 = vpop.f32.mrf.mxu0
  %v163 = vadd.f32 %v40, %v162
  %v164 = vpop.f32.mrf.mxu0
  %165 = vmatprep.mubr.bf16.mxu0 0
  %166 = vmatmul.mubr.bf16.gmra.mxu0 %v98
  %v167 = vpop.f32.mrf.mxu0
  %v168 = vadd.f32 %v40, %v167
  %v169 = vpop.f32.mrf.mxu0
  %v170 = vpop.f32.mrf.mxu0
  %v171 = vadd.f32 %v40, %v170
  %v172 = vpop.f32.mrf.mxu0
  %173 = vmatprep.mubr.bf16.mxu0 0
  %174 = vmatmul.mubr.bf16.gmra.mxu0 %v101
  %v175 = vpop.f32.mrf.mxu0
  %v176 = vadd.f32 %v40, %v175
  %v177 = vpop.f32.mrf.mxu0
  %v178 = vpop.f32.mrf.mxu0
  %v179 = vadd.f32 %v40, %v178
  %v180 = vpop.f32.mrf.mxu0
  %181 = vmatprep.mubr.bf16.mxu0 0
  %182 = vmatmul.mubr.bf16.gmra.mxu0 %v104
  %v183 = vpop.f32.mrf.mxu0
  %v184 = vadd.f32 %v40, %v183
  %v185 = vpop.f32.mrf.mxu0
  %v186 = vpop.f32.mrf.mxu0
  %v187 = vadd.f32 %v40, %v186
  %v188 = vpop.f32.mrf.mxu0
  %189 = vmatprep.mubr.bf16.mxu0 0
  %190 = vmatmul.mubr.bf16.gmra.mxu0 %v107
  %v191 = vpop.f32.mrf.mxu0
  %v192 = vadd.f32 %v40, %v191
  %v193 = vpop.f32.mrf.mxu0
  %v194 = vpop.f32.mrf.mxu0
  %v195 = vadd.f32 %v40, %v194
  %v196 = vpop.f32.mrf.mxu0
  %197 = vmatprep.mubr.bf16.mxu0 0
  %198 = vmatmul.mubr.bf16.gmra.mxu0 %v110
  %v199 = vpop.f32.mrf.mxu0
  %v200 = vadd.f32 %v40, %v199
  %v201 = vpop.f32.mrf.mxu0
  %v202 = vpop.f32.mrf.mxu0
  %v203 = vadd.f32 %v40, %v202
  %v204 = vpop.f32.mrf.mxu0
  %205 = vmatprep.mubr.bf16.mxu0 0
  %206 = vmatmul.mubr.bf16.gmra.mxu0 %v113
  %v207 = vpop.f32.mrf.mxu0
  %v208 = vadd.f32 %v40, %v207
  %v209 = vpop.f32.mrf.mxu0
  %v210 = vpop.f32.mrf.mxu0
  %v211 = vadd.f32 %v40, %v210
  %v212 = vpop.f32.mrf.mxu0
  %213 = vmatprep.mubr.bf16.mxu0 0
  %214 = vmatmul.mubr.bf16.gmra.mxu0 %v116
  %v215 = vpop.f32.mrf.mxu0
  %v216 = vadd.f32 %v40, %v215
  %v217 = vpop.f32.mrf.mxu0
  %v218 = vpop.f32.mrf.mxu0
  %v219 = vadd.f32 %v40, %v218
  %v220 = vpop.f32.mrf.mxu0
  %221 = vdwg.mxu0
  %v222 = vmul.f32 %v160, 0.2
  %v223 = vmul.f32 %v163, 0.2
  %v224 = vmul.f32 %v168, 0.2
  %v225 = vmul.f32 %v171, 0.2
  %v226 = vmul.f32 %v176, 0.2
  %v227 = vmul.f32 %v179, 0.2
  %v228 = vmul.f32 %v184, 0.2
  %v229 = vmul.f32 %v187, 0.2
  %v230 = vmul.f32 %v192, 0.2
  %v231 = vmul.f32 %v195, 0.2
  %v232 = vmul.f32 %v200, 0.2
  %v233 = vmul.f32 %v203, 0.2
  %v234 = vmul.f32 %v208, 0.2
  %v235 = vmul.f32 %v211, 0.2
  %v236 = vmul.f32 %v216, 0.2
  %v237 = vmul.f32 %v219, 0.2
  %v238 = vmax.f32 %v160, %v222
  %v239 = vmax.f32 %v163, %v223
  %v240 = vmax.f32 %v168, %v224
  %v241 = vmax.f32 %v171, %v225
  %v242 = vmax.f32 %v176, %v226
  %v243 = vmax.f32 %v179, %v227
  %v244 = vmax.f32 %v184, %v228
  %v245 = vmax.f32 %v187, %v229
  %v246 = vmax.f32 %v192, %v230
  %v247 = vmax.f32 %v195, %v231
  %v248 = vmax.f32 %v200, %v232
  %v249 = vmax.f32 %v203, %v233
  %v250 = vmax.f32 %v208, %v234
  %v251 = vmax.f32 %v211, %v235
  %v252 = vmax.f32 %v216, %v236
  %v253 = vmax.f32 %v219, %v237
  %v254 = vpack.c.bf16 %v239, %v238
  %v255 = vpack.c.bf16 %v241, %v240
  %v256 = vpack.c.bf16 %v243, %v242
  %v257 = vpack.c.bf16 %v245, %v244
  %v258 = vpack.c.bf16 %v247, %v246
  %v259 = vpack.c.bf16 %v249, %v248
  %v260 = vpack.c.bf16 %v251, %v250
  %v261 = vpack.c.bf16 %v253, %v252
  %v270 = vunpack.c.l.b16 %v254
  %v271 = vunpack.c.h.b16 %v254
  %v272 = vunpack.c.l.b16 %v255
  %v273 = vunpack.c.h.b16 %v255
  %v274 = vunpack.c.l.b16 %v256
  %v275 = vunpack.c.h.b16 %v256
  %v276 = vunpack.c.l.b16 %v257
  %v277 = vunpack.c.h.b16 %v257
  %v278 = vunpack.c.l.b16 %v258
  %v279 = vunpack.c.h.b16 %v258
  %v280 = vunpack.c.l.b16 %v259
  %v281 = vunpack.c.h.b16 %v259
  %v282 = vunpack.c.l.b16 %v260
  %v283 = vunpack.c.h.b16 %v260
  %v284 = vunpack.c.l.b16 %v261
  %v285 = vunpack.c.h.b16 %v261
  %v286 = vpack.c.b16 %v270, %v270
  %v287 = vpack.c.b16 %v271, %v271
  %v288 = vpack.c.b16 %v272, %v272
  %v289 = vpack.c.b16 %v273, %v273
  %v290 = vpack.c.b16 %v274, %v274
  %v291 = vpack.c.b16 %v275, %v275
  %v292 = vpack.c.b16 %v276, %v276
  %v293 = vpack.c.b16 %v277, %v277
  %v294 = vpack.c.b16 %v278, %v278
  %v295 = vpack.c.b16 %v279, %v279
  %v296 = vpack.c.b16 %v280, %v280
  %v297 = vpack.c.b16 %v281, %v281
  %v298 = vpack.c.b16 %v282, %v282
  %v299 = vpack.c.b16 %v283, %v283
  %v300 = vpack.c.b16 %v284, %v284
  %v301 = vpack.c.b16 %v285, %v285
  %318 = vst [vmem:[%s3] sm:$0xf] %v286
  %319 = vst [vmem:[%s3 + $0x4] sm:$0xf] %v287
  %320 = vst [vmem:[%s3 + $0x8] sm:$0xf] %v288
  %321 = vst [vmem:[%s3 + $0xc] sm:$0xf] %v289
  %322 = vst [vmem:[%s3 + $0x10] sm:$0xf] %v290
  %323 = vst [vmem:[%s3 + $0x14] sm:$0xf] %v291
  %324 = vst [vmem:[%s3 + $0x18] sm:$0xf] %v292
  %325 = vst [vmem:[%s3 + $0x1c] sm:$0xf] %v293
  %326 = vst [vmem:[%s3 + $0x20] sm:$0xf] %v294
  %327 = vst [vmem:[%s3 + $0x24] sm:$0xf] %v295
  %328 = vst [vmem:[%s3 + $0x28] sm:$0xf] %v296
  %329 = vst [vmem:[%s3 + $0x2c] sm:$0xf] %v297
  %330 = vst [vmem:[%s3 + $0x30] sm:$0xf] %v298
  %331 = vst [vmem:[%s3 + $0x34] sm:$0xf] %v299
  %332 = vst [vmem:[%s3 + $0x38] sm:$0xf] %v300
  %333 = vst [vmem:[%s3 + $0x3c] sm:$0xf] %v301
  // Predicated region
  $region14: #{bicycle_gan_forward.15} parent=0 // pred_check
    _
  $region15: #{bicycle_gan_forward.15} parent=0 // pred_check_branch
    %335 = sbr.rel (0) target = $region17
  $region16: #{bicycle_gan_forward.15} parent=0 // pred_region
    _
  $region17: #{bicycle_gan_forward.15} parent=0 // pred_fallthru
    _
  // Predicated region
  $region18: #{bicycle_gan_forward.15} parent=0 // pred_check
    _
  $region19: #{bicycle_gan_forward.15} parent=0 // pred_check_branch
    %337 = sbr.rel (0) target = $region21
  $region20: #{bicycle_gan_forward.15} parent=0 // pred_region
    _
  $region21: #{bicycle_gan_forward.15} parent=0 // pred_fallthru
    _

// kernel: bicycle_gan_forward.16
$region0: #{bicycle_gan_forward.16}
  #allocation0 [shape = 'u32[]', space=smem, size = 0x4, offset = 0x4, fixed_abs, tag = 'smem constant byte address 0x4 - core index']
  #allocation1 [shape = 'u32[144,128]{1,0:T(1,128)}', space=vmem, size = 0x12000, scoped, tag = 'internal scratch']
  %s0 = inlined_call_operand.vmem [shape: bf16[32,144], index: 0, kind: input, shape index: {}]
  %s1 = inlined_call_operand.vmem [shape: bf16[144,128], index: 1, kind: input, shape index: {}]
  %s2 = inlined_call_operand.vmem [shape: f32[1,128], index: 2, kind: input, shape index: {}]
  %s3 = inlined_call_operand.vmem [shape: bf16[32,128], index: 3, kind: output, shape index: {}]
  %s4 = sld [smem:[#allocation0]]
  $region22: #{bicycle_gan_forward.16} parent=0
    _
  %s6 = ssub.s32 1, %s4
  %s7 = scalar_select 0, %s6, %s4
  // Predicated region
  $region2: #{bicycle_gan_forward.16} parent=0 // pred_check
    _
  $region3: #{bicycle_gan_forward.16} parent=0 // pred_check_branch
    %9 = sbr.rel (0) target = $region5
  $region4: #{bicycle_gan_forward.16} parent=0 // pred_region
    _
  $region5: #{bicycle_gan_forward.16} parent=0 // pred_fallthru
    _
  // Predicated region
  $region6: #{bicycle_gan_forward.16} parent=0 // pred_check
    _
  $region7: #{bicycle_gan_forward.16} parent=0 // pred_check_branch
    %11 = sbr.rel (0) target = $region9
  $region8: #{bicycle_gan_forward.16} parent=0 // pred_region
    _
  $region9: #{bicycle_gan_forward.16} parent=0 // pred_fallthru
    _
  // Predicated region
  $region10: #{bicycle_gan_forward.16} parent=0 // pred_check
    _
  $region11: #{bicycle_gan_forward.16} parent=0 // pred_check_branch
    %13 = sbr.rel (0) target = $region13
  $region12: #{bicycle_gan_forward.16} parent=0 // pred_region
    _
  $region13: #{bicycle_gan_forward.16} parent=0 // pred_fallthru
    _
  %v15 = vld [vmem:[%s0] sm:$0xff]
  %v16 = vld [vmem:[%s0 + $0x8] sm:$0xff]
  %v17 = vld [vmem:[%s0 + $0x10] sm:$0xff]
  %v18 = vld [vmem:[%s0 + $0x18] sm:$0xff]
  %v19 = vld [vmem:[%s1] sm:$0xf]
  %v20 = vld [vmem:[%s1 + $0x4] sm:$0xf]
  %v21 = vld [vmem:[%s1 + $0x8] sm:$0xf]
  %v22 = vld [vmem:[%s1 + $0xc] sm:$0xf]
  %v23 = vld [vmem:[%s1 + $0x10] sm:$0xf]
  %v24 = vld [vmem:[%s1 + $0x14] sm:$0xf]
  %v25 = vld [vmem:[%s1 + $0x18] sm:$0xf]
  %v26 = vld [vmem:[%s1 + $0x1c] sm:$0xf]
  %v27 = vld [vmem:[%s1 + $0x20] sm:$0xf]
  %v28 = vld [vmem:[%s1 + $0x24] sm:$0xf]
  %v29 = vld [vmem:[%s1 + $0x28] sm:$0xf]
  %v30 = vld [vmem:[%s1 + $0x2c] sm:$0xf]
  %v31 = vld [vmem:[%s1 + $0x30] sm:$0xf]
  %v32 = vld [vmem:[%s1 + $0x34] sm:$0xf]
  %v33 = vld [vmem:[%s1 + $0x38] sm:$0xf]
  %v34 = vld [vmem:[%s1 + $0x3c] sm:$0xf]
  %v35 = vld [vmem:[%s1 + $0x40] sm:$0xf]
  %v36 = vld [vmem:[%s1 + $0x44] sm:$0xf]
  %v37 = vld [vmem:[%s2] sm:$0x1]
  %v39 = vlaneseq
  %v40 = vshrl.u32 %v39, 7
  %v41 = vsub.s32 0, %v40
  %v42 = vrot.slane %v37, %v41
  %v48 = vunpack.c.l.b16 %v15
  %v49 = vunpack.c.h.b16 %v15
  %v50 = vunpack.c.l.b16 %v16
  %v51 = vunpack.c.h.b16 %v16
  %v52 = vunpack.c.l.b16 %v17
  %v53 = vunpack.c.h.b16 %v17
  %v54 = vunpack.c.l.b16 %v18
  %v55 = vunpack.c.h.b16 %v18
  %v56 = vpack.c.b16 %v50, %v48
  %v57 = vpack.c.b16 %v51, %v49
  %v58 = vpack.c.b16 %v54, %v52
  %v59 = vpack.c.b16 %v55, %v53
  %v80 = vunpack.c.l.b16 %v19
  %v81 = vunpack.c.l.b16 %v20
  %v82 = vunpack.c.l.b16 %v21
  %v83 = vunpack.c.l.b16 %v22
  %v84 = vunpack.c.l.b16 %v23
  %v85 = vunpack.c.l.b16 %v24
  %v86 = vunpack.c.l.b16 %v25
  %v87 = vunpack.c.l.b16 %v26
  %v88 = vunpack.c.l.b16 %v27
  %v89 = vunpack.c.l.b16 %v28
  %v90 = vunpack.c.l.b16 %v29
  %v91 = vunpack.c.l.b16 %v30
  %v92 = vunpack.c.l.b16 %v31
  %v93 = vunpack.c.l.b16 %v32
  %v94 = vunpack.c.l.b16 %v33
  %v95 = vunpack.c.l.b16 %v34
  %v96 = vunpack.c.l.b16 %v35
  %v97 = vunpack.c.l.b16 %v36
  %v98 = vpack.c.b16 %v81, %v80
  %v99 = vpack.c.b16 %v83, %v82
  %v100 = vpack.c.b16 %v85, %v84
  %v101 = vpack.c.b16 %v87, %v86
  %v102 = vpack.c.b16 %v89, %v88
  %v103 = vpack.c.b16 %v91, %v90
  %v104 = vpack.c.b16 %v93, %v92
  %v105 = vpack.c.b16 %v95, %v94
  %v106 = vpack.c.b16 %v97, %v96
  %vm116 = vcmask 130048
  %v118 = vsel %vm116, %v57, 0
  %v121 = vsel %vm116, %v59, 0
  %123 = vmatprep.subr.bf16.mxu0 0
  %124 = vmatpush1.bf16.msra.mxu0 %v105
  %125 = vmatprep.subr.bf16.mxu0 0
  %126 = vmatpush1.bf16.msra.mxu0 %v104
  %127 = vmatprep.subr.bf16.mxu0 0
  %128 = vmatpush1.bf16.msra.mxu0 %v103
  %129 = vmatprep.subr.bf16.mxu0 0
  %130 = vmatpush1.bf16.msra.mxu0 %v102
  %131 = vmatprep.subr.bf16.mxu0 0
  %132 = vmatpush1.bf16.msra.mxu0 %v101
  %133 = vmatprep.subr.bf16.mxu0 0
  %134 = vmatpush1.bf16.msra.mxu0 %v100
  %135 = vmatprep.subr.bf16.mxu0 0
  %136 = vmatpush1.bf16.msra.mxu0 %v99
  %137 = vmatprep.subr.bf16.mxu0 0
  %138 = vmatpush1.bf16.msra.mxu0 %v98
  %139 = vmatprep.subr.bf16.mxu0 0
  %140 = vmatpush2.bf16.msra.mxu0 0
  %141 = vmatprep.subr.bf16.mxu0 0
  %142 = vmatpush2.bf16.msra.mxu0 0
  %143 = vmatprep.subr.bf16.mxu0 0
  %144 = vmatpush2.bf16.msra.mxu0 0
  %145 = vmatprep.subr.bf16.mxu0 0
  %146 = vmatpush2.bf16.msra.mxu0 0
  %147 = vmatprep.subr.bf16.mxu0 0
  %148 = vmatpush2.bf16.msra.mxu0 0
  %149 = vmatprep.subr.bf16.mxu0 0
  %150 = vmatpush2.bf16.msra.mxu0 0
  %151 = vmatprep.subr.bf16.mxu0 0
  %152 = vmatpush2.bf16.msra.mxu0 0
  %153 = vmatprep.subr.bf16.mxu0 0
  %154 = vmatpush2.bf16.msra.mxu0 %v106
  %155 = vmatprep.mubr.bf16.mxu0 %v118
  %156 = vmatmul.mubr.bf16.gmra.mxu0 %v56
  %v157 = vpop.f32.mrf.mxu0
  %v158 = vadd.f32 %v42, %v157
  %v159 = vpop.f32.mrf.mxu0
  %v160 = vpop.f32.mrf.mxu0
  %v161 = vadd.f32 %v42, %v160
  %v162 = vpop.f32.mrf.mxu0
  %163 = vmatprep.mubr.bf16.mxu0 %v121
  %164 = vmatmul.mubr.bf16.gmra.mxu0 %v58
  %v165 = vpop.f32.mrf.mxu0
  %v166 = vadd.f32 %v42, %v165
  %v167 = vpop.f32.mrf.mxu0
  %v168 = vpop.f32.mrf.mxu0
  %v169 = vadd.f32 %v42, %v168
  %v170 = vpop.f32.mrf.mxu0
  %171 = vdwg.mxu0
  %v172 = vmul.f32 %v158, 0.2
  %v173 = vmul.f32 %v161, 0.2
  %v174 = vmul.f32 %v166, 0.2
  %v175 = vmul.f32 %v169, 0.2
  %v176 = vmax.f32 %v158, %v172
  %v177 = vmax.f32 %v161, %v173
  %v178 = vmax.f32 %v166, %v174
  %v179 = vmax.f32 %v169, %v175
  %v180 = vpack.c.bf16 %v177, %v176
  %v181 = vpack.c.bf16 %v179, %v178
  %v184 = vunpack.c.l.b16 %v180
  %v185 = vunpack.c.h.b16 %v180
  %v186 = vunpack.c.l.b16 %v181
  %v187 = vunpack.c.h.b16 %v181
  %v188 = vpack.c.b16 %v184, %v184
  %v189 = vpack.c.b16 %v185, %v185
  %v190 = vpack.c.b16 %v186, %v186
  %v191 = vpack.c.b16 %v187, %v187
  %196 = vst [vmem:[%s3] sm:$0xf] %v188
  %197 = vst [vmem:[%s3 + $0x4] sm:$0xf] %v189
  %198 = vst [vmem:[%s3 + $0x8] sm:$0xf] %v190
  %199 = vst [vmem:[%s3 + $0xc] sm:$0xf] %v191
  // Predicated region
  $region14: #{bicycle_gan_forward.16} parent=0 // pred_check
    _
  $region15: #{bicycle_gan_forward.16} parent=0 // pred_check_branch
    %201 = sbr.rel (0) target = $region17
  $region16: #{bicycle_gan_forward.16} parent=0 // pred_region
    _
  $region17: #{bicycle_gan_forward.16} parent=0 // pred_fallthru
    _
  // Predicated region
  $region18: #{bicycle_gan_forward.16} parent=0 // pred_check
    _
  $region19: #{bicycle_gan_forward.16} parent=0 // pred_check_branch
    %203 = sbr.rel (0) target = $region21
  $region20: #{bicycle_gan_forward.16} parent=0 // pred_region
    _
  $region21: #{bicycle_gan_forward.16} parent=0 // pred_fallthru
    _

// kernel: bicycle_gan_forward.17
$region0: #{bicycle_gan_forward.17}
  #allocation0 [shape = 'u32[]', space=smem, size = 0x4, offset = 0x4, fixed_abs, tag = 'smem constant byte address 0x4 - core index']
  #allocation1 [shape = 'u32[144,128]{1,0:T(1,128)}', space=vmem, size = 0x12000, scoped, tag = 'internal scratch']
  %s0 = inlined_call_operand.vmem [shape: bf16[2,512], index: 0, kind: input, shape index: {}]
  %s1 = inlined_call_operand.vmem [shape: bf16[512,128], index: 1, kind: input, shape index: {}]
  %s2 = inlined_call_operand.vmem [shape: f32[1,128], index: 2, kind: input, shape index: {}]
  %s3 = inlined_call_operand.vmem [shape: bf16[2,128], index: 3, kind: output, shape index: {}]
  %s4 = sld [smem:[#allocation0]]
  $region22: #{bicycle_gan_forward.17} parent=0
    _
  %s6 = ssub.s32 1, %s4
  %s7 = scalar_select 0, %s6, %s4
  // Predicated region
  $region2: #{bicycle_gan_forward.17} parent=0 // pred_check
    _
  $region3: #{bicycle_gan_forward.17} parent=0 // pred_check_branch
    %9 = sbr.rel (0) target = $region5
  $region4: #{bicycle_gan_forward.17} parent=0 // pred_region
    _
  $region5: #{bicycle_gan_forward.17} parent=0 // pred_fallthru
    _
  // Predicated region
  $region6: #{bicycle_gan_forward.17} parent=0 // pred_check
    _
  $region7: #{bicycle_gan_forward.17} parent=0 // pred_check_branch
    %11 = sbr.rel (0) target = $region9
  $region8: #{bicycle_gan_forward.17} parent=0 // pred_region
    _
  $region9: #{bicycle_gan_forward.17} parent=0 // pred_fallthru
    _
  // Predicated region
  $region10: #{bicycle_gan_forward.17} parent=0 // pred_check
    _
  $region11: #{bicycle_gan_forward.17} parent=0 // pred_check_branch
    %13 = sbr.rel (0) target = $region13
  $region12: #{bicycle_gan_forward.17} parent=0 // pred_region
    _
  $region13: #{bicycle_gan_forward.17} parent=0 // pred_fallthru
    _
  %v15 = vld [vmem:[%s0] sm:$0xf]
  %v16 = vld [vmem:[%s1] sm:$0xf]
  %v17 = vld [vmem:[%s1 + $0x4] sm:$0xf]
  %v18 = vld [vmem:[%s1 + $0x8] sm:$0xf]
  %v19 = vld [vmem:[%s1 + $0xc] sm:$0xf]
  %v20 = vld [vmem:[%s1 + $0x10] sm:$0xf]
  %v21 = vld [vmem:[%s1 + $0x14] sm:$0xf]
  %v22 = vld [vmem:[%s1 + $0x18] sm:$0xf]
  %v23 = vld [vmem:[%s1 + $0x1c] sm:$0xf]
  %v24 = vld [vmem:[%s1 + $0x20] sm:$0xf]
  %v25 = vld [vmem:[%s1 + $0x24] sm:$0xf]
  %v26 = vld [vmem:[%s1 + $0x28] sm:$0xf]
  %v27 = vld [vmem:[%s1 + $0x2c] sm:$0xf]
  %v28 = vld [vmem:[%s1 + $0x30] sm:$0xf]
  %v29 = vld [vmem:[%s1 + $0x34] sm:$0xf]
  %v30 = vld [vmem:[%s1 + $0x38] sm:$0xf]
  %v31 = vld [vmem:[%s1 + $0x3c] sm:$0xf]
  %v32 = vld [vmem:[%s1 + $0x40] sm:$0xf]
  %v33 = vld [vmem:[%s1 + $0x44] sm:$0xf]
  %v34 = vld [vmem:[%s1 + $0x48] sm:$0xf]
  %v35 = vld [vmem:[%s1 + $0x4c] sm:$0xf]
  %v36 = vld [vmem:[%s1 + $0x50] sm:$0xf]
  %v37 = vld [vmem:[%s1 + $0x54] sm:$0xf]
  %v38 = vld [vmem:[%s1 + $0x58] sm:$0xf]
  %v39 = vld [vmem:[%s1 + $0x5c] sm:$0xf]
  %v40 = vld [vmem:[%s1 + $0x60] sm:$0xf]
  %v41 = vld [vmem:[%s1 + $0x64] sm:$0xf]
  %v42 = vld [vmem:[%s1 + $0x68] sm:$0xf]
  %v43 = vld [vmem:[%s1 + $0x6c] sm:$0xf]
  %v44 = vld [vmem:[%s1 + $0x70] sm:$0xf]
  %v45 = vld [vmem:[%s1 + $0x74] sm:$0xf]
  %v46 = vld [vmem:[%s1 + $0x78] sm:$0xf]
  %v47 = vld [vmem:[%s1 + $0x7c] sm:$0xf]
  %v48 = vld [vmem:[%s1 + $0x80] sm:$0xf]
  %v49 = vld [vmem:[%s1 + $0x84] sm:$0xf]
  %v50 = vld [vmem:[%s1 + $0x88] sm:$0xf]
  %v51 = vld [vmem:[%s1 + $0x8c] sm:$0xf]
  %v52 = vld [vmem:[%s1 + $0x90] sm:$0xf]
  %v53 = vld [vmem:[%s1 + $0x94] sm:$0xf]
  %v54 = vld [vmem:[%s1 + $0x98] sm:$0xf]
  %v55 = vld [vmem:[%s1 + $0x9c] sm:$0xf]
  %v56 = vld [vmem:[%s1 + $0xa0] sm:$0xf]
  %v57 = vld [vmem:[%s1 + $0xa4] sm:$0xf]
  %v58 = vld [vmem:[%s1 + $0xa8] sm:$0xf]
  %v59 = vld [vmem:[%s1 + $0xac] sm:$0xf]
  %v60 = vld [vmem:[%s1 + $0xb0] sm:$0xf]
  %v61 = vld [vmem:[%s1 + $0xb4] sm:$0xf]
  %v62 = vld [vmem:[%s1 + $0xb8] sm:$0xf]
  %v63 = vld [vmem:[%s1 + $0xbc] sm:$0xf]
  %v64 = vld [vmem:[%s1 + $0xc0] sm:$0xf]
  %v65 = vld [vmem:[%s1 + $0xc4] sm:$0xf]
  %v66 = vld [vmem:[%s1 + $0xc8] sm:$0xf]
  %v67 = vld [vmem:[%s1 + $0xcc] sm:$0xf]
  %v68 = vld [vmem:[%s1 + $0xd0] sm:$0xf]
  %v69 = vld [vmem:[%s1 + $0xd4] sm:$0xf]
  %v70 = vld [vmem:[%s1 + $0xd8] sm:$0xf]
  %v71 = vld [vmem:[%s1 + $0xdc] sm:$0xf]
  %v72 = vld [vmem:[%s1 + $0xe0] sm:$0xf]
  %v73 = vld [vmem:[%s1 + $0xe4] sm:$0xf]
  %v74 = vld [vmem:[%s1 + $0xe8] sm:$0xf]
  %v75 = vld [vmem:[%s1 + $0xec] sm:$0xf]
  %v76 = vld [vmem:[%s1 + $0xf0] sm:$0xf]
  %v77 = vld [vmem:[%s1 + $0xf4] sm:$0xf]
  %v78 = vld [vmem:[%s1 + $0xf8] sm:$0xf]
  %v79 = vld [vmem:[%s1 + $0xfc] sm:$0xf]
  %v80 = vld [vmem:[%s2] sm:$0x1]
  %v82 = vlaneseq
  %v83 = vshrl.u32 %v82, 7
  %v84 = vsub.s32 0, %v83
  %v85 = vrot.slane %v80, %v84
  %v89 = vunpack.c.l.s4 1966171168
  %v90 = vunpack.c.0.s8 %v89
  %v91 = vlaneseq
  %v92 = vshrl.u32 %v91, 7
  %v93 = vsub.s32 %v90, %v92
  %v94 = vrot.slane %v15, %v93
  %v95 = vcombine.high %v94, %v94
  %v97 = vunpack.c.l.s4 1966171168
  %v98 = vunpack.c.0.s8 %v97
  %v99 = vlaneseq
  %v100 = vshrl.u32 %v99, 7
  %v101 = vsub.s32 %v98, %v100
  %v102 = vrot.slane %v94, %v101
  %v104 = vunpack.c.l.s4 1966171168
  %v105 = vunpack.c.0.s8 %v104
  %v106 = vlaneseq
  %v107 = vshrl.u32 %v106, 7
  %v108 = vsub.s32 %v105, %v107
  %v109 = vrot.slane %v95, %v108
  %v110 = vcombine.high %v102, %v102
  %v111 = vcombine.high %v109, %v109
  %v180 = vunpack.c.l.b16 %v16
  %v181 = vunpack.c.l.b16 %v17
  %v182 = vunpack.c.l.b16 %v18
  %v183 = vunpack.c.l.b16 %v19
  %v184 = vunpack.c.l.b16 %v20
  %v185 = vunpack.c.l.b16 %v21
  %v186 = vunpack.c.l.b16 %v22
  %v187 = vunpack.c.l.b16 %v23
  %v188 = vunpack.c.l.b16 %v24
  %v189 = vunpack.c.l.b16 %v25
  %v190 = vunpack.c.l.b16 %v26
  %v191 = vunpack.c.l.b16 %v27
  %v192 = vunpack.c.l.b16 %v28
  %v193 = vunpack.c.l.b16 %v29
  %v194 = vunpack.c.l.b16 %v30
  %v195 = vunpack.c.l.b16 %v31
  %v196 = vunpack.c.l.b16 %v32
  %v197 = vunpack.c.l.b16 %v33
  %v198 = vunpack.c.l.b16 %v34
  %v199 = vunpack.c.l.b16 %v35
  %v200 = vunpack.c.l.b16 %v36
  %v201 = vunpack.c.l.b16 %v37
  %v202 = vunpack.c.l.b16 %v38
  %v203 = vunpack.c.l.b16 %v39
  %v204 = vunpack.c.l.b16 %v40
  %v205 = vunpack.c.l.b16 %v41
  %v206 = vunpack.c.l.b16 %v42
  %v207 = vunpack.c.l.b16 %v43
  %v208 = vunpack.c.l.b16 %v44
  %v209 = vunpack.c.l.b16 %v45
  %v210 = vunpack.c.l.b16 %v46
  %v211 = vunpack.c.l.b16 %v47
  %v212 = vunpack.c.l.b16 %v48
  %v213 = vunpack.c.l.b16 %v49
  %v214 = vunpack.c.l.b16 %v50
  %v215 = vunpack.c.l.b16 %v51
  %v216 = vunpack.c.l.b16 %v52
  %v217 = vunpack.c.l.b16 %v53
  %v218 = vunpack.c.l.b16 %v54
  %v219 = vunpack.c.l.b16 %v55
  %v220 = vunpack.c.l.b16 %v56
  %v221 = vunpack.c.l.b16 %v57
  %v222 = vunpack.c.l.b16 %v58
  %v223 = vunpack.c.l.b16 %v59
  %v224 = vunpack.c.l.b16 %v60
  %v225 = vunpack.c.l.b16 %v61
  %v226 = vunpack.c.l.b16 %v62
  %v227 = vunpack.c.l.b16 %v63
  %v228 = vunpack.c.l.b16 %v64
  %v229 = vunpack.c.l.b16 %v65
  %v230 = vunpack.c.l.b16 %v66
  %v231 = vunpack.c.l.b16 %v67
  %v232 = vunpack.c.l.b16 %v68
  %v233 = vunpack.c.l.b16 %v69
  %v234 = vunpack.c.l.b16 %v70
  %v235 = vunpack.c.l.b16 %v71
  %v236 = vunpack.c.l.b16 %v72
  %v237 = vunpack.c.l.b16 %v73
  %v238 = vunpack.c.l.b16 %v74
  %v239 = vunpack.c.l.b16 %v75
  %v240 = vunpack.c.l.b16 %v76
  %v241 = vunpack.c.l.b16 %v77
  %v242 = vunpack.c.l.b16 %v78
  %v243 = vunpack.c.l.b16 %v79
  %v244 = vpack.c.b16 %v181, %v180
  %v245 = vpack.c.b16 %v183, %v182
  %v246 = vpack.c.b16 %v185, %v184
  %v247 = vpack.c.b16 %v187, %v186
  %v248 = vpack.c.b16 %v189, %v188
  %v249 = vpack.c.b16 %v191, %v190
  %v250 = vpack.c.b16 %v193, %v192
  %v251 = vpack.c.b16 %v195, %v194
  %v252 = vpack.c.b16 %v197, %v196
  %v253 = vpack.c.b16 %v199, %v198
  %v254 = vpack.c.b16 %v201, %v200
  %v255 = vpack.c.b16 %v203, %v202
  %v256 = vpack.c.b16 %v205, %v204
  %v257 = vpack.c.b16 %v207, %v206
  %v258 = vpack.c.b16 %v209, %v208
  %v259 = vpack.c.b16 %v211, %v210
  %v260 = vpack.c.b16 %v213, %v212
  %v261 = vpack.c.b16 %v215, %v214
  %v262 = vpack.c.b16 %v217, %v216
  %v263 = vpack.c.b16 %v219, %v218
  %v264 = vpack.c.b16 %v221, %v220
  %v265 = vpack.c.b16 %v223, %v222
  %v266 = vpack.c.b16 %v225, %v224
  %v267 = vpack.c.b16 %v227, %v226
  %v268 = vpack.c.b16 %v229, %v228
  %v269 = vpack.c.b16 %v231, %v230
  %v270 = vpack.c.b16 %v233, %v232
  %v271 = vpack.c.b16 %v235, %v234
  %v272 = vpack.c.b16 %v237, %v236
  %v273 = vpack.c.b16 %v239, %v238
  %v274 = vpack.c.b16 %v241, %v240
  %v275 = vpack.c.b16 %v243, %v242
  %308 = vmatprep.subr.bf16.mxu0 0
  %309 = vmatpush1.bf16.msra.mxu0 %v251
  %310 = vmatprep.subr.bf16.mxu0 0
  %311 = vmatpush1.bf16.msra.mxu0 %v250
  %312 = vmatprep.subr.bf16.mxu0 0
  %313 = vmatpush1.bf16.msra.mxu0 %v249
  %314 = vmatprep.subr.bf16.mxu0 0
  %315 = vmatpush1.bf16.msra.mxu0 %v248
  %316 = vmatprep.subr.bf16.mxu0 0
  %317 = vmatpush1.bf16.msra.mxu0 %v247
  %318 = vmatprep.subr.bf16.mxu0 0
  %319 = vmatpush1.bf16.msra.mxu0 %v246
  %320 = vmatprep.subr.bf16.mxu0 0
  %321 = vmatpush1.bf16.msra.mxu0 %v245
  %322 = vmatprep.subr.bf16.mxu0 0
  %323 = vmatpush1.bf16.msra.mxu0 %v244
  %324 = vmatprep.subr.bf16.mxu0 0
  %325 = vmatpush2.bf16.msra.mxu0 %v259
  %326 = vmatprep.subr.bf16.mxu0 0
  %327 = vmatpush2.bf16.msra.mxu0 %v258
  %328 = vmatprep.subr.bf16.mxu0 0
  %329 = vmatpush2.bf16.msra.mxu0 %v257
  %330 = vmatprep.subr.bf16.mxu0 0
  %331 = vmatpush2.bf16.msra.mxu0 %v256
  %332 = vmatprep.subr.bf16.mxu0 0
  %333 = vmatpush2.bf16.msra.mxu0 %v255
  %334 = vmatprep.subr.bf16.mxu0 0
  %335 = vmatpush2.bf16.msra.mxu0 %v254
  %336 = vmatprep.subr.bf16.mxu0 0
  %337 = vmatpush2.bf16.msra.mxu0 %v253
  %338 = vmatprep.subr.bf16.mxu0 0
  %339 = vmatpush2.bf16.msra.mxu0 %v252
  %340 = vmatprep.mubr.bf16.mxu0 %v109
  %341 = vmatmul.mubr.bf16.gmra.mxu0 %v102
  %v342 = vpop.f32.mrf.mxu0
  %v343 = vadd.f32 %v85, %v342
  %v344 = vpop.f32.mrf.mxu0
  %v345 = vpop.f32.mrf.mxu0
  %v346 = vpop.f32.mrf.mxu0
  %347 = vdwg.mxu0
  %348 = vmatprep.subr.bf16.mxu0 0
  %349 = vmatpush1.bf16.msra.mxu0 %v267
  %350 = vmatprep.subr.bf16.mxu0 0
  %351 = vmatpush1.bf16.msra.mxu0 %v266
  %352 = vmatprep.subr.bf16.mxu0 0
  %353 = vmatpush1.bf16.msra.mxu0 %v265
  %354 = vmatprep.subr.bf16.mxu0 0
  %355 = vmatpush1.bf16.msra.mxu0 %v264
  %356 = vmatprep.subr.bf16.mxu0 0
  %357 = vmatpush1.bf16.msra.mxu0 %v263
  %358 = vmatprep.subr.bf16.mxu0 0
  %359 = vmatpush1.bf16.msra.mxu0 %v262
  %360 = vmatprep.subr.bf16.mxu0 0
  %361 = vmatpush1.bf16.msra.mxu0 %v261
  %362 = vmatprep.subr.bf16.mxu0 0
  %363 = vmatpush1.bf16.msra.mxu0 %v260
  %364 = vmatprep.subr.bf16.mxu0 0
  %365 = vmatpush2.bf16.msra.mxu0 %v275
  %366 = vmatprep.subr.bf16.mxu0 0
  %367 = vmatpush2.bf16.msra.mxu0 %v274
  %368 = vmatprep.subr.bf16.mxu0 0
  %369 = vmatpush2.bf16.msra.mxu0 %v273
  %370 = vmatprep.subr.bf16.mxu0 0
  %371 = vmatpush2.bf16.msra.mxu0 %v272
  %372 = vmatprep.subr.bf16.mxu0 0
  %373 = vmatpush2.bf16.msra.mxu0 %v271
  %374 = vmatprep.subr.bf16.mxu0 0
  %375 = vmatpush2.bf16.msra.mxu0 %v270
  %376 = vmatprep.subr.bf16.mxu0 0
  %377 = vmatpush2.bf16.msra.mxu0 %v269
  %378 = vmatprep.subr.bf16.mxu0 0
  %379 = vmatpush2.bf16.msra.mxu0 %v268
  %380 = vmatprep.mubr.bf16.mxu0 %v111
  %381 = vmatmul.mubr.bf16.gmra.mxu0 %v110
  %v382 = vpop.f32.mrf.mxu0
  %v383 = vadd.f32 %v343, %v382
  %v384 = vpop.f32.mrf.mxu0
  %v385 = vpop.f32.mrf.mxu0
  %v386 = vpop.f32.mrf.mxu0
  %387 = vdwg.mxu0
  %v388 = vpack.c.bf16 %v383, %v383
  %389 = vst [vmem:[%s3] sm:$0x1] %v388
  // Predicated region
  $region14: #{bicycle_gan_forward.17} parent=0 // pred_check
    _
  $region15: #{bicycle_gan_forward.17} parent=0 // pred_check_branch
    %391 = sbr.rel (0) target = $region17
  $region16: #{bicycle_gan_forward.17} parent=0 // pred_region
    _
  $region17: #{bicycle_gan_forward.17} parent=0 // pred_fallthru
    _
  // Predicated region
  $region18: #{bicycle_gan_forward.17} parent=0 // pred_check
    _
  $region19: #{bicycle_gan_forward.17} parent=0 // pred_check_branch
    %393 = sbr.rel (0) target = $region21
  $region20: #{bicycle_gan_forward.17} parent=0 // pred_region
    _
  $region21: #{bicycle_gan_forward.17} parent=0 // pred_fallthru
    _

// kernel: bicycle_gan_forward.18
$region0: #{bicycle_gan_forward.18}
  #allocation0 [shape = 'u32[]', space=smem, size = 0x4, offset = 0x4, fixed_abs, tag = 'smem constant byte address 0x4 - core index']
  #allocation1 [shape = 'u32[144,128]{1,0:T(1,128)}', space=vmem, size = 0x12000, scoped, tag = 'internal scratch']
  %s0 = inlined_call_operand.vmem [shape: bf16[1024,99], index: 0, kind: input, shape index: {}]
  %s1 = inlined_call_operand.vmem [shape: bf16[99,128], index: 1, kind: input, shape index: {}]
  %s2 = inlined_call_operand.vmem [shape: f32[1,128], index: 2, kind: input, shape index: {}]
  %s3 = inlined_call_operand.vmem [shape: bf16[1024,128], index: 3, kind: output, shape index: {}]
  %s4 = sld [smem:[#allocation0]]
  $region22: #{bicycle_gan_forward.18} parent=0
    _
  %s6 = ssub.s32 1, %s4
  %s7 = scalar_select 0, %s6, %s4
  // Predicated region
  $region2: #{bicycle_gan_forward.18} parent=0 // pred_check
    _
  $region3: #{bicycle_gan_forward.18} parent=0 // pred_check_branch
    %9 = sbr.rel (0) target = $region5
  $region4: #{bicycle_gan_forward.18} parent=0 // pred_region
    _
  $region5: #{bicycle_gan_forward.18} parent=0 // pred_fallthru
    _
  // Predicated region
  $region6: #{bicycle_gan_forward.18} parent=0 // pred_check
    _
  $region7: #{bicycle_gan_forward.18} parent=0 // pred_check_branch
    %11 = sbr.rel (0) target = $region9
  $region8: #{bicycle_gan_forward.18} parent=0 // pred_region
    _
  $region9: #{bicycle_gan_forward.18} parent=0 // pred_fallthru
    _
  // Predicated region
  $region10: #{bicycle_gan_forward.18} parent=0 // pred_check
    _
  $region11: #{bicycle_gan_forward.18} parent=0 // pred_check_branch
    %13 = sbr.rel (0) target = $region13
  $region12: #{bicycle_gan_forward.18} parent=0 // pred_region
    _
  $region13: #{bicycle_gan_forward.18} parent=0 // pred_fallthru
    _
  %v15 = vld [vmem:[%s0] sm:$0xf]
  %v16 = vld [vmem:[%s0 + $0x4] sm:$0xf]
  %v17 = vld [vmem:[%s0 + $0x8] sm:$0xf]
  %v18 = vld [vmem:[%s0 + $0xc] sm:$0xf]
  %v19 = vld [vmem:[%s0 + $0x10] sm:$0xf]
  %v20 = vld [vmem:[%s0 + $0x14] sm:$0xf]
  %v21 = vld [vmem:[%s0 + $0x18] sm:$0xf]
  %v22 = vld [vmem:[%s0 + $0x1c] sm:$0xf]
  %v23 = vld [vmem:[%s0 + $0x20] sm:$0xf]
  %v24 = vld [vmem:[%s0 + $0x24] sm:$0xf]
  %v25 = vld [vmem:[%s0 + $0x28] sm:$0xf]
  %v26 = vld [vmem:[%s0 + $0x2c] sm:$0xf]
  %v27 = vld [vmem:[%s0 + $0x30] sm:$0xf]
  %v28 = vld [vmem:[%s0 + $0x34] sm:$0xf]
  %v29 = vld [vmem:[%s0 + $0x38] sm:$0xf]
  %v30 = vld [vmem:[%s0 + $0x3c] sm:$0xf]
  %v31 = vld [vmem:[%s0 + $0x40] sm:$0xf]
  %v32 = vld [vmem:[%s0 + $0x44] sm:$0xf]
  %v33 = vld [vmem:[%s0 + $0x48] sm:$0xf]
  %v34 = vld [vmem:[%s0 + $0x4c] sm:$0xf]
  %v35 = vld [vmem:[%s0 + $0x50] sm:$0xf]
  %v36 = vld [vmem:[%s0 + $0x54] sm:$0xf]
  %v37 = vld [vmem:[%s0 + $0x58] sm:$0xf]
  %v38 = vld [vmem:[%s0 + $0x5c] sm:$0xf]
  %v39 = vld [vmem:[%s0 + $0x60] sm:$0xf]
  %v40 = vld [vmem:[%s0 + $0x64] sm:$0xf]
  %v41 = vld [vmem:[%s0 + $0x68] sm:$0xf]
  %v42 = vld [vmem:[%s0 + $0x6c] sm:$0xf]
  %v43 = vld [vmem:[%s0 + $0x70] sm:$0xf]
  %v44 = vld [vmem:[%s0 + $0x74] sm:$0xf]
  %v45 = vld [vmem:[%s0 + $0x78] sm:$0xf]
  %v46 = vld [vmem:[%s0 + $0x7c] sm:$0xf]
  %v47 = vld [vmem:[%s0 + $0x80] sm:$0xf]
  %v48 = vld [vmem:[%s0 + $0x84] sm:$0xf]
  %v49 = vld [vmem:[%s0 + $0x88] sm:$0xf]
  %v50 = vld [vmem:[%s0 + $0x8c] sm:$0xf]
  %v51 = vld [vmem:[%s0 + $0x90] sm:$0xf]
  %v52 = vld [vmem:[%s0 + $0x94] sm:$0xf]
  %v53 = vld [vmem:[%s0 + $0x98] sm:$0xf]
  %v54 = vld [vmem:[%s0 + $0x9c] sm:$0xf]
  %v55 = vld [vmem:[%s0 + $0xa0] sm:$0xf]
  %v56 = vld [vmem:[%s0 + $0xa4] sm:$0xf]
  %v57 = vld [vmem:[%s0 + $0xa8] sm:$0xf]
  %v58 = vld [vmem:[%s0 + $0xac] sm:$0xf]
  %v59 = vld [vmem:[%s0 + $0xb0] sm:$0xf]
  %v60 = vld [vmem:[%s0 + $0xb4] sm:$0xf]
  %v61 = vld [vmem:[%s0 + $0xb8] sm:$0xf]
  %v62 = vld [vmem:[%s0 + $0xbc] sm:$0xf]
  %v63 = vld [vmem:[%s0 + $0xc0] sm:$0xf]
  %v64 = vld [vmem:[%s0 + $0xc4] sm:$0xf]
  %v65 = vld [vmem:[%s0 + $0xc8] sm:$0xf]
  %v66 = vld [vmem:[%s0 + $0xcc] sm:$0xf]
  %v67 = vld [vmem:[%s0 + $0xd0] sm:$0xf]
  %v68 = vld [vmem:[%s0 + $0xd4] sm:$0xf]
  %v69 = vld [vmem:[%s0 + $0xd8] sm:$0xf]
  %v70 = vld [vmem:[%s0 + $0xdc] sm:$0xf]
  %v71 = vld [vmem:[%s0 + $0xe0] sm:$0xf]
  %v72 = vld [vmem:[%s0 + $0xe4] sm:$0xf]
  %v73 = vld [vmem:[%s0 + $0xe8] sm:$0xf]
  %v74 = vld [vmem:[%s0 + $0xec] sm:$0xf]
  %v75 = vld [vmem:[%s0 + $0xf0] sm:$0xf]
  %v76 = vld [vmem:[%s0 + $0xf4] sm:$0xf]
  %v77 = vld [vmem:[%s0 + $0xf8] sm:$0xf]
  %v78 = vld [vmem:[%s0 + $0xfc] sm:$0xf]
  %v79 = vld [vmem:[%s0 + $0x100] sm:$0xf]
  %v80 = vld [vmem:[%s0 + $0x104] sm:$0xf]
  %v81 = vld [vmem:[%s0 + $0x108] sm:$0xf]
  %v82 = vld [vmem:[%s0 + $0x10c] sm:$0xf]
  %v83 = vld [vmem:[%s0 + $0x110] sm:$0xf]
  %v84 = vld [vmem:[%s0 + $0x114] sm:$0xf]
  %v85 = vld [vmem:[%s0 + $0x118] sm:$0xf]
  %v86 = vld [vmem:[%s0 + $0x11c] sm:$0xf]
  %v87 = vld [vmem:[%s0 + $0x120] sm:$0xf]
  %v88 = vld [vmem:[%s0 + $0x124] sm:$0xf]
  %v89 = vld [vmem:[%s0 + $0x128] sm:$0xf]
  %v90 = vld [vmem:[%s0 + $0x12c] sm:$0xf]
  %v91 = vld [vmem:[%s0 + $0x130] sm:$0xf]
  %v92 = vld [vmem:[%s0 + $0x134] sm:$0xf]
  %v93 = vld [vmem:[%s0 + $0x138] sm:$0xf]
  %v94 = vld [vmem:[%s0 + $0x13c] sm:$0xf]
  %v95 = vld [vmem:[%s0 + $0x140] sm:$0xf]
  %v96 = vld [vmem:[%s0 + $0x144] sm:$0xf]
  %v97 = vld [vmem:[%s0 + $0x148] sm:$0xf]
  %v98 = vld [vmem:[%s0 + $0x14c] sm:$0xf]
  %v99 = vld [vmem:[%s0 + $0x150] sm:$0xf]
  %v100 = vld [vmem:[%s0 + $0x154] sm:$0xf]
  %v101 = vld [vmem:[%s0 + $0x158] sm:$0xf]
  %v102 = vld [vmem:[%s0 + $0x15c] sm:$0xf]
  %v103 = vld [vmem:[%s0 + $0x160] sm:$0xf]
  %v104 = vld [vmem:[%s0 + $0x164] sm:$0xf]
  %v105 = vld [vmem:[%s0 + $0x168] sm:$0xf]
  %v106 = vld [vmem:[%s0 + $0x16c] sm:$0xf]
  %v107 = vld [vmem:[%s0 + $0x170] sm:$0xf]
  %v108 = vld [vmem:[%s0 + $0x174] sm:$0xf]
  %v109 = vld [vmem:[%s0 + $0x178] sm:$0xf]
  %v110 = vld [vmem:[%s0 + $0x17c] sm:$0xf]
  %v111 = vld [vmem:[%s0 + $0x180] sm:$0xf]
  %v112 = vld [vmem:[%s0 + $0x184] sm:$0xf]
  %v113 = vld [vmem:[%s0 + $0x188] sm:$0xf]
  %v114 = vld [vmem:[%s0 + $0x18c] sm:$0xf]
  %v115 = vld [vmem:[%s0 + $0x190] sm:$0xf]
  %v116 = vld [vmem:[%s0 + $0x194] sm:$0xf]
  %v117 = vld [vmem:[%s0 + $0x198] sm:$0xf]
  %v118 = vld [vmem:[%s0 + $0x19c] sm:$0xf]
  %v119 = vld [vmem:[%s0 + $0x1a0] sm:$0xf]
  %v120 = vld [vmem:[%s0 + $0x1a4] sm:$0xf]
  %v121 = vld [vmem:[%s0 + $0x1a8] sm:$0xf]
  %v122 = vld [vmem:[%s0 + $0x1ac] sm:$0xf]
  %v123 = vld [vmem:[%s0 + $0x1b0] sm:$0xf]
  %v124 = vld [vmem:[%s0 + $0x1b4] sm:$0xf]
  %v125 = vld [vmem:[%s0 + $0x1b8] sm:$0xf]
  %v126 = vld [vmem:[%s0 + $0x1bc] sm:$0xf]
  %v127 = vld [vmem:[%s0 + $0x1c0] sm:$0xf]
  %v128 = vld [vmem:[%s0 + $0x1c4] sm:$0xf]
  %v129 = vld [vmem:[%s0 + $0x1c8] sm:$0xf]
  %v130 = vld [vmem:[%s0 + $0x1cc] sm:$0xf]
  %v131 = vld [vmem:[%s0 + $0x1d0] sm:$0xf]
  %v132 = vld [vmem:[%s0 + $0x1d4] sm:$0xf]
  %v133 = vld [vmem:[%s0 + $0x1d8] sm:$0xf]
  %v134 = vld [vmem:[%s0 + $0x1dc] sm:$0xf]
  %v135 = vld [vmem:[%s0 + $0x1e0] sm:$0xf]
  %v136 = vld [vmem:[%s0 + $0x1e4] sm:$0xf]
  %v137 = vld [vmem:[%s0 + $0x1e8] sm:$0xf]
  %v138 = vld [vmem:[%s0 + $0x1ec] sm:$0xf]
  %v139 = vld [vmem:[%s0 + $0x1f0] sm:$0xf]
  %v140 = vld [vmem:[%s0 + $0x1f4] sm:$0xf]
  %v141 = vld [vmem:[%s0 + $0x1f8] sm:$0xf]
  %v142 = vld [vmem:[%s0 + $0x1fc] sm:$0xf]
  %v143 = vld [vmem:[%s1] sm:$0xf]
  %v144 = vld [vmem:[%s1 + $0x4] sm:$0xf]
  %v145 = vld [vmem:[%s1 + $0x8] sm:$0xf]
  %v146 = vld [vmem:[%s1 + $0xc] sm:$0xf]
  %v147 = vld [vmem:[%s1 + $0x10] sm:$0xf]
  %v148 = vld [vmem:[%s1 + $0x14] sm:$0xf]
  %v149 = vld [vmem:[%s1 + $0x18] sm:$0xf]
  %v150 = vld [vmem:[%s1 + $0x1c] sm:$0xf]
  %v151 = vld [vmem:[%s1 + $0x20] sm:$0xf]
  %v152 = vld [vmem:[%s1 + $0x24] sm:$0xf]
  %v153 = vld [vmem:[%s1 + $0x28] sm:$0xf]
  %v154 = vld [vmem:[%s1 + $0x2c] sm:$0xf]
  %v155 = vld [vmem:[%s1 + $0x30] sm:$0x3]
  %v156 = vld [vmem:[%s2] sm:$0x1]
  %v158 = vlaneseq
  %v159 = vshrl.u32 %v158, 7
  %v160 = vsub.s32 0, %v159
  %v161 = vrot.slane %v156, %v160
  %v291 = vunpack.c.l.b16 %v15
  %v292 = vunpack.c.l.b16 %v16
  %v293 = vunpack.c.l.b16 %v17
  %v294 = vunpack.c.l.b16 %v18
  %v295 = vunpack.c.l.b16 %v19
  %v296 = vunpack.c.l.b16 %v20
  %v297 = vunpack.c.l.b16 %v21
  %v298 = vunpack.c.l.b16 %v22
  %v299 = vunpack.c.l.b16 %v23
  %v300 = vunpack.c.l.b16 %v24
  %v301 = vunpack.c.l.b16 %v25
  %v302 = vunpack.c.l.b16 %v26
  %v303 = vunpack.c.l.b16 %v27
  %v304 = vunpack.c.l.b16 %v28
  %v305 = vunpack.c.l.b16 %v29
  %v306 = vunpack.c.l.b16 %v30
  %v307 = vunpack.c.l.b16 %v31
  %v308 = vunpack.c.l.b16 %v32
  %v309 = vunpack.c.l.b16 %v33
  %v310 = vunpack.c.l.b16 %v34
  %v311 = vunpack.c.l.b16 %v35
  %v312 = vunpack.c.l.b16 %v36
  %v313 = vunpack.c.l.b16 %v37
  %v314 = vunpack.c.l.b16 %v38
  %v315 = vunpack.c.l.b16 %v39
  %v316 = vunpack.c.l.b16 %v40
  %v317 = vunpack.c.l.b16 %v41
  %v318 = vunpack.c.l.b16 %v42
  %v319 = vunpack.c.l.b16 %v43
  %v320 = vunpack.c.l.b16 %v44
  %v321 = vunpack.c.l.b16 %v45
  %v322 = vunpack.c.l.b16 %v46
  %v323 = vunpack.c.l.b16 %v47
  %v324 = vunpack.c.l.b16 %v48
  %v325 = vunpack.c.l.b16 %v49
  %v326 = vunpack.c.l.b16 %v50
  %v327 = vunpack.c.l.b16 %v51
  %v328 = vunpack.c.l.b16 %v52
  %v329 = vunpack.c.l.b16 %v53
  %v330 = vunpack.c.l.b16 %v54
  %v331 = vunpack.c.l.b16 %v55
  %v332 = vunpack.c.l.b16 %v56
  %v333 = vunpack.c.l.b16 %v57
  %v334 = vunpack.c.l.b16 %v58
  %v335 = vunpack.c.l.b16 %v59
  %v336 = vunpack.c.l.b16 %v60
  %v337 = vunpack.c.l.b16 %v61
  %v338 = vunpack.c.l.b16 %v62
  %v339 = vunpack.c.l.b16 %v63
  %v340 = vunpack.c.l.b16 %v64
  %v341 = vunpack.c.l.b16 %v65
  %v342 = vunpack.c.l.b16 %v66
  %v343 = vunpack.c.l.b16 %v67
  %v344 = vunpack.c.l.b16 %v68
  %v345 = vunpack.c.l.b16 %v69
  %v346 = vunpack.c.l.b16 %v70
  %v347 = vunpack.c.l.b16 %v71
  %v348 = vunpack.c.l.b16 %v72
  %v349 = vunpack.c.l.b16 %v73
  %v350 = vunpack.c.l.b16 %v74
  %v351 = vunpack.c.l.b16 %v75
  %v352 = vunpack.c.l.b16 %v76
  %v353 = vunpack.c.l.b16 %v77
  %v354 = vunpack.c.l.b16 %v78
  %v355 = vunpack.c.l.b16 %v79
  %v356 = vunpack.c.l.b16 %v80
  %v357 = vunpack.c.l.b16 %v81
  %v358 = vunpack.c.l.b16 %v82
  %v359 = vunpack.c.l.b16 %v83
  %v360 = vunpack.c.l.b16 %v84
  %v361 = vunpack.c.l.b16 %v85
  %v362 = vunpack.c.l.b16 %v86
  %v363 = vunpack.c.l.b16 %v87
  %v364 = vunpack.c.l.b16 %v88
  %v365 = vunpack.c.l.b16 %v89
  %v366 = vunpack.c.l.b16 %v90
  %v367 = vunpack.c.l.b16 %v91
  %v368 = vunpack.c.l.b16 %v92
  %v369 = vunpack.c.l.b16 %v93
  %v370 = vunpack.c.l.b16 %v94
  %v371 = vunpack.c.l.b16 %v95
  %v372 = vunpack.c.l.b16 %v96
  %v373 = vunpack.c.l.b16 %v97
  %v374 = vunpack.c.l.b16 %v98
  %v375 = vunpack.c.l.b16 %v99
  %v376 = vunpack.c.l.b16 %v100
  %v377 = vunpack.c.l.b16 %v101
  %v378 = vunpack.c.l.b16 %v102
  %v379 = vunpack.c.l.b16 %v103
  %v380 = vunpack.c.l.b16 %v104
  %v381 = vunpack.c.l.b16 %v105
  %v382 = vunpack.c.l.b16 %v106
  %v383 = vunpack.c.l.b16 %v107
  %v384 = vunpack.c.l.b16 %v108
  %v385 = vunpack.c.l.b16 %v109
  %v386 = vunpack.c.l.b16 %v110
  %v387 = vunpack.c.l.b16 %v111
  %v388 = vunpack.c.l.b16 %v112
  %v389 = vunpack.c.l.b16 %v113
  %v390 = vunpack.c.l.b16 %v114
  %v391 = vunpack.c.l.b16 %v115
  %v392 = vunpack.c.l.b16 %v116
  %v393 = vunpack.c.l.b16 %v117
  %v394 = vunpack.c.l.b16 %v118
  %v395 = vunpack.c.l.b16 %v119
  %v396 = vunpack.c.l.b16 %v120
  %v397 = vunpack.c.l.b16 %v121
  %v398 = vunpack.c.l.b16 %v122
  %v399 = vunpack.c.l.b16 %v123
  %v400 = vunpack.c.l.b16 %v124
  %v401 = vunpack.c.l.b16 %v125
  %v402 = vunpack.c.l.b16 %v126
  %v403 = vunpack.c.l.b16 %v127
  %v404 = vunpack.c.l.b16 %v128
  %v405 = vunpack.c.l.b16 %v129
  %v406 = vunpack.c.l.b16 %v130
  %v407 = vunpack.c.l.b16 %v131
  %v408 = vunpack.c.l.b16 %v132
  %v409 = vunpack.c.l.b16 %v133
  %v410 = vunpack.c.l.b16 %v134
  %v411 = vunpack.c.l.b16 %v135
  %v412 = vunpack.c.l.b16 %v136
  %v413 = vunpack.c.l.b16 %v137
  %v414 = vunpack.c.l.b16 %v138
  %v415 = vunpack.c.l.b16 %v139
  %v416 = vunpack.c.l.b16 %v140
  %v417 = vunpack.c.l.b16 %v141
  %v418 = vunpack.c.l.b16 %v142
  %v419 = vpack.c.b16 %v292, %v291
  %v420 = vpack.c.b16 %v294, %v293
  %v421 = vpack.c.b16 %v296, %v295
  %v422 = vpack.c.b16 %v298, %v297
  %v423 = vpack.c.b16 %v300, %v299
  %v424 = vpack.c.b16 %v302, %v301
  %v425 = vpack.c.b16 %v304, %v303
  %v426 = vpack.c.b16 %v306, %v305
  %v427 = vpack.c.b16 %v308, %v307
  %v428 = vpack.c.b16 %v310, %v309
  %v429 = vpack.c.b16 %v312, %v311
  %v430 = vpack.c.b16 %v314, %v313
  %v431 = vpack.c.b16 %v316, %v315
  %v432 = vpack.c.b16 %v318, %v317
  %v433 = vpack.c.b16 %v320, %v319
  %v434 = vpack.c.b16 %v322, %v321
  %v435 = vpack.c.b16 %v324, %v323
  %v436 = vpack.c.b16 %v326, %v325
  %v437 = vpack.c.b16 %v328, %v327
  %v438 = vpack.c.b16 %v330, %v329
  %v439 = vpack.c.b16 %v332, %v331
  %v440 = vpack.c.b16 %v334, %v333
  %v441 = vpack.c.b16 %v336, %v335
  %v442 = vpack.c.b16 %v338, %v337
  %v443 = vpack.c.b16 %v340, %v339
  %v444 = vpack.c.b16 %v342, %v341
  %v445 = vpack.c.b16 %v344, %v343
  %v446 = vpack.c.b16 %v346, %v345
  %v447 = vpack.c.b16 %v348, %v347
  %v448 = vpack.c.b16 %v350, %v349
  %v449 = vpack.c.b16 %v352, %v351
  %v450 = vpack.c.b16 %v354, %v353
  %v451 = vpack.c.b16 %v356, %v355
  %v452 = vpack.c.b16 %v358, %v357
  %v453 = vpack.c.b16 %v360, %v359
  %v454 = vpack.c.b16 %v362, %v361
  %v455 = vpack.c.b16 %v364, %v363
  %v456 = vpack.c.b16 %v366, %v365
  %v457 = vpack.c.b16 %v368, %v367
  %v458 = vpack.c.b16 %v370, %v369
  %v459 = vpack.c.b16 %v372, %v371
  %v460 = vpack.c.b16 %v374, %v373
  %v461 = vpack.c.b16 %v376, %v375
  %v462 = vpack.c.b16 %v378, %v377
  %v463 = vpack.c.b16 %v380, %v379
  %v464 = vpack.c.b16 %v382, %v381
  %v465 = vpack.c.b16 %v384, %v383
  %v466 = vpack.c.b16 %v386, %v385
  %v467 = vpack.c.b16 %v388, %v387
  %v468 = vpack.c.b16 %v390, %v389
  %v469 = vpack.c.b16 %v392, %v391
  %v470 = vpack.c.b16 %v394, %v393
  %v471 = vpack.c.b16 %v396, %v395
  %v472 = vpack.c.b16 %v398, %v397
  %v473 = vpack.c.b16 %v400, %v399
  %v474 = vpack.c.b16 %v402, %v401
  %v475 = vpack.c.b16 %v404, %v403
  %v476 = vpack.c.b16 %v406, %v405
  %v477 = vpack.c.b16 %v408, %v407
  %v478 = vpack.c.b16 %v410, %v409
  %v479 = vpack.c.b16 %v412, %v411
  %v480 = vpack.c.b16 %v414, %v413
  %v481 = vpack.c.b16 %v416, %v415
  %v482 = vpack.c.b16 %v418, %v417
  %v496 = vunpack.c.l.b16 %v143
  %v497 = vunpack.c.l.b16 %v144
  %v498 = vunpack.c.l.b16 %v145
  %v499 = vunpack.c.l.b16 %v146
  %v500 = vunpack.c.l.b16 %v147
  %v501 = vunpack.c.l.b16 %v148
  %v502 = vunpack.c.l.b16 %v149
  %v503 = vunpack.c.l.b16 %v150
  %v504 = vunpack.c.l.b16 %v151
  %v505 = vunpack.c.l.b16 %v152
  %v506 = vunpack.c.l.b16 %v153
  %v507 = vunpack.c.l.b16 %v154
  %v508 = vunpack.c.l.b16 %v155
  %v509 = vpack.c.b16 %v497, %v496
  %v510 = vpack.c.b16 %v499, %v498
  %v511 = vpack.c.b16 %v501, %v500
  %v512 = vpack.c.b16 %v503, %v502
  %v513 = vpack.c.b16 %v505, %v504
  %v514 = vpack.c.b16 %v507, %v506
  %v515 = vpack.c.b16 %v508, %v508
  %vm522 = vcmask 809984
  %v524 = vsel %vm522, %v419, 0
  %v527 = vsel %vm522, %v420, 0
  %v530 = vsel %vm522, %v421, 0
  %v533 = vsel %vm522, %v422, 0
  %v536 = vsel %vm522, %v423, 0
  %v539 = vsel %vm522, %v424, 0
  %v542 = vsel %vm522, %v425, 0
  %v545 = vsel %vm522, %v426, 0
  %v548 = vsel %vm522, %v427, 0
  %v551 = vsel %vm522, %v428, 0
  %v554 = vsel %vm522, %v429, 0
  %v557 = vsel %vm522, %v430, 0
  %v560 = vsel %vm522, %v431, 0
  %v563 = vsel %vm522, %v432, 0
  %v566 = vsel %vm522, %v433, 0
  %v569 = vsel %vm522, %v434, 0
  %v572 = vsel %vm522, %v435, 0
  %v575 = vsel %vm522, %v436, 0
  %v578 = vsel %vm522, %v437, 0
  %v581 = vsel %vm522, %v438, 0
  %v584 = vsel %vm522, %v439, 0
  %v587 = vsel %vm522, %v440, 0
  %v590 = vsel %vm522, %v441, 0
  %v593 = vsel %vm522, %v442, 0
  %v596 = vsel %vm522, %v443, 0
  %v599 = vsel %vm522, %v444, 0
  %v602 = vsel %vm522, %v445, 0
  %v605 = vsel %vm522, %v446, 0
  %v608 = vsel %vm522, %v447, 0
  %v611 = vsel %vm522, %v448, 0
  %v614 = vsel %vm522, %v449, 0
  %v617 = vsel %vm522, %v450, 0
  %v620 = vsel %vm522, %v451, 0
  %v623 = vsel %vm522, %v452, 0
  %v626 = vsel %vm522, %v453, 0
  %v629 = vsel %vm522, %v454, 0
  %v632 = vsel %vm522, %v455, 0
  %v635 = vsel %vm522, %v456, 0
  %v638 = vsel %vm522, %v457, 0
  %v641 = vsel %vm522, %v458, 0
  %v644 = vsel %vm522, %v459, 0
  %v647 = vsel %vm522, %v460, 0
  %v650 = vsel %vm522, %v461, 0
  %v653 = vsel %vm522, %v462, 0
  %v656 = vsel %vm522, %v463, 0
  %v659 = vsel %vm522, %v464, 0
  %v662 = vsel %vm522, %v465, 0
  %v665 = vsel %vm522, %v466, 0
  %v668 = vsel %vm522, %v467, 0
  %v671 = vsel %vm522, %v468, 0
  %v674 = vsel %vm522, %v469, 0
  %v677 = vsel %vm522, %v470, 0
  %v680 = vsel %vm522, %v471, 0
  %v683 = vsel %vm522, %v472, 0
  %v686 = vsel %vm522, %v473, 0
  %v689 = vsel %vm522, %v474, 0
  %v692 = vsel %vm522, %v475, 0
  %v695 = vsel %vm522, %v476, 0
  %v698 = vsel %vm522, %v477, 0
  %v701 = vsel %vm522, %v478, 0
  %v704 = vsel %vm522, %v479, 0
  %v707 = vsel %vm522, %v480, 0
  %v710 = vsel %vm522, %v481, 0
  %v713 = vsel %vm522, %v482, 0
  %vm715 = vcmask 1040384
  %vm716 = vcmask 1041408
  %v717 = vsel %vm715, 4294967295, 65535
  %v718 = vsel %vm716, %v717, 0
  %v720 = vand.u32 %v515, %v718
  %722 = vmatprep.subr.bf16.mxu0 0
  %723 = vmatpush1.bf16.msra.mxu0 0
  %724 = vmatprep.subr.bf16.mxu0 0
  %725 = vmatpush1.bf16.msra.mxu0 %v720
  %726 = vmatprep.subr.bf16.mxu0 0
  %727 = vmatpush1.bf16.msra.mxu0 %v514
  %728 = vmatprep.subr.bf16.mxu0 0
  %729 = vmatpush1.bf16.msra.mxu0 %v513
  %730 = vmatprep.subr.bf16.mxu0 0
  %731 = vmatpush1.bf16.msra.mxu0 %v512
  %732 = vmatprep.subr.bf16.mxu0 0
  %733 = vmatpush1.bf16.msra.mxu0 %v511
  %734 = vmatprep.subr.bf16.mxu0 0
  %735 = vmatpush1.bf16.msra.mxu0 %v510
  %736 = vmatprep.subr.bf16.mxu0 0
  %737 = vmatpush1.bf16.msra.mxu0 %v509
  %738 = vmatprep.subr.bf16.mxu0 0
  %739 = vmatpush2.bf16.msra.mxu0 0
  %740 = vmatprep.subr.bf16.mxu0 0
  %741 = vmatpush2.bf16.msra.mxu0 0
  %742 = vmatprep.subr.bf16.mxu0 0
  %743 = vmatpush2.bf16.msra.mxu0 0
  %744 = vmatprep.subr.bf16.mxu0 0
  %745 = vmatpush2.bf16.msra.mxu0 0
  %746 = vmatprep.subr.bf16.mxu0 0
  %747 = vmatpush2.bf16.msra.mxu0 0
  %748 = vmatprep.subr.bf16.mxu0 0
  %749 = vmatpush2.bf16.msra.mxu0 0
  %750 = vmatprep.subr.bf16.mxu0 0
  %751 = vmatpush2.bf16.msra.mxu0 0
  %752 = vmatprep.subr.bf16.mxu0 0
  %753 = vmatpush2.bf16.msra.mxu0 0
  %754 = vmatprep.mubr.bf16.mxu0 0
  %755 = vmatmul.mubr.bf16.gmra.mxu0 %v524
  %v756 = vpop.f32.mrf.mxu0
  %v757 = vadd.f32 %v161, %v756
  %v758 = vpop.f32.mrf.mxu0
  %v759 = vpop.f32.mrf.mxu0
  %v760 = vadd.f32 %v161, %v759
  %v761 = vpop.f32.mrf.mxu0
  %762 = vmatprep.mubr.bf16.mxu0 0
  %763 = vmatmul.mubr.bf16.gmra.mxu0 %v527
  %v764 = vpop.f32.mrf.mxu0
  %v765 = vadd.f32 %v161, %v764
  %v766 = vpop.f32.mrf.mxu0
  %v767 = vpop.f32.mrf.mxu0
  %v768 = vadd.f32 %v161, %v767
  %v769 = vpop.f32.mrf.mxu0
  %770 = vmatprep.mubr.bf16.mxu0 0
  %771 = vmatmul.mubr.bf16.gmra.mxu0 %v530
  %v772 = vpop.f32.mrf.mxu0
  %v773 = vadd.f32 %v161, %v772
  %v774 = vpop.f32.mrf.mxu0
  %v775 = vpop.f32.mrf.mxu0
  %v776 = vadd.f32 %v161, %v775
  %v777 = vpop.f32.mrf.mxu0
  %778 = vmatprep.mubr.bf16.mxu0 0
  %779 = vmatmul.mubr.bf16.gmra.mxu0 %v533
  %v780 = vpop.f32.mrf.mxu0
  %v781 = vadd.f32 %v161, %v780
  %v782 = vpop.f32.mrf.mxu0
  %v783 = vpop.f32.mrf.mxu0
  %v784 = vadd.f32 %v161, %v783
  %v785 = vpop.f32.mrf.mxu0
  %786 = vmatprep.mubr.bf16.mxu0 0
  %787 = vmatmul.mubr.bf16.gmra.mxu0 %v536
  %v788 = vpop.f32.mrf.mxu0
  %v789 = vadd.f32 %v161, %v788
  %v790 = vpop.f32.mrf.mxu0
  %v791 = vpop.f32.mrf.mxu0
  %v792 = vadd.f32 %v161, %v791
  %v793 = vpop.f32.mrf.mxu0
  %794 = vmatprep.mubr.bf16.mxu0 0
  %795 = vmatmul.mubr.bf16.gmra.mxu0 %v539
  %v796 = vpop.f32.mrf.mxu0
  %v797 = vadd.f32 %v161, %v796
  %v798 = vpop.f32.mrf.mxu0
  %v799 = vpop.f32.mrf.mxu0
  %v800 = vadd.f32 %v161, %v799
  %v801 = vpop.f32.mrf.mxu0
  %802 = vmatprep.mubr.bf16.mxu0 0
  %803 = vmatmul.mubr.bf16.gmra.mxu0 %v542
  %v804 = vpop.f32.mrf.mxu0
  %v805 = vadd.f32 %v161, %v804
  %v806 = vpop.f32.mrf.mxu0
  %v807 = vpop.f32.mrf.mxu0
  %v808 = vadd.f32 %v161, %v807
  %v809 = vpop.f32.mrf.mxu0
  %810 = vmatprep.mubr.bf16.mxu0 0
  %811 = vmatmul.mubr.bf16.gmra.mxu0 %v545
  %v812 = vpop.f32.mrf.mxu0
  %v813 = vadd.f32 %v161, %v812
  %v814 = vpop.f32.mrf.mxu0
  %v815 = vpop.f32.mrf.mxu0
  %v816 = vadd.f32 %v161, %v815
  %v817 = vpop.f32.mrf.mxu0
  %818 = vmatprep.mubr.bf16.mxu0 0
  %819 = vmatmul.mubr.bf16.gmra.mxu0 %v548
  %v820 = vpop.f32.mrf.mxu0
  %v821 = vadd.f32 %v161, %v820
  %v822 = vpop.f32.mrf.mxu0
  %v823 = vpop.f32.mrf.mxu0
  %v824 = vadd.f32 %v161, %v823
  %v825 = vpop.f32.mrf.mxu0
  %826 = vmatprep.mubr.bf16.mxu0 0
  %827 = vmatmul.mubr.bf16.gmra.mxu0 %v551
  %v828 = vpop.f32.mrf.mxu0
  %v829 = vadd.f32 %v161, %v828
  %v830 = vpop.f32.mrf.mxu0
  %v831 = vpop.f32.mrf.mxu0
  %v832 = vadd.f32 %v161, %v831
  %v833 = vpop.f32.mrf.mxu0
  %834 = vmatprep.mubr.bf16.mxu0 0
  %835 = vmatmul.mubr.bf16.gmra.mxu0 %v554
  %v836 = vpop.f32.mrf.mxu0
  %v837 = vadd.f32 %v161, %v836
  %v838 = vpop.f32.mrf.mxu0
  %v839 = vpop.f32.mrf.mxu0
  %v840 = vadd.f32 %v161, %v839
  %v841 = vpop.f32.mrf.mxu0
  %842 = vmatprep.mubr.bf16.mxu0 0
  %843 = vmatmul.mubr.bf16.gmra.mxu0 %v557
  %v844 = vpop.f32.mrf.mxu0
  %v845 = vadd.f32 %v161, %v844
  %v846 = vpop.f32.mrf.mxu0
  %v847 = vpop.f32.mrf.mxu0
  %v848 = vadd.f32 %v161, %v847
  %v849 = vpop.f32.mrf.mxu0
  %850 = vmatprep.mubr.bf16.mxu0 0
  %851 = vmatmul.mubr.bf16.gmra.mxu0 %v560
  %v852 = vpop.f32.mrf.mxu0
  %v853 = vadd.f32 %v161, %v852
  %v854 = vpop.f32.mrf.mxu0
  %v855 = vpop.f32.mrf.mxu0
  %v856 = vadd.f32 %v161, %v855
  %v857 = vpop.f32.mrf.mxu0
  %858 = vmatprep.mubr.bf16.mxu0 0
  %859 = vmatmul.mubr.bf16.gmra.mxu0 %v563
  %v860 = vpop.f32.mrf.mxu0
  %v861 = vadd.f32 %v161, %v860
  %v862 = vpop.f32.mrf.mxu0
  %v863 = vpop.f32.mrf.mxu0
  %v864 = vadd.f32 %v161, %v863
  %v865 = vpop.f32.mrf.mxu0
  %866 = vmatprep.mubr.bf16.mxu0 0
  %867 = vmatmul.mubr.bf16.gmra.mxu0 %v566
  %v868 = vpop.f32.mrf.mxu0
  %v869 = vadd.f32 %v161, %v868
  %v870 = vpop.f32.mrf.mxu0
  %v871 = vpop.f32.mrf.mxu0
  %v872 = vadd.f32 %v161, %v871
  %v873 = vpop.f32.mrf.mxu0
  %874 = vmatprep.mubr.bf16.mxu0 0
  %875 = vmatmul.mubr.bf16.gmra.mxu0 %v569
  %v876 = vpop.f32.mrf.mxu0
  %v877 = vadd.f32 %v161, %v876
  %v878 = vpop.f32.mrf.mxu0
  %v879 = vpop.f32.mrf.mxu0
  %v880 = vadd.f32 %v161, %v879
  %v881 = vpop.f32.mrf.mxu0
  %882 = vmatprep.mubr.bf16.mxu0 0
  %883 = vmatmul.mubr.bf16.gmra.mxu0 %v572
  %v884 = vpop.f32.mrf.mxu0
  %v885 = vadd.f32 %v161, %v884
  %v886 = vpop.f32.mrf.mxu0
  %v887 = vpop.f32.mrf.mxu0
  %v888 = vadd.f32 %v161, %v887
  %v889 = vpop.f32.mrf.mxu0
  %890 = vmatprep.mubr.bf16.mxu0 0
  %891 = vmatmul.mubr.bf16.gmra.mxu0 %v575
  %v892 = vpop.f32.mrf.mxu0
  %v893 = vadd.f32 %v161, %v892
  %v894 = vpop.f32.mrf.mxu0
  %v895 = vpop.f32.mrf.mxu0
  %v896 = vadd.f32 %v161, %v895
  %v897 = vpop.f32.mrf.mxu0
  %898 = vmatprep.mubr.bf16.mxu0 0
  %899 = vmatmul.mubr.bf16.gmra.mxu0 %v578
  %v900 = vpop.f32.mrf.mxu0
  %v901 = vadd.f32 %v161, %v900
  %v902 = vpop.f32.mrf.mxu0
  %v903 = vpop.f32.mrf.mxu0
  %v904 = vadd.f32 %v161, %v903
  %v905 = vpop.f32.mrf.mxu0
  %906 = vmatprep.mubr.bf16.mxu0 0
  %907 = vmatmul.mubr.bf16.gmra.mxu0 %v581
  %v908 = vpop.f32.mrf.mxu0
  %v909 = vadd.f32 %v161, %v908
  %v910 = vpop.f32.mrf.mxu0
  %v911 = vpop.f32.mrf.mxu0
  %v912 = vadd.f32 %v161, %v911
  %v913 = vpop.f32.mrf.mxu0
  %914 = vmatprep.mubr.bf16.mxu0 0
  %915 = vmatmul.mubr.bf16.gmra.mxu0 %v584
  %v916 = vpop.f32.mrf.mxu0
  %v917 = vadd.f32 %v161, %v916
  %v918 = vpop.f32.mrf.mxu0
  %v919 = vpop.f32.mrf.mxu0
  %v920 = vadd.f32 %v161, %v919
  %v921 = vpop.f32.mrf.mxu0
  %922 = vmatprep.mubr.bf16.mxu0 0
  %923 = vmatmul.mubr.bf16.gmra.mxu0 %v587
  %v924 = vpop.f32.mrf.mxu0
  %v925 = vadd.f32 %v161, %v924
  %v926 = vpop.f32.mrf.mxu0
  %v927 = vpop.f32.mrf.mxu0
  %v928 = vadd.f32 %v161, %v927
  %v929 = vpop.f32.mrf.mxu0
  %930 = vmatprep.mubr.bf16.mxu0 0
  %931 = vmatmul.mubr.bf16.gmra.mxu0 %v590
  %v932 = vpop.f32.mrf.mxu0
  %v933 = vadd.f32 %v161, %v932
  %v934 = vpop.f32.mrf.mxu0
  %v935 = vpop.f32.mrf.mxu0
  %v936 = vadd.f32 %v161, %v935
  %v937 = vpop.f32.mrf.mxu0
  %938 = vmatprep.mubr.bf16.mxu0 0
  %939 = vmatmul.mubr.bf16.gmra.mxu0 %v593
  %v940 = vpop.f32.mrf.mxu0
  %v941 = vadd.f32 %v161, %v940
  %v942 = vpop.f32.mrf.mxu0
  %v943 = vpop.f32.mrf.mxu0
  %v944 = vadd.f32 %v161, %v943
  %v945 = vpop.f32.mrf.mxu0
  %946 = vmatprep.mubr.bf16.mxu0 0
  %947 = vmatmul.mubr.bf16.gmra.mxu0 %v596
  %v948 = vpop.f32.mrf.mxu0
  %v949 = vadd.f32 %v161, %v948
  %v950 = vpop.f32.mrf.mxu0
  %v951 = vpop.f32.mrf.mxu0
  %v952 = vadd.f32 %v161, %v951
  %v953 = vpop.f32.mrf.mxu0
  %954 = vmatprep.mubr.bf16.mxu0 0
  %955 = vmatmul.mubr.bf16.gmra.mxu0 %v599
  %v956 = vpop.f32.mrf.mxu0
  %v957 = vadd.f32 %v161, %v956
  %v958 = vpop.f32.mrf.mxu0
  %v959 = vpop.f32.mrf.mxu0
  %v960 = vadd.f32 %v161, %v959
  %v961 = vpop.f32.mrf.mxu0
  %962 = vmatprep.mubr.bf16.mxu0 0
  %963 = vmatmul.mubr.bf16.gmra.mxu0 %v602
  %v964 = vpop.f32.mrf.mxu0
  %v965 = vadd.f32 %v161, %v964
  %v966 = vpop.f32.mrf.mxu0
  %v967 = vpop.f32.mrf.mxu0
  %v968 = vadd.f32 %v161, %v967
  %v969 = vpop.f32.mrf.mxu0
  %970 = vmatprep.mubr.bf16.mxu0 0
  %971 = vmatmul.mubr.bf16.gmra.mxu0 %v605
  %v972 = vpop.f32.mrf.mxu0
  %v973 = vadd.f32 %v161, %v972
  %v974 = vpop.f32.mrf.mxu0
  %v975 = vpop.f32.mrf.mxu0
  %v976 = vadd.f32 %v161, %v975
  %v977 = vpop.f32.mrf.mxu0
  %978 = vmatprep.mubr.bf16.mxu0 0
  %979 = vmatmul.mubr.bf16.gmra.mxu0 %v608
  %v980 = vpop.f32.mrf.mxu0
  %v981 = vadd.f32 %v161, %v980
  %v982 = vpop.f32.mrf.mxu0
  %v983 = vpop.f32.mrf.mxu0
  %v984 = vadd.f32 %v161, %v983
  %v985 = vpop.f32.mrf.mxu0
  %986 = vmatprep.mubr.bf16.mxu0 0
  %987 = vmatmul.mubr.bf16.gmra.mxu0 %v611
  %v988 = vpop.f32.mrf.mxu0
  %v989 = vadd.f32 %v161, %v988
  %v990 = vpop.f32.mrf.mxu0
  %v991 = vpop.f32.mrf.mxu0
  %v992 = vadd.f32 %v161, %v991
  %v993 = vpop.f32.mrf.mxu0
  %994 = vmatprep.mubr.bf16.mxu0 0
  %995 = vmatmul.mubr.bf16.gmra.mxu0 %v614
  %v996 = vpop.f32.mrf.mxu0
  %v997 = vadd.f32 %v161, %v996
  %v998 = vpop.f32.mrf.mxu0
  %v999 = vpop.f32.mrf.mxu0
  %v1000 = vadd.f32 %v161, %v999
  %v1001 = vpop.f32.mrf.mxu0
  %1002 = vmatprep.mubr.bf16.mxu0 0
  %1003 = vmatmul.mubr.bf16.gmra.mxu0 %v617
  %v1004 = vpop.f32.mrf.mxu0
  %v1005 = vadd.f32 %v161, %v1004
  %v1006 = vpop.f32.mrf.mxu0
  %v1007 = vpop.f32.mrf.mxu0
  %v1008 = vadd.f32 %v161, %v1007
  %v1009 = vpop.f32.mrf.mxu0
  %1010 = vmatprep.mubr.bf16.mxu0 0
  %1011 = vmatmul.mubr.bf16.gmra.mxu0 %v620
  %v1012 = vpop.f32.mrf.mxu0
  %v1013 = vadd.f32 %v161, %v1012
  %v1014 = vpop.f32.mrf.mxu0
  %v1015 = vpop.f32.mrf.mxu0
  %v1016 = vadd.f32 %v161, %v1015
  %v1017 = vpop.f32.mrf.mxu0
  %1018 = vmatprep.mubr.bf16.mxu0 0
  %1019 = vmatmul.mubr.bf16.gmra.mxu0 %v623
  %v1020 = vpop.f32.mrf.mxu0
  %v1021 = vadd.f32 %v161, %v1020
  %v1022 = vpop.f32.mrf.mxu0
  %v1023 = vpop.f32.mrf.mxu0
  %v1024 = vadd.f32 %v161, %v1023
  %v1025 = vpop.f32.mrf.mxu0
  %1026 = vmatprep.mubr.bf16.mxu0 0
  %1027 = vmatmul.mubr.bf16.gmra.mxu0 %v626
  %v1028 = vpop.f32.mrf.mxu0
  %v1029 = vadd.f32 %v161, %v1028
  %v1030 = vpop.f32.mrf.mxu0
  %v1031 = vpop.f32.mrf.mxu0
  %v1032 = vadd.f32 %v161, %v1031
  %v1033 = vpop.f32.mrf.mxu0
  %1034 = vmatprep.mubr.bf16.mxu0 0
  %1035 = vmatmul.mubr.bf16.gmra.mxu0 %v629
  %v1036 = vpop.f32.mrf.mxu0
  %v1037 = vadd.f32 %v161, %v1036
  %v1038 = vpop.f32.mrf.mxu0
  %v1039 = vpop.f32.mrf.mxu0
  %v1040 = vadd.f32 %v161, %v1039
  %v1041 = vpop.f32.mrf.mxu0
  %1042 = vmatprep.mubr.bf16.mxu0 0
  %1043 = vmatmul.mubr.bf16.gmra.mxu0 %v632
  %v1044 = vpop.f32.mrf.mxu0
  %v1045 = vadd.f32 %v161, %v1044
  %v1046 = vpop.f32.mrf.mxu0
  %v1047 = vpop.f32.mrf.mxu0
  %v1048 = vadd.f32 %v161, %v1047
  %v1049 = vpop.f32.mrf.mxu0
  %1050 = vmatprep.mubr.bf16.mxu0 0
  %1051 = vmatmul.mubr.bf16.gmra.mxu0 %v635
  %v1052 = vpop.f32.mrf.mxu0
  %v1053 = vadd.f32 %v161, %v1052
  %v1054 = vpop.f32.mrf.mxu0
  %v1055 = vpop.f32.mrf.mxu0
  %v1056 = vadd.f32 %v161, %v1055
  %v1057 = vpop.f32.mrf.mxu0
  %1058 = vmatprep.mubr.bf16.mxu0 0
  %1059 = vmatmul.mubr.bf16.gmra.mxu0 %v638
  %v1060 = vpop.f32.mrf.mxu0
  %v1061 = vadd.f32 %v161, %v1060
  %v1062 = vpop.f32.mrf.mxu0
  %v1063 = vpop.f32.mrf.mxu0
  %v1064 = vadd.f32 %v161, %v1063
  %v1065 = vpop.f32.mrf.mxu0
  %1066 = vmatprep.mubr.bf16.mxu0 0
  %1067 = vmatmul.mubr.bf16.gmra.mxu0 %v641
  %v1068 = vpop.f32.mrf.mxu0
  %v1069 = vadd.f32 %v161, %v1068
  %v1070 = vpop.f32.mrf.mxu0
  %v1071 = vpop.f32.mrf.mxu0
  %v1072 = vadd.f32 %v161, %v1071
  %v1073 = vpop.f32.mrf.mxu0
  %1074 = vmatprep.mubr.bf16.mxu0 0
  %1075 = vmatmul.mubr.bf16.gmra.mxu0 %v644
  %v1076 = vpop.f32.mrf.mxu0
  %v1077 = vadd.f32 %v161, %v1076
  %v1078 = vpop.f32.mrf.mxu0
  %v1079 = vpop.f32.mrf.mxu0
  %v1080 = vadd.f32 %v161, %v1079
  %v1081 = vpop.f32.mrf.mxu0
  %1082 = vmatprep.mubr.bf16.mxu0 0
  %1083 = vmatmul.mubr.bf16.gmra.mxu0 %v647
  %v1084 = vpop.f32.mrf.mxu0
  %v1085 = vadd.f32 %v161, %v1084
  %v1086 = vpop.f32.mrf.mxu0
  %v1087 = vpop.f32.mrf.mxu0
  %v1088 = vadd.f32 %v161, %v1087
  %v1089 = vpop.f32.mrf.mxu0
  %1090 = vmatprep.mubr.bf16.mxu0 0
  %1091 = vmatmul.mubr.bf16.gmra.mxu0 %v650
  %v1092 = vpop.f32.mrf.mxu0
  %v1093 = vadd.f32 %v161, %v1092
  %v1094 = vpop.f32.mrf.mxu0
  %v1095 = vpop.f32.mrf.mxu0
  %v1096 = vadd.f32 %v161, %v1095
  %v1097 = vpop.f32.mrf.mxu0
  %1098 = vmatprep.mubr.bf16.mxu0 0
  %1099 = vmatmul.mubr.bf16.gmra.mxu0 %v653
  %v1100 = vpop.f32.mrf.mxu0
  %v1101 = vadd.f32 %v161, %v1100
  %v1102 = vpop.f32.mrf.mxu0
  %v1103 = vpop.f32.mrf.mxu0
  %v1104 = vadd.f32 %v161, %v1103
  %v1105 = vpop.f32.mrf.mxu0
  %1106 = vmatprep.mubr.bf16.mxu0 0
  %1107 = vmatmul.mubr.bf16.gmra.mxu0 %v656
  %v1108 = vpop.f32.mrf.mxu0
  %v1109 = vadd.f32 %v161, %v1108
  %v1110 = vpop.f32.mrf.mxu0
  %v1111 = vpop.f32.mrf.mxu0
  %v1112 = vadd.f32 %v161, %v1111
  %v1113 = vpop.f32.mrf.mxu0
  %1114 = vmatprep.mubr.bf16.mxu0 0
  %1115 = vmatmul.mubr.bf16.gmra.mxu0 %v659
  %v1116 = vpop.f32.mrf.mxu0
  %v1117 = vadd.f32 %v161, %v1116
  %v1118 = vpop.f32.mrf.mxu0
  %v1119 = vpop.f32.mrf.mxu0
  %v1120 = vadd.f32 %v161, %v1119
  %v1121 = vpop.f32.mrf.mxu0
  %1122 = vmatprep.mubr.bf16.mxu0 0
  %1123 = vmatmul.mubr.bf16.gmra.mxu0 %v662
  %v1124 = vpop.f32.mrf.mxu0
  %v1125 = vadd.f32 %v161, %v1124
  %v1126 = vpop.f32.mrf.mxu0
  %v1127 = vpop.f32.mrf.mxu0
  %v1128 = vadd.f32 %v161, %v1127
  %v1129 = vpop.f32.mrf.mxu0
  %1130 = vmatprep.mubr.bf16.mxu0 0
  %1131 = vmatmul.mubr.bf16.gmra.mxu0 %v665
  %v1132 = vpop.f32.mrf.mxu0
  %v1133 = vadd.f32 %v161, %v1132
  %v1134 = vpop.f32.mrf.mxu0
  %v1135 = vpop.f32.mrf.mxu0
  %v1136 = vadd.f32 %v161, %v1135
  %v1137 = vpop.f32.mrf.mxu0
  %1138 = vmatprep.mubr.bf16.mxu0 0
  %1139 = vmatmul.mubr.bf16.gmra.mxu0 %v668
  %v1140 = vpop.f32.mrf.mxu0
  %v1141 = vadd.f32 %v161, %v1140
  %v1142 = vpop.f32.mrf.mxu0
  %v1143 = vpop.f32.mrf.mxu0
  %v1144 = vadd.f32 %v161, %v1143
  %v1145 = vpop.f32.mrf.mxu0
  %1146 = vmatprep.mubr.bf16.mxu0 0
  %1147 = vmatmul.mubr.bf16.gmra.mxu0 %v671
  %v1148 = vpop.f32.mrf.mxu0
  %v1149 = vadd.f32 %v161, %v1148
  %v1150 = vpop.f32.mrf.mxu0
  %v1151 = vpop.f32.mrf.mxu0
  %v1152 = vadd.f32 %v161, %v1151
  %v1153 = vpop.f32.mrf.mxu0
  %1154 = vmatprep.mubr.bf16.mxu0 0
  %1155 = vmatmul.mubr.bf16.gmra.mxu0 %v674
  %v1156 = vpop.f32.mrf.mxu0
  %v1157 = vadd.f32 %v161, %v1156
  %v1158 = vpop.f32.mrf.mxu0
  %v1159 = vpop.f32.mrf.mxu0
  %v1160 = vadd.f32 %v161, %v1159
  %v1161 = vpop.f32.mrf.mxu0
  %1162 = vmatprep.mubr.bf16.mxu0 0
  %1163 = vmatmul.mubr.bf16.gmra.mxu0 %v677
  %v1164 = vpop.f32.mrf.mxu0
  %v1165 = vadd.f32 %v161, %v1164
  %v1166 = vpop.f32.mrf.mxu0
  %v1167 = vpop.f32.mrf.mxu0
  %v1168 = vadd.f32 %v161, %v1167
  %v1169 = vpop.f32.mrf.mxu0
  %1170 = vmatprep.mubr.bf16.mxu0 0
  %1171 = vmatmul.mubr.bf16.gmra.mxu0 %v680
  %v1172 = vpop.f32.mrf.mxu0
  %v1173 = vadd.f32 %v161, %v1172
  %v1174 = vpop.f32.mrf.mxu0
  %v1175 = vpop.f32.mrf.mxu0
  %v1176 = vadd.f32 %v161, %v1175
  %v1177 = vpop.f32.mrf.mxu0
  %1178 = vmatprep.mubr.bf16.mxu0 0
  %1179 = vmatmul.mubr.bf16.gmra.mxu0 %v683
  %v1180 = vpop.f32.mrf.mxu0
  %v1181 = vadd.f32 %v161, %v1180
  %v1182 = vpop.f32.mrf.mxu0
  %v1183 = vpop.f32.mrf.mxu0
  %v1184 = vadd.f32 %v161, %v1183
  %v1185 = vpop.f32.mrf.mxu0
  %1186 = vmatprep.mubr.bf16.mxu0 0
  %1187 = vmatmul.mubr.bf16.gmra.mxu0 %v686
  %v1188 = vpop.f32.mrf.mxu0
  %v1189 = vadd.f32 %v161, %v1188
  %v1190 = vpop.f32.mrf.mxu0
  %v1191 = vpop.f32.mrf.mxu0
  %v1192 = vadd.f32 %v161, %v1191
  %v1193 = vpop.f32.mrf.mxu0
  %1194 = vmatprep.mubr.bf16.mxu0 0
  %1195 = vmatmul.mubr.bf16.gmra.mxu0 %v689
  %v1196 = vpop.f32.mrf.mxu0
  %v1197 = vadd.f32 %v161, %v1196
  %v1198 = vpop.f32.mrf.mxu0
  %v1199 = vpop.f32.mrf.mxu0
  %v1200 = vadd.f32 %v161, %v1199
  %v1201 = vpop.f32.mrf.mxu0
  %1202 = vmatprep.mubr.bf16.mxu0 0
  %1203 = vmatmul.mubr.bf16.gmra.mxu0 %v692
  %v1204 = vpop.f32.mrf.mxu0
  %v1205 = vadd.f32 %v161, %v1204
  %v1206 = vpop.f32.mrf.mxu0
  %v1207 = vpop.f32.mrf.mxu0
  %v1208 = vadd.f32 %v161, %v1207
  %v1209 = vpop.f32.mrf.mxu0
  %1210 = vmatprep.mubr.bf16.mxu0 0
  %1211 = vmatmul.mubr.bf16.gmra.mxu0 %v695
  %v1212 = vpop.f32.mrf.mxu0
  %v1213 = vadd.f32 %v161, %v1212
  %v1214 = vpop.f32.mrf.mxu0
  %v1215 = vpop.f32.mrf.mxu0
  %v1216 = vadd.f32 %v161, %v1215
  %v1217 = vpop.f32.mrf.mxu0
  %1218 = vmatprep.mubr.bf16.mxu0 0
  %1219 = vmatmul.mubr.bf16.gmra.mxu0 %v698
  %v1220 = vpop.f32.mrf.mxu0
  %v1221 = vadd.f32 %v161, %v1220
  %v1222 = vpop.f32.mrf.mxu0
  %v1223 = vpop.f32.mrf.mxu0
  %v1224 = vadd.f32 %v161, %v1223
  %v1225 = vpop.f32.mrf.mxu0
  %1226 = vmatprep.mubr.bf16.mxu0 0
  %1227 = vmatmul.mubr.bf16.gmra.mxu0 %v701
  %v1228 = vpop.f32.mrf.mxu0
  %v1229 = vadd.f32 %v161, %v1228
  %v1230 = vpop.f32.mrf.mxu0
  %v1231 = vpop.f32.mrf.mxu0
  %v1232 = vadd.f32 %v161, %v1231
  %v1233 = vpop.f32.mrf.mxu0
  %1234 = vmatprep.mubr.bf16.mxu0 0
  %1235 = vmatmul.mubr.bf16.gmra.mxu0 %v704
  %v1236 = vpop.f32.mrf.mxu0
  %v1237 = vadd.f32 %v161, %v1236
  %v1238 = vpop.f32.mrf.mxu0
  %v1239 = vpop.f32.mrf.mxu0
  %v1240 = vadd.f32 %v161, %v1239
  %v1241 = vpop.f32.mrf.mxu0
  %1242 = vmatprep.mubr.bf16.mxu0 0
  %1243 = vmatmul.mubr.bf16.gmra.mxu0 %v707
  %v1244 = vpop.f32.mrf.mxu0
  %v1245 = vadd.f32 %v161, %v1244
  %v1246 = vpop.f32.mrf.mxu0
  %v1247 = vpop.f32.mrf.mxu0
  %v1248 = vadd.f32 %v161, %v1247
  %v1249 = vpop.f32.mrf.mxu0
  %1250 = vmatprep.mubr.bf16.mxu0 0
  %1251 = vmatmul.mubr.bf16.gmra.mxu0 %v710
  %v1252 = vpop.f32.mrf.mxu0
  %v1253 = vadd.f32 %v161, %v1252
  %v1254 = vpop.f32.mrf.mxu0
  %v1255 = vpop.f32.mrf.mxu0
  %v1256 = vadd.f32 %v161, %v1255
  %v1257 = vpop.f32.mrf.mxu0
  %1258 = vmatprep.mubr.bf16.mxu0 0
  %1259 = vmatmul.mubr.bf16.gmra.mxu0 %v713
  %v1260 = vpop.f32.mrf.mxu0
  %v1261 = vadd.f32 %v161, %v1260
  %v1262 = vpop.f32.mrf.mxu0
  %v1263 = vpop.f32.mrf.mxu0
  %v1264 = vadd.f32 %v161, %v1263
  %v1265 = vpop.f32.mrf.mxu0
  %1266 = vdwg.mxu0
  %v1267 = vmul.f32 %v757, 0.2
  %v1268 = vmul.f32 %v760, 0.2
  %v1269 = vmul.f32 %v765, 0.2
  %v1270 = vmul.f32 %v768, 0.2
  %v1271 = vmul.f32 %v773, 0.2
  %v1272 = vmul.f32 %v776, 0.2
  %v1273 = vmul.f32 %v781, 0.2
  %v1274 = vmul.f32 %v784, 0.2
  %v1275 = vmul.f32 %v789, 0.2
  %v1276 = vmul.f32 %v792, 0.2
  %v1277 = vmul.f32 %v797, 0.2
  %v1278 = vmul.f32 %v800, 0.2
  %v1279 = vmul.f32 %v805, 0.2
  %v1280 = vmul.f32 %v808, 0.2
  %v1281 = vmul.f32 %v813, 0.2
  %v1282 = vmul.f32 %v816, 0.2
  %v1283 = vmul.f32 %v821, 0.2
  %v1284 = vmul.f32 %v824, 0.2
  %v1285 = vmul.f32 %v829, 0.2
  %v1286 = vmul.f32 %v832, 0.2
  %v1287 = vmul.f32 %v837, 0.2
  %v1288 = vmul.f32 %v840, 0.2
  %v1289 = vmul.f32 %v845, 0.2
  %v1290 = vmul.f32 %v848, 0.2
  %v1291 = vmul.f32 %v853, 0.2
  %v1292 = vmul.f32 %v856, 0.2
  %v1293 = vmul.f32 %v861, 0.2
  %v1294 = vmul.f32 %v864, 0.2
  %v1295 = vmul.f32 %v869, 0.2
  %v1296 = vmul.f32 %v872, 0.2
  %v1297 = vmul.f32 %v877, 0.2
  %v1298 = vmul.f32 %v880, 0.2
  %v1299 = vmul.f32 %v885, 0.2
  %v1300 = vmul.f32 %v888, 0.2
  %v1301 = vmul.f32 %v893, 0.2
  %v1302 = vmul.f32 %v896, 0.2
  %v1303 = vmul.f32 %v901, 0.2
  %v1304 = vmul.f32 %v904, 0.2
  %v1305 = vmul.f32 %v909, 0.2
  %v1306 = vmul.f32 %v912, 0.2
  %v1307 = vmul.f32 %v917, 0.2
  %v1308 = vmul.f32 %v920, 0.2
  %v1309 = vmul.f32 %v925, 0.2
  %v1310 = vmul.f32 %v928, 0.2
  %v1311 = vmul.f32 %v933, 0.2
  %v1312 = vmul.f32 %v936, 0.2
  %v1313 = vmul.f32 %v941, 0.2
  %v1314 = vmul.f32 %v944, 0.2
  %v1315 = vmul.f32 %v949, 0.2
  %v1316 = vmul.f32 %v952, 0.2
  %v1317 = vmul.f32 %v957, 0.2
  %v1318 = vmul.f32 %v960, 0.2
  %v1319 = vmul.f32 %v965, 0.2
  %v1320 = vmul.f32 %v968, 0.2
  %v1321 = vmul.f32 %v973, 0.2
  %v1322 = vmul.f32 %v976, 0.2
  %v1323 = vmul.f32 %v981, 0.2
  %v1324 = vmul.f32 %v984, 0.2
  %v1325 = vmul.f32 %v989, 0.2
  %v1326 = vmul.f32 %v992, 0.2
  %v1327 = vmul.f32 %v997, 0.2
  %v1328 = vmul.f32 %v1000, 0.2
  %v1329 = vmul.f32 %v1005, 0.2
  %v1330 = vmul.f32 %v1008, 0.2
  %v1331 = vmul.f32 %v1013, 0.2
  %v1332 = vmul.f32 %v1016, 0.2
  %v1333 = vmul.f32 %v1021, 0.2
  %v1334 = vmul.f32 %v1024, 0.2
  %v1335 = vmul.f32 %v1029, 0.2
  %v1336 = vmul.f32 %v1032, 0.2
  %v1337 = vmul.f32 %v1037, 0.2
  %v1338 = vmul.f32 %v1040, 0.2
  %v1339 = vmul.f32 %v1045, 0.2
  %v1340 = vmul.f32 %v1048, 0.2
  %v1341 = vmul.f32 %v1053, 0.2
  %v1342 = vmul.f32 %v1056, 0.2
  %v1343 = vmul.f32 %v1061, 0.2
  %v1344 = vmul.f32 %v1064, 0.2
  %v1345 = vmul.f32 %v1069, 0.2
  %v1346 = vmul.f32 %v1072, 0.2
  %v1347 = vmul.f32 %v1077, 0.2
  %v1348 = vmul.f32 %v1080, 0.2
  %v1349 = vmul.f32 %v1085, 0.2
  %v1350 = vmul.f32 %v1088, 0.2
  %v1351 = vmul.f32 %v1093, 0.2
  %v1352 = vmul.f32 %v1096, 0.2
  %v1353 = vmul.f32 %v1101, 0.2
  %v1354 = vmul.f32 %v1104, 0.2
  %v1355 = vmul.f32 %v1109, 0.2
  %v1356 = vmul.f32 %v1112, 0.2
  %v1357 = vmul.f32 %v1117, 0.2
  %v1358 = vmul.f32 %v1120, 0.2
  %v1359 = vmul.f32 %v1125, 0.2
  %v1360 = vmul.f32 %v1128, 0.2
  %v1361 = vmul.f32 %v1133, 0.2
  %v1362 = vmul.f32 %v1136, 0.2
  %v1363 = vmul.f32 %v1141, 0.2
  %v1364 = vmul.f32 %v1144, 0.2
  %v1365 = vmul.f32 %v1149, 0.2
  %v1366 = vmul.f32 %v1152, 0.2
  %v1367 = vmul.f32 %v1157, 0.2
  %v1368 = vmul.f32 %v1160, 0.2
  %v1369 = vmul.f32 %v1165, 0.2
  %v1370 = vmul.f32 %v1168, 0.2
  %v1371 = vmul.f32 %v1173, 0.2
  %v1372 = vmul.f32 %v1176, 0.2
  %v1373 = vmul.f32 %v1181, 0.2
  %v1374 = vmul.f32 %v1184, 0.2
  %v1375 = vmul.f32 %v1189, 0.2
  %v1376 = vmul.f32 %v1192, 0.2
  %v1377 = vmul.f32 %v1197, 0.2
  %v1378 = vmul.f32 %v1200, 0.2
  %v1379 = vmul.f32 %v1205, 0.2
  %v1380 = vmul.f32 %v1208, 0.2
  %v1381 = vmul.f32 %v1213, 0.2
  %v1382 = vmul.f32 %v1216, 0.2
  %v1383 = vmul.f32 %v1221, 0.2
  %v1384 = vmul.f32 %v1224, 0.2
  %v1385 = vmul.f32 %v1229, 0.2
  %v1386 = vmul.f32 %v1232, 0.2
  %v1387 = vmul.f32 %v1237, 0.2
  %v1388 = vmul.f32 %v1240, 0.2
  %v1389 = vmul.f32 %v1245, 0.2
  %v1390 = vmul.f32 %v1248, 0.2
  %v1391 = vmul.f32 %v1253, 0.2
  %v1392 = vmul.f32 %v1256, 0.2
  %v1393 = vmul.f32 %v1261, 0.2
  %v1394 = vmul.f32 %v1264, 0.2
  %v1395 = vmax.f32 %v757, %v1267
  %v1396 = vmax.f32 %v760, %v1268
  %v1397 = vmax.f32 %v765, %v1269
  %v1398 = vmax.f32 %v768, %v1270
  %v1399 = vmax.f32 %v773, %v1271
  %v1400 = vmax.f32 %v776, %v1272
  %v1401 = vmax.f32 %v781, %v1273
  %v1402 = vmax.f32 %v784, %v1274
  %v1403 = vmax.f32 %v789, %v1275
  %v1404 = vmax.f32 %v792, %v1276
  %v1405 = vmax.f32 %v797, %v1277
  %v1406 = vmax.f32 %v800, %v1278
  %v1407 = vmax.f32 %v805, %v1279
  %v1408 = vmax.f32 %v808, %v1280
  %v1409 = vmax.f32 %v813, %v1281
  %v1410 = vmax.f32 %v816, %v1282
  %v1411 = vmax.f32 %v821, %v1283
  %v1412 = vmax.f32 %v824, %v1284
  %v1413 = vmax.f32 %v829, %v1285
  %v1414 = vmax.f32 %v832, %v1286
  %v1415 = vmax.f32 %v837, %v1287
  %v1416 = vmax.f32 %v840, %v1288
  %v1417 = vmax.f32 %v845, %v1289
  %v1418 = vmax.f32 %v848, %v1290
  %v1419 = vmax.f32 %v853, %v1291
  %v1420 = vmax.f32 %v856, %v1292
  %v1421 = vmax.f32 %v861, %v1293
  %v1422 = vmax.f32 %v864, %v1294
  %v1423 = vmax.f32 %v869, %v1295
  %v1424 = vmax.f32 %v872, %v1296
  %v1425 = vmax.f32 %v877, %v1297
  %v1426 = vmax.f32 %v880, %v1298
  %v1427 = vmax.f32 %v885, %v1299
  %v1428 = vmax.f32 %v888, %v1300
  %v1429 = vmax.f32 %v893, %v1301
  %v1430 = vmax.f32 %v896, %v1302
  %v1431 = vmax.f32 %v901, %v1303
  %v1432 = vmax.f32 %v904, %v1304
  %v1433 = vmax.f32 %v909, %v1305
  %v1434 = vmax.f32 %v912, %v1306
  %v1435 = vmax.f32 %v917, %v1307
  %v1436 = vmax.f32 %v920, %v1308
  %v1437 = vmax.f32 %v925, %v1309
  %v1438 = vmax.f32 %v928, %v1310
  %v1439 = vmax.f32 %v933, %v1311
  %v1440 = vmax.f32 %v936, %v1312
  %v1441 = vmax.f32 %v941, %v1313
  %v1442 = vmax.f32 %v944, %v1314
  %v1443 = vmax.f32 %v949, %v1315
  %v1444 = vmax.f32 %v952, %v1316
  %v1445 = vmax.f32 %v957, %v1317
  %v1446 = vmax.f32 %v960, %v1318
  %v1447 = vmax.f32 %v965, %v1319
  %v1448 = vmax.f32 %v968, %v1320
  %v1449 = vmax.f32 %v973, %v1321
  %v1450 = vmax.f32 %v976, %v1322
  %v1451 = vmax.f32 %v981, %v1323
  %v1452 = vmax.f32 %v984, %v1324
  %v1453 = vmax.f32 %v989, %v1325
  %v1454 = vmax.f32 %v992, %v1326
  %v1455 = vmax.f32 %v997, %v1327
  %v1456 = vmax.f32 %v1000, %v1328
  %v1457 = vmax.f32 %v1005, %v1329
  %v1458 = vmax.f32 %v1008, %v1330
  %v1459 = vmax.f32 %v1013, %v1331
  %v1460 = vmax.f32 %v1016, %v1332
  %v1461 = vmax.f32 %v1021, %v1333
  %v1462 = vmax.f32 %v1024, %v1334
  %v1463 = vmax.f32 %v1029, %v1335
  %v1464 = vmax.f32 %v1032, %v1336
  %v1465 = vmax.f32 %v1037, %v1337
  %v1466 = vmax.f32 %v1040, %v1338
  %v1467 = vmax.f32 %v1045, %v1339
  %v1468 = vmax.f32 %v1048, %v1340
  %v1469 = vmax.f32 %v1053, %v1341
  %v1470 = vmax.f32 %v1056, %v1342
  %v1471 = vmax.f32 %v1061, %v1343
  %v1472 = vmax.f32 %v1064, %v1344
  %v1473 = vmax.f32 %v1069, %v1345
  %v1474 = vmax.f32 %v1072, %v1346
  %v1475 = vmax.f32 %v1077, %v1347
  %v1476 = vmax.f32 %v1080, %v1348
  %v1477 = vmax.f32 %v1085, %v1349
  %v1478 = vmax.f32 %v1088, %v1350
  %v1479 = vmax.f32 %v1093, %v1351
  %v1480 = vmax.f32 %v1096, %v1352
  %v1481 = vmax.f32 %v1101, %v1353
  %v1482 = vmax.f32 %v1104, %v1354
  %v1483 = vmax.f32 %v1109, %v1355
  %v1484 = vmax.f32 %v1112, %v1356
  %v1485 = vmax.f32 %v1117, %v1357
  %v1486 = vmax.f32 %v1120, %v1358
  %v1487 = vmax.f32 %v1125, %v1359
  %v1488 = vmax.f32 %v1128, %v1360
  %v1489 = vmax.f32 %v1133, %v1361
  %v1490 = vmax.f32 %v1136, %v1362
  %v1491 = vmax.f32 %v1141, %v1363
  %v1492 = vmax.f32 %v1144, %v1364
  %v1493 = vmax.f32 %v1149, %v1365
  %v1494 = vmax.f32 %v1152, %v1366
  %v1495 = vmax.f32 %v1157, %v1367
  %v1496 = vmax.f32 %v1160, %v1368
  %v1497 = vmax.f32 %v1165, %v1369
  %v1498 = vmax.f32 %v1168, %v1370
  %v1499 = vmax.f32 %v1173, %v1371
  %v1500 = vmax.f32 %v1176, %v1372
  %v1501 = vmax.f32 %v1181, %v1373
  %v1502 = vmax.f32 %v1184, %v1374
  %v1503 = vmax.f32 %v1189, %v1375
  %v1504 = vmax.f32 %v1192, %v1376
  %v1505 = vmax.f32 %v1197, %v1377
  %v1506 = vmax.f32 %v1200, %v1378
  %v1507 = vmax.f32 %v1205, %v1379
  %v1508 = vmax.f32 %v1208, %v1380
  %v1509 = vmax.f32 %v1213, %v1381
  %v1510 = vmax.f32 %v1216, %v1382
  %v1511 = vmax.f32 %v1221, %v1383
  %v1512 = vmax.f32 %v1224, %v1384
  %v1513 = vmax.f32 %v1229, %v1385
  %v1514 = vmax.f32 %v1232, %v1386
  %v1515 = vmax.f32 %v1237, %v1387
  %v1516 = vmax.f32 %v1240, %v1388
  %v1517 = vmax.f32 %v1245, %v1389
  %v1518 = vmax.f32 %v1248, %v1390
  %v1519 = vmax.f32 %v1253, %v1391
  %v1520 = vmax.f32 %v1256, %v1392
  %v1521 = vmax.f32 %v1261, %v1393
  %v1522 = vmax.f32 %v1264, %v1394
  %v1523 = vpack.c.bf16 %v1396, %v1395
  %v1524 = vpack.c.bf16 %v1398, %v1397
  %v1525 = vpack.c.bf16 %v1400, %v1399
  %v1526 = vpack.c.bf16 %v1402, %v1401
  %v1527 = vpack.c.bf16 %v1404, %v1403
  %v1528 = vpack.c.bf16 %v1406, %v1405
  %v1529 = vpack.c.bf16 %v1408, %v1407
  %v1530 = vpack.c.bf16 %v1410, %v1409
  %v1531 = vpack.c.bf16 %v1412, %v1411
  %v1532 = vpack.c.bf16 %v1414, %v1413
  %v1533 = vpack.c.bf16 %v1416, %v1415
  %v1534 = vpack.c.bf16 %v1418, %v1417
  %v1535 = vpack.c.bf16 %v1420, %v1419
  %v1536 = vpack.c.bf16 %v1422, %v1421
  %v1537 = vpack.c.bf16 %v1424, %v1423
  %v1538 = vpack.c.bf16 %v1426, %v1425
  %v1539 = vpack.c.bf16 %v1428, %v1427
  %v1540 = vpack.c.bf16 %v1430, %v1429
  %v1541 = vpack.c.bf16 %v1432, %v1431
  %v1542 = vpack.c.bf16 %v1434, %v1433
  %v1543 = vpack.c.bf16 %v1436, %v1435
  %v1544 = vpack.c.bf16 %v1438, %v1437
  %v1545 = vpack.c.bf16 %v1440, %v1439
  %v1546 = vpack.c.bf16 %v1442, %v1441
  %v1547 = vpack.c.bf16 %v1444, %v1443
  %v1548 = vpack.c.bf16 %v1446, %v1445
  %v1549 = vpack.c.bf16 %v1448, %v1447
  %v1550 = vpack.c.bf16 %v1450, %v1449
  %v1551 = vpack.c.bf16 %v1452, %v1451
  %v1552 = vpack.c.bf16 %v1454, %v1453
  %v1553 = vpack.c.bf16 %v1456, %v1455
  %v1554 = vpack.c.bf16 %v1458, %v1457
  %v1555 = vpack.c.bf16 %v1460, %v1459
  %v1556 = vpack.c.bf16 %v1462, %v1461
  %v1557 = vpack.c.bf16 %v1464, %v1463
  %v1558 = vpack.c.bf16 %v1466, %v1465
  %v1559 = vpack.c.bf16 %v1468, %v1467
  %v1560 = vpack.c.bf16 %v1470, %v1469
  %v1561 = vpack.c.bf16 %v1472, %v1471
  %v1562 = vpack.c.bf16 %v1474, %v1473
  %v1563 = vpack.c.bf16 %v1476, %v1475
  %v1564 = vpack.c.bf16 %v1478, %v1477
  %v1565 = vpack.c.bf16 %v1480, %v1479
  %v1566 = vpack.c.bf16 %v1482, %v1481
  %v1567 = vpack.c.bf16 %v1484, %v1483
  %v1568 = vpack.c.bf16 %v1486, %v1485
  %v1569 = vpack.c.bf16 %v1488, %v1487
  %v1570 = vpack.c.bf16 %v1490, %v1489
  %v1571 = vpack.c.bf16 %v1492, %v1491
  %v1572 = vpack.c.bf16 %v1494, %v1493
  %v1573 = vpack.c.bf16 %v1496, %v1495
  %v1574 = vpack.c.bf16 %v1498, %v1497
  %v1575 = vpack.c.bf16 %v1500, %v1499
  %v1576 = vpack.c.bf16 %v1502, %v1501
  %v1577 = vpack.c.bf16 %v1504, %v1503
  %v1578 = vpack.c.bf16 %v1506, %v1505
  %v1579 = vpack.c.bf16 %v1508, %v1507
  %v1580 = vpack.c.bf16 %v1510, %v1509
  %v1581 = vpack.c.bf16 %v1512, %v1511
  %v1582 = vpack.c.bf16 %v1514, %v1513
  %v1583 = vpack.c.bf16 %v1516, %v1515
  %v1584 = vpack.c.bf16 %v1518, %v1517
  %v1585 = vpack.c.bf16 %v1520, %v1519
  %v1586 = vpack.c.bf16 %v1522, %v1521
  %v1651 = vunpack.c.l.b16 %v1523
  %v1652 = vunpack.c.h.b16 %v1523
  %v1653 = vunpack.c.l.b16 %v1524
  %v1654 = vunpack.c.h.b16 %v1524
  %v1655 = vunpack.c.l.b16 %v1525
  %v1656 = vunpack.c.h.b16 %v1525
  %v1657 = vunpack.c.l.b16 %v1526
  %v1658 = vunpack.c.h.b16 %v1526
  %v1659 = vunpack.c.l.b16 %v1527
  %v1660 = vunpack.c.h.b16 %v1527
  %v1661 = vunpack.c.l.b16 %v1528
  %v1662 = vunpack.c.h.b16 %v1528
  %v1663 = vunpack.c.l.b16 %v1529
  %v1664 = vunpack.c.h.b16 %v1529
  %v1665 = vunpack.c.l.b16 %v1530
  %v1666 = vunpack.c.h.b16 %v1530
  %v1667 = vunpack.c.l.b16 %v1531
  %v1668 = vunpack.c.h.b16 %v1531
  %v1669 = vunpack.c.l.b16 %v1532
  %v1670 = vunpack.c.h.b16 %v1532
  %v1671 = vunpack.c.l.b16 %v1533
  %v1672 = vunpack.c.h.b16 %v1533
  %v1673 = vunpack.c.l.b16 %v1534
  %v1674 = vunpack.c.h.b16 %v1534
  %v1675 = vunpack.c.l.b16 %v1535
  %v1676 = vunpack.c.h.b16 %v1535
  %v1677 = vunpack.c.l.b16 %v1536
  %v1678 = vunpack.c.h.b16 %v1536
  %v1679 = vunpack.c.l.b16 %v1537
  %v1680 = vunpack.c.h.b16 %v1537
  %v1681 = vunpack.c.l.b16 %v1538
  %v1682 = vunpack.c.h.b16 %v1538
  %v1683 = vunpack.c.l.b16 %v1539
  %v1684 = vunpack.c.h.b16 %v1539
  %v1685 = vunpack.c.l.b16 %v1540
  %v1686 = vunpack.c.h.b16 %v1540
  %v1687 = vunpack.c.l.b16 %v1541
  %v1688 = vunpack.c.h.b16 %v1541
  %v1689 = vunpack.c.l.b16 %v1542
  %v1690 = vunpack.c.h.b16 %v1542
  %v1691 = vunpack.c.l.b16 %v1543
  %v1692 = vunpack.c.h.b16 %v1543
  %v1693 = vunpack.c.l.b16 %v1544
  %v1694 = vunpack.c.h.b16 %v1544
  %v1695 = vunpack.c.l.b16 %v1545
  %v1696 = vunpack.c.h.b16 %v1545
  %v1697 = vunpack.c.l.b16 %v1546
  %v1698 = vunpack.c.h.b16 %v1546
  %v1699 = vunpack.c.l.b16 %v1547
  %v1700 = vunpack.c.h.b16 %v1547
  %v1701 = vunpack.c.l.b16 %v1548
  %v1702 = vunpack.c.h.b16 %v1548
  %v1703 = vunpack.c.l.b16 %v1549
  %v1704 = vunpack.c.h.b16 %v1549
  %v1705 = vunpack.c.l.b16 %v1550
  %v1706 = vunpack.c.h.b16 %v1550
  %v1707 = vunpack.c.l.b16 %v1551
  %v1708 = vunpack.c.h.b16 %v1551
  %v1709 = vunpack.c.l.b16 %v1552
  %v1710 = vunpack.c.h.b16 %v1552
  %v1711 = vunpack.c.l.b16 %v1553
  %v1712 = vunpack.c.h.b16 %v1553
  %v1713 = vunpack.c.l.b16 %v1554
  %v1714 = vunpack.c.h.b16 %v1554
  %v1715 = vunpack.c.l.b16 %v1555
  %v1716 = vunpack.c.h.b16 %v1555
  %v1717 = vunpack.c.l.b16 %v1556
  %v1718 = vunpack.c.h.b16 %v1556
  %v1719 = vunpack.c.l.b16 %v1557
  %v1720 = vunpack.c.h.b16 %v1557
  %v1721 = vunpack.c.l.b16 %v1558
  %v1722 = vunpack.c.h.b16 %v1558
  %v1723 = vunpack.c.l.b16 %v1559
  %v1724 = vunpack.c.h.b16 %v1559
  %v1725 = vunpack.c.l.b16 %v1560
  %v1726 = vunpack.c.h.b16 %v1560
  %v1727 = vunpack.c.l.b16 %v1561
  %v1728 = vunpack.c.h.b16 %v1561
  %v1729 = vunpack.c.l.b16 %v1562
  %v1730 = vunpack.c.h.b16 %v1562
  %v1731 = vunpack.c.l.b16 %v1563
  %v1732 = vunpack.c.h.b16 %v1563
  %v1733 = vunpack.c.l.b16 %v1564
  %v1734 = vunpack.c.h.b16 %v1564
  %v1735 = vunpack.c.l.b16 %v1565
  %v1736 = vunpack.c.h.b16 %v1565
  %v1737 = vunpack.c.l.b16 %v1566
  %v1738 = vunpack.c.h.b16 %v1566
  %v1739 = vunpack.c.l.b16 %v1567
  %v1740 = vunpack.c.h.b16 %v1567
  %v1741 = vunpack.c.l.b16 %v1568
  %v1742 = vunpack.c.h.b16 %v1568
  %v1743 = vunpack.c.l.b16 %v1569
  %v1744 = vunpack.c.h.b16 %v1569
  %v1745 = vunpack.c.l.b16 %v1570
  %v1746 = vunpack.c.h.b16 %v1570
  %v1747 = vunpack.c.l.b16 %v1571
  %v1748 = vunpack.c.h.b16 %v1571
  %v1749 = vunpack.c.l.b16 %v1572
  %v1750 = vunpack.c.h.b16 %v1572
  %v1751 = vunpack.c.l.b16 %v1573
  %v1752 = vunpack.c.h.b16 %v1573
  %v1753 = vunpack.c.l.b16 %v1574
  %v1754 = vunpack.c.h.b16 %v1574
  %v1755 = vunpack.c.l.b16 %v1575
  %v1756 = vunpack.c.h.b16 %v1575
  %v1757 = vunpack.c.l.b16 %v1576
  %v1758 = vunpack.c.h.b16 %v1576
  %v1759 = vunpack.c.l.b16 %v1577
  %v1760 = vunpack.c.h.b16 %v1577
  %v1761 = vunpack.c.l.b16 %v1578
  %v1762 = vunpack.c.h.b16 %v1578
  %v1763 = vunpack.c.l.b16 %v1579
  %v1764 = vunpack.c.h.b16 %v1579
  %v1765 = vunpack.c.l.b16 %v1580
  %v1766 = vunpack.c.h.b16 %v1580
  %v1767 = vunpack.c.l.b16 %v1581
  %v1768 = vunpack.c.h.b16 %v1581
  %v1769 = vunpack.c.l.b16 %v1582
  %v1770 = vunpack.c.h.b16 %v1582
  %v1771 = vunpack.c.l.b16 %v1583
  %v1772 = vunpack.c.h.b16 %v1583
  %v1773 = vunpack.c.l.b16 %v1584
  %v1774 = vunpack.c.h.b16 %v1584
  %v1775 = vunpack.c.l.b16 %v1585
  %v1776 = vunpack.c.h.b16 %v1585
  %v1777 = vunpack.c.l.b16 %v1586
  %v1778 = vunpack.c.h.b16 %v1586
  %v1779 = vpack.c.b16 %v1651, %v1651
  %v1780 = vpack.c.b16 %v1652, %v1652
  %v1781 = vpack.c.b16 %v1653, %v1653
  %v1782 = vpack.c.b16 %v1654, %v1654
  %v1783 = vpack.c.b16 %v1655, %v1655
  %v1784 = vpack.c.b16 %v1656, %v1656
  %v1785 = vpack.c.b16 %v1657, %v1657
  %v1786 = vpack.c.b16 %v1658, %v1658
  %v1787 = vpack.c.b16 %v1659, %v1659
  %v1788 = vpack.c.b16 %v1660, %v1660
  %v1789 = vpack.c.b16 %v1661, %v1661
  %v1790 = vpack.c.b16 %v1662, %v1662
  %v1791 = vpack.c.b16 %v1663, %v1663
  %v1792 = vpack.c.b16 %v1664, %v1664
  %v1793 = vpack.c.b16 %v1665, %v1665
  %v1794 = vpack.c.b16 %v1666, %v1666
  %v1795 = vpack.c.b16 %v1667, %v1667
  %v1796 = vpack.c.b16 %v1668, %v1668
  %v1797 = vpack.c.b16 %v1669, %v1669
  %v1798 = vpack.c.b16 %v1670, %v1670
  %v1799 = vpack.c.b16 %v1671, %v1671
  %v1800 = vpack.c.b16 %v1672, %v1672
  %v1801 = vpack.c.b16 %v1673, %v1673
  %v1802 = vpack.c.b16 %v1674, %v1674
  %v1803 = vpack.c.b16 %v1675, %v1675
  %v1804 = vpack.c.b16 %v1676, %v1676
  %v1805 = vpack.c.b16 %v1677, %v1677
  %v1806 = vpack.c.b16 %v1678, %v1678
  %v1807 = vpack.c.b16 %v1679, %v1679
  %v1808 = vpack.c.b16 %v1680, %v1680
  %v1809 = vpack.c.b16 %v1681, %v1681
  %v1810 = vpack.c.b16 %v1682, %v1682
  %v1811 = vpack.c.b16 %v1683, %v1683
  %v1812 = vpack.c.b16 %v1684, %v1684
  %v1813 = vpack.c.b16 %v1685, %v1685
  %v1814 = vpack.c.b16 %v1686, %v1686
  %v1815 = vpack.c.b16 %v1687, %v1687
  %v1816 = vpack.c.b16 %v1688, %v1688
  %v1817 = vpack.c.b16 %v1689, %v1689
  %v1818 = vpack.c.b16 %v1690, %v1690
  %v1819 = vpack.c.b16 %v1691, %v1691
  %v1820 = vpack.c.b16 %v1692, %v1692
  %v1821 = vpack.c.b16 %v1693, %v1693
  %v1822 = vpack.c.b16 %v1694, %v1694
  %v1823 = vpack.c.b16 %v1695, %v1695
  %v1824 = vpack.c.b16 %v1696, %v1696
  %v1825 = vpack.c.b16 %v1697, %v1697
  %v1826 = vpack.c.b16 %v1698, %v1698
  %v1827 = vpack.c.b16 %v1699, %v1699
  %v1828 = vpack.c.b16 %v1700, %v1700
  %v1829 = vpack.c.b16 %v1701, %v1701
  %v1830 = vpack.c.b16 %v1702, %v1702
  %v1831 = vpack.c.b16 %v1703, %v1703
  %v1832 = vpack.c.b16 %v1704, %v1704
  %v1833 = vpack.c.b16 %v1705, %v1705
  %v1834 = vpack.c.b16 %v1706, %v1706
  %v1835 = vpack.c.b16 %v1707, %v1707
  %v1836 = vpack.c.b16 %v1708, %v1708
  %v1837 = vpack.c.b16 %v1709, %v1709
  %v1838 = vpack.c.b16 %v1710, %v1710
  %v1839 = vpack.c.b16 %v1711, %v1711
  %v1840 = vpack.c.b16 %v1712, %v1712
  %v1841 = vpack.c.b16 %v1713, %v1713
  %v1842 = vpack.c.b16 %v1714, %v1714
  %v1843 = vpack.c.b16 %v1715, %v1715
  %v1844 = vpack.c.b16 %v1716, %v1716
  %v1845 = vpack.c.b16 %v1717, %v1717
  %v1846 = vpack.c.b16 %v1718, %v1718
  %v1847 = vpack.c.b16 %v1719, %v1719
  %v1848 = vpack.c.b16 %v1720, %v1720
  %v1849 = vpack.c.b16 %v1721, %v1721
  %v1850 = vpack.c.b16 %v1722, %v1722
  %v1851 = vpack.c.b16 %v1723, %v1723
  %v1852 = vpack.c.b16 %v1724, %v1724
  %v1853 = vpack.c.b16 %v1725, %v1725
  %v1854 = vpack.c.b16 %v1726, %v1726
  %v1855 = vpack.c.b16 %v1727, %v1727
  %v1856 = vpack.c.b16 %v1728, %v1728
  %v1857 = vpack.c.b16 %v1729, %v1729
  %v1858 = vpack.c.b16 %v1730, %v1730
  %v1859 = vpack.c.b16 %v1731, %v1731
  %v1860 = vpack.c.b16 %v1732, %v1732
  %v1861 = vpack.c.b16 %v1733, %v1733
  %v1862 = vpack.c.b16 %v1734, %v1734
  %v1863 = vpack.c.b16 %v1735, %v1735
  %v1864 = vpack.c.b16 %v1736, %v1736
  %v1865 = vpack.c.b16 %v1737, %v1737
  %v1866 = vpack.c.b16 %v1738, %v1738
  %v1867 = vpack.c.b16 %v1739, %v1739
  %v1868 = vpack.c.b16 %v1740, %v1740
  %v1869 = vpack.c.b16 %v1741, %v1741
  %v1870 = vpack.c.b16 %v1742, %v1742
  %v1871 = vpack.c.b16 %v1743, %v1743
  %v1872 = vpack.c.b16 %v1744, %v1744
  %v1873 = vpack.c.b16 %v1745, %v1745
  %v1874 = vpack.c.b16 %v1746, %v1746
  %v1875 = vpack.c.b16 %v1747, %v1747
  %v1876 = vpack.c.b16 %v1748, %v1748
  %v1877 = vpack.c.b16 %v1749, %v1749
  %v1878 = vpack.c.b16 %v1750, %v1750
  %v1879 = vpack.c.b16 %v1751, %v1751
  %v1880 = vpack.c.b16 %v1752, %v1752
  %v1881 = vpack.c.b16 %v1753, %v1753
  %v1882 = vpack.c.b16 %v1754, %v1754
  %v1883 = vpack.c.b16 %v1755, %v1755
  %v1884 = vpack.c.b16 %v1756, %v1756
  %v1885 = vpack.c.b16 %v1757, %v1757
  %v1886 = vpack.c.b16 %v1758, %v1758
  %v1887 = vpack.c.b16 %v1759, %v1759
  %v1888 = vpack.c.b16 %v1760, %v1760
  %v1889 = vpack.c.b16 %v1761, %v1761
  %v1890 = vpack.c.b16 %v1762, %v1762
  %v1891 = vpack.c.b16 %v1763, %v1763
  %v1892 = vpack.c.b16 %v1764, %v1764
  %v1893 = vpack.c.b16 %v1765, %v1765
  %v1894 = vpack.c.b16 %v1766, %v1766
  %v1895 = vpack.c.b16 %v1767, %v1767
  %v1896 = vpack.c.b16 %v1768, %v1768
  %v1897 = vpack.c.b16 %v1769, %v1769
  %v1898 = vpack.c.b16 %v1770, %v1770
  %v1899 = vpack.c.b16 %v1771, %v1771
  %v1900 = vpack.c.b16 %v1772, %v1772
  %v1901 = vpack.c.b16 %v1773, %v1773
  %v1902 = vpack.c.b16 %v1774, %v1774
  %v1903 = vpack.c.b16 %v1775, %v1775
  %v1904 = vpack.c.b16 %v1776, %v1776
  %v1905 = vpack.c.b16 %v1777, %v1777
  %v1906 = vpack.c.b16 %v1778, %v1778
  %2035 = vst [vmem:[%s3] sm:$0xf] %v1779
  %2036 = vst [vmem:[%s3 + $0x4] sm:$0xf] %v1780
  %2037 = vst [vmem:[%s3 + $0x8] sm:$0xf] %v1781
  %2038 = vst [vmem:[%s3 + $0xc] sm:$0xf] %v1782
  %2039 = vst [vmem:[%s3 + $0x10] sm:$0xf] %v1783
  %2040 = vst [vmem:[%s3 + $0x14] sm:$0xf] %v1784
  %2041 = vst [vmem:[%s3 + $0x18] sm:$0xf] %v1785
  %2042 = vst [vmem:[%s3 + $0x1c] sm:$0xf] %v1786
  %2043 = vst [vmem:[%s3 + $0x20] sm:$0xf] %v1787
  %2044 = vst [vmem:[%s3 + $0x24] sm:$0xf] %v1788
  %2045 = vst [vmem:[%s3 + $0x28] sm:$0xf] %v1789
  %2046 = vst [vmem:[%s3 + $0x2c] sm:$0xf] %v1790
  %2047 = vst [vmem:[%s3 + $0x30] sm:$0xf] %v1791
  %2048 = vst [vmem:[%s3 + $0x34] sm:$0xf] %v1792
  %2049 = vst [vmem:[%s3 + $0x38] sm:$0xf] %v1793
  %2050 = vst [vmem:[%s3 + $0x3c] sm:$0xf] %v1794
  %2051 = vst [vmem:[%s3 + $0x40] sm:$0xf] %v1795
  %2052 = vst [vmem:[%s3 + $0x44] sm:$0xf] %v1796
  %2053 = vst [vmem:[%s3 + $0x48] sm:$0xf] %v1797
  %2054 = vst [vmem:[%s3 + $0x4c] sm:$0xf] %v1798
  %2055 = vst [vmem:[%s3 + $0x50] sm:$0xf] %v1799
  %2056 = vst [vmem:[%s3 + $0x54] sm:$0xf] %v1800
  %2057 = vst [vmem:[%s3 + $0x58] sm:$0xf] %v1801
  %2058 = vst [vmem:[%s3 + $0x5c] sm:$0xf] %v1802
  %2059 = vst [vmem:[%s3 + $0x60] sm:$0xf] %v1803
  %2060 = vst [vmem:[%s3 + $0x64] sm:$0xf] %v1804
  %2061 = vst [vmem:[%s3 + $0x68] sm:$0xf] %v1805
  %2062 = vst [vmem:[%s3 + $0x6c] sm:$0xf] %v1806
  %2063 = vst [vmem:[%s3 + $0x70] sm:$0xf] %v1807
  %2064 = vst [vmem:[%s3 + $0x74] sm:$0xf] %v1808
  %2065 = vst [vmem:[%s3 + $0x78] sm:$0xf] %v1809
  %2066 = vst [vmem:[%s3 + $0x7c] sm:$0xf] %v1810
  %2067 = vst [vmem:[%s3 + $0x80] sm:$0xf] %v1811
  %2068 = vst [vmem:[%s3 + $0x84] sm:$0xf] %v1812
  %2069 = vst [vmem:[%s3 + $0x88] sm:$0xf] %v1813
  %2070 = vst [vmem:[%s3 + $0x8c] sm:$0xf] %v1814
  %2071 = vst [vmem:[%s3 + $0x90] sm:$0xf] %v1815
  %2072 = vst [vmem:[%s3 + $0x94] sm:$0xf] %v1816
  %2073 = vst [vmem:[%s3 + $0x98] sm:$0xf] %v1817
  %2074 = vst [vmem:[%s3 + $0x9c] sm:$0xf] %v1818
  %2075 = vst [vmem:[%s3 + $0xa0] sm:$0xf] %v1819
  %2076 = vst [vmem:[%s3 + $0xa4] sm:$0xf] %v1820
  %2077 = vst [vmem:[%s3 + $0xa8] sm:$0xf] %v1821
  %2078 = vst [vmem:[%s3 + $0xac] sm:$0xf] %v1822
  %2079 = vst [vmem:[%s3 + $0xb0] sm:$0xf] %v1823
  %2080 = vst [vmem:[%s3 + $0xb4] sm:$0xf] %v1824
  %2081 = vst [vmem:[%s3 + $0xb8] sm:$0xf] %v1825
  %2082 = vst [vmem:[%s3 + $0xbc] sm:$0xf] %v1826
  %2083 = vst [vmem:[%s3 + $0xc0] sm:$0xf] %v1827
  %2084 = vst [vmem:[%s3 + $0xc4] sm:$0xf] %v1828
  %2085 = vst [vmem:[%s3 + $0xc8] sm:$0xf] %v1829
  %2086 = vst [vmem:[%s3 + $0xcc] sm:$0xf] %v1830
  %2087 = vst [vmem:[%s3 + $0xd0] sm:$0xf] %v1831
  %2088 = vst [vmem:[%s3 + $0xd4] sm:$0xf] %v1832
  %2089 = vst [vmem:[%s3 + $0xd8] sm:$0xf] %v1833
  %2090 = vst [vmem:[%s3 + $0xdc] sm:$0xf] %v1834
  %2091 = vst [vmem:[%s3 + $0xe0] sm:$0xf] %v1835
  %2092 = vst [vmem:[%s3 + $0xe4] sm:$0xf] %v1836
  %2093 = vst [vmem:[%s3 + $0xe8] sm:$0xf] %v1837
  %2094 = vst [vmem:[%s3 + $0xec] sm:$0xf] %v1838
  %2095 = vst [vmem:[%s3 + $0xf0] sm:$0xf] %v1839
  %2096 = vst [vmem:[%s3 + $0xf4] sm:$0xf] %v1840
  %2097 = vst [vmem:[%s3 + $0xf8] sm:$0xf] %v1841
  %2098 = vst [vmem:[%s3 + $0xfc] sm:$0xf] %v1842
  %2099 = vst [vmem:[%s3 + $0x100] sm:$0xf] %v1843
  %2100 = vst [vmem:[%s3 + $0x104] sm:$0xf] %v1844
  %2101 = vst [vmem:[%s3 + $0x108] sm:$0xf] %v1845
  %2102 = vst [vmem:[%s3 + $0x10c] sm:$0xf] %v1846
  %2103 = vst [vmem:[%s3 + $0x110] sm:$0xf] %v1847
  %2104 = vst [vmem:[%s3 + $0x114] sm:$0xf] %v1848
  %2105 = vst [vmem:[%s3 + $0x118] sm:$0xf] %v1849
  %2106 = vst [vmem:[%s3 + $0x11c] sm:$0xf] %v1850
  %2107 = vst [vmem:[%s3 + $0x120] sm:$0xf] %v1851
  %2108 = vst [vmem:[%s3 + $0x124] sm:$0xf] %v1852
  %2109 = vst [vmem:[%s3 + $0x128] sm:$0xf] %v1853
  %2110 = vst [vmem:[%s3 + $0x12c] sm:$0xf] %v1854
  %2111 = vst [vmem:[%s3 + $0x130] sm:$0xf] %v1855
  %2112 = vst [vmem:[%s3 + $0x134] sm:$0xf] %v1856
  %2113 = vst [vmem:[%s3 + $0x138] sm:$0xf] %v1857
  %2114 = vst [vmem:[%s3 + $0x13c] sm:$0xf] %v1858
  %2115 = vst [vmem:[%s3 + $0x140] sm:$0xf] %v1859
  %2116 = vst [vmem:[%s3 + $0x144] sm:$0xf] %v1860
  %2117 = vst [vmem:[%s3 + $0x148] sm:$0xf] %v1861
  %2118 = vst [vmem:[%s3 + $0x14c] sm:$0xf] %v1862
  %2119 = vst [vmem:[%s3 + $0x150] sm:$0xf] %v1863
  %2120 = vst [vmem:[%s3 + $0x154] sm:$0xf] %v1864
  %2121 = vst [vmem:[%s3 + $0x158] sm:$0xf] %v1865
  %2122 = vst [vmem:[%s3 + $0x15c] sm:$0xf] %v1866
  %2123 = vst [vmem:[%s3 + $0x160] sm:$0xf] %v1867
  %2124 = vst [vmem:[%s3 + $0x164] sm:$0xf] %v1868
  %2125 = vst [vmem:[%s3 + $0x168] sm:$0xf] %v1869
  %2126 = vst [vmem:[%s3 + $0x16c] sm:$0xf] %v1870
  %2127 = vst [vmem:[%s3 + $0x170] sm:$0xf] %v1871
  %2128 = vst [vmem:[%s3 + $0x174] sm:$0xf] %v1872
  %2129 = vst [vmem:[%s3 + $0x178] sm:$0xf] %v1873
  %2130 = vst [vmem:[%s3 + $0x17c] sm:$0xf] %v1874
  %2131 = vst [vmem:[%s3 + $0x180] sm:$0xf] %v1875
  %2132 = vst [vmem:[%s3 + $0x184] sm:$0xf] %v1876
  %2133 = vst [vmem:[%s3 + $0x188] sm:$0xf] %v1877
  %2134 = vst [vmem:[%s3 + $0x18c] sm:$0xf] %v1878
  %2135 = vst [vmem:[%s3 + $0x190] sm:$0xf] %v1879
  %2136 = vst [vmem:[%s3 + $0x194] sm:$0xf] %v1880
  %2137 = vst [vmem:[%s3 + $0x198] sm:$0xf] %v1881
  %2138 = vst [vmem:[%s3 + $0x19c] sm:$0xf] %v1882
  %2139 = vst [vmem:[%s3 + $0x1a0] sm:$0xf] %v1883
  %2140 = vst [vmem:[%s3 + $0x1a4] sm:$0xf] %v1884
  %2141 = vst [vmem:[%s3 + $0x1a8] sm:$0xf] %v1885
  %2142 = vst [vmem:[%s3 + $0x1ac] sm:$0xf] %v1886
  %2143 = vst [vmem:[%s3 + $0x1b0] sm:$0xf] %v1887
  %2144 = vst [vmem:[%s3 + $0x1b4] sm:$0xf] %v1888
  %2145 = vst [vmem:[%s3 + $0x1b8] sm:$0xf] %v1889
  %2146 = vst [vmem:[%s3 + $0x1bc] sm:$0xf] %v1890
  %2147 = vst [vmem:[%s3 + $0x1c0] sm:$0xf] %v1891
  %2148 = vst [vmem:[%s3 + $0x1c4] sm:$0xf] %v1892
  %2149 = vst [vmem:[%s3 + $0x1c8] sm:$0xf] %v1893
  %2150 = vst [vmem:[%s3 + $0x1cc] sm:$0xf] %v1894
  %2151 = vst [vmem:[%s3 + $0x1d0] sm:$0xf] %v1895
  %2152 = vst [vmem:[%s3 + $0x1d4] sm:$0xf] %v1896
  %2153 = vst [vmem:[%s3 + $0x1d8] sm:$0xf] %v1897
  %2154 = vst [vmem:[%s3 + $0x1dc] sm:$0xf] %v1898
  %2155 = vst [vmem:[%s3 + $0x1e0] sm:$0xf] %v1899
  %2156 = vst [vmem:[%s3 + $0x1e4] sm:$0xf] %v1900
  %2157 = vst [vmem:[%s3 + $0x1e8] sm:$0xf] %v1901
  %2158 = vst [vmem:[%s3 + $0x1ec] sm:$0xf] %v1902
  %2159 = vst [vmem:[%s3 + $0x1f0] sm:$0xf] %v1903
  %2160 = vst [vmem:[%s3 + $0x1f4] sm:$0xf] %v1904
  %2161 = vst [vmem:[%s3 + $0x1f8] sm:$0xf] %v1905
  %2162 = vst [vmem:[%s3 + $0x1fc] sm:$0xf] %v1906
  // Predicated region
  $region14: #{bicycle_gan_forward.18} parent=0 // pred_check
    _
  $region15: #{bicycle_gan_forward.18} parent=0 // pred_check_branch
    %2164 = sbr.rel (0) target = $region17
  $region16: #{bicycle_gan_forward.18} parent=0 // pred_region
    _
  $region17: #{bicycle_gan_forward.18} parent=0 // pred_fallthru
    _
  // Predicated region
  $region18: #{bicycle_gan_forward.18} parent=0 // pred_check
    _
  $region19: #{bicycle_gan_forward.18} parent=0 // pred_check_branch
    %2166 = sbr.rel (0) target = $region21
  $region20: #{bicycle_gan_forward.18} parent=0 // pred_region
    _
  $region21: #{bicycle_gan_forward.18} parent=0 // pred_fallthru
    _

// kernel: bicycle_gan_forward.19
$region0: #{bicycle_gan_forward.19}
  #allocation0 [shape = 'u32[]', space=smem, size = 0x4, offset = 0x4, fixed_abs, tag = 'smem constant byte address 0x4 - core index']
  #allocation1 [shape = 'u32[144,128]{1,0:T(1,128)}', space=vmem, size = 0x12000, scoped, tag = 'internal scratch']
  %s0 = inlined_call_operand.vmem [shape: bf16[1024,288], index: 0, kind: input, shape index: {}]
  %s1 = inlined_call_operand.vmem [shape: bf16[288,128], index: 1, kind: input, shape index: {}]
  %s2 = inlined_call_operand.vmem [shape: f32[1,128], index: 2, kind: input, shape index: {}]
  %s3 = inlined_call_operand.vmem [shape: bf16[1024,128], index: 3, kind: output, shape index: {}]
  %s4 = sld [smem:[#allocation0]]
  $region22: #{bicycle_gan_forward.19} parent=0
    _
  %s6 = ssub.s32 1, %s4
  %s7 = scalar_select 0, %s6, %s4
  // Predicated region
  $region2: #{bicycle_gan_forward.19} parent=0 // pred_check
    _
  $region3: #{bicycle_gan_forward.19} parent=0 // pred_check_branch
    %9 = sbr.rel (0) target = $region5
  $region4: #{bicycle_gan_forward.19} parent=0 // pred_region
    _
  $region5: #{bicycle_gan_forward.19} parent=0 // pred_fallthru
    _
  // Predicated region
  $region6: #{bicycle_gan_forward.19} parent=0 // pred_check
    _
  $region7: #{bicycle_gan_forward.19} parent=0 // pred_check_branch
    %11 = sbr.rel (0) target = $region9
  $region8: #{bicycle_gan_forward.19} parent=0 // pred_region
    _
  $region9: #{bicycle_gan_forward.19} parent=0 // pred_fallthru
    _
  // Predicated region
  $region10: #{bicycle_gan_forward.19} parent=0 // pred_check
    _
  $region11: #{bicycle_gan_forward.19} parent=0 // pred_check_branch
    %13 = sbr.rel (0) target = $region13
  $region12: #{bicycle_gan_forward.19} parent=0 // pred_region
    _
  $region13: #{bicycle_gan_forward.19} parent=0 // pred_fallthru
    _
  %v15 = vld [vmem:[%s0] sm:$0xff]
  %v16 = vld [vmem:[%s0 + $0x8] sm:$0xf]
  %v17 = vld [vmem:[%s0 + $0xc] sm:$0xff]
  %v18 = vld [vmem:[%s0 + $0x14] sm:$0xf]
  %v19 = vld [vmem:[%s0 + $0x18] sm:$0xff]
  %v20 = vld [vmem:[%s0 + $0x20] sm:$0xf]
  %v21 = vld [vmem:[%s0 + $0x24] sm:$0xff]
  %v22 = vld [vmem:[%s0 + $0x2c] sm:$0xf]
  %v23 = vld [vmem:[%s0 + $0x30] sm:$0xff]
  %v24 = vld [vmem:[%s0 + $0x38] sm:$0xf]
  %v25 = vld [vmem:[%s0 + $0x3c] sm:$0xff]
  %v26 = vld [vmem:[%s0 + $0x44] sm:$0xf]
  %v27 = vld [vmem:[%s0 + $0x48] sm:$0xff]
  %v28 = vld [vmem:[%s0 + $0x50] sm:$0xf]
  %v29 = vld [vmem:[%s0 + $0x54] sm:$0xff]
  %v30 = vld [vmem:[%s0 + $0x5c] sm:$0xf]
  %v31 = vld [vmem:[%s0 + $0x60] sm:$0xff]
  %v32 = vld [vmem:[%s0 + $0x68] sm:$0xf]
  %v33 = vld [vmem:[%s0 + $0x6c] sm:$0xff]
  %v34 = vld [vmem:[%s0 + $0x74] sm:$0xf]
  %v35 = vld [vmem:[%s0 + $0x78] sm:$0xff]
  %v36 = vld [vmem:[%s0 + $0x80] sm:$0xf]
  %v37 = vld [vmem:[%s0 + $0x84] sm:$0xff]
  %v38 = vld [vmem:[%s0 + $0x8c] sm:$0xf]
  %v39 = vld [vmem:[%s0 + $0x90] sm:$0xff]
  %v40 = vld [vmem:[%s0 + $0x98] sm:$0xf]
  %v41 = vld [vmem:[%s0 + $0x9c] sm:$0xff]
  %v42 = vld [vmem:[%s0 + $0xa4] sm:$0xf]
  %v43 = vld [vmem:[%s0 + $0xa8] sm:$0xff]
  %v44 = vld [vmem:[%s0 + $0xb0] sm:$0xf]
  %v45 = vld [vmem:[%s0 + $0xb4] sm:$0xff]
  %v46 = vld [vmem:[%s0 + $0xbc] sm:$0xf]
  %v47 = vld [vmem:[%s0 + $0xc0] sm:$0xff]
  %v48 = vld [vmem:[%s0 + $0xc8] sm:$0xf]
  %v49 = vld [vmem:[%s0 + $0xcc] sm:$0xff]
  %v50 = vld [vmem:[%s0 + $0xd4] sm:$0xf]
  %v51 = vld [vmem:[%s0 + $0xd8] sm:$0xff]
  %v52 = vld [vmem:[%s0 + $0xe0] sm:$0xf]
  %v53 = vld [vmem:[%s0 + $0xe4] sm:$0xff]
  %v54 = vld [vmem:[%s0 + $0xec] sm:$0xf]
  %v55 = vld [vmem:[%s0 + $0xf0] sm:$0xff]
  %v56 = vld [vmem:[%s0 + $0xf8] sm:$0xf]
  %v57 = vld [vmem:[%s0 + $0xfc] sm:$0xff]
  %v58 = vld [vmem:[%s0 + $0x104] sm:$0xf]
  %v59 = vld [vmem:[%s0 + $0x108] sm:$0xff]
  %v60 = vld [vmem:[%s0 + $0x110] sm:$0xf]
  %v61 = vld [vmem:[%s0 + $0x114] sm:$0xff]
  %v62 = vld [vmem:[%s0 + $0x11c] sm:$0xf]
  %v63 = vld [vmem:[%s0 + $0x120] sm:$0xff]
  %v64 = vld [vmem:[%s0 + $0x128] sm:$0xf]
  %v65 = vld [vmem:[%s0 + $0x12c] sm:$0xff]
  %v66 = vld [vmem:[%s0 + $0x134] sm:$0xf]
  %v67 = vld [vmem:[%s0 + $0x138] sm:$0xff]
  %v68 = vld [vmem:[%s0 + $0x140] sm:$0xf]
  %v69 = vld [vmem:[%s0 + $0x144] sm:$0xff]
  %v70 = vld [vmem:[%s0 + $0x14c] sm:$0xf]
  %v71 = vld [vmem:[%s0 + $0x150] sm:$0xff]
  %v72 = vld [vmem:[%s0 + $0x158] sm:$0xf]
  %v73 = vld [vmem:[%s0 + $0x15c] sm:$0xff]
  %v74 = vld [vmem:[%s0 + $0x164] sm:$0xf]
  %v75 = vld [vmem:[%s0 + $0x168] sm:$0xff]
  %v76 = vld [vmem:[%s0 + $0x170] sm:$0xf]
  %v77 = vld [vmem:[%s0 + $0x174] sm:$0xff]
  %v78 = vld [vmem:[%s0 + $0x17c] sm:$0xf]
  %v79 = vld [vmem:[%s0 + $0x180] sm:$0xff]
  %v80 = vld [vmem:[%s0 + $0x188] sm:$0xf]
  %v81 = vld [vmem:[%s0 + $0x18c] sm:$0xff]
  %v82 = vld [vmem:[%s0 + $0x194] sm:$0xf]
  %v83 = vld [vmem:[%s0 + $0x198] sm:$0xff]
  %v84 = vld [vmem:[%s0 + $0x1a0] sm:$0xf]
  %v85 = vld [vmem:[%s0 + $0x1a4] sm:$0xff]
  %v86 = vld [vmem:[%s0 + $0x1ac] sm:$0xf]
  %v87 = vld [vmem:[%s0 + $0x1b0] sm:$0xff]
  %v88 = vld [vmem:[%s0 + $0x1b8] sm:$0xf]
  %v89 = vld [vmem:[%s0 + $0x1bc] sm:$0xff]
  %v90 = vld [vmem:[%s0 + $0x1c4] sm:$0xf]
  %v91 = vld [vmem:[%s0 + $0x1c8] sm:$0xff]
  %v92 = vld [vmem:[%s0 + $0x1d0] sm:$0xf]
  %v93 = vld [vmem:[%s0 + $0x1d4] sm:$0xff]
  %v94 = vld [vmem:[%s0 + $0x1dc] sm:$0xf]
  %v95 = vld [vmem:[%s0 + $0x1e0] sm:$0xff]
  %v96 = vld [vmem:[%s0 + $0x1e8] sm:$0xf]
  %v97 = vld [vmem:[%s0 + $0x1ec] sm:$0xff]
  %v98 = vld [vmem:[%s0 + $0x1f4] sm:$0xf]
  %v99 = vld [vmem:[%s0 + $0x1f8] sm:$0xff]
  %v100 = vld [vmem:[%s0 + $0x200] sm:$0xf]
  %v101 = vld [vmem:[%s0 + $0x204] sm:$0xff]
  %v102 = vld [vmem:[%s0 + $0x20c] sm:$0xf]
  %v103 = vld [vmem:[%s0 + $0x210] sm:$0xff]
  %v104 = vld [vmem:[%s0 + $0x218] sm:$0xf]
  %v105 = vld [vmem:[%s0 + $0x21c] sm:$0xff]
  %v106 = vld [vmem:[%s0 + $0x224] sm:$0xf]
  %v107 = vld [vmem:[%s0 + $0x228] sm:$0xff]
  %v108 = vld [vmem:[%s0 + $0x230] sm:$0xf]
  %v109 = vld [vmem:[%s0 + $0x234] sm:$0xff]
  %v110 = vld [vmem:[%s0 + $0x23c] sm:$0xf]
  %v111 = vld [vmem:[%s0 + $0x240] sm:$0xff]
  %v112 = vld [vmem:[%s0 + $0x248] sm:$0xf]
  %v113 = vld [vmem:[%s0 + $0x24c] sm:$0xff]
  %v114 = vld [vmem:[%s0 + $0x254] sm:$0xf]
  %v115 = vld [vmem:[%s0 + $0x258] sm:$0xff]
  %v116 = vld [vmem:[%s0 + $0x260] sm:$0xf]
  %v117 = vld [vmem:[%s0 + $0x264] sm:$0xff]
  %v118 = vld [vmem:[%s0 + $0x26c] sm:$0xf]
  %v119 = vld [vmem:[%s0 + $0x270] sm:$0xff]
  %v120 = vld [vmem:[%s0 + $0x278] sm:$0xf]
  %v121 = vld [vmem:[%s0 + $0x27c] sm:$0xff]
  %v122 = vld [vmem:[%s0 + $0x284] sm:$0xf]
  %v123 = vld [vmem:[%s0 + $0x288] sm:$0xff]
  %v124 = vld [vmem:[%s0 + $0x290] sm:$0xf]
  %v125 = vld [vmem:[%s0 + $0x294] sm:$0xff]
  %v126 = vld [vmem:[%s0 + $0x29c] sm:$0xf]
  %v127 = vld [vmem:[%s0 + $0x2a0] sm:$0xff]
  %v128 = vld [vmem:[%s0 + $0x2a8] sm:$0xf]
  %v129 = vld [vmem:[%s0 + $0x2ac] sm:$0xff]
  %v130 = vld [vmem:[%s0 + $0x2b4] sm:$0xf]
  %v131 = vld [vmem:[%s0 + $0x2b8] sm:$0xff]
  %v132 = vld [vmem:[%s0 + $0x2c0] sm:$0xf]
  %v133 = vld [vmem:[%s0 + $0x2c4] sm:$0xff]
  %v134 = vld [vmem:[%s0 + $0x2cc] sm:$0xf]
  %v135 = vld [vmem:[%s0 + $0x2d0] sm:$0xff]
  %v136 = vld [vmem:[%s0 + $0x2d8] sm:$0xf]
  %v137 = vld [vmem:[%s0 + $0x2dc] sm:$0xff]
  %v138 = vld [vmem:[%s0 + $0x2e4] sm:$0xf]
  %v139 = vld [vmem:[%s0 + $0x2e8] sm:$0xff]
  %v140 = vld [vmem:[%s0 + $0x2f0] sm:$0xf]
  %v141 = vld [vmem:[%s0 + $0x2f4] sm:$0xff]
  %v142 = vld [vmem:[%s0 + $0x2fc] sm:$0xf]
  %v143 = vld [vmem:[%s0 + $0x300] sm:$0xff]
  %v144 = vld [vmem:[%s0 + $0x308] sm:$0xf]
  %v145 = vld [vmem:[%s0 + $0x30c] sm:$0xff]
  %v146 = vld [vmem:[%s0 + $0x314] sm:$0xf]
  %v147 = vld [vmem:[%s0 + $0x318] sm:$0xff]
  %v148 = vld [vmem:[%s0 + $0x320] sm:$0xf]
  %v149 = vld [vmem:[%s0 + $0x324] sm:$0xff]
  %v150 = vld [vmem:[%s0 + $0x32c] sm:$0xf]
  %v151 = vld [vmem:[%s0 + $0x330] sm:$0xff]
  %v152 = vld [vmem:[%s0 + $0x338] sm:$0xf]
  %v153 = vld [vmem:[%s0 + $0x33c] sm:$0xff]
  %v154 = vld [vmem:[%s0 + $0x344] sm:$0xf]
  %v155 = vld [vmem:[%s0 + $0x348] sm:$0xff]
  %v156 = vld [vmem:[%s0 + $0x350] sm:$0xf]
  %v157 = vld [vmem:[%s0 + $0x354] sm:$0xff]
  %v158 = vld [vmem:[%s0 + $0x35c] sm:$0xf]
  %v159 = vld [vmem:[%s0 + $0x360] sm:$0xff]
  %v160 = vld [vmem:[%s0 + $0x368] sm:$0xf]
  %v161 = vld [vmem:[%s0 + $0x36c] sm:$0xff]
  %v162 = vld [vmem:[%s0 + $0x374] sm:$0xf]
  %v163 = vld [vmem:[%s0 + $0x378] sm:$0xff]
  %v164 = vld [vmem:[%s0 + $0x380] sm:$0xf]
  %v165 = vld [vmem:[%s0 + $0x384] sm:$0xff]
  %v166 = vld [vmem:[%s0 + $0x38c] sm:$0xf]
  %v167 = vld [vmem:[%s0 + $0x390] sm:$0xff]
  %v168 = vld [vmem:[%s0 + $0x398] sm:$0xf]
  %v169 = vld [vmem:[%s0 + $0x39c] sm:$0xff]
  %v170 = vld [vmem:[%s0 + $0x3a4] sm:$0xf]
  %v171 = vld [vmem:[%s0 + $0x3a8] sm:$0xff]
  %v172 = vld [vmem:[%s0 + $0x3b0] sm:$0xf]
  %v173 = vld [vmem:[%s0 + $0x3b4] sm:$0xff]
  %v174 = vld [vmem:[%s0 + $0x3bc] sm:$0xf]
  %v175 = vld [vmem:[%s0 + $0x3c0] sm:$0xff]
  %v176 = vld [vmem:[%s0 + $0x3c8] sm:$0xf]
  %v177 = vld [vmem:[%s0 + $0x3cc] sm:$0xff]
  %v178 = vld [vmem:[%s0 + $0x3d4] sm:$0xf]
  %v179 = vld [vmem:[%s0 + $0x3d8] sm:$0xff]
  %v180 = vld [vmem:[%s0 + $0x3e0] sm:$0xf]
  %v181 = vld [vmem:[%s0 + $0x3e4] sm:$0xff]
  %v182 = vld [vmem:[%s0 + $0x3ec] sm:$0xf]
  %v183 = vld [vmem:[%s0 + $0x3f0] sm:$0xff]
  %v184 = vld [vmem:[%s0 + $0x3f8] sm:$0xf]
  %v185 = vld [vmem:[%s0 + $0x3fc] sm:$0xff]
  %v186 = vld [vmem:[%s0 + $0x404] sm:$0xf]
  %v187 = vld [vmem:[%s0 + $0x408] sm:$0xff]
  %v188 = vld [vmem:[%s0 + $0x410] sm:$0xf]
  %v189 = vld [vmem:[%s0 + $0x414] sm:$0xff]
  %v190 = vld [vmem:[%s0 + $0x41c] sm:$0xf]
  %v191 = vld [vmem:[%s0 + $0x420] sm:$0xff]
  %v192 = vld [vmem:[%s0 + $0x428] sm:$0xf]
  %v193 = vld [vmem:[%s0 + $0x42c] sm:$0xff]
  %v194 = vld [vmem:[%s0 + $0x434] sm:$0xf]
  %v195 = vld [vmem:[%s0 + $0x438] sm:$0xff]
  %v196 = vld [vmem:[%s0 + $0x440] sm:$0xf]
  %v197 = vld [vmem:[%s0 + $0x444] sm:$0xff]
  %v198 = vld [vmem:[%s0 + $0x44c] sm:$0xf]
  %v199 = vld [vmem:[%s0 + $0x450] sm:$0xff]
  %v200 = vld [vmem:[%s0 + $0x458] sm:$0xf]
  %v201 = vld [vmem:[%s0 + $0x45c] sm:$0xff]
  %v202 = vld [vmem:[%s0 + $0x464] sm:$0xf]
  %v203 = vld [vmem:[%s0 + $0x468] sm:$0xff]
  %v204 = vld [vmem:[%s0 + $0x470] sm:$0xf]
  %v205 = vld [vmem:[%s0 + $0x474] sm:$0xff]
  %v206 = vld [vmem:[%s0 + $0x47c] sm:$0xf]
  %v207 = vld [vmem:[%s0 + $0x480] sm:$0xff]
  %v208 = vld [vmem:[%s0 + $0x488] sm:$0xf]
  %v209 = vld [vmem:[%s0 + $0x48c] sm:$0xff]
  %v210 = vld [vmem:[%s0 + $0x494] sm:$0xf]
  %v211 = vld [vmem:[%s0 + $0x498] sm:$0xff]
  %v212 = vld [vmem:[%s0 + $0x4a0] sm:$0xf]
  %v213 = vld [vmem:[%s0 + $0x4a4] sm:$0xff]
  %v214 = vld [vmem:[%s0 + $0x4ac] sm:$0xf]
  %v215 = vld [vmem:[%s0 + $0x4b0] sm:$0xff]
  %v216 = vld [vmem:[%s0 + $0x4b8] sm:$0xf]
  %v217 = vld [vmem:[%s0 + $0x4bc] sm:$0xff]
  %v218 = vld [vmem:[%s0 + $0x4c4] sm:$0xf]
  %v219 = vld [vmem:[%s0 + $0x4c8] sm:$0xff]
  %v220 = vld [vmem:[%s0 + $0x4d0] sm:$0xf]
  %v221 = vld [vmem:[%s0 + $0x4d4] sm:$0xff]
  %v222 = vld [vmem:[%s0 + $0x4dc] sm:$0xf]
  %v223 = vld [vmem:[%s0 + $0x4e0] sm:$0xff]
  %v224 = vld [vmem:[%s0 + $0x4e8] sm:$0xf]
  %v225 = vld [vmem:[%s0 + $0x4ec] sm:$0xff]
  %v226 = vld [vmem:[%s0 + $0x4f4] sm:$0xf]
  %v227 = vld [vmem:[%s0 + $0x4f8] sm:$0xff]
  %v228 = vld [vmem:[%s0 + $0x500] sm:$0xf]
  %v229 = vld [vmem:[%s0 + $0x504] sm:$0xff]
  %v230 = vld [vmem:[%s0 + $0x50c] sm:$0xf]
  %v231 = vld [vmem:[%s0 + $0x510] sm:$0xff]
  %v232 = vld [vmem:[%s0 + $0x518] sm:$0xf]
  %v233 = vld [vmem:[%s0 + $0x51c] sm:$0xff]
  %v234 = vld [vmem:[%s0 + $0x524] sm:$0xf]
  %v235 = vld [vmem:[%s0 + $0x528] sm:$0xff]
  %v236 = vld [vmem:[%s0 + $0x530] sm:$0xf]
  %v237 = vld [vmem:[%s0 + $0x534] sm:$0xff]
  %v238 = vld [vmem:[%s0 + $0x53c] sm:$0xf]
  %v239 = vld [vmem:[%s0 + $0x540] sm:$0xff]
  %v240 = vld [vmem:[%s0 + $0x548] sm:$0xf]
  %v241 = vld [vmem:[%s0 + $0x54c] sm:$0xff]
  %v242 = vld [vmem:[%s0 + $0x554] sm:$0xf]
  %v243 = vld [vmem:[%s0 + $0x558] sm:$0xff]
  %v244 = vld [vmem:[%s0 + $0x560] sm:$0xf]
  %v245 = vld [vmem:[%s0 + $0x564] sm:$0xff]
  %v246 = vld [vmem:[%s0 + $0x56c] sm:$0xf]
  %v247 = vld [vmem:[%s0 + $0x570] sm:$0xff]
  %v248 = vld [vmem:[%s0 + $0x578] sm:$0xf]
  %v249 = vld [vmem:[%s0 + $0x57c] sm:$0xff]
  %v250 = vld [vmem:[%s0 + $0x584] sm:$0xf]
  %v251 = vld [vmem:[%s0 + $0x588] sm:$0xff]
  %v252 = vld [vmem:[%s0 + $0x590] sm:$0xf]
  %v253 = vld [vmem:[%s0 + $0x594] sm:$0xff]
  %v254 = vld [vmem:[%s0 + $0x59c] sm:$0xf]
  %v255 = vld [vmem:[%s0 + $0x5a0] sm:$0xff]
  %v256 = vld [vmem:[%s0 + $0x5a8] sm:$0xf]
  %v257 = vld [vmem:[%s0 + $0x5ac] sm:$0xff]
  %v258 = vld [vmem:[%s0 + $0x5b4] sm:$0xf]
  %v259 = vld [vmem:[%s0 + $0x5b8] sm:$0xff]
  %v260 = vld [vmem:[%s0 + $0x5c0] sm:$0xf]
  %v261 = vld [vmem:[%s0 + $0x5c4] sm:$0xff]
  %v262 = vld [vmem:[%s0 + $0x5cc] sm:$0xf]
  %v263 = vld [vmem:[%s0 + $0x5d0] sm:$0xff]
  %v264 = vld [vmem:[%s0 + $0x5d8] sm:$0xf]
  %v265 = vld [vmem:[%s0 + $0x5dc] sm:$0xff]
  %v266 = vld [vmem:[%s0 + $0x5e4] sm:$0xf]
  %v267 = vld [vmem:[%s0 + $0x5e8] sm:$0xff]
  %v268 = vld [vmem:[%s0 + $0x5f0] sm:$0xf]
  %v269 = vld [vmem:[%s0 + $0x5f4] sm:$0xff]
  %v270 = vld [vmem:[%s0 + $0x5fc] sm:$0xf]
  %v271 = vld [vmem:[%s1] sm:$0xf]
  %v272 = vld [vmem:[%s1 + $0x4] sm:$0xf]
  %v273 = vld [vmem:[%s1 + $0x8] sm:$0xf]
  %v274 = vld [vmem:[%s1 + $0xc] sm:$0xf]
  %v275 = vld [vmem:[%s1 + $0x10] sm:$0xf]
  %v276 = vld [vmem:[%s1 + $0x14] sm:$0xf]
  %v277 = vld [vmem:[%s1 + $0x18] sm:$0xf]
  %v278 = vld [vmem:[%s1 + $0x1c] sm:$0xf]
  %v279 = vld [vmem:[%s1 + $0x20] sm:$0xf]
  %v280 = vld [vmem:[%s1 + $0x24] sm:$0xf]
  %v281 = vld [vmem:[%s1 + $0x28] sm:$0xf]
  %v282 = vld [vmem:[%s1 + $0x2c] sm:$0xf]
  %v283 = vld [vmem:[%s1 + $0x30] sm:$0xf]
  %v284 = vld [vmem:[%s1 + $0x34] sm:$0xf]
  %v285 = vld [vmem:[%s1 + $0x38] sm:$0xf]
  %v286 = vld [vmem:[%s1 + $0x3c] sm:$0xf]
  %v287 = vld [vmem:[%s1 + $0x40] sm:$0xf]
  %v288 = vld [vmem:[%s1 + $0x44] sm:$0xf]
  %v289 = vld [vmem:[%s1 + $0x48] sm:$0xf]
  %v290 = vld [vmem:[%s1 + $0x4c] sm:$0xf]
  %v291 = vld [vmem:[%s1 + $0x50] sm:$0xf]
  %v292 = vld [vmem:[%s1 + $0x54] sm:$0xf]
  %v293 = vld [vmem:[%s1 + $0x58] sm:$0xf]
  %v294 = vld [vmem:[%s1 + $0x5c] sm:$0xf]
  %v295 = vld [vmem:[%s1 + $0x60] sm:$0xf]
  %v296 = vld [vmem:[%s1 + $0x64] sm:$0xf]
  %v297 = vld [vmem:[%s1 + $0x68] sm:$0xf]
  %v298 = vld [vmem:[%s1 + $0x6c] sm:$0xf]
  %v299 = vld [vmem:[%s1 + $0x70] sm:$0xf]
  %v300 = vld [vmem:[%s1 + $0x74] sm:$0xf]
  %v301 = vld [vmem:[%s1 + $0x78] sm:$0xf]
  %v302 = vld [vmem:[%s1 + $0x7c] sm:$0xf]
  %v303 = vld [vmem:[%s1 + $0x80] sm:$0xf]
  %v304 = vld [vmem:[%s1 + $0x84] sm:$0xf]
  %v305 = vld [vmem:[%s1 + $0x88] sm:$0xf]
  %v306 = vld [vmem:[%s1 + $0x8c] sm:$0xf]
  %v307 = vld [vmem:[%s2] sm:$0x1]
  %v309 = vlaneseq
  %v310 = vshrl.u32 %v309, 7
  %v311 = vsub.s32 0, %v310
  %v312 = vrot.slane %v307, %v311
  %v570 = vunpack.c.l.b16 %v15
  %v571 = vunpack.c.h.b16 %v15
  %v572 = vunpack.c.l.b16 %v16
  %v573 = vunpack.c.l.b16 %v17
  %v574 = vunpack.c.h.b16 %v17
  %v575 = vunpack.c.l.b16 %v18
  %v576 = vunpack.c.l.b16 %v19
  %v577 = vunpack.c.h.b16 %v19
  %v578 = vunpack.c.l.b16 %v20
  %v579 = vunpack.c.l.b16 %v21
  %v580 = vunpack.c.h.b16 %v21
  %v581 = vunpack.c.l.b16 %v22
  %v582 = vunpack.c.l.b16 %v23
  %v583 = vunpack.c.h.b16 %v23
  %v584 = vunpack.c.l.b16 %v24
  %v585 = vunpack.c.l.b16 %v25
  %v586 = vunpack.c.h.b16 %v25
  %v587 = vunpack.c.l.b16 %v26
  %v588 = vunpack.c.l.b16 %v27
  %v589 = vunpack.c.h.b16 %v27
  %v590 = vunpack.c.l.b16 %v28
  %v591 = vunpack.c.l.b16 %v29
  %v592 = vunpack.c.h.b16 %v29
  %v593 = vunpack.c.l.b16 %v30
  %v594 = vunpack.c.l.b16 %v31
  %v595 = vunpack.c.h.b16 %v31
  %v596 = vunpack.c.l.b16 %v32
  %v597 = vunpack.c.l.b16 %v33
  %v598 = vunpack.c.h.b16 %v33
  %v599 = vunpack.c.l.b16 %v34
  %v600 = vunpack.c.l.b16 %v35
  %v601 = vunpack.c.h.b16 %v35
  %v602 = vunpack.c.l.b16 %v36
  %v603 = vunpack.c.l.b16 %v37
  %v604 = vunpack.c.h.b16 %v37
  %v605 = vunpack.c.l.b16 %v38
  %v606 = vunpack.c.l.b16 %v39
  %v607 = vunpack.c.h.b16 %v39
  %v608 = vunpack.c.l.b16 %v40
  %v609 = vunpack.c.l.b16 %v41
  %v610 = vunpack.c.h.b16 %v41
  %v611 = vunpack.c.l.b16 %v42
  %v612 = vunpack.c.l.b16 %v43
  %v613 = vunpack.c.h.b16 %v43
  %v614 = vunpack.c.l.b16 %v44
  %v615 = vunpack.c.l.b16 %v45
  %v616 = vunpack.c.h.b16 %v45
  %v617 = vunpack.c.l.b16 %v46
  %v618 = vunpack.c.l.b16 %v47
  %v619 = vunpack.c.h.b16 %v47
  %v620 = vunpack.c.l.b16 %v48
  %v621 = vunpack.c.l.b16 %v49
  %v622 = vunpack.c.h.b16 %v49
  %v623 = vunpack.c.l.b16 %v50
  %v624 = vunpack.c.l.b16 %v51
  %v625 = vunpack.c.h.b16 %v51
  %v626 = vunpack.c.l.b16 %v52
  %v627 = vunpack.c.l.b16 %v53
  %v628 = vunpack.c.h.b16 %v53
  %v629 = vunpack.c.l.b16 %v54
  %v630 = vunpack.c.l.b16 %v55
  %v631 = vunpack.c.h.b16 %v55
  %v632 = vunpack.c.l.b16 %v56
  %v633 = vunpack.c.l.b16 %v57
  %v634 = vunpack.c.h.b16 %v57
  %v635 = vunpack.c.l.b16 %v58
  %v636 = vunpack.c.l.b16 %v59
  %v637 = vunpack.c.h.b16 %v59
  %v638 = vunpack.c.l.b16 %v60
  %v639 = vunpack.c.l.b16 %v61
  %v640 = vunpack.c.h.b16 %v61
  %v641 = vunpack.c.l.b16 %v62
  %v642 = vunpack.c.l.b16 %v63
  %v643 = vunpack.c.h.b16 %v63
  %v644 = vunpack.c.l.b16 %v64
  %v645 = vunpack.c.l.b16 %v65
  %v646 = vunpack.c.h.b16 %v65
  %v647 = vunpack.c.l.b16 %v66
  %v648 = vunpack.c.l.b16 %v67
  %v649 = vunpack.c.h.b16 %v67
  %v650 = vunpack.c.l.b16 %v68
  %v651 = vunpack.c.l.b16 %v69
  %v652 = vunpack.c.h.b16 %v69
  %v653 = vunpack.c.l.b16 %v70
  %v654 = vunpack.c.l.b16 %v71
  %v655 = vunpack.c.h.b16 %v71
  %v656 = vunpack.c.l.b16 %v72
  %v657 = vunpack.c.l.b16 %v73
  %v658 = vunpack.c.h.b16 %v73
  %v659 = vunpack.c.l.b16 %v74
  %v660 = vunpack.c.l.b16 %v75
  %v661 = vunpack.c.h.b16 %v75
  %v662 = vunpack.c.l.b16 %v76
  %v663 = vunpack.c.l.b16 %v77
  %v664 = vunpack.c.h.b16 %v77
  %v665 = vunpack.c.l.b16 %v78
  %v666 = vunpack.c.l.b16 %v79
  %v667 = vunpack.c.h.b16 %v79
  %v668 = vunpack.c.l.b16 %v80
  %v669 = vunpack.c.l.b16 %v81
  %v670 = vunpack.c.h.b16 %v81
  %v671 = vunpack.c.l.b16 %v82
  %v672 = vunpack.c.l.b16 %v83
  %v673 = vunpack.c.h.b16 %v83
  %v674 = vunpack.c.l.b16 %v84
  %v675 = vunpack.c.l.b16 %v85
  %v676 = vunpack.c.h.b16 %v85
  %v677 = vunpack.c.l.b16 %v86
  %v678 = vunpack.c.l.b16 %v87
  %v679 = vunpack.c.h.b16 %v87
  %v680 = vunpack.c.l.b16 %v88
  %v681 = vunpack.c.l.b16 %v89
  %v682 = vunpack.c.h.b16 %v89
  %v683 = vunpack.c.l.b16 %v90
  %v684 = vunpack.c.l.b16 %v91
  %v685 = vunpack.c.h.b16 %v91
  %v686 = vunpack.c.l.b16 %v92
  %v687 = vunpack.c.l.b16 %v93
  %v688 = vunpack.c.h.b16 %v93
  %v689 = vunpack.c.l.b16 %v94
  %v690 = vunpack.c.l.b16 %v95
  %v691 = vunpack.c.h.b16 %v95
  %v692 = vunpack.c.l.b16 %v96
  %v693 = vunpack.c.l.b16 %v97
  %v694 = vunpack.c.h.b16 %v97
  %v695 = vunpack.c.l.b16 %v98
  %v696 = vunpack.c.l.b16 %v99
  %v697 = vunpack.c.h.b16 %v99
  %v698 = vunpack.c.l.b16 %v100
  %v699 = vunpack.c.l.b16 %v101
  %v700 = vunpack.c.h.b16 %v101
  %v701 = vunpack.c.l.b16 %v102
  %v702 = vunpack.c.l.b16 %v103
  %v703 = vunpack.c.h.b16 %v103
  %v704 = vunpack.c.l.b16 %v104
  %v705 = vunpack.c.l.b16 %v105
  %v706 = vunpack.c.h.b16 %v105
  %v707 = vunpack.c.l.b16 %v106
  %v708 = vunpack.c.l.b16 %v107
  %v709 = vunpack.c.h.b16 %v107
  %v710 = vunpack.c.l.b16 %v108
  %v711 = vunpack.c.l.b16 %v109
  %v712 = vunpack.c.h.b16 %v109
  %v713 = vunpack.c.l.b16 %v110
  %v714 = vunpack.c.l.b16 %v111
  %v715 = vunpack.c.h.b16 %v111
  %v716 = vunpack.c.l.b16 %v112
  %v717 = vunpack.c.l.b16 %v113
  %v718 = vunpack.c.h.b16 %v113
  %v719 = vunpack.c.l.b16 %v114
  %v720 = vunpack.c.l.b16 %v115
  %v721 = vunpack.c.h.b16 %v115
  %v722 = vunpack.c.l.b16 %v116
  %v723 = vunpack.c.l.b16 %v117
  %v724 = vunpack.c.h.b16 %v117
  %v725 = vunpack.c.l.b16 %v118
  %v726 = vunpack.c.l.b16 %v119
  %v727 = vunpack.c.h.b16 %v119
  %v728 = vunpack.c.l.b16 %v120
  %v729 = vunpack.c.l.b16 %v121
  %v730 = vunpack.c.h.b16 %v121
  %v731 = vunpack.c.l.b16 %v122
  %v732 = vunpack.c.l.b16 %v123
  %v733 = vunpack.c.h.b16 %v123
  %v734 = vunpack.c.l.b16 %v124
  %v735 = vunpack.c.l.b16 %v125
  %v736 = vunpack.c.h.b16 %v125
  %v737 = vunpack.c.l.b16 %v126
  %v738 = vunpack.c.l.b16 %v127
  %v739 = vunpack.c.h.b16 %v127
  %v740 = vunpack.c.l.b16 %v128
  %v741 = vunpack.c.l.b16 %v129
  %v742 = vunpack.c.h.b16 %v129
  %v743 = vunpack.c.l.b16 %v130
  %v744 = vunpack.c.l.b16 %v131
  %v745 = vunpack.c.h.b16 %v131
  %v746 = vunpack.c.l.b16 %v132
  %v747 = vunpack.c.l.b16 %v133
  %v748 = vunpack.c.h.b16 %v133
  %v749 = vunpack.c.l.b16 %v134
  %v750 = vunpack.c.l.b16 %v135
  %v751 = vunpack.c.h.b16 %v135
  %v752 = vunpack.c.l.b16 %v136
  %v753 = vunpack.c.l.b16 %v137
  %v754 = vunpack.c.h.b16 %v137
  %v755 = vunpack.c.l.b16 %v138
  %v756 = vunpack.c.l.b16 %v139
  %v757 = vunpack.c.h.b16 %v139
  %v758 = vunpack.c.l.b16 %v140
  %v759 = vunpack.c.l.b16 %v141
  %v760 = vunpack.c.h.b16 %v141
  %v761 = vunpack.c.l.b16 %v142
  %v762 = vunpack.c.l.b16 %v143
  %v763 = vunpack.c.h.b16 %v143
  %v764 = vunpack.c.l.b16 %v144
  %v765 = vunpack.c.l.b16 %v145
  %v766 = vunpack.c.h.b16 %v145
  %v767 = vunpack.c.l.b16 %v146
  %v768 = vunpack.c.l.b16 %v147
  %v769 = vunpack.c.h.b16 %v147
  %v770 = vunpack.c.l.b16 %v148
  %v771 = vunpack.c.l.b16 %v149
  %v772 = vunpack.c.h.b16 %v149
  %v773 = vunpack.c.l.b16 %v150
  %v774 = vunpack.c.l.b16 %v151
  %v775 = vunpack.c.h.b16 %v151
  %v776 = vunpack.c.l.b16 %v152
  %v777 = vunpack.c.l.b16 %v153
  %v778 = vunpack.c.h.b16 %v153
  %v779 = vunpack.c.l.b16 %v154
  %v780 = vunpack.c.l.b16 %v155
  %v781 = vunpack.c.h.b16 %v155
  %v782 = vunpack.c.l.b16 %v156
  %v783 = vunpack.c.l.b16 %v157
  %v784 = vunpack.c.h.b16 %v157
  %v785 = vunpack.c.l.b16 %v158
  %v786 = vunpack.c.l.b16 %v159
  %v787 = vunpack.c.h.b16 %v159
  %v788 = vunpack.c.l.b16 %v160
  %v789 = vunpack.c.l.b16 %v161
  %v790 = vunpack.c.h.b16 %v161
  %v791 = vunpack.c.l.b16 %v162
  %v792 = vunpack.c.l.b16 %v163
  %v793 = vunpack.c.h.b16 %v163
  %v794 = vunpack.c.l.b16 %v164
  %v795 = vunpack.c.l.b16 %v165
  %v796 = vunpack.c.h.b16 %v165
  %v797 = vunpack.c.l.b16 %v166
  %v798 = vunpack.c.l.b16 %v167
  %v799 = vunpack.c.h.b16 %v167
  %v800 = vunpack.c.l.b16 %v168
  %v801 = vunpack.c.l.b16 %v169
  %v802 = vunpack.c.h.b16 %v169
  %v803 = vunpack.c.l.b16 %v170
  %v804 = vunpack.c.l.b16 %v171
  %v805 = vunpack.c.h.b16 %v171
  %v806 = vunpack.c.l.b16 %v172
  %v807 = vunpack.c.l.b16 %v173
  %v808 = vunpack.c.h.b16 %v173
  %v809 = vunpack.c.l.b16 %v174
  %v810 = vunpack.c.l.b16 %v175
  %v811 = vunpack.c.h.b16 %v175
  %v812 = vunpack.c.l.b16 %v176
  %v813 = vunpack.c.l.b16 %v177
  %v814 = vunpack.c.h.b16 %v177
  %v815 = vunpack.c.l.b16 %v178
  %v816 = vunpack.c.l.b16 %v179
  %v817 = vunpack.c.h.b16 %v179
  %v818 = vunpack.c.l.b16 %v180
  %v819 = vunpack.c.l.b16 %v181
  %v820 = vunpack.c.h.b16 %v181
  %v821 = vunpack.c.l.b16 %v182
  %v822 = vunpack.c.l.b16 %v183
  %v823 = vunpack.c.h.b16 %v183
  %v824 = vunpack.c.l.b16 %v184
  %v825 = vunpack.c.l.b16 %v185
  %v826 = vunpack.c.h.b16 %v185
  %v827 = vunpack.c.l.b16 %v186
  %v828 = vunpack.c.l.b16 %v187
  %v829 = vunpack.c.h.b16 %v187
  %v830 = vunpack.c.l.b16 %v188
  %v831 = vunpack.c.l.b16 %v189
  %v832 = vunpack.c.h.b16 %v189
  %v833 = vunpack.c.l.b16 %v190
  %v834 = vunpack.c.l.b16 %v191
  %v835 = vunpack.c.h.b16 %v191
  %v836 = vunpack.c.l.b16 %v192
  %v837 = vunpack.c.l.b16 %v193
  %v838 = vunpack.c.h.b16 %v193
  %v839 = vunpack.c.l.b16 %v194
  %v840 = vunpack.c.l.b16 %v195
  %v841 = vunpack.c.h.b16 %v195
  %v842 = vunpack.c.l.b16 %v196
  %v843 = vunpack.c.l.b16 %v197
  %v844 = vunpack.c.h.b16 %v197
  %v845 = vunpack.c.l.b16 %v198
  %v846 = vunpack.c.l.b16 %v199
  %v847 = vunpack.c.h.b16 %v199
  %v848 = vunpack.c.l.b16 %v200
  %v849 = vunpack.c.l.b16 %v201
  %v850 = vunpack.c.h.b16 %v201
  %v851 = vunpack.c.l.b16 %v202
  %v852 = vunpack.c.l.b16 %v203
  %v853 = vunpack.c.h.b16 %v203
  %v854 = vunpack.c.l.b16 %v204
  %v855 = vunpack.c.l.b16 %v205
  %v856 = vunpack.c.h.b16 %v205
  %v857 = vunpack.c.l.b16 %v206
  %v858 = vunpack.c.l.b16 %v207
  %v859 = vunpack.c.h.b16 %v207
  %v860 = vunpack.c.l.b16 %v208
  %v861 = vunpack.c.l.b16 %v209
  %v862 = vunpack.c.h.b16 %v209
  %v863 = vunpack.c.l.b16 %v210
  %v864 = vunpack.c.l.b16 %v211
  %v865 = vunpack.c.h.b16 %v211
  %v866 = vunpack.c.l.b16 %v212
  %v867 = vunpack.c.l.b16 %v213
  %v868 = vunpack.c.h.b16 %v213
  %v869 = vunpack.c.l.b16 %v214
  %v870 = vunpack.c.l.b16 %v215
  %v871 = vunpack.c.h.b16 %v215
  %v872 = vunpack.c.l.b16 %v216
  %v873 = vunpack.c.l.b16 %v217
  %v874 = vunpack.c.h.b16 %v217
  %v875 = vunpack.c.l.b16 %v218
  %v876 = vunpack.c.l.b16 %v219
  %v877 = vunpack.c.h.b16 %v219
  %v878 = vunpack.c.l.b16 %v220
  %v879 = vunpack.c.l.b16 %v221
  %v880 = vunpack.c.h.b16 %v221
  %v881 = vunpack.c.l.b16 %v222
  %v882 = vunpack.c.l.b16 %v223
  %v883 = vunpack.c.h.b16 %v223
  %v884 = vunpack.c.l.b16 %v224
  %v885 = vunpack.c.l.b16 %v225
  %v886 = vunpack.c.h.b16 %v225
  %v887 = vunpack.c.l.b16 %v226
  %v888 = vunpack.c.l.b16 %v227
  %v889 = vunpack.c.h.b16 %v227
  %v890 = vunpack.c.l.b16 %v228
  %v891 = vunpack.c.l.b16 %v229
  %v892 = vunpack.c.h.b16 %v229
  %v893 = vunpack.c.l.b16 %v230
  %v894 = vunpack.c.l.b16 %v231
  %v895 = vunpack.c.h.b16 %v231
  %v896 = vunpack.c.l.b16 %v232
  %v897 = vunpack.c.l.b16 %v233
  %v898 = vunpack.c.h.b16 %v233
  %v899 = vunpack.c.l.b16 %v234
  %v900 = vunpack.c.l.b16 %v235
  %v901 = vunpack.c.h.b16 %v235
  %v902 = vunpack.c.l.b16 %v236
  %v903 = vunpack.c.l.b16 %v237
  %v904 = vunpack.c.h.b16 %v237
  %v905 = vunpack.c.l.b16 %v238
  %v906 = vunpack.c.l.b16 %v239
  %v907 = vunpack.c.h.b16 %v239
  %v908 = vunpack.c.l.b16 %v240
  %v909 = vunpack.c.l.b16 %v241
  %v910 = vunpack.c.h.b16 %v241
  %v911 = vunpack.c.l.b16 %v242
  %v912 = vunpack.c.l.b16 %v243
  %v913 = vunpack.c.h.b16 %v243
  %v914 = vunpack.c.l.b16 %v244
  %v915 = vunpack.c.l.b16 %v245
  %v916 = vunpack.c.h.b16 %v245
  %v917 = vunpack.c.l.b16 %v246
  %v918 = vunpack.c.l.b16 %v247
  %v919 = vunpack.c.h.b16 %v247
  %v920 = vunpack.c.l.b16 %v248
  %v921 = vunpack.c.l.b16 %v249
  %v922 = vunpack.c.h.b16 %v249
  %v923 = vunpack.c.l.b16 %v250
  %v924 = vunpack.c.l.b16 %v251
  %v925 = vunpack.c.h.b16 %v251
  %v926 = vunpack.c.l.b16 %v252
  %v927 = vunpack.c.l.b16 %v253
  %v928 = vunpack.c.h.b16 %v253
  %v929 = vunpack.c.l.b16 %v254
  %v930 = vunpack.c.l.b16 %v255
  %v931 = vunpack.c.h.b16 %v255
  %v932 = vunpack.c.l.b16 %v256
  %v933 = vunpack.c.l.b16 %v257
  %v934 = vunpack.c.h.b16 %v257
  %v935 = vunpack.c.l.b16 %v258
  %v936 = vunpack.c.l.b16 %v259
  %v937 = vunpack.c.h.b16 %v259
  %v938 = vunpack.c.l.b16 %v260
  %v939 = vunpack.c.l.b16 %v261
  %v940 = vunpack.c.h.b16 %v261
  %v941 = vunpack.c.l.b16 %v262
  %v942 = vunpack.c.l.b16 %v263
  %v943 = vunpack.c.h.b16 %v263
  %v944 = vunpack.c.l.b16 %v264
  %v945 = vunpack.c.l.b16 %v265
  %v946 = vunpack.c.h.b16 %v265
  %v947 = vunpack.c.l.b16 %v266
  %v948 = vunpack.c.l.b16 %v267
  %v949 = vunpack.c.h.b16 %v267
  %v950 = vunpack.c.l.b16 %v268
  %v951 = vunpack.c.l.b16 %v269
  %v952 = vunpack.c.h.b16 %v269
  %v953 = vunpack.c.l.b16 %v270
  %v954 = vpack.c.b16 %v573, %v570
  %v955 = vpack.c.b16 %v574, %v571
  %v956 = vpack.c.b16 %v575, %v572
  %v957 = vpack.c.b16 %v579, %v576
  %v958 = vpack.c.b16 %v580, %v577
  %v959 = vpack.c.b16 %v581, %v578
  %v960 = vpack.c.b16 %v585, %v582
  %v961 = vpack.c.b16 %v586, %v583
  %v962 = vpack.c.b16 %v587, %v584
  %v963 = vpack.c.b16 %v591, %v588
  %v964 = vpack.c.b16 %v592, %v589
  %v965 = vpack.c.b16 %v593, %v590
  %v966 = vpack.c.b16 %v597, %v594
  %v967 = vpack.c.b16 %v598, %v595
  %v968 = vpack.c.b16 %v599, %v596
  %v969 = vpack.c.b16 %v603, %v600
  %v970 = vpack.c.b16 %v604, %v601
  %v971 = vpack.c.b16 %v605, %v602
  %v972 = vpack.c.b16 %v609, %v606
  %v973 = vpack.c.b16 %v610, %v607
  %v974 = vpack.c.b16 %v611, %v608
  %v975 = vpack.c.b16 %v615, %v612
  %v976 = vpack.c.b16 %v616, %v613
  %v977 = vpack.c.b16 %v617, %v614
  %v978 = vpack.c.b16 %v621, %v618
  %v979 = vpack.c.b16 %v622, %v619
  %v980 = vpack.c.b16 %v623, %v620
  %v981 = vpack.c.b16 %v627, %v624
  %v982 = vpack.c.b16 %v628, %v625
  %v983 = vpack.c.b16 %v629, %v626
  %v984 = vpack.c.b16 %v633, %v630
  %v985 = vpack.c.b16 %v634, %v631
  %v986 = vpack.c.b16 %v635, %v632
  %v987 = vpack.c.b16 %v639, %v636
  %v988 = vpack.c.b16 %v640, %v637
  %v989 = vpack.c.b16 %v641, %v638
  %v990 = vpack.c.b16 %v645, %v642
  %v991 = vpack.c.b16 %v646, %v643
  %v992 = vpack.c.b16 %v647, %v644
  %v993 = vpack.c.b16 %v651, %v648
  %v994 = vpack.c.b16 %v652, %v649
  %v995 = vpack.c.b16 %v653, %v650
  %v996 = vpack.c.b16 %v657, %v654
  %v997 = vpack.c.b16 %v658, %v655
  %v998 = vpack.c.b16 %v659, %v656
  %v999 = vpack.c.b16 %v663, %v660
  %v1000 = vpack.c.b16 %v664, %v661
  %v1001 = vpack.c.b16 %v665, %v662
  %v1002 = vpack.c.b16 %v669, %v666
  %v1003 = vpack.c.b16 %v670, %v667
  %v1004 = vpack.c.b16 %v671, %v668
  %v1005 = vpack.c.b16 %v675, %v672
  %v1006 = vpack.c.b16 %v676, %v673
  %v1007 = vpack.c.b16 %v677, %v674
  %v1008 = vpack.c.b16 %v681, %v678
  %v1009 = vpack.c.b16 %v682, %v679
  %v1010 = vpack.c.b16 %v683, %v680
  %v1011 = vpack.c.b16 %v687, %v684
  %v1012 = vpack.c.b16 %v688, %v685
  %v1013 = vpack.c.b16 %v689, %v686
  %v1014 = vpack.c.b16 %v693, %v690
  %v1015 = vpack.c.b16 %v694, %v691
  %v1016 = vpack.c.b16 %v695, %v692
  %v1017 = vpack.c.b16 %v699, %v696
  %v1018 = vpack.c.b16 %v700, %v697
  %v1019 = vpack.c.b16 %v701, %v698
  %v1020 = vpack.c.b16 %v705, %v702
  %v1021 = vpack.c.b16 %v706, %v703
  %v1022 = vpack.c.b16 %v707, %v704
  %v1023 = vpack.c.b16 %v711, %v708
  %v1024 = vpack.c.b16 %v712, %v709
  %v1025 = vpack.c.b16 %v713, %v710
  %v1026 = vpack.c.b16 %v717, %v714
  %v1027 = vpack.c.b16 %v718, %v715
  %v1028 = vpack.c.b16 %v719, %v716
  %v1029 = vpack.c.b16 %v723, %v720
  %v1030 = vpack.c.b16 %v724, %v721
  %v1031 = vpack.c.b16 %v725, %v722
  %v1032 = vpack.c.b16 %v729, %v726
  %v1033 = vpack.c.b16 %v730, %v727
  %v1034 = vpack.c.b16 %v731, %v728
  %v1035 = vpack.c.b16 %v735, %v732
  %v1036 = vpack.c.b16 %v736, %v733
  %v1037 = vpack.c.b16 %v737, %v734
  %v1038 = vpack.c.b16 %v741, %v738
  %v1039 = vpack.c.b16 %v742, %v739
  %v1040 = vpack.c.b16 %v743, %v740
  %v1041 = vpack.c.b16 %v747, %v744
  %v1042 = vpack.c.b16 %v748, %v745
  %v1043 = vpack.c.b16 %v749, %v746
  %v1044 = vpack.c.b16 %v753, %v750
  %v1045 = vpack.c.b16 %v754, %v751
  %v1046 = vpack.c.b16 %v755, %v752
  %v1047 = vpack.c.b16 %v759, %v756
  %v1048 = vpack.c.b16 %v760, %v757
  %v1049 = vpack.c.b16 %v761, %v758
  %v1050 = vpack.c.b16 %v765, %v762
  %v1051 = vpack.c.b16 %v766, %v763
  %v1052 = vpack.c.b16 %v767, %v764
  %v1053 = vpack.c.b16 %v771, %v768
  %v1054 = vpack.c.b16 %v772, %v769
  %v1055 = vpack.c.b16 %v773, %v770
  %v1056 = vpack.c.b16 %v777, %v774
  %v1057 = vpack.c.b16 %v778, %v775
  %v1058 = vpack.c.b16 %v779, %v776
  %v1059 = vpack.c.b16 %v783, %v780
  %v1060 = vpack.c.b16 %v784, %v781
  %v1061 = vpack.c.b16 %v785, %v782
  %v1062 = vpack.c.b16 %v789, %v786
  %v1063 = vpack.c.b16 %v790, %v787
  %v1064 = vpack.c.b16 %v791, %v788
  %v1065 = vpack.c.b16 %v795, %v792
  %v1066 = vpack.c.b16 %v796, %v793
  %v1067 = vpack.c.b16 %v797, %v794
  %v1068 = vpack.c.b16 %v801, %v798
  %v1069 = vpack.c.b16 %v802, %v799
  %v1070 = vpack.c.b16 %v803, %v800
  %v1071 = vpack.c.b16 %v807, %v804
  %v1072 = vpack.c.b16 %v808, %v805
  %v1073 = vpack.c.b16 %v809, %v806
  %v1074 = vpack.c.b16 %v813, %v810
  %v1075 = vpack.c.b16 %v814, %v811
  %v1076 = vpack.c.b16 %v815, %v812
  %v1077 = vpack.c.b16 %v819, %v816
  %v1078 = vpack.c.b16 %v820, %v817
  %v1079 = vpack.c.b16 %v821, %v818
  %v1080 = vpack.c.b16 %v825, %v822
  %v1081 = vpack.c.b16 %v826, %v823
  %v1082 = vpack.c.b16 %v827, %v824
  %v1083 = vpack.c.b16 %v831, %v828
  %v1084 = vpack.c.b16 %v832, %v829
  %v1085 = vpack.c.b16 %v833, %v830
  %v1086 = vpack.c.b16 %v837, %v834
  %v1087 = vpack.c.b16 %v838, %v835
  %v1088 = vpack.c.b16 %v839, %v836
  %v1089 = vpack.c.b16 %v843, %v840
  %v1090 = vpack.c.b16 %v844, %v841
  %v1091 = vpack.c.b16 %v845, %v842
  %v1092 = vpack.c.b16 %v849, %v846
  %v1093 = vpack.c.b16 %v850, %v847
  %v1094 = vpack.c.b16 %v851, %v848
  %v1095 = vpack.c.b16 %v855, %v852
  %v1096 = vpack.c.b16 %v856, %v853
  %v1097 = vpack.c.b16 %v857, %v854
  %v1098 = vpack.c.b16 %v861, %v858
  %v1099 = vpack.c.b16 %v862, %v859
  %v1100 = vpack.c.b16 %v863, %v860
  %v1101 = vpack.c.b16 %v867, %v864
  %v1102 = vpack.c.b16 %v868, %v865
  %v1103 = vpack.c.b16 %v869, %v866
  %v1104 = vpack.c.b16 %v873, %v870
  %v1105 = vpack.c.b16 %v874, %v871
  %v1106 = vpack.c.b16 %v875, %v872
  %v1107 = vpack.c.b16 %v879, %v876
  %v1108 = vpack.c.b16 %v880, %v877
  %v1109 = vpack.c.b16 %v881, %v878
  %v1110 = vpack.c.b16 %v885, %v882
  %v1111 = vpack.c.b16 %v886, %v883
  %v1112 = vpack.c.b16 %v887, %v884
  %v1113 = vpack.c.b16 %v891, %v888
  %v1114 = vpack.c.b16 %v892, %v889
  %v1115 = vpack.c.b16 %v893, %v890
  %v1116 = vpack.c.b16 %v897, %v894
  %v1117 = vpack.c.b16 %v898, %v895
  %v1118 = vpack.c.b16 %v899, %v896
  %v1119 = vpack.c.b16 %v903, %v900
  %v1120 = vpack.c.b16 %v904, %v901
  %v1121 = vpack.c.b16 %v905, %v902
  %v1122 = vpack.c.b16 %v909, %v906
  %v1123 = vpack.c.b16 %v910, %v907
  %v1124 = vpack.c.b16 %v911, %v908
  %v1125 = vpack.c.b16 %v915, %v912
  %v1126 = vpack.c.b16 %v916, %v913
  %v1127 = vpack.c.b16 %v917, %v914
  %v1128 = vpack.c.b16 %v921, %v918
  %v1129 = vpack.c.b16 %v922, %v919
  %v1130 = vpack.c.b16 %v923, %v920
  %v1131 = vpack.c.b16 %v927, %v924
  %v1132 = vpack.c.b16 %v928, %v925
  %v1133 = vpack.c.b16 %v929, %v926
  %v1134 = vpack.c.b16 %v933, %v930
  %v1135 = vpack.c.b16 %v934, %v931
  %v1136 = vpack.c.b16 %v935, %v932
  %v1137 = vpack.c.b16 %v939, %v936
  %v1138 = vpack.c.b16 %v940, %v937
  %v1139 = vpack.c.b16 %v941, %v938
  %v1140 = vpack.c.b16 %v945, %v942
  %v1141 = vpack.c.b16 %v946, %v943
  %v1142 = vpack.c.b16 %v947, %v944
  %v1143 = vpack.c.b16 %v951, %v948
  %v1144 = vpack.c.b16 %v952, %v949
  %v1145 = vpack.c.b16 %v953, %v950
  %v1310 = vunpack.c.l.b16 %v271
  %v1311 = vunpack.c.l.b16 %v272
  %v1312 = vunpack.c.l.b16 %v273
  %v1313 = vunpack.c.l.b16 %v274
  %v1314 = vunpack.c.l.b16 %v275
  %v1315 = vunpack.c.l.b16 %v276
  %v1316 = vunpack.c.l.b16 %v277
  %v1317 = vunpack.c.l.b16 %v278
  %v1318 = vunpack.c.l.b16 %v279
  %v1319 = vunpack.c.l.b16 %v280
  %v1320 = vunpack.c.l.b16 %v281
  %v1321 = vunpack.c.l.b16 %v282
  %v1322 = vunpack.c.l.b16 %v283
  %v1323 = vunpack.c.l.b16 %v284
  %v1324 = vunpack.c.l.b16 %v285
  %v1325 = vunpack.c.l.b16 %v286
  %v1326 = vunpack.c.l.b16 %v287
  %v1327 = vunpack.c.l.b16 %v288
  %v1328 = vunpack.c.l.b16 %v289
  %v1329 = vunpack.c.l.b16 %v290
  %v1330 = vunpack.c.l.b16 %v291
  %v1331 = vunpack.c.l.b16 %v292
  %v1332 = vunpack.c.l.b16 %v293
  %v1333 = vunpack.c.l.b16 %v294
  %v1334 = vunpack.c.l.b16 %v295
  %v1335 = vunpack.c.l.b16 %v296
  %v1336 = vunpack.c.l.b16 %v297
  %v1337 = vunpack.c.l.b16 %v298
  %v1338 = vunpack.c.l.b16 %v299
  %v1339 = vunpack.c.l.b16 %v300
  %v1340 = vunpack.c.l.b16 %v301
  %v1341 = vunpack.c.l.b16 %v302
  %v1342 = vunpack.c.l.b16 %v303
  %v1343 = vunpack.c.l.b16 %v304
  %v1344 = vunpack.c.l.b16 %v305
  %v1345 = vunpack.c.l.b16 %v306
  %v1346 = vpack.c.b16 %v1311, %v1310
  %v1347 = vpack.c.b16 %v1313, %v1312
  %v1348 = vpack.c.b16 %v1315, %v1314
  %v1349 = vpack.c.b16 %v1317, %v1316
  %v1350 = vpack.c.b16 %v1319, %v1318
  %v1351 = vpack.c.b16 %v1321, %v1320
  %v1352 = vpack.c.b16 %v1323, %v1322
  %v1353 = vpack.c.b16 %v1325, %v1324
  %v1354 = vpack.c.b16 %v1327, %v1326
  %v1355 = vpack.c.b16 %v1329, %v1328
  %v1356 = vpack.c.b16 %v1331, %v1330
  %v1357 = vpack.c.b16 %v1333, %v1332
  %v1358 = vpack.c.b16 %v1335, %v1334
  %v1359 = vpack.c.b16 %v1337, %v1336
  %v1360 = vpack.c.b16 %v1339, %v1338
  %v1361 = vpack.c.b16 %v1341, %v1340
  %v1362 = vpack.c.b16 %v1343, %v1342
  %v1363 = vpack.c.b16 %v1345, %v1344
  %vm1382 = vcmask 261120
  %v1384 = vsel %vm1382, %v956, 0
  %v1387 = vsel %vm1382, %v959, 0
  %v1390 = vsel %vm1382, %v962, 0
  %v1393 = vsel %vm1382, %v965, 0
  %v1396 = vsel %vm1382, %v968, 0
  %v1399 = vsel %vm1382, %v971, 0
  %v1402 = vsel %vm1382, %v974, 0
  %v1405 = vsel %vm1382, %v977, 0
  %v1408 = vsel %vm1382, %v980, 0
  %v1411 = vsel %vm1382, %v983, 0
  %v1414 = vsel %vm1382, %v986, 0
  %v1417 = vsel %vm1382, %v989, 0
  %v1420 = vsel %vm1382, %v992, 0
  %v1423 = vsel %vm1382, %v995, 0
  %v1426 = vsel %vm1382, %v998, 0
  %v1429 = vsel %vm1382, %v1001, 0
  %v1432 = vsel %vm1382, %v1004, 0
  %v1435 = vsel %vm1382, %v1007, 0
  %v1438 = vsel %vm1382, %v1010, 0
  %v1441 = vsel %vm1382, %v1013, 0
  %v1444 = vsel %vm1382, %v1016, 0
  %v1447 = vsel %vm1382, %v1019, 0
  %v1450 = vsel %vm1382, %v1022, 0
  %v1453 = vsel %vm1382, %v1025, 0
  %v1456 = vsel %vm1382, %v1028, 0
  %v1459 = vsel %vm1382, %v1031, 0
  %v1462 = vsel %vm1382, %v1034, 0
  %v1465 = vsel %vm1382, %v1037, 0
  %v1468 = vsel %vm1382, %v1040, 0
  %v1471 = vsel %vm1382, %v1043, 0
  %v1474 = vsel %vm1382, %v1046, 0
  %v1477 = vsel %vm1382, %v1049, 0
  %v1480 = vsel %vm1382, %v1052, 0
  %v1483 = vsel %vm1382, %v1055, 0
  %v1486 = vsel %vm1382, %v1058, 0
  %v1489 = vsel %vm1382, %v1061, 0
  %v1492 = vsel %vm1382, %v1064, 0
  %v1495 = vsel %vm1382, %v1067, 0
  %v1498 = vsel %vm1382, %v1070, 0
  %v1501 = vsel %vm1382, %v1073, 0
  %v1504 = vsel %vm1382, %v1076, 0
  %v1507 = vsel %vm1382, %v1079, 0
  %v1510 = vsel %vm1382, %v1082, 0
  %v1513 = vsel %vm1382, %v1085, 0
  %v1516 = vsel %vm1382, %v1088, 0
  %v1519 = vsel %vm1382, %v1091, 0
  %v1522 = vsel %vm1382, %v1094, 0
  %v1525 = vsel %vm1382, %v1097, 0
  %v1528 = vsel %vm1382, %v1100, 0
  %v1531 = vsel %vm1382, %v1103, 0
  %v1534 = vsel %vm1382, %v1106, 0
  %v1537 = vsel %vm1382, %v1109, 0
  %v1540 = vsel %vm1382, %v1112, 0
  %v1543 = vsel %vm1382, %v1115, 0
  %v1546 = vsel %vm1382, %v1118, 0
  %v1549 = vsel %vm1382, %v1121, 0
  %v1552 = vsel %vm1382, %v1124, 0
  %v1555 = vsel %vm1382, %v1127, 0
  %v1558 = vsel %vm1382, %v1130, 0
  %v1561 = vsel %vm1382, %v1133, 0
  %v1564 = vsel %vm1382, %v1136, 0
  %v1567 = vsel %vm1382, %v1139, 0
  %v1570 = vsel %vm1382, %v1142, 0
  %v1573 = vsel %vm1382, %v1145, 0
  %1575 = vmatprep.subr.bf16.mxu0 0
  %1576 = vmatpush1.bf16.msra.mxu0 %v1353
  %1577 = vmatprep.subr.bf16.mxu0 0
  %1578 = vmatpush1.bf16.msra.mxu0 %v1352
  %1579 = vmatprep.subr.bf16.mxu0 0
  %1580 = vmatpush1.bf16.msra.mxu0 %v1351
  %1581 = vmatprep.subr.bf16.mxu0 0
  %1582 = vmatpush1.bf16.msra.mxu0 %v1350
  %1583 = vmatprep.subr.bf16.mxu0 0
  %1584 = vmatpush1.bf16.msra.mxu0 %v1349
  %1585 = vmatprep.subr.bf16.mxu0 0
  %1586 = vmatpush1.bf16.msra.mxu0 %v1348
  %1587 = vmatprep.subr.bf16.mxu0 0
  %1588 = vmatpush1.bf16.msra.mxu0 %v1347
  %1589 = vmatprep.subr.bf16.mxu0 0
  %1590 = vmatpush1.bf16.msra.mxu0 %v1346
  %1591 = vmatprep.subr.bf16.mxu0 0
  %1592 = vmatpush2.bf16.msra.mxu0 %v1361
  %1593 = vmatprep.subr.bf16.mxu0 0
  %1594 = vmatpush2.bf16.msra.mxu0 %v1360
  %1595 = vmatprep.subr.bf16.mxu0 0
  %1596 = vmatpush2.bf16.msra.mxu0 %v1359
  %1597 = vmatprep.subr.bf16.mxu0 0
  %1598 = vmatpush2.bf16.msra.mxu0 %v1358
  %1599 = vmatprep.subr.bf16.mxu0 0
  %1600 = vmatpush2.bf16.msra.mxu0 %v1357
  %1601 = vmatprep.subr.bf16.mxu0 0
  %1602 = vmatpush2.bf16.msra.mxu0 %v1356
  %1603 = vmatprep.subr.bf16.mxu0 0
  %1604 = vmatpush2.bf16.msra.mxu0 %v1355
  %1605 = vmatprep.subr.bf16.mxu0 0
  %1606 = vmatpush2.bf16.msra.mxu0 %v1354
  %1607 = vmatprep.mubr.bf16.mxu0 %v955
  %1608 = vmatmul.mubr.bf16.gmra.mxu0 %v954
  %v1609 = vpop.f32.mrf.mxu0
  %v1610 = vadd.f32 %v312, %v1609
  %v1611 = vpop.f32.mrf.mxu0
  %v1612 = vpop.f32.mrf.mxu0
  %v1613 = vadd.f32 %v312, %v1612
  %v1614 = vpop.f32.mrf.mxu0
  %1615 = vmatprep.mubr.bf16.mxu0 %v958
  %1616 = vmatmul.mubr.bf16.gmra.mxu0 %v957
  %v1617 = vpop.f32.mrf.mxu0
  %v1618 = vadd.f32 %v312, %v1617
  %v1619 = vpop.f32.mrf.mxu0
  %v1620 = vpop.f32.mrf.mxu0
  %v1621 = vadd.f32 %v312, %v1620
  %v1622 = vpop.f32.mrf.mxu0
  %1623 = vmatprep.mubr.bf16.mxu0 %v961
  %1624 = vmatmul.mubr.bf16.gmra.mxu0 %v960
  %v1625 = vpop.f32.mrf.mxu0
  %v1626 = vadd.f32 %v312, %v1625
  %v1627 = vpop.f32.mrf.mxu0
  %v1628 = vpop.f32.mrf.mxu0
  %v1629 = vadd.f32 %v312, %v1628
  %v1630 = vpop.f32.mrf.mxu0
  %1631 = vmatprep.mubr.bf16.mxu0 %v964
  %1632 = vmatmul.mubr.bf16.gmra.mxu0 %v963
  %v1633 = vpop.f32.mrf.mxu0
  %v1634 = vadd.f32 %v312, %v1633
  %v1635 = vpop.f32.mrf.mxu0
  %v1636 = vpop.f32.mrf.mxu0
  %v1637 = vadd.f32 %v312, %v1636
  %v1638 = vpop.f32.mrf.mxu0
  %1639 = vmatprep.mubr.bf16.mxu0 %v967
  %1640 = vmatmul.mubr.bf16.gmra.mxu0 %v966
  %v1641 = vpop.f32.mrf.mxu0
  %v1642 = vadd.f32 %v312, %v1641
  %v1643 = vpop.f32.mrf.mxu0
  %v1644 = vpop.f32.mrf.mxu0
  %v1645 = vadd.f32 %v312, %v1644
  %v1646 = vpop.f32.mrf.mxu0
  %1647 = vmatprep.mubr.bf16.mxu0 %v970
  %1648 = vmatmul.mubr.bf16.gmra.mxu0 %v969
  %v1649 = vpop.f32.mrf.mxu0
  %v1650 = vadd.f32 %v312, %v1649
  %v1651 = vpop.f32.mrf.mxu0
  %v1652 = vpop.f32.mrf.mxu0
  %v1653 = vadd.f32 %v312, %v1652
  %v1654 = vpop.f32.mrf.mxu0
  %1655 = vmatprep.mubr.bf16.mxu0 %v973
  %1656 = vmatmul.mubr.bf16.gmra.mxu0 %v972
  %v1657 = vpop.f32.mrf.mxu0
  %v1658 = vadd.f32 %v312, %v1657
  %v1659 = vpop.f32.mrf.mxu0
  %v1660 = vpop.f32.mrf.mxu0
  %v1661 = vadd.f32 %v312, %v1660
  %v1662 = vpop.f32.mrf.mxu0
  %1663 = vmatprep.mubr.bf16.mxu0 %v976
  %1664 = vmatmul.mubr.bf16.gmra.mxu0 %v975
  %v1665 = vpop.f32.mrf.mxu0
  %v1666 = vadd.f32 %v312, %v1665
  %v1667 = vpop.f32.mrf.mxu0
  %v1668 = vpop.f32.mrf.mxu0
  %v1669 = vadd.f32 %v312, %v1668
  %v1670 = vpop.f32.mrf.mxu0
  %1671 = vmatprep.mubr.bf16.mxu0 %v979
  %1672 = vmatmul.mubr.bf16.gmra.mxu0 %v978
  %v1673 = vpop.f32.mrf.mxu0
  %v1674 = vadd.f32 %v312, %v1673
  %v1675 = vpop.f32.mrf.mxu0
  %v1676 = vpop.f32.mrf.mxu0
  %v1677 = vadd.f32 %v312, %v1676
  %v1678 = vpop.f32.mrf.mxu0
  %1679 = vmatprep.mubr.bf16.mxu0 %v982
  %1680 = vmatmul.mubr.bf16.gmra.mxu0 %v981
  %v1681 = vpop.f32.mrf.mxu0
  %v1682 = vadd.f32 %v312, %v1681
  %v1683 = vpop.f32.mrf.mxu0
  %v1684 = vpop.f32.mrf.mxu0
  %v1685 = vadd.f32 %v312, %v1684
  %v1686 = vpop.f32.mrf.mxu0
  %1687 = vmatprep.mubr.bf16.mxu0 %v985
  %1688 = vmatmul.mubr.bf16.gmra.mxu0 %v984
  %v1689 = vpop.f32.mrf.mxu0
  %v1690 = vadd.f32 %v312, %v1689
  %v1691 = vpop.f32.mrf.mxu0
  %v1692 = vpop.f32.mrf.mxu0
  %v1693 = vadd.f32 %v312, %v1692
  %v1694 = vpop.f32.mrf.mxu0
  %1695 = vmatprep.mubr.bf16.mxu0 %v988
  %1696 = vmatmul.mubr.bf16.gmra.mxu0 %v987
  %v1697 = vpop.f32.mrf.mxu0
  %v1698 = vadd.f32 %v312, %v1697
  %v1699 = vpop.f32.mrf.mxu0
  %v1700 = vpop.f32.mrf.mxu0
  %v1701 = vadd.f32 %v312, %v1700
  %v1702 = vpop.f32.mrf.mxu0
  %1703 = vmatprep.mubr.bf16.mxu0 %v991
  %1704 = vmatmul.mubr.bf16.gmra.mxu0 %v990
  %v1705 = vpop.f32.mrf.mxu0
  %v1706 = vadd.f32 %v312, %v1705
  %v1707 = vpop.f32.mrf.mxu0
  %v1708 = vpop.f32.mrf.mxu0
  %v1709 = vadd.f32 %v312, %v1708
  %v1710 = vpop.f32.mrf.mxu0
  %1711 = vmatprep.mubr.bf16.mxu0 %v994
  %1712 = vmatmul.mubr.bf16.gmra.mxu0 %v993
  %v1713 = vpop.f32.mrf.mxu0
  %v1714 = vadd.f32 %v312, %v1713
  %v1715 = vpop.f32.mrf.mxu0
  %v1716 = vpop.f32.mrf.mxu0
  %v1717 = vadd.f32 %v312, %v1716
  %v1718 = vpop.f32.mrf.mxu0
  %1719 = vmatprep.mubr.bf16.mxu0 %v997
  %1720 = vmatmul.mubr.bf16.gmra.mxu0 %v996
  %v1721 = vpop.f32.mrf.mxu0
  %v1722 = vadd.f32 %v312, %v1721
  %v1723 = vpop.f32.mrf.mxu0
  %v1724 = vpop.f32.mrf.mxu0
  %v1725 = vadd.f32 %v312, %v1724
  %v1726 = vpop.f32.mrf.mxu0
  %1727 = vmatprep.mubr.bf16.mxu0 %v1000
  %1728 = vmatmul.mubr.bf16.gmra.mxu0 %v999
  %v1729 = vpop.f32.mrf.mxu0
  %v1730 = vadd.f32 %v312, %v1729
  %v1731 = vpop.f32.mrf.mxu0
  %v1732 = vpop.f32.mrf.mxu0
  %v1733 = vadd.f32 %v312, %v1732
  %v1734 = vpop.f32.mrf.mxu0
  %1735 = vmatprep.mubr.bf16.mxu0 %v1003
  %1736 = vmatmul.mubr.bf16.gmra.mxu0 %v1002
  %v1737 = vpop.f32.mrf.mxu0
  %v1738 = vadd.f32 %v312, %v1737
  %v1739 = vpop.f32.mrf.mxu0
  %v1740 = vpop.f32.mrf.mxu0
  %v1741 = vadd.f32 %v312, %v1740
  %v1742 = vpop.f32.mrf.mxu0
  %1743 = vmatprep.mubr.bf16.mxu0 %v1006
  %1744 = vmatmul.mubr.bf16.gmra.mxu0 %v1005
  %v1745 = vpop.f32.mrf.mxu0
  %v1746 = vadd.f32 %v312, %v1745
  %v1747 = vpop.f32.mrf.mxu0
  %v1748 = vpop.f32.mrf.mxu0
  %v1749 = vadd.f32 %v312, %v1748
  %v1750 = vpop.f32.mrf.mxu0
  %1751 = vmatprep.mubr.bf16.mxu0 %v1009
  %1752 = vmatmul.mubr.bf16.gmra.mxu0 %v1008
  %v1753 = vpop.f32.mrf.mxu0
  %v1754 = vadd.f32 %v312, %v1753
  %v1755 = vpop.f32.mrf.mxu0
  %v1756 = vpop.f32.mrf.mxu0
  %v1757 = vadd.f32 %v312, %v1756
  %v1758 = vpop.f32.mrf.mxu0
  %1759 = vmatprep.mubr.bf16.mxu0 %v1012
  %1760 = vmatmul.mubr.bf16.gmra.mxu0 %v1011
  %v1761 = vpop.f32.mrf.mxu0
  %v1762 = vadd.f32 %v312, %v1761
  %v1763 = vpop.f32.mrf.mxu0
  %v1764 = vpop.f32.mrf.mxu0
  %v1765 = vadd.f32 %v312, %v1764
  %v1766 = vpop.f32.mrf.mxu0
  %1767 = vmatprep.mubr.bf16.mxu0 %v1015
  %1768 = vmatmul.mubr.bf16.gmra.mxu0 %v1014
  %v1769 = vpop.f32.mrf.mxu0
  %v1770 = vadd.f32 %v312, %v1769
  %v1771 = vpop.f32.mrf.mxu0
  %v1772 = vpop.f32.mrf.mxu0
  %v1773 = vadd.f32 %v312, %v1772
  %v1774 = vpop.f32.mrf.mxu0
  %1775 = vmatprep.mubr.bf16.mxu0 %v1018
  %1776 = vmatmul.mubr.bf16.gmra.mxu0 %v1017
  %v1777 = vpop.f32.mrf.mxu0
  %v1778 = vadd.f32 %v312, %v1777
  %v1779 = vpop.f32.mrf.mxu0
  %v1780 = vpop.f32.mrf.mxu0
  %v1781 = vadd.f32 %v312, %v1780
  %v1782 = vpop.f32.mrf.mxu0
  %1783 = vmatprep.mubr.bf16.mxu0 %v1021
  %1784 = vmatmul.mubr.bf16.gmra.mxu0 %v1020
  %v1785 = vpop.f32.mrf.mxu0
  %v1786 = vadd.f32 %v312, %v1785
  %v1787 = vpop.f32.mrf.mxu0
  %v1788 = vpop.f32.mrf.mxu0
  %v1789 = vadd.f32 %v312, %v1788
  %v1790 = vpop.f32.mrf.mxu0
  %1791 = vmatprep.mubr.bf16.mxu0 %v1024
  %1792 = vmatmul.mubr.bf16.gmra.mxu0 %v1023
  %v1793 = vpop.f32.mrf.mxu0
  %v1794 = vadd.f32 %v312, %v1793
  %v1795 = vpop.f32.mrf.mxu0
  %v1796 = vpop.f32.mrf.mxu0
  %v1797 = vadd.f32 %v312, %v1796
  %v1798 = vpop.f32.mrf.mxu0
  %1799 = vmatprep.mubr.bf16.mxu0 %v1027
  %1800 = vmatmul.mubr.bf16.gmra.mxu0 %v1026
  %v1801 = vpop.f32.mrf.mxu0
  %v1802 = vadd.f32 %v312, %v1801
  %v1803 = vpop.f32.mrf.mxu0
  %v1804 = vpop.f32.mrf.mxu0
  %v1805 = vadd.f32 %v312, %v1804
  %v1806 = vpop.f32.mrf.mxu0
  %1807 = vmatprep.mubr.bf16.mxu0 %v1030
  %1808 = vmatmul.mubr.bf16.gmra.mxu0 %v1029
  %v1809 = vpop.f32.mrf.mxu0
  %v1810 = vadd.f32 %v312, %v1809
  %v1811 = vpop.f32.mrf.mxu0
  %v1812 = vpop.f32.mrf.mxu0
  %v1813 = vadd.f32 %v312, %v1812
  %v1814 = vpop.f32.mrf.mxu0
  %1815 = vmatprep.mubr.bf16.mxu0 %v1033
  %1816 = vmatmul.mubr.bf16.gmra.mxu0 %v1032
  %v1817 = vpop.f32.mrf.mxu0
  %v1818 = vadd.f32 %v312, %v1817
  %v1819 = vpop.f32.mrf.mxu0
  %v1820 = vpop.f32.mrf.mxu0
  %v1821 = vadd.f32 %v312, %v1820
  %v1822 = vpop.f32.mrf.mxu0
  %1823 = vmatprep.mubr.bf16.mxu0 %v1036
  %1824 = vmatmul.mubr.bf16.gmra.mxu0 %v1035
  %v1825 = vpop.f32.mrf.mxu0
  %v1826 = vadd.f32 %v312, %v1825
  %v1827 = vpop.f32.mrf.mxu0
  %v1828 = vpop.f32.mrf.mxu0
  %v1829 = vadd.f32 %v312, %v1828
  %v1830 = vpop.f32.mrf.mxu0
  %1831 = vmatprep.mubr.bf16.mxu0 %v1039
  %1832 = vmatmul.mubr.bf16.gmra.mxu0 %v1038
  %v1833 = vpop.f32.mrf.mxu0
  %v1834 = vadd.f32 %v312, %v1833
  %v1835 = vpop.f32.mrf.mxu0
  %v1836 = vpop.f32.mrf.mxu0
  %v1837 = vadd.f32 %v312, %v1836
  %v1838 = vpop.f32.mrf.mxu0
  %1839 = vmatprep.mubr.bf16.mxu0 %v1042
  %1840 = vmatmul.mubr.bf16.gmra.mxu0 %v1041
  %v1841 = vpop.f32.mrf.mxu0
  %v1842 = vadd.f32 %v312, %v1841
  %v1843 = vpop.f32.mrf.mxu0
  %v1844 = vpop.f32.mrf.mxu0
  %v1845 = vadd.f32 %v312, %v1844
  %v1846 = vpop.f32.mrf.mxu0
  %1847 = vmatprep.mubr.bf16.mxu0 %v1045
  %1848 = vmatmul.mubr.bf16.gmra.mxu0 %v1044
  %v1849 = vpop.f32.mrf.mxu0
  %v1850 = vadd.f32 %v312, %v1849
  %v1851 = vpop.f32.mrf.mxu0
  %v1852 = vpop.f32.mrf.mxu0
  %v1853 = vadd.f32 %v312, %v1852
  %v1854 = vpop.f32.mrf.mxu0
  %1855 = vmatprep.mubr.bf16.mxu0 %v1048
  %1856 = vmatmul.mubr.bf16.gmra.mxu0 %v1047
  %v1857 = vpop.f32.mrf.mxu0
  %v1858 = vadd.f32 %v312, %v1857
  %v1859 = vpop.f32.mrf.mxu0
  %v1860 = vpop.f32.mrf.mxu0
  %v1861 = vadd.f32 %v312, %v1860
  %v1862 = vpop.f32.mrf.mxu0
  %1863 = vmatprep.mubr.bf16.mxu0 %v1051
  %1864 = vmatmul.mubr.bf16.gmra.mxu0 %v1050
  %v1865 = vpop.f32.mrf.mxu0
  %v1866 = vadd.f32 %v312, %v1865
  %v1867 = vpop.f32.mrf.mxu0
  %v1868 = vpop.f32.mrf.mxu0
  %v1869 = vadd.f32 %v312, %v1868
  %v1870 = vpop.f32.mrf.mxu0
  %1871 = vmatprep.mubr.bf16.mxu0 %v1054
  %1872 = vmatmul.mubr.bf16.gmra.mxu0 %v1053
  %v1873 = vpop.f32.mrf.mxu0
  %v1874 = vadd.f32 %v312, %v1873
  %v1875 = vpop.f32.mrf.mxu0
  %v1876 = vpop.f32.mrf.mxu0
  %v1877 = vadd.f32 %v312, %v1876
  %v1878 = vpop.f32.mrf.mxu0
  %1879 = vmatprep.mubr.bf16.mxu0 %v1057
  %1880 = vmatmul.mubr.bf16.gmra.mxu0 %v1056
  %v1881 = vpop.f32.mrf.mxu0
  %v1882 = vadd.f32 %v312, %v1881
  %v1883 = vpop.f32.mrf.mxu0
  %v1884 = vpop.f32.mrf.mxu0
  %v1885 = vadd.f32 %v312, %v1884
  %v1886 = vpop.f32.mrf.mxu0
  %1887 = vmatprep.mubr.bf16.mxu0 %v1060
  %1888 = vmatmul.mubr.bf16.gmra.mxu0 %v1059
  %v1889 = vpop.f32.mrf.mxu0
  %v1890 = vadd.f32 %v312, %v1889
  %v1891 = vpop.f32.mrf.mxu0
  %v1892 = vpop.f32.mrf.mxu0
  %v1893 = vadd.f32 %v312, %v1892
  %v1894 = vpop.f32.mrf.mxu0
  %1895 = vmatprep.mubr.bf16.mxu0 %v1063
  %1896 = vmatmul.mubr.bf16.gmra.mxu0 %v1062
  %v1897 = vpop.f32.mrf.mxu0
  %v1898 = vadd.f32 %v312, %v1897
  %v1899 = vpop.f32.mrf.mxu0
  %v1900 = vpop.f32.mrf.mxu0
  %v1901 = vadd.f32 %v312, %v1900
  %v1902 = vpop.f32.mrf.mxu0
  %1903 = vmatprep.mubr.bf16.mxu0 %v1066
  %1904 = vmatmul.mubr.bf16.gmra.mxu0 %v1065
  %v1905 = vpop.f32.mrf.mxu0
  %v1906 = vadd.f32 %v312, %v1905
  %v1907 = vpop.f32.mrf.mxu0
  %v1908 = vpop.f32.mrf.mxu0
  %v1909 = vadd.f32 %v312, %v1908
  %v1910 = vpop.f32.mrf.mxu0
  %1911 = vmatprep.mubr.bf16.mxu0 %v1069
  %1912 = vmatmul.mubr.bf16.gmra.mxu0 %v1068
  %v1913 = vpop.f32.mrf.mxu0
  %v1914 = vadd.f32 %v312, %v1913
  %v1915 = vpop.f32.mrf.mxu0
  %v1916 = vpop.f32.mrf.mxu0
  %v1917 = vadd.f32 %v312, %v1916
  %v1918 = vpop.f32.mrf.mxu0
  %1919 = vmatprep.mubr.bf16.mxu0 %v1072
  %1920 = vmatmul.mubr.bf16.gmra.mxu0 %v1071
  %v1921 = vpop.f32.mrf.mxu0
  %v1922 = vadd.f32 %v312, %v1921
  %v1923 = vpop.f32.mrf.mxu0
  %v1924 = vpop.f32.mrf.mxu0
  %v1925 = vadd.f32 %v312, %v1924
  %v1926 = vpop.f32.mrf.mxu0
  %1927 = vmatprep.mubr.bf16.mxu0 %v1075
  %1928 = vmatmul.mubr.bf16.gmra.mxu0 %v1074
  %v1929 = vpop.f32.mrf.mxu0
  %v1930 = vadd.f32 %v312, %v1929
  %v1931 = vpop.f32.mrf.mxu0
  %v1932 = vpop.f32.mrf.mxu0
  %v1933 = vadd.f32 %v312, %v1932
  %v1934 = vpop.f32.mrf.mxu0
  %1935 = vmatprep.mubr.bf16.mxu0 %v1078
  %1936 = vmatmul.mubr.bf16.gmra.mxu0 %v1077
  %v1937 = vpop.f32.mrf.mxu0
  %v1938 = vadd.f32 %v312, %v1937
  %v1939 = vpop.f32.mrf.mxu0
  %v1940 = vpop.f32.mrf.mxu0
  %v1941 = vadd.f32 %v312, %v1940
  %v1942 = vpop.f32.mrf.mxu0
  %1943 = vmatprep.mubr.bf16.mxu0 %v1081
  %1944 = vmatmul.mubr.bf16.gmra.mxu0 %v1080
  %v1945 = vpop.f32.mrf.mxu0
  %v1946 = vadd.f32 %v312, %v1945
  %v1947 = vpop.f32.mrf.mxu0
  %v1948 = vpop.f32.mrf.mxu0
  %v1949 = vadd.f32 %v312, %v1948
  %v1950 = vpop.f32.mrf.mxu0
  %1951 = vmatprep.mubr.bf16.mxu0 %v1084
  %1952 = vmatmul.mubr.bf16.gmra.mxu0 %v1083
  %v1953 = vpop.f32.mrf.mxu0
  %v1954 = vadd.f32 %v312, %v1953
  %v1955 = vpop.f32.mrf.mxu0
  %v1956 = vpop.f32.mrf.mxu0
  %v1957 = vadd.f32 %v312, %v1956
  %v1958 = vpop.f32.mrf.mxu0
  %1959 = vmatprep.mubr.bf16.mxu0 %v1087
  %1960 = vmatmul.mubr.bf16.gmra.mxu0 %v1086
  %v1961 = vpop.f32.mrf.mxu0
  %v1962 = vadd.f32 %v312, %v1961
  %v1963 = vpop.f32.mrf.mxu0
  %v1964 = vpop.f32.mrf.mxu0
  %v1965 = vadd.f32 %v312, %v1964
  %v1966 = vpop.f32.mrf.mxu0
  %1967 = vmatprep.mubr.bf16.mxu0 %v1090
  %1968 = vmatmul.mubr.bf16.gmra.mxu0 %v1089
  %v1969 = vpop.f32.mrf.mxu0
  %v1970 = vadd.f32 %v312, %v1969
  %v1971 = vpop.f32.mrf.mxu0
  %v1972 = vpop.f32.mrf.mxu0
  %v1973 = vadd.f32 %v312, %v1972
  %v1974 = vpop.f32.mrf.mxu0
  %1975 = vmatprep.mubr.bf16.mxu0 %v1093
  %1976 = vmatmul.mubr.bf16.gmra.mxu0 %v1092
  %v1977 = vpop.f32.mrf.mxu0
  %v1978 = vadd.f32 %v312, %v1977
  %v1979 = vpop.f32.mrf.mxu0
  %v1980 = vpop.f32.mrf.mxu0
  %v1981 = vadd.f32 %v312, %v1980
  %v1982 = vpop.f32.mrf.mxu0
  %1983 = vmatprep.mubr.bf16.mxu0 %v1096
  %1984 = vmatmul.mubr.bf16.gmra.mxu0 %v1095
  %v1985 = vpop.f32.mrf.mxu0
  %v1986 = vadd.f32 %v312, %v1985
  %v1987 = vpop.f32.mrf.mxu0
  %v1988 = vpop.f32.mrf.mxu0
  %v1989 = vadd.f32 %v312, %v1988
  %v1990 = vpop.f32.mrf.mxu0
  %1991 = vmatprep.mubr.bf16.mxu0 %v1099
  %1992 = vmatmul.mubr.bf16.gmra.mxu0 %v1098
  %v1993 = vpop.f32.mrf.mxu0
  %v1994 = vadd.f32 %v312, %v1993
  %v1995 = vpop.f32.mrf.mxu0
  %v1996 = vpop.f32.mrf.mxu0
  %v1997 = vadd.f32 %v312, %v1996
  %v1998 = vpop.f32.mrf.mxu0
  %1999 = vmatprep.mubr.bf16.mxu0 %v1102
  %2000 = vmatmul.mubr.bf16.gmra.mxu0 %v1101
  %v2001 = vpop.f32.mrf.mxu0
  %v2002 = vadd.f32 %v312, %v2001
  %v2003 = vpop.f32.mrf.mxu0
  %v2004 = vpop.f32.mrf.mxu0
  %v2005 = vadd.f32 %v312, %v2004
  %v2006 = vpop.f32.mrf.mxu0
  %2007 = vmatprep.mubr.bf16.mxu0 %v1105
  %2008 = vmatmul.mubr.bf16.gmra.mxu0 %v1104
  %v2009 = vpop.f32.mrf.mxu0
  %v2010 = vadd.f32 %v312, %v2009
  %v2011 = vpop.f32.mrf.mxu0
  %v2012 = vpop.f32.mrf.mxu0
  %v2013 = vadd.f32 %v312, %v2012
  %v2014 = vpop.f32.mrf.mxu0
  %2015 = vmatprep.mubr.bf16.mxu0 %v1108
  %2016 = vmatmul.mubr.bf16.gmra.mxu0 %v1107
  %v2017 = vpop.f32.mrf.mxu0
  %v2018 = vadd.f32 %v312, %v2017
  %v2019 = vpop.f32.mrf.mxu0
  %v2020 = vpop.f32.mrf.mxu0
  %v2021 = vadd.f32 %v312, %v2020
  %v2022 = vpop.f32.mrf.mxu0
  %2023 = vmatprep.mubr.bf16.mxu0 %v1111
  %2024 = vmatmul.mubr.bf16.gmra.mxu0 %v1110
  %v2025 = vpop.f32.mrf.mxu0
  %v2026 = vadd.f32 %v312, %v2025
  %v2027 = vpop.f32.mrf.mxu0
  %v2028 = vpop.f32.mrf.mxu0
  %v2029 = vadd.f32 %v312, %v2028
  %v2030 = vpop.f32.mrf.mxu0
  %2031 = vmatprep.mubr.bf16.mxu0 %v1114
  %2032 = vmatmul.mubr.bf16.gmra.mxu0 %v1113
  %v2033 = vpop.f32.mrf.mxu0
  %v2034 = vadd.f32 %v312, %v2033
  %v2035 = vpop.f32.mrf.mxu0
  %v2036 = vpop.f32.mrf.mxu0
  %v2037 = vadd.f32 %v312, %v2036
  %v2038 = vpop.f32.mrf.mxu0
  %2039 = vmatprep.mubr.bf16.mxu0 %v1117
  %2040 = vmatmul.mubr.bf16.gmra.mxu0 %v1116
  %v2041 = vpop.f32.mrf.mxu0
  %v2042 = vadd.f32 %v312, %v2041
  %v2043 = vpop.f32.mrf.mxu0
  %v2044 = vpop.f32.mrf.mxu0
  %v2045 = vadd.f32 %v312, %v2044
  %v2046 = vpop.f32.mrf.mxu0
  %2047 = vmatprep.mubr.bf16.mxu0 %v1120
  %2048 = vmatmul.mubr.bf16.gmra.mxu0 %v1119
  %v2049 = vpop.f32.mrf.mxu0
  %v2050 = vadd.f32 %v312, %v2049
  %v2051 = vpop.f32.mrf.mxu0
  %v2052 = vpop.f32.mrf.mxu0
  %v2053 = vadd.f32 %v312, %v2052
  %v2054 = vpop.f32.mrf.mxu0
  %2055 = vmatprep.mubr.bf16.mxu0 %v1123
  %2056 = vmatmul.mubr.bf16.gmra.mxu0 %v1122
  %v2057 = vpop.f32.mrf.mxu0
  %v2058 = vadd.f32 %v312, %v2057
  %v2059 = vpop.f32.mrf.mxu0
  %v2060 = vpop.f32.mrf.mxu0
  %v2061 = vadd.f32 %v312, %v2060
  %v2062 = vpop.f32.mrf.mxu0
  %2063 = vmatprep.mubr.bf16.mxu0 %v1126
  %2064 = vmatmul.mubr.bf16.gmra.mxu0 %v1125
  %v2065 = vpop.f32.mrf.mxu0
  %v2066 = vadd.f32 %v312, %v2065
  %v2067 = vpop.f32.mrf.mxu0
  %v2068 = vpop.f32.mrf.mxu0
  %v2069 = vadd.f32 %v312, %v2068
  %v2070 = vpop.f32.mrf.mxu0
  %2071 = vmatprep.mubr.bf16.mxu0 %v1129
  %2072 = vmatmul.mubr.bf16.gmra.mxu0 %v1128
  %v2073 = vpop.f32.mrf.mxu0
  %v2074 = vadd.f32 %v312, %v2073
  %v2075 = vpop.f32.mrf.mxu0
  %v2076 = vpop.f32.mrf.mxu0
  %v2077 = vadd.f32 %v312, %v2076
  %v2078 = vpop.f32.mrf.mxu0
  %2079 = vmatprep.mubr.bf16.mxu0 %v1132
  %2080 = vmatmul.mubr.bf16.gmra.mxu0 %v1131
  %v2081 = vpop.f32.mrf.mxu0
  %v2082 = vadd.f32 %v312, %v2081
  %v2083 = vpop.f32.mrf.mxu0
  %v2084 = vpop.f32.mrf.mxu0
  %v2085 = vadd.f32 %v312, %v2084
  %v2086 = vpop.f32.mrf.mxu0
  %2087 = vmatprep.mubr.bf16.mxu0 %v1135
  %2088 = vmatmul.mubr.bf16.gmra.mxu0 %v1134
  %v2089 = vpop.f32.mrf.mxu0
  %v2090 = vadd.f32 %v312, %v2089
  %v2091 = vpop.f32.mrf.mxu0
  %v2092 = vpop.f32.mrf.mxu0
  %v2093 = vadd.f32 %v312, %v2092
  %v2094 = vpop.f32.mrf.mxu0
  %2095 = vmatprep.mubr.bf16.mxu0 %v1138
  %2096 = vmatmul.mubr.bf16.gmra.mxu0 %v1137
  %v2097 = vpop.f32.mrf.mxu0
  %v2098 = vadd.f32 %v312, %v2097
  %v2099 = vpop.f32.mrf.mxu0
  %v2100 = vpop.f32.mrf.mxu0
  %v2101 = vadd.f32 %v312, %v2100
  %v2102 = vpop.f32.mrf.mxu0
  %2103 = vmatprep.mubr.bf16.mxu0 %v1141
  %2104 = vmatmul.mubr.bf16.gmra.mxu0 %v1140
  %v2105 = vpop.f32.mrf.mxu0
  %v2106 = vadd.f32 %v312, %v2105
  %v2107 = vpop.f32.mrf.mxu0
  %v2108 = vpop.f32.mrf.mxu0
  %v2109 = vadd.f32 %v312, %v2108
  %v2110 = vpop.f32.mrf.mxu0
  %2111 = vmatprep.mubr.bf16.mxu0 %v1144
  %2112 = vmatmul.mubr.bf16.gmra.mxu0 %v1143
  %v2113 = vpop.f32.mrf.mxu0
  %v2114 = vadd.f32 %v312, %v2113
  %v2115 = vpop.f32.mrf.mxu0
  %v2116 = vpop.f32.mrf.mxu0
  %v2117 = vadd.f32 %v312, %v2116
  %v2118 = vpop.f32.mrf.mxu0
  %2119 = vdwg.mxu0
  %2120 = vmatprep.subr.bf16.mxu0 0
  %2121 = vmatpush1.bf16.msra.mxu0 0
  %2122 = vmatprep.subr.bf16.mxu0 0
  %2123 = vmatpush1.bf16.msra.mxu0 0
  %2124 = vmatprep.subr.bf16.mxu0 0
  %2125 = vmatpush1.bf16.msra.mxu0 0
  %2126 = vmatprep.subr.bf16.mxu0 0
  %2127 = vmatpush1.bf16.msra.mxu0 0
  %2128 = vmatprep.subr.bf16.mxu0 0
  %2129 = vmatpush1.bf16.msra.mxu0 0
  %2130 = vmatprep.subr.bf16.mxu0 0
  %2131 = vmatpush1.bf16.msra.mxu0 0
  %2132 = vmatprep.subr.bf16.mxu0 0
  %2133 = vmatpush1.bf16.msra.mxu0 %v1363
  %2134 = vmatprep.subr.bf16.mxu0 0
  %2135 = vmatpush1.bf16.msra.mxu0 %v1362
  %2136 = vmatprep.subr.bf16.mxu0 0
  %2137 = vmatpush2.bf16.msra.mxu0 0
  %2138 = vmatprep.subr.bf16.mxu0 0
  %2139 = vmatpush2.bf16.msra.mxu0 0
  %2140 = vmatprep.subr.bf16.mxu0 0
  %2141 = vmatpush2.bf16.msra.mxu0 0
  %2142 = vmatprep.subr.bf16.mxu0 0
  %2143 = vmatpush2.bf16.msra.mxu0 0
  %2144 = vmatprep.subr.bf16.mxu0 0
  %2145 = vmatpush2.bf16.msra.mxu0 0
  %2146 = vmatprep.subr.bf16.mxu0 0
  %2147 = vmatpush2.bf16.msra.mxu0 0
  %2148 = vmatprep.subr.bf16.mxu0 0
  %2149 = vmatpush2.bf16.msra.mxu0 0
  %2150 = vmatprep.subr.bf16.mxu0 0
  %2151 = vmatpush2.bf16.msra.mxu0 0
  %2152 = vmatprep.mubr.bf16.mxu0 0
  %2153 = vmatmul.mubr.bf16.gmra.mxu0 %v1384
  %v2154 = vpop.f32.mrf.mxu0
  %v2155 = vadd.f32 %v1610, %v2154
  %v2156 = vpop.f32.mrf.mxu0
  %v2157 = vpop.f32.mrf.mxu0
  %v2158 = vadd.f32 %v1613, %v2157
  %v2159 = vpop.f32.mrf.mxu0
  %2160 = vmatprep.mubr.bf16.mxu0 0
  %2161 = vmatmul.mubr.bf16.gmra.mxu0 %v1387
  %v2162 = vpop.f32.mrf.mxu0
  %v2163 = vadd.f32 %v1618, %v2162
  %v2164 = vpop.f32.mrf.mxu0
  %v2165 = vpop.f32.mrf.mxu0
  %v2166 = vadd.f32 %v1621, %v2165
  %v2167 = vpop.f32.mrf.mxu0
  %2168 = vmatprep.mubr.bf16.mxu0 0
  %2169 = vmatmul.mubr.bf16.gmra.mxu0 %v1390
  %v2170 = vpop.f32.mrf.mxu0
  %v2171 = vadd.f32 %v1626, %v2170
  %v2172 = vpop.f32.mrf.mxu0
  %v2173 = vpop.f32.mrf.mxu0
  %v2174 = vadd.f32 %v1629, %v2173
  %v2175 = vpop.f32.mrf.mxu0
  %2176 = vmatprep.mubr.bf16.mxu0 0
  %2177 = vmatmul.mubr.bf16.gmra.mxu0 %v1393
  %v2178 = vpop.f32.mrf.mxu0
  %v2179 = vadd.f32 %v1634, %v2178
  %v2180 = vpop.f32.mrf.mxu0
  %v2181 = vpop.f32.mrf.mxu0
  %v2182 = vadd.f32 %v1637, %v2181
  %v2183 = vpop.f32.mrf.mxu0
  %2184 = vmatprep.mubr.bf16.mxu0 0
  %2185 = vmatmul.mubr.bf16.gmra.mxu0 %v1396
  %v2186 = vpop.f32.mrf.mxu0
  %v2187 = vadd.f32 %v1642, %v2186
  %v2188 = vpop.f32.mrf.mxu0
  %v2189 = vpop.f32.mrf.mxu0
  %v2190 = vadd.f32 %v1645, %v2189
  %v2191 = vpop.f32.mrf.mxu0
  %2192 = vmatprep.mubr.bf16.mxu0 0
  %2193 = vmatmul.mubr.bf16.gmra.mxu0 %v1399
  %v2194 = vpop.f32.mrf.mxu0
  %v2195 = vadd.f32 %v1650, %v2194
  %v2196 = vpop.f32.mrf.mxu0
  %v2197 = vpop.f32.mrf.mxu0
  %v2198 = vadd.f32 %v1653, %v2197
  %v2199 = vpop.f32.mrf.mxu0
  %2200 = vmatprep.mubr.bf16.mxu0 0
  %2201 = vmatmul.mubr.bf16.gmra.mxu0 %v1402
  %v2202 = vpop.f32.mrf.mxu0
  %v2203 = vadd.f32 %v1658, %v2202
  %v2204 = vpop.f32.mrf.mxu0
  %v2205 = vpop.f32.mrf.mxu0
  %v2206 = vadd.f32 %v1661, %v2205
  %v2207 = vpop.f32.mrf.mxu0
  %2208 = vmatprep.mubr.bf16.mxu0 0
  %2209 = vmatmul.mubr.bf16.gmra.mxu0 %v1405
  %v2210 = vpop.f32.mrf.mxu0
  %v2211 = vadd.f32 %v1666, %v2210
  %v2212 = vpop.f32.mrf.mxu0
  %v2213 = vpop.f32.mrf.mxu0
  %v2214 = vadd.f32 %v1669, %v2213
  %v2215 = vpop.f32.mrf.mxu0
  %2216 = vmatprep.mubr.bf16.mxu0 0
  %2217 = vmatmul.mubr.bf16.gmra.mxu0 %v1408
  %v2218 = vpop.f32.mrf.mxu0
  %v2219 = vadd.f32 %v1674, %v2218
  %v2220 = vpop.f32.mrf.mxu0
  %v2221 = vpop.f32.mrf.mxu0
  %v2222 = vadd.f32 %v1677, %v2221
  %v2223 = vpop.f32.mrf.mxu0
  %2224 = vmatprep.mubr.bf16.mxu0 0
  %2225 = vmatmul.mubr.bf16.gmra.mxu0 %v1411
  %v2226 = vpop.f32.mrf.mxu0
  %v2227 = vadd.f32 %v1682, %v2226
  %v2228 = vpop.f32.mrf.mxu0
  %v2229 = vpop.f32.mrf.mxu0
  %v2230 = vadd.f32 %v1685, %v2229
  %v2231 = vpop.f32.mrf.mxu0
  %2232 = vmatprep.mubr.bf16.mxu0 0
  %2233 = vmatmul.mubr.bf16.gmra.mxu0 %v1414
  %v2234 = vpop.f32.mrf.mxu0
  %v2235 = vadd.f32 %v1690, %v2234
  %v2236 = vpop.f32.mrf.mxu0
  %v2237 = vpop.f32.mrf.mxu0
  %v2238 = vadd.f32 %v1693, %v2237
  %v2239 = vpop.f32.mrf.mxu0
  %2240 = vmatprep.mubr.bf16.mxu0 0
  %2241 = vmatmul.mubr.bf16.gmra.mxu0 %v1417
  %v2242 = vpop.f32.mrf.mxu0
  %v2243 = vadd.f32 %v1698, %v2242
  %v2244 = vpop.f32.mrf.mxu0
  %v2245 = vpop.f32.mrf.mxu0
  %v2246 = vadd.f32 %v1701, %v2245
  %v2247 = vpop.f32.mrf.mxu0
  %2248 = vmatprep.mubr.bf16.mxu0 0
  %2249 = vmatmul.mubr.bf16.gmra.mxu0 %v1420
  %v2250 = vpop.f32.mrf.mxu0
  %v2251 = vadd.f32 %v1706, %v2250
  %v2252 = vpop.f32.mrf.mxu0
  %v2253 = vpop.f32.mrf.mxu0
  %v2254 = vadd.f32 %v1709, %v2253
  %v2255 = vpop.f32.mrf.mxu0
  %2256 = vmatprep.mubr.bf16.mxu0 0
  %2257 = vmatmul.mubr.bf16.gmra.mxu0 %v1423
  %v2258 = vpop.f32.mrf.mxu0
  %v2259 = vadd.f32 %v1714, %v2258
  %v2260 = vpop.f32.mrf.mxu0
  %v2261 = vpop.f32.mrf.mxu0
  %v2262 = vadd.f32 %v1717, %v2261
  %v2263 = vpop.f32.mrf.mxu0
  %2264 = vmatprep.mubr.bf16.mxu0 0
  %2265 = vmatmul.mubr.bf16.gmra.mxu0 %v1426
  %v2266 = vpop.f32.mrf.mxu0
  %v2267 = vadd.f32 %v1722, %v2266
  %v2268 = vpop.f32.mrf.mxu0
  %v2269 = vpop.f32.mrf.mxu0
  %v2270 = vadd.f32 %v1725, %v2269
  %v2271 = vpop.f32.mrf.mxu0
  %2272 = vmatprep.mubr.bf16.mxu0 0
  %2273 = vmatmul.mubr.bf16.gmra.mxu0 %v1429
  %v2274 = vpop.f32.mrf.mxu0
  %v2275 = vadd.f32 %v1730, %v2274
  %v2276 = vpop.f32.mrf.mxu0
  %v2277 = vpop.f32.mrf.mxu0
  %v2278 = vadd.f32 %v1733, %v2277
  %v2279 = vpop.f32.mrf.mxu0
  %2280 = vmatprep.mubr.bf16.mxu0 0
  %2281 = vmatmul.mubr.bf16.gmra.mxu0 %v1432
  %v2282 = vpop.f32.mrf.mxu0
  %v2283 = vadd.f32 %v1738, %v2282
  %v2284 = vpop.f32.mrf.mxu0
  %v2285 = vpop.f32.mrf.mxu0
  %v2286 = vadd.f32 %v1741, %v2285
  %v2287 = vpop.f32.mrf.mxu0
  %2288 = vmatprep.mubr.bf16.mxu0 0
  %2289 = vmatmul.mubr.bf16.gmra.mxu0 %v1435
  %v2290 = vpop.f32.mrf.mxu0
  %v2291 = vadd.f32 %v1746, %v2290
  %v2292 = vpop.f32.mrf.mxu0
  %v2293 = vpop.f32.mrf.mxu0
  %v2294 = vadd.f32 %v1749, %v2293
  %v2295 = vpop.f32.mrf.mxu0
  %2296 = vmatprep.mubr.bf16.mxu0 0
  %2297 = vmatmul.mubr.bf16.gmra.mxu0 %v1438
  %v2298 = vpop.f32.mrf.mxu0
  %v2299 = vadd.f32 %v1754, %v2298
  %v2300 = vpop.f32.mrf.mxu0
  %v2301 = vpop.f32.mrf.mxu0
  %v2302 = vadd.f32 %v1757, %v2301
  %v2303 = vpop.f32.mrf.mxu0
  %2304 = vmatprep.mubr.bf16.mxu0 0
  %2305 = vmatmul.mubr.bf16.gmra.mxu0 %v1441
  %v2306 = vpop.f32.mrf.mxu0
  %v2307 = vadd.f32 %v1762, %v2306
  %v2308 = vpop.f32.mrf.mxu0
  %v2309 = vpop.f32.mrf.mxu0
  %v2310 = vadd.f32 %v1765, %v2309
  %v2311 = vpop.f32.mrf.mxu0
  %2312 = vmatprep.mubr.bf16.mxu0 0
  %2313 = vmatmul.mubr.bf16.gmra.mxu0 %v1444
  %v2314 = vpop.f32.mrf.mxu0
  %v2315 = vadd.f32 %v1770, %v2314
  %v2316 = vpop.f32.mrf.mxu0
  %v2317 = vpop.f32.mrf.mxu0
  %v2318 = vadd.f32 %v1773, %v2317
  %v2319 = vpop.f32.mrf.mxu0
  %2320 = vmatprep.mubr.bf16.mxu0 0
  %2321 = vmatmul.mubr.bf16.gmra.mxu0 %v1447
  %v2322 = vpop.f32.mrf.mxu0
  %v2323 = vadd.f32 %v1778, %v2322
  %v2324 = vpop.f32.mrf.mxu0
  %v2325 = vpop.f32.mrf.mxu0
  %v2326 = vadd.f32 %v1781, %v2325
  %v2327 = vpop.f32.mrf.mxu0
  %2328 = vmatprep.mubr.bf16.mxu0 0
  %2329 = vmatmul.mubr.bf16.gmra.mxu0 %v1450
  %v2330 = vpop.f32.mrf.mxu0
  %v2331 = vadd.f32 %v1786, %v2330
  %v2332 = vpop.f32.mrf.mxu0
  %v2333 = vpop.f32.mrf.mxu0
  %v2334 = vadd.f32 %v1789, %v2333
  %v2335 = vpop.f32.mrf.mxu0
  %2336 = vmatprep.mubr.bf16.mxu0 0
  %2337 = vmatmul.mubr.bf16.gmra.mxu0 %v1453
  %v2338 = vpop.f32.mrf.mxu0
  %v2339 = vadd.f32 %v1794, %v2338
  %v2340 = vpop.f32.mrf.mxu0
  %v2341 = vpop.f32.mrf.mxu0
  %v2342 = vadd.f32 %v1797, %v2341
  %v2343 = vpop.f32.mrf.mxu0
  %2344 = vmatprep.mubr.bf16.mxu0 0
  %2345 = vmatmul.mubr.bf16.gmra.mxu0 %v1456
  %v2346 = vpop.f32.mrf.mxu0
  %v2347 = vadd.f32 %v1802, %v2346
  %v2348 = vpop.f32.mrf.mxu0
  %v2349 = vpop.f32.mrf.mxu0
  %v2350 = vadd.f32 %v1805, %v2349
  %v2351 = vpop.f32.mrf.mxu0
  %2352 = vmatprep.mubr.bf16.mxu0 0
  %2353 = vmatmul.mubr.bf16.gmra.mxu0 %v1459
  %v2354 = vpop.f32.mrf.mxu0
  %v2355 = vadd.f32 %v1810, %v2354
  %v2356 = vpop.f32.mrf.mxu0
  %v2357 = vpop.f32.mrf.mxu0
  %v2358 = vadd.f32 %v1813, %v2357
  %v2359 = vpop.f32.mrf.mxu0
  %2360 = vmatprep.mubr.bf16.mxu0 0
  %2361 = vmatmul.mubr.bf16.gmra.mxu0 %v1462
  %v2362 = vpop.f32.mrf.mxu0
  %v2363 = vadd.f32 %v1818, %v2362
  %v2364 = vpop.f32.mrf.mxu0
  %v2365 = vpop.f32.mrf.mxu0
  %v2366 = vadd.f32 %v1821, %v2365
  %v2367 = vpop.f32.mrf.mxu0
  %2368 = vmatprep.mubr.bf16.mxu0 0
  %2369 = vmatmul.mubr.bf16.gmra.mxu0 %v1465
  %v2370 = vpop.f32.mrf.mxu0
  %v2371 = vadd.f32 %v1826, %v2370
  %v2372 = vpop.f32.mrf.mxu0
  %v2373 = vpop.f32.mrf.mxu0
  %v2374 = vadd.f32 %v1829, %v2373
  %v2375 = vpop.f32.mrf.mxu0
  %2376 = vmatprep.mubr.bf16.mxu0 0
  %2377 = vmatmul.mubr.bf16.gmra.mxu0 %v1468
  %v2378 = vpop.f32.mrf.mxu0
  %v2379 = vadd.f32 %v1834, %v2378
  %v2380 = vpop.f32.mrf.mxu0
  %v2381 = vpop.f32.mrf.mxu0
  %v2382 = vadd.f32 %v1837, %v2381
  %v2383 = vpop.f32.mrf.mxu0
  %2384 = vmatprep.mubr.bf16.mxu0 0
  %2385 = vmatmul.mubr.bf16.gmra.mxu0 %v1471
  %v2386 = vpop.f32.mrf.mxu0
  %v2387 = vadd.f32 %v1842, %v2386
  %v2388 = vpop.f32.mrf.mxu0
  %v2389 = vpop.f32.mrf.mxu0
  %v2390 = vadd.f32 %v1845, %v2389
  %v2391 = vpop.f32.mrf.mxu0
  %2392 = vmatprep.mubr.bf16.mxu0 0
  %2393 = vmatmul.mubr.bf16.gmra.mxu0 %v1474
  %v2394 = vpop.f32.mrf.mxu0
  %v2395 = vadd.f32 %v1850, %v2394
  %v2396 = vpop.f32.mrf.mxu0
  %v2397 = vpop.f32.mrf.mxu0
  %v2398 = vadd.f32 %v1853, %v2397
  %v2399 = vpop.f32.mrf.mxu0
  %2400 = vmatprep.mubr.bf16.mxu0 0
  %2401 = vmatmul.mubr.bf16.gmra.mxu0 %v1477
  %v2402 = vpop.f32.mrf.mxu0
  %v2403 = vadd.f32 %v1858, %v2402
  %v2404 = vpop.f32.mrf.mxu0
  %v2405 = vpop.f32.mrf.mxu0
  %v2406 = vadd.f32 %v1861, %v2405
  %v2407 = vpop.f32.mrf.mxu0
  %2408 = vmatprep.mubr.bf16.mxu0 0
  %2409 = vmatmul.mubr.bf16.gmra.mxu0 %v1480
  %v2410 = vpop.f32.mrf.mxu0
  %v2411 = vadd.f32 %v1866, %v2410
  %v2412 = vpop.f32.mrf.mxu0
  %v2413 = vpop.f32.mrf.mxu0
  %v2414 = vadd.f32 %v1869, %v2413
  %v2415 = vpop.f32.mrf.mxu0
  %2416 = vmatprep.mubr.bf16.mxu0 0
  %2417 = vmatmul.mubr.bf16.gmra.mxu0 %v1483
  %v2418 = vpop.f32.mrf.mxu0
  %v2419 = vadd.f32 %v1874, %v2418
  %v2420 = vpop.f32.mrf.mxu0
  %v2421 = vpop.f32.mrf.mxu0
  %v2422 = vadd.f32 %v1877, %v2421
  %v2423 = vpop.f32.mrf.mxu0
  %2424 = vmatprep.mubr.bf16.mxu0 0
  %2425 = vmatmul.mubr.bf16.gmra.mxu0 %v1486
  %v2426 = vpop.f32.mrf.mxu0
  %v2427 = vadd.f32 %v1882, %v2426
  %v2428 = vpop.f32.mrf.mxu0
  %v2429 = vpop.f32.mrf.mxu0
  %v2430 = vadd.f32 %v1885, %v2429
  %v2431 = vpop.f32.mrf.mxu0
  %2432 = vmatprep.mubr.bf16.mxu0 0
  %2433 = vmatmul.mubr.bf16.gmra.mxu0 %v1489
  %v2434 = vpop.f32.mrf.mxu0
  %v2435 = vadd.f32 %v1890, %v2434
  %v2436 = vpop.f32.mrf.mxu0
  %v2437 = vpop.f32.mrf.mxu0
  %v2438 = vadd.f32 %v1893, %v2437
  %v2439 = vpop.f32.mrf.mxu0
  %2440 = vmatprep.mubr.bf16.mxu0 0
  %2441 = vmatmul.mubr.bf16.gmra.mxu0 %v1492
  %v2442 = vpop.f32.mrf.mxu0
  %v2443 = vadd.f32 %v1898, %v2442
  %v2444 = vpop.f32.mrf.mxu0
  %v2445 = vpop.f32.mrf.mxu0
  %v2446 = vadd.f32 %v1901, %v2445
  %v2447 = vpop.f32.mrf.mxu0
  %2448 = vmatprep.mubr.bf16.mxu0 0
  %2449 = vmatmul.mubr.bf16.gmra.mxu0 %v1495
  %v2450 = vpop.f32.mrf.mxu0
  %v2451 = vadd.f32 %v1906, %v2450
  %v2452 = vpop.f32.mrf.mxu0
  %v2453 = vpop.f32.mrf.mxu0
  %v2454 = vadd.f32 %v1909, %v2453
  %v2455 = vpop.f32.mrf.mxu0
  %2456 = vmatprep.mubr.bf16.mxu0 0
  %2457 = vmatmul.mubr.bf16.gmra.mxu0 %v1498
  %v2458 = vpop.f32.mrf.mxu0
  %v2459 = vadd.f32 %v1914, %v2458
  %v2460 = vpop.f32.mrf.mxu0
  %v2461 = vpop.f32.mrf.mxu0
  %v2462 = vadd.f32 %v1917, %v2461
  %v2463 = vpop.f32.mrf.mxu0
  %2464 = vmatprep.mubr.bf16.mxu0 0
  %2465 = vmatmul.mubr.bf16.gmra.mxu0 %v1501
  %v2466 = vpop.f32.mrf.mxu0
  %v2467 = vadd.f32 %v1922, %v2466
  %v2468 = vpop.f32.mrf.mxu0
  %v2469 = vpop.f32.mrf.mxu0
  %v2470 = vadd.f32 %v1925, %v2469
  %v2471 = vpop.f32.mrf.mxu0
  %2472 = vmatprep.mubr.bf16.mxu0 0
  %2473 = vmatmul.mubr.bf16.gmra.mxu0 %v1504
  %v2474 = vpop.f32.mrf.mxu0
  %v2475 = vadd.f32 %v1930, %v2474
  %v2476 = vpop.f32.mrf.mxu0
  %v2477 = vpop.f32.mrf.mxu0
  %v2478 = vadd.f32 %v1933, %v2477
  %v2479 = vpop.f32.mrf.mxu0
  %2480 = vmatprep.mubr.bf16.mxu0 0
  %2481 = vmatmul.mubr.bf16.gmra.mxu0 %v1507
  %v2482 = vpop.f32.mrf.mxu0
  %v2483 = vadd.f32 %v1938, %v2482
  %v2484 = vpop.f32.mrf.mxu0
  %v2485 = vpop.f32.mrf.mxu0
  %v2486 = vadd.f32 %v1941, %v2485
  %v2487 = vpop.f32.mrf.mxu0
  %2488 = vmatprep.mubr.bf16.mxu0 0
  %2489 = vmatmul.mubr.bf16.gmra.mxu0 %v1510
  %v2490 = vpop.f32.mrf.mxu0
  %v2491 = vadd.f32 %v1946, %v2490
  %v2492 = vpop.f32.mrf.mxu0
  %v2493 = vpop.f32.mrf.mxu0
  %v2494 = vadd.f32 %v1949, %v2493
  %v2495 = vpop.f32.mrf.mxu0
  %2496 = vmatprep.mubr.bf16.mxu0 0
  %2497 = vmatmul.mubr.bf16.gmra.mxu0 %v1513
  %v2498 = vpop.f32.mrf.mxu0
  %v2499 = vadd.f32 %v1954, %v2498
  %v2500 = vpop.f32.mrf.mxu0
  %v2501 = vpop.f32.mrf.mxu0
  %v2502 = vadd.f32 %v1957, %v2501
  %v2503 = vpop.f32.mrf.mxu0
  %2504 = vmatprep.mubr.bf16.mxu0 0
  %2505 = vmatmul.mubr.bf16.gmra.mxu0 %v1516
  %v2506 = vpop.f32.mrf.mxu0
  %v2507 = vadd.f32 %v1962, %v2506
  %v2508 = vpop.f32.mrf.mxu0
  %v2509 = vpop.f32.mrf.mxu0
  %v2510 = vadd.f32 %v1965, %v2509
  %v2511 = vpop.f32.mrf.mxu0
  %2512 = vmatprep.mubr.bf16.mxu0 0
  %2513 = vmatmul.mubr.bf16.gmra.mxu0 %v1519
  %v2514 = vpop.f32.mrf.mxu0
  %v2515 = vadd.f32 %v1970, %v2514
  %v2516 = vpop.f32.mrf.mxu0
  %v2517 = vpop.f32.mrf.mxu0
  %v2518 = vadd.f32 %v1973, %v2517
  %v2519 = vpop.f32.mrf.mxu0
  %2520 = vmatprep.mubr.bf16.mxu0 0
  %2521 = vmatmul.mubr.bf16.gmra.mxu0 %v1522
  %v2522 = vpop.f32.mrf.mxu0
  %v2523 = vadd.f32 %v1978, %v2522
  %v2524 = vpop.f32.mrf.mxu0
  %v2525 = vpop.f32.mrf.mxu0
  %v2526 = vadd.f32 %v1981, %v2525
  %v2527 = vpop.f32.mrf.mxu0
  %2528 = vmatprep.mubr.bf16.mxu0 0
  %2529 = vmatmul.mubr.bf16.gmra.mxu0 %v1525
  %v2530 = vpop.f32.mrf.mxu0
  %v2531 = vadd.f32 %v1986, %v2530
  %v2532 = vpop.f32.mrf.mxu0
  %v2533 = vpop.f32.mrf.mxu0
  %v2534 = vadd.f32 %v1989, %v2533
  %v2535 = vpop.f32.mrf.mxu0
  %2536 = vmatprep.mubr.bf16.mxu0 0
  %2537 = vmatmul.mubr.bf16.gmra.mxu0 %v1528
  %v2538 = vpop.f32.mrf.mxu0
  %v2539 = vadd.f32 %v1994, %v2538
  %v2540 = vpop.f32.mrf.mxu0
  %v2541 = vpop.f32.mrf.mxu0
  %v2542 = vadd.f32 %v1997, %v2541
  %v2543 = vpop.f32.mrf.mxu0
  %2544 = vmatprep.mubr.bf16.mxu0 0
  %2545 = vmatmul.mubr.bf16.gmra.mxu0 %v1531
  %v2546 = vpop.f32.mrf.mxu0
  %v2547 = vadd.f32 %v2002, %v2546
  %v2548 = vpop.f32.mrf.mxu0
  %v2549 = vpop.f32.mrf.mxu0
  %v2550 = vadd.f32 %v2005, %v2549
  %v2551 = vpop.f32.mrf.mxu0
  %2552 = vmatprep.mubr.bf16.mxu0 0
  %2553 = vmatmul.mubr.bf16.gmra.mxu0 %v1534
  %v2554 = vpop.f32.mrf.mxu0
  %v2555 = vadd.f32 %v2010, %v2554
  %v2556 = vpop.f32.mrf.mxu0
  %v2557 = vpop.f32.mrf.mxu0
  %v2558 = vadd.f32 %v2013, %v2557
  %v2559 = vpop.f32.mrf.mxu0
  %2560 = vmatprep.mubr.bf16.mxu0 0
  %2561 = vmatmul.mubr.bf16.gmra.mxu0 %v1537
  %v2562 = vpop.f32.mrf.mxu0
  %v2563 = vadd.f32 %v2018, %v2562
  %v2564 = vpop.f32.mrf.mxu0
  %v2565 = vpop.f32.mrf.mxu0
  %v2566 = vadd.f32 %v2021, %v2565
  %v2567 = vpop.f32.mrf.mxu0
  %2568 = vmatprep.mubr.bf16.mxu0 0
  %2569 = vmatmul.mubr.bf16.gmra.mxu0 %v1540
  %v2570 = vpop.f32.mrf.mxu0
  %v2571 = vadd.f32 %v2026, %v2570
  %v2572 = vpop.f32.mrf.mxu0
  %v2573 = vpop.f32.mrf.mxu0
  %v2574 = vadd.f32 %v2029, %v2573
  %v2575 = vpop.f32.mrf.mxu0
  %2576 = vmatprep.mubr.bf16.mxu0 0
  %2577 = vmatmul.mubr.bf16.gmra.mxu0 %v1543
  %v2578 = vpop.f32.mrf.mxu0
  %v2579 = vadd.f32 %v2034, %v2578
  %v2580 = vpop.f32.mrf.mxu0
  %v2581 = vpop.f32.mrf.mxu0
  %v2582 = vadd.f32 %v2037, %v2581
  %v2583 = vpop.f32.mrf.mxu0
  %2584 = vmatprep.mubr.bf16.mxu0 0
  %2585 = vmatmul.mubr.bf16.gmra.mxu0 %v1546
  %v2586 = vpop.f32.mrf.mxu0
  %v2587 = vadd.f32 %v2042, %v2586
  %v2588 = vpop.f32.mrf.mxu0
  %v2589 = vpop.f32.mrf.mxu0
  %v2590 = vadd.f32 %v2045, %v2589
  %v2591 = vpop.f32.mrf.mxu0
  %2592 = vmatprep.mubr.bf16.mxu0 0
  %2593 = vmatmul.mubr.bf16.gmra.mxu0 %v1549
  %v2594 = vpop.f32.mrf.mxu0
  %v2595 = vadd.f32 %v2050, %v2594
  %v2596 = vpop.f32.mrf.mxu0
  %v2597 = vpop.f32.mrf.mxu0
  %v2598 = vadd.f32 %v2053, %v2597
  %v2599 = vpop.f32.mrf.mxu0
  %2600 = vmatprep.mubr.bf16.mxu0 0
  %2601 = vmatmul.mubr.bf16.gmra.mxu0 %v1552
  %v2602 = vpop.f32.mrf.mxu0
  %v2603 = vadd.f32 %v2058, %v2602
  %v2604 = vpop.f32.mrf.mxu0
  %v2605 = vpop.f32.mrf.mxu0
  %v2606 = vadd.f32 %v2061, %v2605
  %v2607 = vpop.f32.mrf.mxu0
  %2608 = vmatprep.mubr.bf16.mxu0 0
  %2609 = vmatmul.mubr.bf16.gmra.mxu0 %v1555
  %v2610 = vpop.f32.mrf.mxu0
  %v2611 = vadd.f32 %v2066, %v2610
  %v2612 = vpop.f32.mrf.mxu0
  %v2613 = vpop.f32.mrf.mxu0
  %v2614 = vadd.f32 %v2069, %v2613
  %v2615 = vpop.f32.mrf.mxu0
  %2616 = vmatprep.mubr.bf16.mxu0 0
  %2617 = vmatmul.mubr.bf16.gmra.mxu0 %v1558
  %v2618 = vpop.f32.mrf.mxu0
  %v2619 = vadd.f32 %v2074, %v2618
  %v2620 = vpop.f32.mrf.mxu0
  %v2621 = vpop.f32.mrf.mxu0
  %v2622 = vadd.f32 %v2077, %v2621
  %v2623 = vpop.f32.mrf.mxu0
  %2624 = vmatprep.mubr.bf16.mxu0 0
  %2625 = vmatmul.mubr.bf16.gmra.mxu0 %v1561
  %v2626 = vpop.f32.mrf.mxu0
  %v2627 = vadd.f32 %v2082, %v2626
  %v2628 = vpop.f32.mrf.mxu0
  %v2629 = vpop.f32.mrf.mxu0
  %v2630 = vadd.f32 %v2085, %v2629
  %v2631 = vpop.f32.mrf.mxu0
  %2632 = vmatprep.mubr.bf16.mxu0 0
  %2633 = vmatmul.mubr.bf16.gmra.mxu0 %v1564
  %v2634 = vpop.f32.mrf.mxu0
  %v2635 = vadd.f32 %v2090, %v2634
  %v2636 = vpop.f32.mrf.mxu0
  %v2637 = vpop.f32.mrf.mxu0
  %v2638 = vadd.f32 %v2093, %v2637
  %v2639 = vpop.f32.mrf.mxu0
  %2640 = vmatprep.mubr.bf16.mxu0 0
  %2641 = vmatmul.mubr.bf16.gmra.mxu0 %v1567
  %v2642 = vpop.f32.mrf.mxu0
  %v2643 = vadd.f32 %v2098, %v2642
  %v2644 = vpop.f32.mrf.mxu0
  %v2645 = vpop.f32.mrf.mxu0
  %v2646 = vadd.f32 %v2101, %v2645
  %v2647 = vpop.f32.mrf.mxu0
  %2648 = vmatprep.mubr.bf16.mxu0 0
  %2649 = vmatmul.mubr.bf16.gmra.mxu0 %v1570
  %v2650 = vpop.f32.mrf.mxu0
  %v2651 = vadd.f32 %v2106, %v2650
  %v2652 = vpop.f32.mrf.mxu0
  %v2653 = vpop.f32.mrf.mxu0
  %v2654 = vadd.f32 %v2109, %v2653
  %v2655 = vpop.f32.mrf.mxu0
  %2656 = vmatprep.mubr.bf16.mxu0 0
  %2657 = vmatmul.mubr.bf16.gmra.mxu0 %v1573
  %v2658 = vpop.f32.mrf.mxu0
  %v2659 = vadd.f32 %v2114, %v2658
  %v2660 = vpop.f32.mrf.mxu0
  %v2661 = vpop.f32.mrf.mxu0
  %v2662 = vadd.f32 %v2117, %v2661
  %v2663 = vpop.f32.mrf.mxu0
  %2664 = vdwg.mxu0
  %v2665 = vmul.f32 %v2155, 0.2
  %v2666 = vmul.f32 %v2158, 0.2
  %v2667 = vmul.f32 %v2163, 0.2
  %v2668 = vmul.f32 %v2166, 0.2
  %v2669 = vmul.f32 %v2171, 0.2
  %v2670 = vmul.f32 %v2174, 0.2
  %v2671 = vmul.f32 %v2179, 0.2
  %v2672 = vmul.f32 %v2182, 0.2
  %v2673 = vmul.f32 %v2187, 0.2
  %v2674 = vmul.f32 %v2190, 0.2
  %v2675 = vmul.f32 %v2195, 0.2
  %v2676 = vmul.f32 %v2198, 0.2
  %v2677 = vmul.f32 %v2203, 0.2
  %v2678 = vmul.f32 %v2206, 0.2
  %v2679 = vmul.f32 %v2211, 0.2
  %v2680 = vmul.f32 %v2214, 0.2
  %v2681 = vmul.f32 %v2219, 0.2
  %v2682 = vmul.f32 %v2222, 0.2
  %v2683 = vmul.f32 %v2227, 0.2
  %v2684 = vmul.f32 %v2230, 0.2
  %v2685 = vmul.f32 %v2235, 0.2
  %v2686 = vmul.f32 %v2238, 0.2
  %v2687 = vmul.f32 %v2243, 0.2
  %v2688 = vmul.f32 %v2246, 0.2
  %v2689 = vmul.f32 %v2251, 0.2
  %v2690 = vmul.f32 %v2254, 0.2
  %v2691 = vmul.f32 %v2259, 0.2
  %v2692 = vmul.f32 %v2262, 0.2
  %v2693 = vmul.f32 %v2267, 0.2
  %v2694 = vmul.f32 %v2270, 0.2
  %v2695 = vmul.f32 %v2275, 0.2
  %v2696 = vmul.f32 %v2278, 0.2
  %v2697 = vmul.f32 %v2283, 0.2
  %v2698 = vmul.f32 %v2286, 0.2
  %v2699 = vmul.f32 %v2291, 0.2
  %v2700 = vmul.f32 %v2294, 0.2
  %v2701 = vmul.f32 %v2299, 0.2
  %v2702 = vmul.f32 %v2302, 0.2
  %v2703 = vmul.f32 %v2307, 0.2
  %v2704 = vmul.f32 %v2310, 0.2
  %v2705 = vmul.f32 %v2315, 0.2
  %v2706 = vmul.f32 %v2318, 0.2
  %v2707 = vmul.f32 %v2323, 0.2
  %v2708 = vmul.f32 %v2326, 0.2
  %v2709 = vmul.f32 %v2331, 0.2
  %v2710 = vmul.f32 %v2334, 0.2
  %v2711 = vmul.f32 %v2339, 0.2
  %v2712 = vmul.f32 %v2342, 0.2
  %v2713 = vmul.f32 %v2347, 0.2
  %v2714 = vmul.f32 %v2350, 0.2
  %v2715 = vmul.f32 %v2355, 0.2
  %v2716 = vmul.f32 %v2358, 0.2
  %v2717 = vmul.f32 %v2363, 0.2
  %v2718 = vmul.f32 %v2366, 0.2
  %v2719 = vmul.f32 %v2371, 0.2
  %v2720 = vmul.f32 %v2374, 0.2
  %v2721 = vmul.f32 %v2379, 0.2
  %v2722 = vmul.f32 %v2382, 0.2
  %v2723 = vmul.f32 %v2387, 0.2
  %v2724 = vmul.f32 %v2390, 0.2
  %v2725 = vmul.f32 %v2395, 0.2
  %v2726 = vmul.f32 %v2398, 0.2
  %v2727 = vmul.f32 %v2403, 0.2
  %v2728 = vmul.f32 %v2406, 0.2
  %v2729 = vmul.f32 %v2411, 0.2
  %v2730 = vmul.f32 %v2414, 0.2
  %v2731 = vmul.f32 %v2419, 0.2
  %v2732 = vmul.f32 %v2422, 0.2
  %v2733 = vmul.f32 %v2427, 0.2
  %v2734 = vmul.f32 %v2430, 0.2
  %v2735 = vmul.f32 %v2435, 0.2
  %v2736 = vmul.f32 %v2438, 0.2
  %v2737 = vmul.f32 %v2443, 0.2
  %v2738 = vmul.f32 %v2446, 0.2
  %v2739 = vmul.f32 %v2451, 0.2
  %v2740 = vmul.f32 %v2454, 0.2
  %v2741 = vmul.f32 %v2459, 0.2
  %v2742 = vmul.f32 %v2462, 0.2
  %v2743 = vmul.f32 %v2467, 0.2
  %v2744 = vmul.f32 %v2470, 0.2
  %v2745 = vmul.f32 %v2475, 0.2
  %v2746 = vmul.f32 %v2478, 0.2
  %v2747 = vmul.f32 %v2483, 0.2
  %v2748 = vmul.f32 %v2486, 0.2
  %v2749 = vmul.f32 %v2491, 0.2
  %v2750 = vmul.f32 %v2494, 0.2
  %v2751 = vmul.f32 %v2499, 0.2
  %v2752 = vmul.f32 %v2502, 0.2
  %v2753 = vmul.f32 %v2507, 0.2
  %v2754 = vmul.f32 %v2510, 0.2
  %v2755 = vmul.f32 %v2515, 0.2
  %v2756 = vmul.f32 %v2518, 0.2
  %v2757 = vmul.f32 %v2523, 0.2
  %v2758 = vmul.f32 %v2526, 0.2
  %v2759 = vmul.f32 %v2531, 0.2
  %v2760 = vmul.f32 %v2534, 0.2
  %v2761 = vmul.f32 %v2539, 0.2
  %v2762 = vmul.f32 %v2542, 0.2
  %v2763 = vmul.f32 %v2547, 0.2
  %v2764 = vmul.f32 %v2550, 0.2
  %v2765 = vmul.f32 %v2555, 0.2
  %v2766 = vmul.f32 %v2558, 0.2
  %v2767 = vmul.f32 %v2563, 0.2
  %v2768 = vmul.f32 %v2566, 0.2
  %v2769 = vmul.f32 %v2571, 0.2
  %v2770 = vmul.f32 %v2574, 0.2
  %v2771 = vmul.f32 %v2579, 0.2
  %v2772 = vmul.f32 %v2582, 0.2
  %v2773 = vmul.f32 %v2587, 0.2
  %v2774 = vmul.f32 %v2590, 0.2
  %v2775 = vmul.f32 %v2595, 0.2
  %v2776 = vmul.f32 %v2598, 0.2
  %v2777 = vmul.f32 %v2603, 0.2
  %v2778 = vmul.f32 %v2606, 0.2
  %v2779 = vmul.f32 %v2611, 0.2
  %v2780 = vmul.f32 %v2614, 0.2
  %v2781 = vmul.f32 %v2619, 0.2
  %v2782 = vmul.f32 %v2622, 0.2
  %v2783 = vmul.f32 %v2627, 0.2
  %v2784 = vmul.f32 %v2630, 0.2
  %v2785 = vmul.f32 %v2635, 0.2
  %v2786 = vmul.f32 %v2638, 0.2
  %v2787 = vmul.f32 %v2643, 0.2
  %v2788 = vmul.f32 %v2646, 0.2
  %v2789 = vmul.f32 %v2651, 0.2
  %v2790 = vmul.f32 %v2654, 0.2
  %v2791 = vmul.f32 %v2659, 0.2
  %v2792 = vmul.f32 %v2662, 0.2
  %v2793 = vmax.f32 %v2155, %v2665
  %v2794 = vmax.f32 %v2158, %v2666
  %v2795 = vmax.f32 %v2163, %v2667
  %v2796 = vmax.f32 %v2166, %v2668
  %v2797 = vmax.f32 %v2171, %v2669
  %v2798 = vmax.f32 %v2174, %v2670
  %v2799 = vmax.f32 %v2179, %v2671
  %v2800 = vmax.f32 %v2182, %v2672
  %v2801 = vmax.f32 %v2187, %v2673
  %v2802 = vmax.f32 %v2190, %v2674
  %v2803 = vmax.f32 %v2195, %v2675
  %v2804 = vmax.f32 %v2198, %v2676
  %v2805 = vmax.f32 %v2203, %v2677
  %v2806 = vmax.f32 %v2206, %v2678
  %v2807 = vmax.f32 %v2211, %v2679
  %v2808 = vmax.f32 %v2214, %v2680
  %v2809 = vmax.f32 %v2219, %v2681
  %v2810 = vmax.f32 %v2222, %v2682
  %v2811 = vmax.f32 %v2227, %v2683
  %v2812 = vmax.f32 %v2230, %v2684
  %v2813 = vmax.f32 %v2235, %v2685
  %v2814 = vmax.f32 %v2238, %v2686
  %v2815 = vmax.f32 %v2243, %v2687
  %v2816 = vmax.f32 %v2246, %v2688
  %v2817 = vmax.f32 %v2251, %v2689
  %v2818 = vmax.f32 %v2254, %v2690
  %v2819 = vmax.f32 %v2259, %v2691
  %v2820 = vmax.f32 %v2262, %v2692
  %v2821 = vmax.f32 %v2267, %v2693
  %v2822 = vmax.f32 %v2270, %v2694
  %v2823 = vmax.f32 %v2275, %v2695
  %v2824 = vmax.f32 %v2278, %v2696
  %v2825 = vmax.f32 %v2283, %v2697
  %v2826 = vmax.f32 %v2286, %v2698
  %v2827 = vmax.f32 %v2291, %v2699
  %v2828 = vmax.f32 %v2294, %v2700
  %v2829 = vmax.f32 %v2299, %v2701
  %v2830 = vmax.f32 %v2302, %v2702
  %v2831 = vmax.f32 %v2307, %v2703
  %v2832 = vmax.f32 %v2310, %v2704
  %v2833 = vmax.f32 %v2315, %v2705
  %v2834 = vmax.f32 %v2318, %v2706
  %v2835 = vmax.f32 %v2323, %v2707
  %v2836 = vmax.f32 %v2326, %v2708
  %v2837 = vmax.f32 %v2331, %v2709
  %v2838 = vmax.f32 %v2334, %v2710
  %v2839 = vmax.f32 %v2339, %v2711
  %v2840 = vmax.f32 %v2342, %v2712
  %v2841 = vmax.f32 %v2347, %v2713
  %v2842 = vmax.f32 %v2350, %v2714
  %v2843 = vmax.f32 %v2355, %v2715
  %v2844 = vmax.f32 %v2358, %v2716
  %v2845 = vmax.f32 %v2363, %v2717
  %v2846 = vmax.f32 %v2366, %v2718
  %v2847 = vmax.f32 %v2371, %v2719
  %v2848 = vmax.f32 %v2374, %v2720
  %v2849 = vmax.f32 %v2379, %v2721
  %v2850 = vmax.f32 %v2382, %v2722
  %v2851 = vmax.f32 %v2387, %v2723
  %v2852 = vmax.f32 %v2390, %v2724
  %v2853 = vmax.f32 %v2395, %v2725
  %v2854 = vmax.f32 %v2398, %v2726
  %v2855 = vmax.f32 %v2403, %v2727
  %v2856 = vmax.f32 %v2406, %v2728
  %v2857 = vmax.f32 %v2411, %v2729
  %v2858 = vmax.f32 %v2414, %v2730
  %v2859 = vmax.f32 %v2419, %v2731
  %v2860 = vmax.f32 %v2422, %v2732
  %v2861 = vmax.f32 %v2427, %v2733
  %v2862 = vmax.f32 %v2430, %v2734
  %v2863 = vmax.f32 %v2435, %v2735
  %v2864 = vmax.f32 %v2438, %v2736
  %v2865 = vmax.f32 %v2443, %v2737
  %v2866 = vmax.f32 %v2446, %v2738
  %v2867 = vmax.f32 %v2451, %v2739
  %v2868 = vmax.f32 %v2454, %v2740
  %v2869 = vmax.f32 %v2459, %v2741
  %v2870 = vmax.f32 %v2462, %v2742
  %v2871 = vmax.f32 %v2467, %v2743
  %v2872 = vmax.f32 %v2470, %v2744
  %v2873 = vmax.f32 %v2475, %v2745
  %v2874 = vmax.f32 %v2478, %v2746
  %v2875 = vmax.f32 %v2483, %v2747
  %v2876 = vmax.f32 %v2486, %v2748
  %v2877 = vmax.f32 %v2491, %v2749
  %v2878 = vmax.f32 %v2494, %v2750
  %v2879 = vmax.f32 %v2499, %v2751
  %v2880 = vmax.f32 %v2502, %v2752
  %v2881 = vmax.f32 %v2507, %v2753
  %v2882 = vmax.f32 %v2510, %v2754
  %v2883 = vmax.f32 %v2515, %v2755
  %v2884 = vmax.f32 %v2518, %v2756
  %v2885 = vmax.f32 %v2523, %v2757
  %v2886 = vmax.f32 %v2526, %v2758
  %v2887 = vmax.f32 %v2531, %v2759
  %v2888 = vmax.f32 %v2534, %v2760
  %v2889 = vmax.f32 %v2539, %v2761
  %v2890 = vmax.f32 %v2542, %v2762
  %v2891 = vmax.f32 %v2547, %v2763
  %v2892 = vmax.f32 %v2550, %v2764
  %v2893 = vmax.f32 %v2555, %v2765
  %v2894 = vmax.f32 %v2558, %v2766
  %v2895 = vmax.f32 %v2563, %v2767
  %v2896 = vmax.f32 %v2566, %v2768
  %v2897 = vmax.f32 %v2571, %v2769
  %v2898 = vmax.f32 %v2574, %v2770
  %v2899 = vmax.f32 %v2579, %v2771
  %v2900 = vmax.f32 %v2582, %v2772
  %v2901 = vmax.f32 %v2587, %v2773
  %v2902 = vmax.f32 %v2590, %v2774
  %v2903 = vmax.f32 %v2595, %v2775
  %v2904 = vmax.f32 %v2598, %v2776
  %v2905 = vmax.f32 %v2603, %v2777
  %v2906 = vmax.f32 %v2606, %v2778
  %v2907 = vmax.f32 %v2611, %v2779
  %v2908 = vmax.f32 %v2614, %v2780
  %v2909 = vmax.f32 %v2619, %v2781
  %v2910 = vmax.f32 %v2622, %v2782
  %v2911 = vmax.f32 %v2627, %v2783
  %v2912 = vmax.f32 %v2630, %v2784
  %v2913 = vmax.f32 %v2635, %v2785
  %v2914 = vmax.f32 %v2638, %v2786
  %v2915 = vmax.f32 %v2643, %v2787
  %v2916 = vmax.f32 %v2646, %v2788
  %v2917 = vmax.f32 %v2651, %v2789
  %v2918 = vmax.f32 %v2654, %v2790
  %v2919 = vmax.f32 %v2659, %v2791
  %v2920 = vmax.f32 %v2662, %v2792
  %v2921 = vpack.c.bf16 %v2794, %v2793
  %v2922 = vpack.c.bf16 %v2796, %v2795
  %v2923 = vpack.c.bf16 %v2798, %v2797
  %v2924 = vpack.c.bf16 %v2800, %v2799
  %v2925 = vpack.c.bf16 %v2802, %v2801
  %v2926 = vpack.c.bf16 %v2804, %v2803
  %v2927 = vpack.c.bf16 %v2806, %v2805
  %v2928 = vpack.c.bf16 %v2808, %v2807
  %v2929 = vpack.c.bf16 %v2810, %v2809
  %v2930 = vpack.c.bf16 %v2812, %v2811
  %v2931 = vpack.c.bf16 %v2814, %v2813
  %v2932 = vpack.c.bf16 %v2816, %v2815
  %v2933 = vpack.c.bf16 %v2818, %v2817
  %v2934 = vpack.c.bf16 %v2820, %v2819
  %v2935 = vpack.c.bf16 %v2822, %v2821
  %v2936 = vpack.c.bf16 %v2824, %v2823
  %v2937 = vpack.c.bf16 %v2826, %v2825
  %v2938 = vpack.c.bf16 %v2828, %v2827
  %v2939 = vpack.c.bf16 %v2830, %v2829
  %v2940 = vpack.c.bf16 %v2832, %v2831
  %v2941 = vpack.c.bf16 %v2834, %v2833
  %v2942 = vpack.c.bf16 %v2836, %v2835
  %v2943 = vpack.c.bf16 %v2838, %v2837
  %v2944 = vpack.c.bf16 %v2840, %v2839
  %v2945 = vpack.c.bf16 %v2842, %v2841
  %v2946 = vpack.c.bf16 %v2844, %v2843
  %v2947 = vpack.c.bf16 %v2846, %v2845
  %v2948 = vpack.c.bf16 %v2848, %v2847
  %v2949 = vpack.c.bf16 %v2850, %v2849
  %v2950 = vpack.c.bf16 %v2852, %v2851
  %v2951 = vpack.c.bf16 %v2854, %v2853
  %v2952 = vpack.c.bf16 %v2856, %v2855
  %v2953 = vpack.c.bf16 %v2858, %v2857
  %v2954 = vpack.c.bf16 %v2860, %v2859
  %v2955 = vpack.c.bf16 %v2862, %v2861
  %v2956 = vpack.c.bf16 %v2864, %v2863
  %v2957 = vpack.c.bf16 %v2866, %v2865
  %v2958 = vpack.c.bf16 %v2868, %v2867
  %v2959 = vpack.c.bf16 %v2870, %v2869
  %v2960 = vpack.c.bf16 %v2872, %v2871
  %v2961 = vpack.c.bf16 %v2874, %v2873
  %v2962 = vpack.c.bf16 %v2876, %v2875
  %v2963 = vpack.c.bf16 %v2878, %v2877
  %v2964 = vpack.c.bf16 %v2880, %v2879
  %v2965 = vpack.c.bf16 %v2882, %v2881
  %v2966 = vpack.c.bf16 %v2884, %v2883
  %v2967 = vpack.c.bf16 %v2886, %v2885
  %v2968 = vpack.c.bf16 %v2888, %v2887
  %v2969 = vpack.c.bf16 %v2890, %v2889
  %v2970 = vpack.c.bf16 %v2892, %v2891
  %v2971 = vpack.c.bf16 %v2894, %v2893
  %v2972 = vpack.c.bf16 %v2896, %v2895
  %v2973 = vpack.c.bf16 %v2898, %v2897
  %v2974 = vpack.c.bf16 %v2900, %v2899
  %v2975 = vpack.c.bf16 %v2902, %v2901
  %v2976 = vpack.c.bf16 %v2904, %v2903
  %v2977 = vpack.c.bf16 %v2906, %v2905
  %v2978 = vpack.c.bf16 %v2908, %v2907
  %v2979 = vpack.c.bf16 %v2910, %v2909
  %v2980 = vpack.c.bf16 %v2912, %v2911
  %v2981 = vpack.c.bf16 %v2914, %v2913
  %v2982 = vpack.c.bf16 %v2916, %v2915
  %v2983 = vpack.c.bf16 %v2918, %v2917
  %v2984 = vpack.c.bf16 %v2920, %v2919
  %v3049 = vunpack.c.l.b16 %v2921
  %v3050 = vunpack.c.h.b16 %v2921
  %v3051 = vunpack.c.l.b16 %v2922
  %v3052 = vunpack.c.h.b16 %v2922
  %v3053 = vunpack.c.l.b16 %v2923
  %v3054 = vunpack.c.h.b16 %v2923
  %v3055 = vunpack.c.l.b16 %v2924
  %v3056 = vunpack.c.h.b16 %v2924
  %v3057 = vunpack.c.l.b16 %v2925
  %v3058 = vunpack.c.h.b16 %v2925
  %v3059 = vunpack.c.l.b16 %v2926
  %v3060 = vunpack.c.h.b16 %v2926
  %v3061 = vunpack.c.l.b16 %v2927
  %v3062 = vunpack.c.h.b16 %v2927
  %v3063 = vunpack.c.l.b16 %v2928
  %v3064 = vunpack.c.h.b16 %v2928
  %v3065 = vunpack.c.l.b16 %v2929
  %v3066 = vunpack.c.h.b16 %v2929
  %v3067 = vunpack.c.l.b16 %v2930
  %v3068 = vunpack.c.h.b16 %v2930
  %v3069 = vunpack.c.l.b16 %v2931
  %v3070 = vunpack.c.h.b16 %v2931
  %v3071 = vunpack.c.l.b16 %v2932
  %v3072 = vunpack.c.h.b16 %v2932
  %v3073 = vunpack.c.l.b16 %v2933
  %v3074 = vunpack.c.h.b16 %v2933
  %v3075 = vunpack.c.l.b16 %v2934
  %v3076 = vunpack.c.h.b16 %v2934
  %v3077 = vunpack.c.l.b16 %v2935
  %v3078 = vunpack.c.h.b16 %v2935
  %v3079 = vunpack.c.l.b16 %v2936
  %v3080 = vunpack.c.h.b16 %v2936
  %v3081 = vunpack.c.l.b16 %v2937
  %v3082 = vunpack.c.h.b16 %v2937
  %v3083 = vunpack.c.l.b16 %v2938
  %v3084 = vunpack.c.h.b16 %v2938
  %v3085 = vunpack.c.l.b16 %v2939
  %v3086 = vunpack.c.h.b16 %v2939
  %v3087 = vunpack.c.l.b16 %v2940
  %v3088 = vunpack.c.h.b16 %v2940
  %v3089 = vunpack.c.l.b16 %v2941
  %v3090 = vunpack.c.h.b16 %v2941
  %v3091 = vunpack.c.l.b16 %v2942
  %v3092 = vunpack.c.h.b16 %v2942
  %v3093 = vunpack.c.l.b16 %v2943
  %v3094 = vunpack.c.h.b16 %v2943
  %v3095 = vunpack.c.l.b16 %v2944
  %v3096 = vunpack.c.h.b16 %v2944
  %v3097 = vunpack.c.l.b16 %v2945
  %v3098 = vunpack.c.h.b16 %v2945
  %v3099 = vunpack.c.l.b16 %v2946
  %v3100 = vunpack.c.h.b16 %v2946
  %v3101 = vunpack.c.l.b16 %v2947
  %v3102 = vunpack.c.h.b16 %v2947
  %v3103 = vunpack.c.l.b16 %v2948
  %v3104 = vunpack.c.h.b16 %v2948
  %v3105 = vunpack.c.l.b16 %v2949
  %v3106 = vunpack.c.h.b16 %v2949
  %v3107 = vunpack.c.l.b16 %v2950
  %v3108 = vunpack.c.h.b16 %v2950
  %v3109 = vunpack.c.l.b16 %v2951
  %v3110 = vunpack.c.h.b16 %v2951
  %v3111 = vunpack.c.l.b16 %v2952
  %v3112 = vunpack.c.h.b16 %v2952
  %v3113 = vunpack.c.l.b16 %v2953
  %v3114 = vunpack.c.h.b16 %v2953
  %v3115 = vunpack.c.l.b16 %v2954
  %v3116 = vunpack.c.h.b16 %v2954
  %v3117 = vunpack.c.l.b16 %v2955
  %v3118 = vunpack.c.h.b16 %v2955
  %v3119 = vunpack.c.l.b16 %v2956
  %v3120 = vunpack.c.h.b16 %v2956
  %v3121 = vunpack.c.l.b16 %v2957
  %v3122 = vunpack.c.h.b16 %v2957
  %v3123 = vunpack.c.l.b16 %v2958
  %v3124 = vunpack.c.h.b16 %v2958
  %v3125 = vunpack.c.l.b16 %v2959
  %v3126 = vunpack.c.h.b16 %v2959
  %v3127 = vunpack.c.l.b16 %v2960
  %v3128 = vunpack.c.h.b16 %v2960
  %v3129 = vunpack.c.l.b16 %v2961
  %v3130 = vunpack.c.h.b16 %v2961
  %v3131 = vunpack.c.l.b16 %v2962
  %v3132 = vunpack.c.h.b16 %v2962
  %v3133 = vunpack.c.l.b16 %v2963
  %v3134 = vunpack.c.h.b16 %v2963
  %v3135 = vunpack.c.l.b16 %v2964
  %v3136 = vunpack.c.h.b16 %v2964
  %v3137 = vunpack.c.l.b16 %v2965
  %v3138 = vunpack.c.h.b16 %v2965
  %v3139 = vunpack.c.l.b16 %v2966
  %v3140 = vunpack.c.h.b16 %v2966
  %v3141 = vunpack.c.l.b16 %v2967
  %v3142 = vunpack.c.h.b16 %v2967
  %v3143 = vunpack.c.l.b16 %v2968
  %v3144 = vunpack.c.h.b16 %v2968
  %v3145 = vunpack.c.l.b16 %v2969
  %v3146 = vunpack.c.h.b16 %v2969
  %v3147 = vunpack.c.l.b16 %v2970
  %v3148 = vunpack.c.h.b16 %v2970
  %v3149 = vunpack.c.l.b16 %v2971
  %v3150 = vunpack.c.h.b16 %v2971
  %v3151 = vunpack.c.l.b16 %v2972
  %v3152 = vunpack.c.h.b16 %v2972
  %v3153 = vunpack.c.l.b16 %v2973
  %v3154 = vunpack.c.h.b16 %v2973
  %v3155 = vunpack.c.l.b16 %v2974
  %v3156 = vunpack.c.h.b16 %v2974
  %v3157 = vunpack.c.l.b16 %v2975
  %v3158 = vunpack.c.h.b16 %v2975
  %v3159 = vunpack.c.l.b16 %v2976
  %v3160 = vunpack.c.h.b16 %v2976
  %v3161 = vunpack.c.l.b16 %v2977
  %v3162 = vunpack.c.h.b16 %v2977
  %v3163 = vunpack.c.l.b16 %v2978
  %v3164 = vunpack.c.h.b16 %v2978
  %v3165 = vunpack.c.l.b16 %v2979
  %v3166 = vunpack.c.h.b16 %v2979
  %v3167 = vunpack.c.l.b16 %v2980
  %v3168 = vunpack.c.h.b16 %v2980
  %v3169 = vunpack.c.l.b16 %v2981
  %v3170 = vunpack.c.h.b16 %v2981
  %v3171 = vunpack.c.l.b16 %v2982
  %v3172 = vunpack.c.h.b16 %v2982
  %v3173 = vunpack.c.l.b16 %v2983
  %v3174 = vunpack.c.h.b16 %v2983
  %v3175 = vunpack.c.l.b16 %v2984
  %v3176 = vunpack.c.h.b16 %v2984
  %v3177 = vpack.c.b16 %v3049, %v3049
  %v3178 = vpack.c.b16 %v3050, %v3050
  %v3179 = vpack.c.b16 %v3051, %v3051
  %v3180 = vpack.c.b16 %v3052, %v3052
  %v3181 = vpack.c.b16 %v3053, %v3053
  %v3182 = vpack.c.b16 %v3054, %v3054
  %v3183 = vpack.c.b16 %v3055, %v3055
  %v3184 = vpack.c.b16 %v3056, %v3056
  %v3185 = vpack.c.b16 %v3057, %v3057
  %v3186 = vpack.c.b16 %v3058, %v3058
  %v3187 = vpack.c.b16 %v3059, %v3059
  %v3188 = vpack.c.b16 %v3060, %v3060
  %v3189 = vpack.c.b16 %v3061, %v3061
  %v3190 = vpack.c.b16 %v3062, %v3062
  %v3191 = vpack.c.b16 %v3063, %v3063
  %v3192 = vpack.c.b16 %v3064, %v3064
  %v3193 = vpack.c.b16 %v3065, %v3065
  %v3194 = vpack.c.b16 %v3066, %v3066
  %v3195 = vpack.c.b16 %v3067, %v3067
  %v3196 = vpack.c.b16 %v3068, %v3068
  %v3197 = vpack.c.b16 %v3069, %v3069
  %v3198 = vpack.c.b16 %v3070, %v3070
  %v3199 = vpack.c.b16 %v3071, %v3071
  %v3200 = vpack.c.b16 %v3072, %v3072
  %v3201 = vpack.c.b16 %v3073, %v3073
  %v3202 = vpack.c.b16 %v3074, %v3074
  %v3203 = vpack.c.b16 %v3075, %v3075
  %v3204 = vpack.c.b16 %v3076, %v3076
  %v3205 = vpack.c.b16 %v3077, %v3077
  %v3206 = vpack.c.b16 %v3078, %v3078
  %v3207 = vpack.c.b16 %v3079, %v3079
  %v3208 = vpack.c.b16 %v3080, %v3080
  %v3209 = vpack.c.b16 %v3081, %v3081
  %v3210 = vpack.c.b16 %v3082, %v3082
  %v3211 = vpack.c.b16 %v3083, %v3083
  %v3212 = vpack.c.b16 %v3084, %v3084
  %v3213 = vpack.c.b16 %v3085, %v3085
  %v3214 = vpack.c.b16 %v3086, %v3086
  %v3215 = vpack.c.b16 %v3087, %v3087
  %v3216 = vpack.c.b16 %v3088, %v3088
  %v3217 = vpack.c.b16 %v3089, %v3089
  %v3218 = vpack.c.b16 %v3090, %v3090
  %v3219 = vpack.c.b16 %v3091, %v3091
  %v3220 = vpack.c.b16 %v3092, %v3092
  %v3221 = vpack.c.b16 %v3093, %v3093
  %v3222 = vpack.c.b16 %v3094, %v3094
  %v3223 = vpack.c.b16 %v3095, %v3095
  %v3224 = vpack.c.b16 %v3096, %v3096
  %v3225 = vpack.c.b16 %v3097, %v3097
  %v3226 = vpack.c.b16 %v3098, %v3098
  %v3227 = vpack.c.b16 %v3099, %v3099
  %v3228 = vpack.c.b16 %v3100, %v3100
  %v3229 = vpack.c.b16 %v3101, %v3101
  %v3230 = vpack.c.b16 %v3102, %v3102
  %v3231 = vpack.c.b16 %v3103, %v3103
  %v3232 = vpack.c.b16 %v3104, %v3104
  %v3233 = vpack.c.b16 %v3105, %v3105
  %v3234 = vpack.c.b16 %v3106, %v3106
  %v3235 = vpack.c.b16 %v3107, %v3107
  %v3236 = vpack.c.b16 %v3108, %v3108
  %v3237 = vpack.c.b16 %v3109, %v3109
  %v3238 = vpack.c.b16 %v3110, %v3110
  %v3239 = vpack.c.b16 %v3111, %v3111
  %v3240 = vpack.c.b16 %v3112, %v3112
  %v3241 = vpack.c.b16 %v3113, %v3113
  %v3242 = vpack.c.b16 %v3114, %v3114
  %v3243 = vpack.c.b16 %v3115, %v3115
  %v3244 = vpack.c.b16 %v3116, %v3116
  %v3245 = vpack.c.b16 %v3117, %v3117
  %v3246 = vpack.c.b16 %v3118, %v3118
  %v3247 = vpack.c.b16 %v3119, %v3119
  %v3248 = vpack.c.b16 %v3120, %v3120
  %v3249 = vpack.c.b16 %v3121, %v3121
  %v3250 = vpack.c.b16 %v3122, %v3122
  %v3251 = vpack.c.b16 %v3123, %v3123
  %v3252 = vpack.c.b16 %v3124, %v3124
  %v3253 = vpack.c.b16 %v3125, %v3125
  %v3254 = vpack.c.b16 %v3126, %v3126
  %v3255 = vpack.c.b16 %v3127, %v3127
  %v3256 = vpack.c.b16 %v3128, %v3128
  %v3257 = vpack.c.b16 %v3129, %v3129
  %v3258 = vpack.c.b16 %v3130, %v3130
  %v3259 = vpack.c.b16 %v3131, %v3131
  %v3260 = vpack.c.b16 %v3132, %v3132
  %v3261 = vpack.c.b16 %v3133, %v3133
  %v3262 = vpack.c.b16 %v3134, %v3134
  %v3263 = vpack.c.b16 %v3135, %v3135
  %v3264 = vpack.c.b16 %v3136, %v3136
  %v3265 = vpack.c.b16 %v3137, %v3137
  %v3266 = vpack.c.b16 %v3138, %v3138
  %v3267 = vpack.c.b16 %v3139, %v3139
  %v3268 = vpack.c.b16 %v3140, %v3140
  %v3269 = vpack.c.b16 %v3141, %v3141
  %v3270 = vpack.c.b16 %v3142, %v3142
  %v3271 = vpack.c.b16 %v3143, %v3143
  %v3272 = vpack.c.b16 %v3144, %v3144
  %v3273 = vpack.c.b16 %v3145, %v3145
  %v3274 = vpack.c.b16 %v3146, %v3146
  %v3275 = vpack.c.b16 %v3147, %v3147
  %v3276 = vpack.c.b16 %v3148, %v3148
  %v3277 = vpack.c.b16 %v3149, %v3149
  %v3278 = vpack.c.b16 %v3150, %v3150
  %v3279 = vpack.c.b16 %v3151, %v3151
  %v3280 = vpack.c.b16 %v3152, %v3152
  %v3281 = vpack.c.b16 %v3153, %v3153
  %v3282 = vpack.c.b16 %v3154, %v3154
  %v3283 = vpack.c.b16 %v3155, %v3155
  %v3284 = vpack.c.b16 %v3156, %v3156
  %v3285 = vpack.c.b16 %v3157, %v3157
  %v3286 = vpack.c.b16 %v3158, %v3158
  %v3287 = vpack.c.b16 %v3159, %v3159
  %v3288 = vpack.c.b16 %v3160, %v3160
  %v3289 = vpack.c.b16 %v3161, %v3161
  %v3290 = vpack.c.b16 %v3162, %v3162
  %v3291 = vpack.c.b16 %v3163, %v3163
  %v3292 = vpack.c.b16 %v3164, %v3164
  %v3293 = vpack.c.b16 %v3165, %v3165
  %v3294 = vpack.c.b16 %v3166, %v3166
  %v3295 = vpack.c.b16 %v3167, %v3167
  %v3296 = vpack.c.b16 %v3168, %v3168
  %v3297 = vpack.c.b16 %v3169, %v3169
  %v3298 = vpack.c.b16 %v3170, %v3170
  %v3299 = vpack.c.b16 %v3171, %v3171
  %v3300 = vpack.c.b16 %v3172, %v3172
  %v3301 = vpack.c.b16 %v3173, %v3173
  %v3302 = vpack.c.b16 %v3174, %v3174
  %v3303 = vpack.c.b16 %v3175, %v3175
  %v3304 = vpack.c.b16 %v3176, %v3176
  %3433 = vst [vmem:[%s3] sm:$0xf] %v3177
  %3434 = vst [vmem:[%s3 + $0x4] sm:$0xf] %v3178
  %3435 = vst [vmem:[%s3 + $0x8] sm:$0xf] %v3179
  %3436 = vst [vmem:[%s3 + $0xc] sm:$0xf] %v3180
  %3437 = vst [vmem:[%s3 + $0x10] sm:$0xf] %v3181
  %3438 = vst [vmem:[%s3 + $0x14] sm:$0xf] %v3182
  %3439 = vst [vmem:[%s3 + $0x18] sm:$0xf] %v3183
  %3440 = vst [vmem:[%s3 + $0x1c] sm:$0xf] %v3184
  %3441 = vst [vmem:[%s3 + $0x20] sm:$0xf] %v3185
  %3442 = vst [vmem:[%s3 + $0x24] sm:$0xf] %v3186
  %3443 = vst [vmem:[%s3 + $0x28] sm:$0xf] %v3187
  %3444 = vst [vmem:[%s3 + $0x2c] sm:$0xf] %v3188
  %3445 = vst [vmem:[%s3 + $0x30] sm:$0xf] %v3189
  %3446 = vst [vmem:[%s3 + $0x34] sm:$0xf] %v3190
  %3447 = vst [vmem:[%s3 + $0x38] sm:$0xf] %v3191
  %3448 = vst [vmem:[%s3 + $0x3c] sm:$0xf] %v3192
  %3449 = vst [vmem:[%s3 + $0x40] sm:$0xf] %v3193
  %3450 = vst [vmem:[%s3 + $0x44] sm:$0xf] %v3194
  %3451 = vst [vmem:[%s3 + $0x48] sm:$0xf] %v3195
  %3452 = vst [vmem:[%s3 + $0x4c] sm:$0xf] %v3196
  %3453 = vst [vmem:[%s3 + $0x50] sm:$0xf] %v3197
  %3454 = vst [vmem:[%s3 + $0x54] sm:$0xf] %v3198
  %3455 = vst [vmem:[%s3 + $0x58] sm:$0xf] %v3199
  %3456 = vst [vmem:[%s3 + $0x5c] sm:$0xf] %v3200
  %3457 = vst [vmem:[%s3 + $0x60] sm:$0xf] %v3201
  %3458 = vst [vmem:[%s3 + $0x64] sm:$0xf] %v3202
  %3459 = vst [vmem:[%s3 + $0x68] sm:$0xf] %v3203
  %3460 = vst [vmem:[%s3 + $0x6c] sm:$0xf] %v3204
  %3461 = vst [vmem:[%s3 + $0x70] sm:$0xf] %v3205
  %3462 = vst [vmem:[%s3 + $0x74] sm:$0xf] %v3206
  %3463 = vst [vmem:[%s3 + $0x78] sm:$0xf] %v3207
  %3464 = vst [vmem:[%s3 + $0x7c] sm:$0xf] %v3208
  %3465 = vst [vmem:[%s3 + $0x80] sm:$0xf] %v3209
  %3466 = vst [vmem:[%s3 + $0x84] sm:$0xf] %v3210
  %3467 = vst [vmem:[%s3 + $0x88] sm:$0xf] %v3211
  %3468 = vst [vmem:[%s3 + $0x8c] sm:$0xf] %v3212
  %3469 = vst [vmem:[%s3 + $0x90] sm:$0xf] %v3213
  %3470 = vst [vmem:[%s3 + $0x94] sm:$0xf] %v3214
  %3471 = vst [vmem:[%s3 + $0x98] sm:$0xf] %v3215
  %3472 = vst [vmem:[%s3 + $0x9c] sm:$0xf] %v3216
  %3473 = vst [vmem:[%s3 + $0xa0] sm:$0xf] %v3217
  %3474 = vst [vmem:[%s3 + $0xa4] sm:$0xf] %v3218
  %3475 = vst [vmem:[%s3 + $0xa8] sm:$0xf] %v3219
  %3476 = vst [vmem:[%s3 + $0xac] sm:$0xf] %v3220
  %3477 = vst [vmem:[%s3 + $0xb0] sm:$0xf] %v3221
  %3478 = vst [vmem:[%s3 + $0xb4] sm:$0xf] %v3222
  %3479 = vst [vmem:[%s3 + $0xb8] sm:$0xf] %v3223
  %3480 = vst [vmem:[%s3 + $0xbc] sm:$0xf] %v3224
  %3481 = vst [vmem:[%s3 + $0xc0] sm:$0xf] %v3225
  %3482 = vst [vmem:[%s3 + $0xc4] sm:$0xf] %v3226
  %3483 = vst [vmem:[%s3 + $0xc8] sm:$0xf] %v3227
  %3484 = vst [vmem:[%s3 + $0xcc] sm:$0xf] %v3228
  %3485 = vst [vmem:[%s3 + $0xd0] sm:$0xf] %v3229
  %3486 = vst [vmem:[%s3 + $0xd4] sm:$0xf] %v3230
  %3487 = vst [vmem:[%s3 + $0xd8] sm:$0xf] %v3231
  %3488 = vst [vmem:[%s3 + $0xdc] sm:$0xf] %v3232
  %3489 = vst [vmem:[%s3 + $0xe0] sm:$0xf] %v3233
  %3490 = vst [vmem:[%s3 + $0xe4] sm:$0xf] %v3234
  %3491 = vst [vmem:[%s3 + $0xe8] sm:$0xf] %v3235
  %3492 = vst [vmem:[%s3 + $0xec] sm:$0xf] %v3236
  %3493 = vst [vmem:[%s3 + $0xf0] sm:$0xf] %v3237
  %3494 = vst [vmem:[%s3 + $0xf4] sm:$0xf] %v3238
  %3495 = vst [vmem:[%s3 + $0xf8] sm:$0xf] %v3239
  %3496 = vst [vmem:[%s3 + $0xfc] sm:$0xf] %v3240
  %3497 = vst [vmem:[%s3 + $0x100] sm:$0xf] %v3241
  %3498 = vst [vmem:[%s3 + $0x104] sm:$0xf] %v3242
  %3499 = vst [vmem:[%s3 + $0x108] sm:$0xf] %v3243
  %3500 = vst [vmem:[%s3 + $0x10c] sm:$0xf] %v3244
  %3501 = vst [vmem:[%s3 + $0x110] sm:$0xf] %v3245
  %3502 = vst [vmem:[%s3 + $0x114] sm:$0xf] %v3246
  %3503 = vst [vmem:[%s3 + $0x118] sm:$0xf] %v3247
  %3504 = vst [vmem:[%s3 + $0x11c] sm:$0xf] %v3248
  %3505 = vst [vmem:[%s3 + $0x120] sm:$0xf] %v3249
  %3506 = vst [vmem:[%s3 + $0x124] sm:$0xf] %v3250
  %3507 = vst [vmem:[%s3 + $0x128] sm:$0xf] %v3251
  %3508 = vst [vmem:[%s3 + $0x12c] sm:$0xf] %v3252
  %3509 = vst [vmem:[%s3 + $0x130] sm:$0xf] %v3253
  %3510 = vst [vmem:[%s3 + $0x134] sm:$0xf] %v3254
  %3511 = vst [vmem:[%s3 + $0x138] sm:$0xf] %v3255
  %3512 = vst [vmem:[%s3 + $0x13c] sm:$0xf] %v3256
  %3513 = vst [vmem:[%s3 + $0x140] sm:$0xf] %v3257
  %3514 = vst [vmem:[%s3 + $0x144] sm:$0xf] %v3258
  %3515 = vst [vmem:[%s3 + $0x148] sm:$0xf] %v3259
  %3516 = vst [vmem:[%s3 + $0x14c] sm:$0xf] %v3260
  %3517 = vst [vmem:[%s3 + $0x150] sm:$0xf] %v3261
  %3518 = vst [vmem:[%s3 + $0x154] sm:$0xf] %v3262
  %3519 = vst [vmem:[%s3 + $0x158] sm:$0xf] %v3263
  %3520 = vst [vmem:[%s3 + $0x15c] sm:$0xf] %v3264
  %3521 = vst [vmem:[%s3 + $0x160] sm:$0xf] %v3265
  %3522 = vst [vmem:[%s3 + $0x164] sm:$0xf] %v3266
  %3523 = vst [vmem:[%s3 + $0x168] sm:$0xf] %v3267
  %3524 = vst [vmem:[%s3 + $0x16c] sm:$0xf] %v3268
  %3525 = vst [vmem:[%s3 + $0x170] sm:$0xf] %v3269
  %3526 = vst [vmem:[%s3 + $0x174] sm:$0xf] %v3270
  %3527 = vst [vmem:[%s3 + $0x178] sm:$0xf] %v3271
  %3528 = vst [vmem:[%s3 + $0x17c] sm:$0xf] %v3272
  %3529 = vst [vmem:[%s3 + $0x180] sm:$0xf] %v3273
  %3530 = vst [vmem:[%s3 + $0x184] sm:$0xf] %v3274
  %3531 = vst [vmem:[%s3 + $0x188] sm:$0xf] %v3275
  %3532 = vst [vmem:[%s3 + $0x18c] sm:$0xf] %v3276
  %3533 = vst [vmem:[%s3 + $0x190] sm:$0xf] %v3277
  %3534 = vst [vmem:[%s3 + $0x194] sm:$0xf] %v3278
  %3535 = vst [vmem:[%s3 + $0x198] sm:$0xf] %v3279
  %3536 = vst [vmem:[%s3 + $0x19c] sm:$0xf] %v3280
  %3537 = vst [vmem:[%s3 + $0x1a0] sm:$0xf] %v3281
  %3538 = vst [vmem:[%s3 + $0x1a4] sm:$0xf] %v3282
  %3539 = vst [vmem:[%s3 + $0x1a8] sm:$0xf] %v3283
  %3540 = vst [vmem:[%s3 + $0x1ac] sm:$0xf] %v3284
  %3541 = vst [vmem:[%s3 + $0x1b0] sm:$0xf] %v3285
  %3542 = vst [vmem:[%s3 + $0x1b4] sm:$0xf] %v3286
  %3543 = vst [vmem:[%s3 + $0x1b8] sm:$0xf] %v3287
  %3544 = vst [vmem:[%s3 + $0x1bc] sm:$0xf] %v3288
  %3545 = vst [vmem:[%s3 + $0x1c0] sm:$0xf] %v3289
  %3546 = vst [vmem:[%s3 + $0x1c4] sm:$0xf] %v3290
  %3547 = vst [vmem:[%s3 + $0x1c8] sm:$0xf] %v3291
  %3548 = vst [vmem:[%s3 + $0x1cc] sm:$0xf] %v3292
  %3549 = vst [vmem:[%s3 + $0x1d0] sm:$0xf] %v3293
  %3550 = vst [vmem:[%s3 + $0x1d4] sm:$0xf] %v3294
  %3551 = vst [vmem:[%s3 + $0x1d8] sm:$0xf] %v3295
  %3552 = vst [vmem:[%s3 + $0x1dc] sm:$0xf] %v3296
  %3553 = vst [vmem:[%s3 + $0x1e0] sm:$0xf] %v3297
  %3554 = vst [vmem:[%s3 + $0x1e4] sm:$0xf] %v3298
  %3555 = vst [vmem:[%s3 + $0x1e8] sm:$0xf] %v3299
  %3556 = vst [vmem:[%s3 + $0x1ec] sm:$0xf] %v3300
  %3557 = vst [vmem:[%s3 + $0x1f0] sm:$0xf] %v3301
  %3558 = vst [vmem:[%s3 + $0x1f4] sm:$0xf] %v3302
  %3559 = vst [vmem:[%s3 + $0x1f8] sm:$0xf] %v3303
  %3560 = vst [vmem:[%s3 + $0x1fc] sm:$0xf] %v3304
  // Predicated region
  $region14: #{bicycle_gan_forward.19} parent=0 // pred_check
    _
  $region15: #{bicycle_gan_forward.19} parent=0 // pred_check_branch
    %3562 = sbr.rel (0) target = $region17
  $region16: #{bicycle_gan_forward.19} parent=0 // pred_region
    _
  $region17: #{bicycle_gan_forward.19} parent=0 // pred_fallthru
    _
  // Predicated region
  $region18: #{bicycle_gan_forward.19} parent=0 // pred_check
    _
  $region19: #{bicycle_gan_forward.19} parent=0 // pred_check_branch
    %3564 = sbr.rel (0) target = $region21
  $region20: #{bicycle_gan_forward.19} parent=0 // pred_region
    _
  $region21: #{bicycle_gan_forward.19} parent=0 // pred_fallthru
    _

// kernel: bicycle_gan_forward.20
$region0: #{bicycle_gan_forward.20}
  #allocation0 [shape = 'u32[]', space=smem, size = 0x4, offset = 0x4, fixed_abs, tag = 'smem constant byte address 0x4 - core index']
  #allocation1 [shape = 'u32[144,128]{1,0:T(1,128)}', space=vmem, size = 0x12000, scoped, tag = 'internal scratch']
  %s0 = inlined_call_operand.vmem [shape: bf16[1024,288], index: 0, kind: input, shape index: {}]
  %s1 = inlined_call_operand.vmem [shape: bf16[288,128], index: 1, kind: input, shape index: {}]
  %s2 = inlined_call_operand.vmem [shape: f32[1,128], index: 2, kind: input, shape index: {}]
  %s3 = inlined_call_operand.vmem [shape: bf16[1024,128], index: 3, kind: output, shape index: {}]
  %s4 = sld [smem:[#allocation0]]
  $region22: #{bicycle_gan_forward.20} parent=0
    _
  %s6 = ssub.s32 1, %s4
  %s7 = scalar_select 0, %s6, %s4
  // Predicated region
  $region2: #{bicycle_gan_forward.20} parent=0 // pred_check
    _
  $region3: #{bicycle_gan_forward.20} parent=0 // pred_check_branch
    %9 = sbr.rel (0) target = $region5
  $region4: #{bicycle_gan_forward.20} parent=0 // pred_region
    _
  $region5: #{bicycle_gan_forward.20} parent=0 // pred_fallthru
    _
  // Predicated region
  $region6: #{bicycle_gan_forward.20} parent=0 // pred_check
    _
  $region7: #{bicycle_gan_forward.20} parent=0 // pred_check_branch
    %11 = sbr.rel (0) target = $region9
  $region8: #{bicycle_gan_forward.20} parent=0 // pred_region
    _
  $region9: #{bicycle_gan_forward.20} parent=0 // pred_fallthru
    _
  // Predicated region
  $region10: #{bicycle_gan_forward.20} parent=0 // pred_check
    _
  $region11: #{bicycle_gan_forward.20} parent=0 // pred_check_branch
    %13 = sbr.rel (0) target = $region13
  $region12: #{bicycle_gan_forward.20} parent=0 // pred_region
    _
  $region13: #{bicycle_gan_forward.20} parent=0 // pred_fallthru
    _
  %v15 = vld [vmem:[%s0] sm:$0xff]
  %v16 = vld [vmem:[%s0 + $0x8] sm:$0xf]
  %v17 = vld [vmem:[%s0 + $0xc] sm:$0xff]
  %v18 = vld [vmem:[%s0 + $0x14] sm:$0xf]
  %v19 = vld [vmem:[%s0 + $0x18] sm:$0xff]
  %v20 = vld [vmem:[%s0 + $0x20] sm:$0xf]
  %v21 = vld [vmem:[%s0 + $0x24] sm:$0xff]
  %v22 = vld [vmem:[%s0 + $0x2c] sm:$0xf]
  %v23 = vld [vmem:[%s0 + $0x30] sm:$0xff]
  %v24 = vld [vmem:[%s0 + $0x38] sm:$0xf]
  %v25 = vld [vmem:[%s0 + $0x3c] sm:$0xff]
  %v26 = vld [vmem:[%s0 + $0x44] sm:$0xf]
  %v27 = vld [vmem:[%s0 + $0x48] sm:$0xff]
  %v28 = vld [vmem:[%s0 + $0x50] sm:$0xf]
  %v29 = vld [vmem:[%s0 + $0x54] sm:$0xff]
  %v30 = vld [vmem:[%s0 + $0x5c] sm:$0xf]
  %v31 = vld [vmem:[%s0 + $0x60] sm:$0xff]
  %v32 = vld [vmem:[%s0 + $0x68] sm:$0xf]
  %v33 = vld [vmem:[%s0 + $0x6c] sm:$0xff]
  %v34 = vld [vmem:[%s0 + $0x74] sm:$0xf]
  %v35 = vld [vmem:[%s0 + $0x78] sm:$0xff]
  %v36 = vld [vmem:[%s0 + $0x80] sm:$0xf]
  %v37 = vld [vmem:[%s0 + $0x84] sm:$0xff]
  %v38 = vld [vmem:[%s0 + $0x8c] sm:$0xf]
  %v39 = vld [vmem:[%s0 + $0x90] sm:$0xff]
  %v40 = vld [vmem:[%s0 + $0x98] sm:$0xf]
  %v41 = vld [vmem:[%s0 + $0x9c] sm:$0xff]
  %v42 = vld [vmem:[%s0 + $0xa4] sm:$0xf]
  %v43 = vld [vmem:[%s0 + $0xa8] sm:$0xff]
  %v44 = vld [vmem:[%s0 + $0xb0] sm:$0xf]
  %v45 = vld [vmem:[%s0 + $0xb4] sm:$0xff]
  %v46 = vld [vmem:[%s0 + $0xbc] sm:$0xf]
  %v47 = vld [vmem:[%s0 + $0xc0] sm:$0xff]
  %v48 = vld [vmem:[%s0 + $0xc8] sm:$0xf]
  %v49 = vld [vmem:[%s0 + $0xcc] sm:$0xff]
  %v50 = vld [vmem:[%s0 + $0xd4] sm:$0xf]
  %v51 = vld [vmem:[%s0 + $0xd8] sm:$0xff]
  %v52 = vld [vmem:[%s0 + $0xe0] sm:$0xf]
  %v53 = vld [vmem:[%s0 + $0xe4] sm:$0xff]
  %v54 = vld [vmem:[%s0 + $0xec] sm:$0xf]
  %v55 = vld [vmem:[%s0 + $0xf0] sm:$0xff]
  %v56 = vld [vmem:[%s0 + $0xf8] sm:$0xf]
  %v57 = vld [vmem:[%s0 + $0xfc] sm:$0xff]
  %v58 = vld [vmem:[%s0 + $0x104] sm:$0xf]
  %v59 = vld [vmem:[%s0 + $0x108] sm:$0xff]
  %v60 = vld [vmem:[%s0 + $0x110] sm:$0xf]
  %v61 = vld [vmem:[%s0 + $0x114] sm:$0xff]
  %v62 = vld [vmem:[%s0 + $0x11c] sm:$0xf]
  %v63 = vld [vmem:[%s0 + $0x120] sm:$0xff]
  %v64 = vld [vmem:[%s0 + $0x128] sm:$0xf]
  %v65 = vld [vmem:[%s0 + $0x12c] sm:$0xff]
  %v66 = vld [vmem:[%s0 + $0x134] sm:$0xf]
  %v67 = vld [vmem:[%s0 + $0x138] sm:$0xff]
  %v68 = vld [vmem:[%s0 + $0x140] sm:$0xf]
  %v69 = vld [vmem:[%s0 + $0x144] sm:$0xff]
  %v70 = vld [vmem:[%s0 + $0x14c] sm:$0xf]
  %v71 = vld [vmem:[%s0 + $0x150] sm:$0xff]
  %v72 = vld [vmem:[%s0 + $0x158] sm:$0xf]
  %v73 = vld [vmem:[%s0 + $0x15c] sm:$0xff]
  %v74 = vld [vmem:[%s0 + $0x164] sm:$0xf]
  %v75 = vld [vmem:[%s0 + $0x168] sm:$0xff]
  %v76 = vld [vmem:[%s0 + $0x170] sm:$0xf]
  %v77 = vld [vmem:[%s0 + $0x174] sm:$0xff]
  %v78 = vld [vmem:[%s0 + $0x17c] sm:$0xf]
  %v79 = vld [vmem:[%s0 + $0x180] sm:$0xff]
  %v80 = vld [vmem:[%s0 + $0x188] sm:$0xf]
  %v81 = vld [vmem:[%s0 + $0x18c] sm:$0xff]
  %v82 = vld [vmem:[%s0 + $0x194] sm:$0xf]
  %v83 = vld [vmem:[%s0 + $0x198] sm:$0xff]
  %v84 = vld [vmem:[%s0 + $0x1a0] sm:$0xf]
  %v85 = vld [vmem:[%s0 + $0x1a4] sm:$0xff]
  %v86 = vld [vmem:[%s0 + $0x1ac] sm:$0xf]
  %v87 = vld [vmem:[%s0 + $0x1b0] sm:$0xff]
  %v88 = vld [vmem:[%s0 + $0x1b8] sm:$0xf]
  %v89 = vld [vmem:[%s0 + $0x1bc] sm:$0xff]
  %v90 = vld [vmem:[%s0 + $0x1c4] sm:$0xf]
  %v91 = vld [vmem:[%s0 + $0x1c8] sm:$0xff]
  %v92 = vld [vmem:[%s0 + $0x1d0] sm:$0xf]
  %v93 = vld [vmem:[%s0 + $0x1d4] sm:$0xff]
  %v94 = vld [vmem:[%s0 + $0x1dc] sm:$0xf]
  %v95 = vld [vmem:[%s0 + $0x1e0] sm:$0xff]
  %v96 = vld [vmem:[%s0 + $0x1e8] sm:$0xf]
  %v97 = vld [vmem:[%s0 + $0x1ec] sm:$0xff]
  %v98 = vld [vmem:[%s0 + $0x1f4] sm:$0xf]
  %v99 = vld [vmem:[%s0 + $0x1f8] sm:$0xff]
  %v100 = vld [vmem:[%s0 + $0x200] sm:$0xf]
  %v101 = vld [vmem:[%s0 + $0x204] sm:$0xff]
  %v102 = vld [vmem:[%s0 + $0x20c] sm:$0xf]
  %v103 = vld [vmem:[%s0 + $0x210] sm:$0xff]
  %v104 = vld [vmem:[%s0 + $0x218] sm:$0xf]
  %v105 = vld [vmem:[%s0 + $0x21c] sm:$0xff]
  %v106 = vld [vmem:[%s0 + $0x224] sm:$0xf]
  %v107 = vld [vmem:[%s0 + $0x228] sm:$0xff]
  %v108 = vld [vmem:[%s0 + $0x230] sm:$0xf]
  %v109 = vld [vmem:[%s0 + $0x234] sm:$0xff]
  %v110 = vld [vmem:[%s0 + $0x23c] sm:$0xf]
  %v111 = vld [vmem:[%s0 + $0x240] sm:$0xff]
  %v112 = vld [vmem:[%s0 + $0x248] sm:$0xf]
  %v113 = vld [vmem:[%s0 + $0x24c] sm:$0xff]
  %v114 = vld [vmem:[%s0 + $0x254] sm:$0xf]
  %v115 = vld [vmem:[%s0 + $0x258] sm:$0xff]
  %v116 = vld [vmem:[%s0 + $0x260] sm:$0xf]
  %v117 = vld [vmem:[%s0 + $0x264] sm:$0xff]
  %v118 = vld [vmem:[%s0 + $0x26c] sm:$0xf]
  %v119 = vld [vmem:[%s0 + $0x270] sm:$0xff]
  %v120 = vld [vmem:[%s0 + $0x278] sm:$0xf]
  %v121 = vld [vmem:[%s0 + $0x27c] sm:$0xff]
  %v122 = vld [vmem:[%s0 + $0x284] sm:$0xf]
  %v123 = vld [vmem:[%s0 + $0x288] sm:$0xff]
  %v124 = vld [vmem:[%s0 + $0x290] sm:$0xf]
  %v125 = vld [vmem:[%s0 + $0x294] sm:$0xff]
  %v126 = vld [vmem:[%s0 + $0x29c] sm:$0xf]
  %v127 = vld [vmem:[%s0 + $0x2a0] sm:$0xff]
  %v128 = vld [vmem:[%s0 + $0x2a8] sm:$0xf]
  %v129 = vld [vmem:[%s0 + $0x2ac] sm:$0xff]
  %v130 = vld [vmem:[%s0 + $0x2b4] sm:$0xf]
  %v131 = vld [vmem:[%s0 + $0x2b8] sm:$0xff]
  %v132 = vld [vmem:[%s0 + $0x2c0] sm:$0xf]
  %v133 = vld [vmem:[%s0 + $0x2c4] sm:$0xff]
  %v134 = vld [vmem:[%s0 + $0x2cc] sm:$0xf]
  %v135 = vld [vmem:[%s0 + $0x2d0] sm:$0xff]
  %v136 = vld [vmem:[%s0 + $0x2d8] sm:$0xf]
  %v137 = vld [vmem:[%s0 + $0x2dc] sm:$0xff]
  %v138 = vld [vmem:[%s0 + $0x2e4] sm:$0xf]
  %v139 = vld [vmem:[%s0 + $0x2e8] sm:$0xff]
  %v140 = vld [vmem:[%s0 + $0x2f0] sm:$0xf]
  %v141 = vld [vmem:[%s0 + $0x2f4] sm:$0xff]
  %v142 = vld [vmem:[%s0 + $0x2fc] sm:$0xf]
  %v143 = vld [vmem:[%s0 + $0x300] sm:$0xff]
  %v144 = vld [vmem:[%s0 + $0x308] sm:$0xf]
  %v145 = vld [vmem:[%s0 + $0x30c] sm:$0xff]
  %v146 = vld [vmem:[%s0 + $0x314] sm:$0xf]
  %v147 = vld [vmem:[%s0 + $0x318] sm:$0xff]
  %v148 = vld [vmem:[%s0 + $0x320] sm:$0xf]
  %v149 = vld [vmem:[%s0 + $0x324] sm:$0xff]
  %v150 = vld [vmem:[%s0 + $0x32c] sm:$0xf]
  %v151 = vld [vmem:[%s0 + $0x330] sm:$0xff]
  %v152 = vld [vmem:[%s0 + $0x338] sm:$0xf]
  %v153 = vld [vmem:[%s0 + $0x33c] sm:$0xff]
  %v154 = vld [vmem:[%s0 + $0x344] sm:$0xf]
  %v155 = vld [vmem:[%s0 + $0x348] sm:$0xff]
  %v156 = vld [vmem:[%s0 + $0x350] sm:$0xf]
  %v157 = vld [vmem:[%s0 + $0x354] sm:$0xff]
  %v158 = vld [vmem:[%s0 + $0x35c] sm:$0xf]
  %v159 = vld [vmem:[%s0 + $0x360] sm:$0xff]
  %v160 = vld [vmem:[%s0 + $0x368] sm:$0xf]
  %v161 = vld [vmem:[%s0 + $0x36c] sm:$0xff]
  %v162 = vld [vmem:[%s0 + $0x374] sm:$0xf]
  %v163 = vld [vmem:[%s0 + $0x378] sm:$0xff]
  %v164 = vld [vmem:[%s0 + $0x380] sm:$0xf]
  %v165 = vld [vmem:[%s0 + $0x384] sm:$0xff]
  %v166 = vld [vmem:[%s0 + $0x38c] sm:$0xf]
  %v167 = vld [vmem:[%s0 + $0x390] sm:$0xff]
  %v168 = vld [vmem:[%s0 + $0x398] sm:$0xf]
  %v169 = vld [vmem:[%s0 + $0x39c] sm:$0xff]
  %v170 = vld [vmem:[%s0 + $0x3a4] sm:$0xf]
  %v171 = vld [vmem:[%s0 + $0x3a8] sm:$0xff]
  %v172 = vld [vmem:[%s0 + $0x3b0] sm:$0xf]
  %v173 = vld [vmem:[%s0 + $0x3b4] sm:$0xff]
  %v174 = vld [vmem:[%s0 + $0x3bc] sm:$0xf]
  %v175 = vld [vmem:[%s0 + $0x3c0] sm:$0xff]
  %v176 = vld [vmem:[%s0 + $0x3c8] sm:$0xf]
  %v177 = vld [vmem:[%s0 + $0x3cc] sm:$0xff]
  %v178 = vld [vmem:[%s0 + $0x3d4] sm:$0xf]
  %v179 = vld [vmem:[%s0 + $0x3d8] sm:$0xff]
  %v180 = vld [vmem:[%s0 + $0x3e0] sm:$0xf]
  %v181 = vld [vmem:[%s0 + $0x3e4] sm:$0xff]
  %v182 = vld [vmem:[%s0 + $0x3ec] sm:$0xf]
  %v183 = vld [vmem:[%s0 + $0x3f0] sm:$0xff]
  %v184 = vld [vmem:[%s0 + $0x3f8] sm:$0xf]
  %v185 = vld [vmem:[%s0 + $0x3fc] sm:$0xff]
  %v186 = vld [vmem:[%s0 + $0x404] sm:$0xf]
  %v187 = vld [vmem:[%s0 + $0x408] sm:$0xff]
  %v188 = vld [vmem:[%s0 + $0x410] sm:$0xf]
  %v189 = vld [vmem:[%s0 + $0x414] sm:$0xff]
  %v190 = vld [vmem:[%s0 + $0x41c] sm:$0xf]
  %v191 = vld [vmem:[%s0 + $0x420] sm:$0xff]
  %v192 = vld [vmem:[%s0 + $0x428] sm:$0xf]
  %v193 = vld [vmem:[%s0 + $0x42c] sm:$0xff]
  %v194 = vld [vmem:[%s0 + $0x434] sm:$0xf]
  %v195 = vld [vmem:[%s0 + $0x438] sm:$0xff]
  %v196 = vld [vmem:[%s0 + $0x440] sm:$0xf]
  %v197 = vld [vmem:[%s0 + $0x444] sm:$0xff]
  %v198 = vld [vmem:[%s0 + $0x44c] sm:$0xf]
  %v199 = vld [vmem:[%s0 + $0x450] sm:$0xff]
  %v200 = vld [vmem:[%s0 + $0x458] sm:$0xf]
  %v201 = vld [vmem:[%s0 + $0x45c] sm:$0xff]
  %v202 = vld [vmem:[%s0 + $0x464] sm:$0xf]
  %v203 = vld [vmem:[%s0 + $0x468] sm:$0xff]
  %v204 = vld [vmem:[%s0 + $0x470] sm:$0xf]
  %v205 = vld [vmem:[%s0 + $0x474] sm:$0xff]
  %v206 = vld [vmem:[%s0 + $0x47c] sm:$0xf]
  %v207 = vld [vmem:[%s0 + $0x480] sm:$0xff]
  %v208 = vld [vmem:[%s0 + $0x488] sm:$0xf]
  %v209 = vld [vmem:[%s0 + $0x48c] sm:$0xff]
  %v210 = vld [vmem:[%s0 + $0x494] sm:$0xf]
  %v211 = vld [vmem:[%s0 + $0x498] sm:$0xff]
  %v212 = vld [vmem:[%s0 + $0x4a0] sm:$0xf]
  %v213 = vld [vmem:[%s0 + $0x4a4] sm:$0xff]
  %v214 = vld [vmem:[%s0 + $0x4ac] sm:$0xf]
  %v215 = vld [vmem:[%s0 + $0x4b0] sm:$0xff]
  %v216 = vld [vmem:[%s0 + $0x4b8] sm:$0xf]
  %v217 = vld [vmem:[%s0 + $0x4bc] sm:$0xff]
  %v218 = vld [vmem:[%s0 + $0x4c4] sm:$0xf]
  %v219 = vld [vmem:[%s0 + $0x4c8] sm:$0xff]
  %v220 = vld [vmem:[%s0 + $0x4d0] sm:$0xf]
  %v221 = vld [vmem:[%s0 + $0x4d4] sm:$0xff]
  %v222 = vld [vmem:[%s0 + $0x4dc] sm:$0xf]
  %v223 = vld [vmem:[%s0 + $0x4e0] sm:$0xff]
  %v224 = vld [vmem:[%s0 + $0x4e8] sm:$0xf]
  %v225 = vld [vmem:[%s0 + $0x4ec] sm:$0xff]
  %v226 = vld [vmem:[%s0 + $0x4f4] sm:$0xf]
  %v227 = vld [vmem:[%s0 + $0x4f8] sm:$0xff]
  %v228 = vld [vmem:[%s0 + $0x500] sm:$0xf]
  %v229 = vld [vmem:[%s0 + $0x504] sm:$0xff]
  %v230 = vld [vmem:[%s0 + $0x50c] sm:$0xf]
  %v231 = vld [vmem:[%s0 + $0x510] sm:$0xff]
  %v232 = vld [vmem:[%s0 + $0x518] sm:$0xf]
  %v233 = vld [vmem:[%s0 + $0x51c] sm:$0xff]
  %v234 = vld [vmem:[%s0 + $0x524] sm:$0xf]
  %v235 = vld [vmem:[%s0 + $0x528] sm:$0xff]
  %v236 = vld [vmem:[%s0 + $0x530] sm:$0xf]
  %v237 = vld [vmem:[%s0 + $0x534] sm:$0xff]
  %v238 = vld [vmem:[%s0 + $0x53c] sm:$0xf]
  %v239 = vld [vmem:[%s0 + $0x540] sm:$0xff]
  %v240 = vld [vmem:[%s0 + $0x548] sm:$0xf]
  %v241 = vld [vmem:[%s0 + $0x54c] sm:$0xff]
  %v242 = vld [vmem:[%s0 + $0x554] sm:$0xf]
  %v243 = vld [vmem:[%s0 + $0x558] sm:$0xff]
  %v244 = vld [vmem:[%s0 + $0x560] sm:$0xf]
  %v245 = vld [vmem:[%s0 + $0x564] sm:$0xff]
  %v246 = vld [vmem:[%s0 + $0x56c] sm:$0xf]
  %v247 = vld [vmem:[%s0 + $0x570] sm:$0xff]
  %v248 = vld [vmem:[%s0 + $0x578] sm:$0xf]
  %v249 = vld [vmem:[%s0 + $0x57c] sm:$0xff]
  %v250 = vld [vmem:[%s0 + $0x584] sm:$0xf]
  %v251 = vld [vmem:[%s0 + $0x588] sm:$0xff]
  %v252 = vld [vmem:[%s0 + $0x590] sm:$0xf]
  %v253 = vld [vmem:[%s0 + $0x594] sm:$0xff]
  %v254 = vld [vmem:[%s0 + $0x59c] sm:$0xf]
  %v255 = vld [vmem:[%s0 + $0x5a0] sm:$0xff]
  %v256 = vld [vmem:[%s0 + $0x5a8] sm:$0xf]
  %v257 = vld [vmem:[%s0 + $0x5ac] sm:$0xff]
  %v258 = vld [vmem:[%s0 + $0x5b4] sm:$0xf]
  %v259 = vld [vmem:[%s0 + $0x5b8] sm:$0xff]
  %v260 = vld [vmem:[%s0 + $0x5c0] sm:$0xf]
  %v261 = vld [vmem:[%s0 + $0x5c4] sm:$0xff]
  %v262 = vld [vmem:[%s0 + $0x5cc] sm:$0xf]
  %v263 = vld [vmem:[%s0 + $0x5d0] sm:$0xff]
  %v264 = vld [vmem:[%s0 + $0x5d8] sm:$0xf]
  %v265 = vld [vmem:[%s0 + $0x5dc] sm:$0xff]
  %v266 = vld [vmem:[%s0 + $0x5e4] sm:$0xf]
  %v267 = vld [vmem:[%s0 + $0x5e8] sm:$0xff]
  %v268 = vld [vmem:[%s0 + $0x5f0] sm:$0xf]
  %v269 = vld [vmem:[%s0 + $0x5f4] sm:$0xff]
  %v270 = vld [vmem:[%s0 + $0x5fc] sm:$0xf]
  %v271 = vld [vmem:[%s1] sm:$0xf]
  %v272 = vld [vmem:[%s1 + $0x4] sm:$0xf]
  %v273 = vld [vmem:[%s1 + $0x8] sm:$0xf]
  %v274 = vld [vmem:[%s1 + $0xc] sm:$0xf]
  %v275 = vld [vmem:[%s1 + $0x10] sm:$0xf]
  %v276 = vld [vmem:[%s1 + $0x14] sm:$0xf]
  %v277 = vld [vmem:[%s1 + $0x18] sm:$0xf]
  %v278 = vld [vmem:[%s1 + $0x1c] sm:$0xf]
  %v279 = vld [vmem:[%s1 + $0x20] sm:$0xf]
  %v280 = vld [vmem:[%s1 + $0x24] sm:$0xf]
  %v281 = vld [vmem:[%s1 + $0x28] sm:$0xf]
  %v282 = vld [vmem:[%s1 + $0x2c] sm:$0xf]
  %v283 = vld [vmem:[%s1 + $0x30] sm:$0xf]
  %v284 = vld [vmem:[%s1 + $0x34] sm:$0xf]
  %v285 = vld [vmem:[%s1 + $0x38] sm:$0xf]
  %v286 = vld [vmem:[%s1 + $0x3c] sm:$0xf]
  %v287 = vld [vmem:[%s1 + $0x40] sm:$0xf]
  %v288 = vld [vmem:[%s1 + $0x44] sm:$0xf]
  %v289 = vld [vmem:[%s1 + $0x48] sm:$0xf]
  %v290 = vld [vmem:[%s1 + $0x4c] sm:$0xf]
  %v291 = vld [vmem:[%s1 + $0x50] sm:$0xf]
  %v292 = vld [vmem:[%s1 + $0x54] sm:$0xf]
  %v293 = vld [vmem:[%s1 + $0x58] sm:$0xf]
  %v294 = vld [vmem:[%s1 + $0x5c] sm:$0xf]
  %v295 = vld [vmem:[%s1 + $0x60] sm:$0xf]
  %v296 = vld [vmem:[%s1 + $0x64] sm:$0xf]
  %v297 = vld [vmem:[%s1 + $0x68] sm:$0xf]
  %v298 = vld [vmem:[%s1 + $0x6c] sm:$0xf]
  %v299 = vld [vmem:[%s1 + $0x70] sm:$0xf]
  %v300 = vld [vmem:[%s1 + $0x74] sm:$0xf]
  %v301 = vld [vmem:[%s1 + $0x78] sm:$0xf]
  %v302 = vld [vmem:[%s1 + $0x7c] sm:$0xf]
  %v303 = vld [vmem:[%s1 + $0x80] sm:$0xf]
  %v304 = vld [vmem:[%s1 + $0x84] sm:$0xf]
  %v305 = vld [vmem:[%s1 + $0x88] sm:$0xf]
  %v306 = vld [vmem:[%s1 + $0x8c] sm:$0xf]
  %v307 = vld [vmem:[%s2] sm:$0x1]
  %v309 = vlaneseq
  %v310 = vshrl.u32 %v309, 7
  %v311 = vsub.s32 0, %v310
  %v312 = vrot.slane %v307, %v311
  %v570 = vunpack.c.l.b16 %v15
  %v571 = vunpack.c.h.b16 %v15
  %v572 = vunpack.c.l.b16 %v16
  %v573 = vunpack.c.l.b16 %v17
  %v574 = vunpack.c.h.b16 %v17
  %v575 = vunpack.c.l.b16 %v18
  %v576 = vunpack.c.l.b16 %v19
  %v577 = vunpack.c.h.b16 %v19
  %v578 = vunpack.c.l.b16 %v20
  %v579 = vunpack.c.l.b16 %v21
  %v580 = vunpack.c.h.b16 %v21
  %v581 = vunpack.c.l.b16 %v22
  %v582 = vunpack.c.l.b16 %v23
  %v583 = vunpack.c.h.b16 %v23
  %v584 = vunpack.c.l.b16 %v24
  %v585 = vunpack.c.l.b16 %v25
  %v586 = vunpack.c.h.b16 %v25
  %v587 = vunpack.c.l.b16 %v26
  %v588 = vunpack.c.l.b16 %v27
  %v589 = vunpack.c.h.b16 %v27
  %v590 = vunpack.c.l.b16 %v28
  %v591 = vunpack.c.l.b16 %v29
  %v592 = vunpack.c.h.b16 %v29
  %v593 = vunpack.c.l.b16 %v30
  %v594 = vunpack.c.l.b16 %v31
  %v595 = vunpack.c.h.b16 %v31
  %v596 = vunpack.c.l.b16 %v32
  %v597 = vunpack.c.l.b16 %v33
  %v598 = vunpack.c.h.b16 %v33
  %v599 = vunpack.c.l.b16 %v34
  %v600 = vunpack.c.l.b16 %v35
  %v601 = vunpack.c.h.b16 %v35
  %v602 = vunpack.c.l.b16 %v36
  %v603 = vunpack.c.l.b16 %v37
  %v604 = vunpack.c.h.b16 %v37
  %v605 = vunpack.c.l.b16 %v38
  %v606 = vunpack.c.l.b16 %v39
  %v607 = vunpack.c.h.b16 %v39
  %v608 = vunpack.c.l.b16 %v40
  %v609 = vunpack.c.l.b16 %v41
  %v610 = vunpack.c.h.b16 %v41
  %v611 = vunpack.c.l.b16 %v42
  %v612 = vunpack.c.l.b16 %v43
  %v613 = vunpack.c.h.b16 %v43
  %v614 = vunpack.c.l.b16 %v44
  %v615 = vunpack.c.l.b16 %v45
  %v616 = vunpack.c.h.b16 %v45
  %v617 = vunpack.c.l.b16 %v46
  %v618 = vunpack.c.l.b16 %v47
  %v619 = vunpack.c.h.b16 %v47
  %v620 = vunpack.c.l.b16 %v48
  %v621 = vunpack.c.l.b16 %v49
  %v622 = vunpack.c.h.b16 %v49
  %v623 = vunpack.c.l.b16 %v50
  %v624 = vunpack.c.l.b16 %v51
  %v625 = vunpack.c.h.b16 %v51
  %v626 = vunpack.c.l.b16 %v52
  %v627 = vunpack.c.l.b16 %v53
  %v628 = vunpack.c.h.b16 %v53
  %v629 = vunpack.c.l.b16 %v54
  %v630 = vunpack.c.l.b16 %v55
  %v631 = vunpack.c.h.b16 %v55
  %v632 = vunpack.c.l.b16 %v56
  %v633 = vunpack.c.l.b16 %v57
  %v634 = vunpack.c.h.b16 %v57
  %v635 = vunpack.c.l.b16 %v58
  %v636 = vunpack.c.l.b16 %v59
  %v637 = vunpack.c.h.b16 %v59
  %v638 = vunpack.c.l.b16 %v60
  %v639 = vunpack.c.l.b16 %v61
  %v640 = vunpack.c.h.b16 %v61
  %v641 = vunpack.c.l.b16 %v62
  %v642 = vunpack.c.l.b16 %v63
  %v643 = vunpack.c.h.b16 %v63
  %v644 = vunpack.c.l.b16 %v64
  %v645 = vunpack.c.l.b16 %v65
  %v646 = vunpack.c.h.b16 %v65
  %v647 = vunpack.c.l.b16 %v66
  %v648 = vunpack.c.l.b16 %v67
  %v649 = vunpack.c.h.b16 %v67
  %v650 = vunpack.c.l.b16 %v68
  %v651 = vunpack.c.l.b16 %v69
  %v652 = vunpack.c.h.b16 %v69
  %v653 = vunpack.c.l.b16 %v70
  %v654 = vunpack.c.l.b16 %v71
  %v655 = vunpack.c.h.b16 %v71
  %v656 = vunpack.c.l.b16 %v72
  %v657 = vunpack.c.l.b16 %v73
  %v658 = vunpack.c.h.b16 %v73
  %v659 = vunpack.c.l.b16 %v74
  %v660 = vunpack.c.l.b16 %v75
  %v661 = vunpack.c.h.b16 %v75
  %v662 = vunpack.c.l.b16 %v76
  %v663 = vunpack.c.l.b16 %v77
  %v664 = vunpack.c.h.b16 %v77
  %v665 = vunpack.c.l.b16 %v78
  %v666 = vunpack.c.l.b16 %v79
  %v667 = vunpack.c.h.b16 %v79
  %v668 = vunpack.c.l.b16 %v80
  %v669 = vunpack.c.l.b16 %v81
  %v670 = vunpack.c.h.b16 %v81
  %v671 = vunpack.c.l.b16 %v82
  %v672 = vunpack.c.l.b16 %v83
  %v673 = vunpack.c.h.b16 %v83
  %v674 = vunpack.c.l.b16 %v84
  %v675 = vunpack.c.l.b16 %v85
  %v676 = vunpack.c.h.b16 %v85
  %v677 = vunpack.c.l.b16 %v86
  %v678 = vunpack.c.l.b16 %v87
  %v679 = vunpack.c.h.b16 %v87
  %v680 = vunpack.c.l.b16 %v88
  %v681 = vunpack.c.l.b16 %v89
  %v682 = vunpack.c.h.b16 %v89
  %v683 = vunpack.c.l.b16 %v90
  %v684 = vunpack.c.l.b16 %v91
  %v685 = vunpack.c.h.b16 %v91
  %v686 = vunpack.c.l.b16 %v92
  %v687 = vunpack.c.l.b16 %v93
  %v688 = vunpack.c.h.b16 %v93
  %v689 = vunpack.c.l.b16 %v94
  %v690 = vunpack.c.l.b16 %v95
  %v691 = vunpack.c.h.b16 %v95
  %v692 = vunpack.c.l.b16 %v96
  %v693 = vunpack.c.l.b16 %v97
  %v694 = vunpack.c.h.b16 %v97
  %v695 = vunpack.c.l.b16 %v98
  %v696 = vunpack.c.l.b16 %v99
  %v697 = vunpack.c.h.b16 %v99
  %v698 = vunpack.c.l.b16 %v100
  %v699 = vunpack.c.l.b16 %v101
  %v700 = vunpack.c.h.b16 %v101
  %v701 = vunpack.c.l.b16 %v102
  %v702 = vunpack.c.l.b16 %v103
  %v703 = vunpack.c.h.b16 %v103
  %v704 = vunpack.c.l.b16 %v104
  %v705 = vunpack.c.l.b16 %v105
  %v706 = vunpack.c.h.b16 %v105
  %v707 = vunpack.c.l.b16 %v106
  %v708 = vunpack.c.l.b16 %v107
  %v709 = vunpack.c.h.b16 %v107
  %v710 = vunpack.c.l.b16 %v108
  %v711 = vunpack.c.l.b16 %v109
  %v712 = vunpack.c.h.b16 %v109
  %v713 = vunpack.c.l.b16 %v110
  %v714 = vunpack.c.l.b16 %v111
  %v715 = vunpack.c.h.b16 %v111
  %v716 = vunpack.c.l.b16 %v112
  %v717 = vunpack.c.l.b16 %v113
  %v718 = vunpack.c.h.b16 %v113
  %v719 = vunpack.c.l.b16 %v114
  %v720 = vunpack.c.l.b16 %v115
  %v721 = vunpack.c.h.b16 %v115
  %v722 = vunpack.c.l.b16 %v116
  %v723 = vunpack.c.l.b16 %v117
  %v724 = vunpack.c.h.b16 %v117
  %v725 = vunpack.c.l.b16 %v118
  %v726 = vunpack.c.l.b16 %v119
  %v727 = vunpack.c.h.b16 %v119
  %v728 = vunpack.c.l.b16 %v120
  %v729 = vunpack.c.l.b16 %v121
  %v730 = vunpack.c.h.b16 %v121
  %v731 = vunpack.c.l.b16 %v122
  %v732 = vunpack.c.l.b16 %v123
  %v733 = vunpack.c.h.b16 %v123
  %v734 = vunpack.c.l.b16 %v124
  %v735 = vunpack.c.l.b16 %v125
  %v736 = vunpack.c.h.b16 %v125
  %v737 = vunpack.c.l.b16 %v126
  %v738 = vunpack.c.l.b16 %v127
  %v739 = vunpack.c.h.b16 %v127
  %v740 = vunpack.c.l.b16 %v128
  %v741 = vunpack.c.l.b16 %v129
  %v742 = vunpack.c.h.b16 %v129
  %v743 = vunpack.c.l.b16 %v130
  %v744 = vunpack.c.l.b16 %v131
  %v745 = vunpack.c.h.b16 %v131
  %v746 = vunpack.c.l.b16 %v132
  %v747 = vunpack.c.l.b16 %v133
  %v748 = vunpack.c.h.b16 %v133
  %v749 = vunpack.c.l.b16 %v134
  %v750 = vunpack.c.l.b16 %v135
  %v751 = vunpack.c.h.b16 %v135
  %v752 = vunpack.c.l.b16 %v136
  %v753 = vunpack.c.l.b16 %v137
  %v754 = vunpack.c.h.b16 %v137
  %v755 = vunpack.c.l.b16 %v138
  %v756 = vunpack.c.l.b16 %v139
  %v757 = vunpack.c.h.b16 %v139
  %v758 = vunpack.c.l.b16 %v140
  %v759 = vunpack.c.l.b16 %v141
  %v760 = vunpack.c.h.b16 %v141
  %v761 = vunpack.c.l.b16 %v142
  %v762 = vunpack.c.l.b16 %v143
  %v763 = vunpack.c.h.b16 %v143
  %v764 = vunpack.c.l.b16 %v144
  %v765 = vunpack.c.l.b16 %v145
  %v766 = vunpack.c.h.b16 %v145
  %v767 = vunpack.c.l.b16 %v146
  %v768 = vunpack.c.l.b16 %v147
  %v769 = vunpack.c.h.b16 %v147
  %v770 = vunpack.c.l.b16 %v148
  %v771 = vunpack.c.l.b16 %v149
  %v772 = vunpack.c.h.b16 %v149
  %v773 = vunpack.c.l.b16 %v150
  %v774 = vunpack.c.l.b16 %v151
  %v775 = vunpack.c.h.b16 %v151
  %v776 = vunpack.c.l.b16 %v152
  %v777 = vunpack.c.l.b16 %v153
  %v778 = vunpack.c.h.b16 %v153
  %v779 = vunpack.c.l.b16 %v154
  %v780 = vunpack.c.l.b16 %v155
  %v781 = vunpack.c.h.b16 %v155
  %v782 = vunpack.c.l.b16 %v156
  %v783 = vunpack.c.l.b16 %v157
  %v784 = vunpack.c.h.b16 %v157
  %v785 = vunpack.c.l.b16 %v158
  %v786 = vunpack.c.l.b16 %v159
  %v787 = vunpack.c.h.b16 %v159
  %v788 = vunpack.c.l.b16 %v160
  %v789 = vunpack.c.l.b16 %v161
  %v790 = vunpack.c.h.b16 %v161
  %v791 = vunpack.c.l.b16 %v162
  %v792 = vunpack.c.l.b16 %v163
  %v793 = vunpack.c.h.b16 %v163
  %v794 = vunpack.c.l.b16 %v164
  %v795 = vunpack.c.l.b16 %v165
  %v796 = vunpack.c.h.b16 %v165
  %v797 = vunpack.c.l.b16 %v166
  %v798 = vunpack.c.l.b16 %v167
  %v799 = vunpack.c.h.b16 %v167
  %v800 = vunpack.c.l.b16 %v168
  %v801 = vunpack.c.l.b16 %v169
  %v802 = vunpack.c.h.b16 %v169
  %v803 = vunpack.c.l.b16 %v170
  %v804 = vunpack.c.l.b16 %v171
  %v805 = vunpack.c.h.b16 %v171
  %v806 = vunpack.c.l.b16 %v172
  %v807 = vunpack.c.l.b16 %v173
  %v808 = vunpack.c.h.b16 %v173
  %v809 = vunpack.c.l.b16 %v174
  %v810 = vunpack.c.l.b16 %v175
  %v811 = vunpack.c.h.b16 %v175
  %v812 = vunpack.c.l.b16 %v176
  %v813 = vunpack.c.l.b16 %v177
  %v814 = vunpack.c.h.b16 %v177
  %v815 = vunpack.c.l.b16 %v178
  %v816 = vunpack.c.l.b16 %v179
  %v817 = vunpack.c.h.b16 %v179
  %v818 = vunpack.c.l.b16 %v180
  %v819 = vunpack.c.l.b16 %v181
  %v820 = vunpack.c.h.b16 %v181
  %v821 = vunpack.c.l.b16 %v182
  %v822 = vunpack.c.l.b16 %v183
  %v823 = vunpack.c.h.b16 %v183
  %v824 = vunpack.c.l.b16 %v184
  %v825 = vunpack.c.l.b16 %v185
  %v826 = vunpack.c.h.b16 %v185
  %v827 = vunpack.c.l.b16 %v186
  %v828 = vunpack.c.l.b16 %v187
  %v829 = vunpack.c.h.b16 %v187
  %v830 = vunpack.c.l.b16 %v188
  %v831 = vunpack.c.l.b16 %v189
  %v832 = vunpack.c.h.b16 %v189
  %v833 = vunpack.c.l.b16 %v190
  %v834 = vunpack.c.l.b16 %v191
  %v835 = vunpack.c.h.b16 %v191
  %v836 = vunpack.c.l.b16 %v192
  %v837 = vunpack.c.l.b16 %v193
  %v838 = vunpack.c.h.b16 %v193
  %v839 = vunpack.c.l.b16 %v194
  %v840 = vunpack.c.l.b16 %v195
  %v841 = vunpack.c.h.b16 %v195
  %v842 = vunpack.c.l.b16 %v196
  %v843 = vunpack.c.l.b16 %v197
  %v844 = vunpack.c.h.b16 %v197
  %v845 = vunpack.c.l.b16 %v198
  %v846 = vunpack.c.l.b16 %v199
  %v847 = vunpack.c.h.b16 %v199
  %v848 = vunpack.c.l.b16 %v200
  %v849 = vunpack.c.l.b16 %v201
  %v850 = vunpack.c.h.b16 %v201
  %v851 = vunpack.c.l.b16 %v202
  %v852 = vunpack.c.l.b16 %v203
  %v853 = vunpack.c.h.b16 %v203
  %v854 = vunpack.c.l.b16 %v204
  %v855 = vunpack.c.l.b16 %v205
  %v856 = vunpack.c.h.b16 %v205
  %v857 = vunpack.c.l.b16 %v206
  %v858 = vunpack.c.l.b16 %v207
  %v859 = vunpack.c.h.b16 %v207
  %v860 = vunpack.c.l.b16 %v208
  %v861 = vunpack.c.l.b16 %v209
  %v862 = vunpack.c.h.b16 %v209
  %v863 = vunpack.c.l.b16 %v210
  %v864 = vunpack.c.l.b16 %v211
  %v865 = vunpack.c.h.b16 %v211
  %v866 = vunpack.c.l.b16 %v212
  %v867 = vunpack.c.l.b16 %v213
  %v868 = vunpack.c.h.b16 %v213
  %v869 = vunpack.c.l.b16 %v214
  %v870 = vunpack.c.l.b16 %v215
  %v871 = vunpack.c.h.b16 %v215
  %v872 = vunpack.c.l.b16 %v216
  %v873 = vunpack.c.l.b16 %v217
  %v874 = vunpack.c.h.b16 %v217
  %v875 = vunpack.c.l.b16 %v218
  %v876 = vunpack.c.l.b16 %v219
  %v877 = vunpack.c.h.b16 %v219
  %v878 = vunpack.c.l.b16 %v220
  %v879 = vunpack.c.l.b16 %v221
  %v880 = vunpack.c.h.b16 %v221
  %v881 = vunpack.c.l.b16 %v222
  %v882 = vunpack.c.l.b16 %v223
  %v883 = vunpack.c.h.b16 %v223
  %v884 = vunpack.c.l.b16 %v224
  %v885 = vunpack.c.l.b16 %v225
  %v886 = vunpack.c.h.b16 %v225
  %v887 = vunpack.c.l.b16 %v226
  %v888 = vunpack.c.l.b16 %v227
  %v889 = vunpack.c.h.b16 %v227
  %v890 = vunpack.c.l.b16 %v228
  %v891 = vunpack.c.l.b16 %v229
  %v892 = vunpack.c.h.b16 %v229
  %v893 = vunpack.c.l.b16 %v230
  %v894 = vunpack.c.l.b16 %v231
  %v895 = vunpack.c.h.b16 %v231
  %v896 = vunpack.c.l.b16 %v232
  %v897 = vunpack.c.l.b16 %v233
  %v898 = vunpack.c.h.b16 %v233
  %v899 = vunpack.c.l.b16 %v234
  %v900 = vunpack.c.l.b16 %v235
  %v901 = vunpack.c.h.b16 %v235
  %v902 = vunpack.c.l.b16 %v236
  %v903 = vunpack.c.l.b16 %v237
  %v904 = vunpack.c.h.b16 %v237
  %v905 = vunpack.c.l.b16 %v238
  %v906 = vunpack.c.l.b16 %v239
  %v907 = vunpack.c.h.b16 %v239
  %v908 = vunpack.c.l.b16 %v240
  %v909 = vunpack.c.l.b16 %v241
  %v910 = vunpack.c.h.b16 %v241
  %v911 = vunpack.c.l.b16 %v242
  %v912 = vunpack.c.l.b16 %v243
  %v913 = vunpack.c.h.b16 %v243
  %v914 = vunpack.c.l.b16 %v244
  %v915 = vunpack.c.l.b16 %v245
  %v916 = vunpack.c.h.b16 %v245
  %v917 = vunpack.c.l.b16 %v246
  %v918 = vunpack.c.l.b16 %v247
  %v919 = vunpack.c.h.b16 %v247
  %v920 = vunpack.c.l.b16 %v248
  %v921 = vunpack.c.l.b16 %v249
  %v922 = vunpack.c.h.b16 %v249
  %v923 = vunpack.c.l.b16 %v250
  %v924 = vunpack.c.l.b16 %v251
  %v925 = vunpack.c.h.b16 %v251
  %v926 = vunpack.c.l.b16 %v252
  %v927 = vunpack.c.l.b16 %v253
  %v928 = vunpack.c.h.b16 %v253
  %v929 = vunpack.c.l.b16 %v254
  %v930 = vunpack.c.l.b16 %v255
  %v931 = vunpack.c.h.b16 %v255
  %v932 = vunpack.c.l.b16 %v256
  %v933 = vunpack.c.l.b16 %v257
  %v934 = vunpack.c.h.b16 %v257
  %v935 = vunpack.c.l.b16 %v258
  %v936 = vunpack.c.l.b16 %v259
  %v937 = vunpack.c.h.b16 %v259
  %v938 = vunpack.c.l.b16 %v260
  %v939 = vunpack.c.l.b16 %v261
  %v940 = vunpack.c.h.b16 %v261
  %v941 = vunpack.c.l.b16 %v262
  %v942 = vunpack.c.l.b16 %v263
  %v943 = vunpack.c.h.b16 %v263
  %v944 = vunpack.c.l.b16 %v264
  %v945 = vunpack.c.l.b16 %v265
  %v946 = vunpack.c.h.b16 %v265
  %v947 = vunpack.c.l.b16 %v266
  %v948 = vunpack.c.l.b16 %v267
  %v949 = vunpack.c.h.b16 %v267
  %v950 = vunpack.c.l.b16 %v268
  %v951 = vunpack.c.l.b16 %v269
  %v952 = vunpack.c.h.b16 %v269
  %v953 = vunpack.c.l.b16 %v270
  %v954 = vpack.c.b16 %v573, %v570
  %v955 = vpack.c.b16 %v574, %v571
  %v956 = vpack.c.b16 %v575, %v572
  %v957 = vpack.c.b16 %v579, %v576
  %v958 = vpack.c.b16 %v580, %v577
  %v959 = vpack.c.b16 %v581, %v578
  %v960 = vpack.c.b16 %v585, %v582
  %v961 = vpack.c.b16 %v586, %v583
  %v962 = vpack.c.b16 %v587, %v584
  %v963 = vpack.c.b16 %v591, %v588
  %v964 = vpack.c.b16 %v592, %v589
  %v965 = vpack.c.b16 %v593, %v590
  %v966 = vpack.c.b16 %v597, %v594
  %v967 = vpack.c.b16 %v598, %v595
  %v968 = vpack.c.b16 %v599, %v596
  %v969 = vpack.c.b16 %v603, %v600
  %v970 = vpack.c.b16 %v604, %v601
  %v971 = vpack.c.b16 %v605, %v602
  %v972 = vpack.c.b16 %v609, %v606
  %v973 = vpack.c.b16 %v610, %v607
  %v974 = vpack.c.b16 %v611, %v608
  %v975 = vpack.c.b16 %v615, %v612
  %v976 = vpack.c.b16 %v616, %v613
  %v977 = vpack.c.b16 %v617, %v614
  %v978 = vpack.c.b16 %v621, %v618
  %v979 = vpack.c.b16 %v622, %v619
  %v980 = vpack.c.b16 %v623, %v620
  %v981 = vpack.c.b16 %v627, %v624
  %v982 = vpack.c.b16 %v628, %v625
  %v983 = vpack.c.b16 %v629, %v626
  %v984 = vpack.c.b16 %v633, %v630
  %v985 = vpack.c.b16 %v634, %v631
  %v986 = vpack.c.b16 %v635, %v632
  %v987 = vpack.c.b16 %v639, %v636
  %v988 = vpack.c.b16 %v640, %v637
  %v989 = vpack.c.b16 %v641, %v638
  %v990 = vpack.c.b16 %v645, %v642
  %v991 = vpack.c.b16 %v646, %v643
  %v992 = vpack.c.b16 %v647, %v644
  %v993 = vpack.c.b16 %v651, %v648
  %v994 = vpack.c.b16 %v652, %v649
  %v995 = vpack.c.b16 %v653, %v650
  %v996 = vpack.c.b16 %v657, %v654
  %v997 = vpack.c.b16 %v658, %v655
  %v998 = vpack.c.b16 %v659, %v656
  %v999 = vpack.c.b16 %v663, %v660
  %v1000 = vpack.c.b16 %v664, %v661
  %v1001 = vpack.c.b16 %v665, %v662
  %v1002 = vpack.c.b16 %v669, %v666
  %v1003 = vpack.c.b16 %v670, %v667
  %v1004 = vpack.c.b16 %v671, %v668
  %v1005 = vpack.c.b16 %v675, %v672
  %v1006 = vpack.c.b16 %v676, %v673
  %v1007 = vpack.c.b16 %v677, %v674
  %v1008 = vpack.c.b16 %v681, %v678
  %v1009 = vpack.c.b16 %v682, %v679
  %v1010 = vpack.c.b16 %v683, %v680
  %v1011 = vpack.c.b16 %v687, %v684
  %v1012 = vpack.c.b16 %v688, %v685
  %v1013 = vpack.c.b16 %v689, %v686
  %v1014 = vpack.c.b16 %v693, %v690
  %v1015 = vpack.c.b16 %v694, %v691
  %v1016 = vpack.c.b16 %v695, %v692
  %v1017 = vpack.c.b16 %v699, %v696
  %v1018 = vpack.c.b16 %v700, %v697
  %v1019 = vpack.c.b16 %v701, %v698
  %v1020 = vpack.c.b16 %v705, %v702
  %v1021 = vpack.c.b16 %v706, %v703
  %v1022 = vpack.c.b16 %v707, %v704
  %v1023 = vpack.c.b16 %v711, %v708
  %v1024 = vpack.c.b16 %v712, %v709
  %v1025 = vpack.c.b16 %v713, %v710
  %v1026 = vpack.c.b16 %v717, %v714
  %v1027 = vpack.c.b16 %v718, %v715
  %v1028 = vpack.c.b16 %v719, %v716
  %v1029 = vpack.c.b16 %v723, %v720
  %v1030 = vpack.c.b16 %v724, %v721
  %v1031 = vpack.c.b16 %v725, %v722
  %v1032 = vpack.c.b16 %v729, %v726
  %v1033 = vpack.c.b16 %v730, %v727
  %v1034 = vpack.c.b16 %v731, %v728
  %v1035 = vpack.c.b16 %v735, %v732
  %v1036 = vpack.c.b16 %v736, %v733
  %v1037 = vpack.c.b16 %v737, %v734
  %v1038 = vpack.c.b16 %v741, %v738
  %v1039 = vpack.c.b16 %v742, %v739
  %v1040 = vpack.c.b16 %v743, %v740
  %v1041 = vpack.c.b16 %v747, %v744
  %v1042 = vpack.c.b16 %v748, %v745
  %v1043 = vpack.c.b16 %v749, %v746
  %v1044 = vpack.c.b16 %v753, %v750
  %v1045 = vpack.c.b16 %v754, %v751
  %v1046 = vpack.c.b16 %v755, %v752
  %v1047 = vpack.c.b16 %v759, %v756
  %v1048 = vpack.c.b16 %v760, %v757
  %v1049 = vpack.c.b16 %v761, %v758
  %v1050 = vpack.c.b16 %v765, %v762
  %v1051 = vpack.c.b16 %v766, %v763
  %v1052 = vpack.c.b16 %v767, %v764
  %v1053 = vpack.c.b16 %v771, %v768
  %v1054 = vpack.c.b16 %v772, %v769
  %v1055 = vpack.c.b16 %v773, %v770
  %v1056 = vpack.c.b16 %v777, %v774
  %v1057 = vpack.c.b16 %v778, %v775
  %v1058 = vpack.c.b16 %v779, %v776
  %v1059 = vpack.c.b16 %v783, %v780
  %v1060 = vpack.c.b16 %v784, %v781
  %v1061 = vpack.c.b16 %v785, %v782
  %v1062 = vpack.c.b16 %v789, %v786
  %v1063 = vpack.c.b16 %v790, %v787
  %v1064 = vpack.c.b16 %v791, %v788
  %v1065 = vpack.c.b16 %v795, %v792
  %v1066 = vpack.c.b16 %v796, %v793
  %v1067 = vpack.c.b16 %v797, %v794
  %v1068 = vpack.c.b16 %v801, %v798
  %v1069 = vpack.c.b16 %v802, %v799
  %v1070 = vpack.c.b16 %v803, %v800
  %v1071 = vpack.c.b16 %v807, %v804
  %v1072 = vpack.c.b16 %v808, %v805
  %v1073 = vpack.c.b16 %v809, %v806
  %v1074 = vpack.c.b16 %v813, %v810
  %v1075 = vpack.c.b16 %v814, %v811
  %v1076 = vpack.c.b16 %v815, %v812
  %v1077 = vpack.c.b16 %v819, %v816
  %v1078 = vpack.c.b16 %v820, %v817
  %v1079 = vpack.c.b16 %v821, %v818
  %v1080 = vpack.c.b16 %v825, %v822
  %v1081 = vpack.c.b16 %v826, %v823
  %v1082 = vpack.c.b16 %v827, %v824
  %v1083 = vpack.c.b16 %v831, %v828
  %v1084 = vpack.c.b16 %v832, %v829
  %v1085 = vpack.c.b16 %v833, %v830
  %v1086 = vpack.c.b16 %v837, %v834
  %v1087 = vpack.c.b16 %v838, %v835
  %v1088 = vpack.c.b16 %v839, %v836
  %v1089 = vpack.c.b16 %v843, %v840
  %v1090 = vpack.c.b16 %v844, %v841
  %v1091 = vpack.c.b16 %v845, %v842
  %v1092 = vpack.c.b16 %v849, %v846
  %v1093 = vpack.c.b16 %v850, %v847
  %v1094 = vpack.c.b16 %v851, %v848
  %v1095 = vpack.c.b16 %v855, %v852
  %v1096 = vpack.c.b16 %v856, %v853
  %v1097 = vpack.c.b16 %v857, %v854
  %v1098 = vpack.c.b16 %v861, %v858
  %v1099 = vpack.c.b16 %v862, %v859
  %v1100 = vpack.c.b16 %v863, %v860
  %v1101 = vpack.c.b16 %v867, %v864
  %v1102 = vpack.c.b16 %v868, %v865
  %v1103 = vpack.c.b16 %v869, %v866
  %v1104 = vpack.c.b16 %v873, %v870
  %v1105 = vpack.c.b16 %v874, %v871
  %v1106 = vpack.c.b16 %v875, %v872
  %v1107 = vpack.c.b16 %v879, %v876
  %v1108 = vpack.c.b16 %v880, %v877
  %v1109 = vpack.c.b16 %v881, %v878
  %v1110 = vpack.c.b16 %v885, %v882
  %v1111 = vpack.c.b16 %v886, %v883
  %v1112 = vpack.c.b16 %v887, %v884
  %v1113 = vpack.c.b16 %v891, %v888
  %v1114 = vpack.c.b16 %v892, %v889
  %v1115 = vpack.c.b16 %v893, %v890
  %v1116 = vpack.c.b16 %v897, %v894
  %v1117 = vpack.c.b16 %v898, %v895
  %v1118 = vpack.c.b16 %v899, %v896
  %v1119 = vpack.c.b16 %v903, %v900
  %v1120 = vpack.c.b16 %v904, %v901
  %v1121 = vpack.c.b16 %v905, %v902
  %v1122 = vpack.c.b16 %v909, %v906
  %v1123 = vpack.c.b16 %v910, %v907
  %v1124 = vpack.c.b16 %v911, %v908
  %v1125 = vpack.c.b16 %v915, %v912
  %v1126 = vpack.c.b16 %v916, %v913
  %v1127 = vpack.c.b16 %v917, %v914
  %v1128 = vpack.c.b16 %v921, %v918
  %v1129 = vpack.c.b16 %v922, %v919
  %v1130 = vpack.c.b16 %v923, %v920
  %v1131 = vpack.c.b16 %v927, %v924
  %v1132 = vpack.c.b16 %v928, %v925
  %v1133 = vpack.c.b16 %v929, %v926
  %v1134 = vpack.c.b16 %v933, %v930
  %v1135 = vpack.c.b16 %v934, %v931
  %v1136 = vpack.c.b16 %v935, %v932
  %v1137 = vpack.c.b16 %v939, %v936
  %v1138 = vpack.c.b16 %v940, %v937
  %v1139 = vpack.c.b16 %v941, %v938
  %v1140 = vpack.c.b16 %v945, %v942
  %v1141 = vpack.c.b16 %v946, %v943
  %v1142 = vpack.c.b16 %v947, %v944
  %v1143 = vpack.c.b16 %v951, %v948
  %v1144 = vpack.c.b16 %v952, %v949
  %v1145 = vpack.c.b16 %v953, %v950
  %v1310 = vunpack.c.l.b16 %v271
  %v1311 = vunpack.c.l.b16 %v272
  %v1312 = vunpack.c.l.b16 %v273
  %v1313 = vunpack.c.l.b16 %v274
  %v1314 = vunpack.c.l.b16 %v275
  %v1315 = vunpack.c.l.b16 %v276
  %v1316 = vunpack.c.l.b16 %v277
  %v1317 = vunpack.c.l.b16 %v278
  %v1318 = vunpack.c.l.b16 %v279
  %v1319 = vunpack.c.l.b16 %v280
  %v1320 = vunpack.c.l.b16 %v281
  %v1321 = vunpack.c.l.b16 %v282
  %v1322 = vunpack.c.l.b16 %v283
  %v1323 = vunpack.c.l.b16 %v284
  %v1324 = vunpack.c.l.b16 %v285
  %v1325 = vunpack.c.l.b16 %v286
  %v1326 = vunpack.c.l.b16 %v287
  %v1327 = vunpack.c.l.b16 %v288
  %v1328 = vunpack.c.l.b16 %v289
  %v1329 = vunpack.c.l.b16 %v290
  %v1330 = vunpack.c.l.b16 %v291
  %v1331 = vunpack.c.l.b16 %v292
  %v1332 = vunpack.c.l.b16 %v293
  %v1333 = vunpack.c.l.b16 %v294
  %v1334 = vunpack.c.l.b16 %v295
  %v1335 = vunpack.c.l.b16 %v296
  %v1336 = vunpack.c.l.b16 %v297
  %v1337 = vunpack.c.l.b16 %v298
  %v1338 = vunpack.c.l.b16 %v299
  %v1339 = vunpack.c.l.b16 %v300
  %v1340 = vunpack.c.l.b16 %v301
  %v1341 = vunpack.c.l.b16 %v302
  %v1342 = vunpack.c.l.b16 %v303
  %v1343 = vunpack.c.l.b16 %v304
  %v1344 = vunpack.c.l.b16 %v305
  %v1345 = vunpack.c.l.b16 %v306
  %v1346 = vpack.c.b16 %v1311, %v1310
  %v1347 = vpack.c.b16 %v1313, %v1312
  %v1348 = vpack.c.b16 %v1315, %v1314
  %v1349 = vpack.c.b16 %v1317, %v1316
  %v1350 = vpack.c.b16 %v1319, %v1318
  %v1351 = vpack.c.b16 %v1321, %v1320
  %v1352 = vpack.c.b16 %v1323, %v1322
  %v1353 = vpack.c.b16 %v1325, %v1324
  %v1354 = vpack.c.b16 %v1327, %v1326
  %v1355 = vpack.c.b16 %v1329, %v1328
  %v1356 = vpack.c.b16 %v1331, %v1330
  %v1357 = vpack.c.b16 %v1333, %v1332
  %v1358 = vpack.c.b16 %v1335, %v1334
  %v1359 = vpack.c.b16 %v1337, %v1336
  %v1360 = vpack.c.b16 %v1339, %v1338
  %v1361 = vpack.c.b16 %v1341, %v1340
  %v1362 = vpack.c.b16 %v1343, %v1342
  %v1363 = vpack.c.b16 %v1345, %v1344
  %vm1382 = vcmask 261120
  %v1384 = vsel %vm1382, %v956, 0
  %v1387 = vsel %vm1382, %v959, 0
  %v1390 = vsel %vm1382, %v962, 0
  %v1393 = vsel %vm1382, %v965, 0
  %v1396 = vsel %vm1382, %v968, 0
  %v1399 = vsel %vm1382, %v971, 0
  %v1402 = vsel %vm1382, %v974, 0
  %v1405 = vsel %vm1382, %v977, 0
  %v1408 = vsel %vm1382, %v980, 0
  %v1411 = vsel %vm1382, %v983, 0
  %v1414 = vsel %vm1382, %v986, 0
  %v1417 = vsel %vm1382, %v989, 0
  %v1420 = vsel %vm1382, %v992, 0
  %v1423 = vsel %vm1382, %v995, 0
  %v1426 = vsel %vm1382, %v998, 0
  %v1429 = vsel %vm1382, %v1001, 0
  %v1432 = vsel %vm1382, %v1004, 0
  %v1435 = vsel %vm1382, %v1007, 0
  %v1438 = vsel %vm1382, %v1010, 0
  %v1441 = vsel %vm1382, %v1013, 0
  %v1444 = vsel %vm1382, %v1016, 0
  %v1447 = vsel %vm1382, %v1019, 0
  %v1450 = vsel %vm1382, %v1022, 0
  %v1453 = vsel %vm1382, %v1025, 0
  %v1456 = vsel %vm1382, %v1028, 0
  %v1459 = vsel %vm1382, %v1031, 0
  %v1462 = vsel %vm1382, %v1034, 0
  %v1465 = vsel %vm1382, %v1037, 0
  %v1468 = vsel %vm1382, %v1040, 0
  %v1471 = vsel %vm1382, %v1043, 0
  %v1474 = vsel %vm1382, %v1046, 0
  %v1477 = vsel %vm1382, %v1049, 0
  %v1480 = vsel %vm1382, %v1052, 0
  %v1483 = vsel %vm1382, %v1055, 0
  %v1486 = vsel %vm1382, %v1058, 0
  %v1489 = vsel %vm1382, %v1061, 0
  %v1492 = vsel %vm1382, %v1064, 0
  %v1495 = vsel %vm1382, %v1067, 0
  %v1498 = vsel %vm1382, %v1070, 0
  %v1501 = vsel %vm1382, %v1073, 0
  %v1504 = vsel %vm1382, %v1076, 0
  %v1507 = vsel %vm1382, %v1079, 0
  %v1510 = vsel %vm1382, %v1082, 0
  %v1513 = vsel %vm1382, %v1085, 0
  %v1516 = vsel %vm1382, %v1088, 0
  %v1519 = vsel %vm1382, %v1091, 0
  %v1522 = vsel %vm1382, %v1094, 0
  %v1525 = vsel %vm1382, %v1097, 0
  %v1528 = vsel %vm1382, %v1100, 0
  %v1531 = vsel %vm1382, %v1103, 0
  %v1534 = vsel %vm1382, %v1106, 0
  %v1537 = vsel %vm1382, %v1109, 0
  %v1540 = vsel %vm1382, %v1112, 0
  %v1543 = vsel %vm1382, %v1115, 0
  %v1546 = vsel %vm1382, %v1118, 0
  %v1549 = vsel %vm1382, %v1121, 0
  %v1552 = vsel %vm1382, %v1124, 0
  %v1555 = vsel %vm1382, %v1127, 0
  %v1558 = vsel %vm1382, %v1130, 0
  %v1561 = vsel %vm1382, %v1133, 0
  %v1564 = vsel %vm1382, %v1136, 0
  %v1567 = vsel %vm1382, %v1139, 0
  %v1570 = vsel %vm1382, %v1142, 0
  %v1573 = vsel %vm1382, %v1145, 0
  %1575 = vmatprep.subr.bf16.mxu0 0
  %1576 = vmatpush1.bf16.msra.mxu0 %v1353
  %1577 = vmatprep.subr.bf16.mxu0 0
  %1578 = vmatpush1.bf16.msra.mxu0 %v1352
  %1579 = vmatprep.subr.bf16.mxu0 0
  %1580 = vmatpush1.bf16.msra.mxu0 %v1351
  %1581 = vmatprep.subr.bf16.mxu0 0
  %1582 = vmatpush1.bf16.msra.mxu0 %v1350
  %1583 = vmatprep.subr.bf16.mxu0 0
  %1584 = vmatpush1.bf16.msra.mxu0 %v1349
  %1585 = vmatprep.subr.bf16.mxu0 0
  %1586 = vmatpush1.bf16.msra.mxu0 %v1348
  %1587 = vmatprep.subr.bf16.mxu0 0
  %1588 = vmatpush1.bf16.msra.mxu0 %v1347
  %1589 = vmatprep.subr.bf16.mxu0 0
  %1590 = vmatpush1.bf16.msra.mxu0 %v1346
  %1591 = vmatprep.subr.bf16.mxu0 0
  %1592 = vmatpush2.bf16.msra.mxu0 %v1361
  %1593 = vmatprep.subr.bf16.mxu0 0
  %1594 = vmatpush2.bf16.msra.mxu0 %v1360
  %1595 = vmatprep.subr.bf16.mxu0 0
  %1596 = vmatpush2.bf16.msra.mxu0 %v1359
  %1597 = vmatprep.subr.bf16.mxu0 0
  %1598 = vmatpush2.bf16.msra.mxu0 %v1358
  %1599 = vmatprep.subr.bf16.mxu0 0
  %1600 = vmatpush2.bf16.msra.mxu0 %v1357
  %1601 = vmatprep.subr.bf16.mxu0 0
  %1602 = vmatpush2.bf16.msra.mxu0 %v1356
  %1603 = vmatprep.subr.bf16.mxu0 0
  %1604 = vmatpush2.bf16.msra.mxu0 %v1355
  %1605 = vmatprep.subr.bf16.mxu0 0
  %1606 = vmatpush2.bf16.msra.mxu0 %v1354
  %1607 = vmatprep.mubr.bf16.mxu0 %v955
  %1608 = vmatmul.mubr.bf16.gmra.mxu0 %v954
  %v1609 = vpop.f32.mrf.mxu0
  %v1610 = vadd.f32 %v312, %v1609
  %v1611 = vpop.f32.mrf.mxu0
  %v1612 = vpop.f32.mrf.mxu0
  %v1613 = vadd.f32 %v312, %v1612
  %v1614 = vpop.f32.mrf.mxu0
  %1615 = vmatprep.mubr.bf16.mxu0 %v958
  %1616 = vmatmul.mubr.bf16.gmra.mxu0 %v957
  %v1617 = vpop.f32.mrf.mxu0
  %v1618 = vadd.f32 %v312, %v1617
  %v1619 = vpop.f32.mrf.mxu0
  %v1620 = vpop.f32.mrf.mxu0
  %v1621 = vadd.f32 %v312, %v1620
  %v1622 = vpop.f32.mrf.mxu0
  %1623 = vmatprep.mubr.bf16.mxu0 %v961
  %1624 = vmatmul.mubr.bf16.gmra.mxu0 %v960
  %v1625 = vpop.f32.mrf.mxu0
  %v1626 = vadd.f32 %v312, %v1625
  %v1627 = vpop.f32.mrf.mxu0
  %v1628 = vpop.f32.mrf.mxu0
  %v1629 = vadd.f32 %v312, %v1628
  %v1630 = vpop.f32.mrf.mxu0
  %1631 = vmatprep.mubr.bf16.mxu0 %v964
  %1632 = vmatmul.mubr.bf16.gmra.mxu0 %v963
  %v1633 = vpop.f32.mrf.mxu0
  %v1634 = vadd.f32 %v312, %v1633
  %v1635 = vpop.f32.mrf.mxu0
  %v1636 = vpop.f32.mrf.mxu0
  %v1637 = vadd.f32 %v312, %v1636
  %v1638 = vpop.f32.mrf.mxu0
  %1639 = vmatprep.mubr.bf16.mxu0 %v967
  %1640 = vmatmul.mubr.bf16.gmra.mxu0 %v966
  %v1641 = vpop.f32.mrf.mxu0
  %v1642 = vadd.f32 %v312, %v1641
  %v1643 = vpop.f32.mrf.mxu0
  %v1644 = vpop.f32.mrf.mxu0
  %v1645 = vadd.f32 %v312, %v1644
  %v1646 = vpop.f32.mrf.mxu0
  %1647 = vmatprep.mubr.bf16.mxu0 %v970
  %1648 = vmatmul.mubr.bf16.gmra.mxu0 %v969
  %v1649 = vpop.f32.mrf.mxu0
  %v1650 = vadd.f32 %v312, %v1649
  %v1651 = vpop.f32.mrf.mxu0
  %v1652 = vpop.f32.mrf.mxu0
  %v1653 = vadd.f32 %v312, %v1652
  %v1654 = vpop.f32.mrf.mxu0
  %1655 = vmatprep.mubr.bf16.mxu0 %v973
  %1656 = vmatmul.mubr.bf16.gmra.mxu0 %v972
  %v1657 = vpop.f32.mrf.mxu0
  %v1658 = vadd.f32 %v312, %v1657
  %v1659 = vpop.f32.mrf.mxu0
  %v1660 = vpop.f32.mrf.mxu0
  %v1661 = vadd.f32 %v312, %v1660
  %v1662 = vpop.f32.mrf.mxu0
  %1663 = vmatprep.mubr.bf16.mxu0 %v976
  %1664 = vmatmul.mubr.bf16.gmra.mxu0 %v975
  %v1665 = vpop.f32.mrf.mxu0
  %v1666 = vadd.f32 %v312, %v1665
  %v1667 = vpop.f32.mrf.mxu0
  %v1668 = vpop.f32.mrf.mxu0
  %v1669 = vadd.f32 %v312, %v1668
  %v1670 = vpop.f32.mrf.mxu0
  %1671 = vmatprep.mubr.bf16.mxu0 %v979
  %1672 = vmatmul.mubr.bf16.gmra.mxu0 %v978
  %v1673 = vpop.f32.mrf.mxu0
  %v1674 = vadd.f32 %v312, %v1673
  %v1675 = vpop.f32.mrf.mxu0
  %v1676 = vpop.f32.mrf.mxu0
  %v1677 = vadd.f32 %v312, %v1676
  %v1678 = vpop.f32.mrf.mxu0
  %1679 = vmatprep.mubr.bf16.mxu0 %v982
  %1680 = vmatmul.mubr.bf16.gmra.mxu0 %v981
  %v1681 = vpop.f32.mrf.mxu0
  %v1682 = vadd.f32 %v312, %v1681
  %v1683 = vpop.f32.mrf.mxu0
  %v1684 = vpop.f32.mrf.mxu0
  %v1685 = vadd.f32 %v312, %v1684
  %v1686 = vpop.f32.mrf.mxu0
  %1687 = vmatprep.mubr.bf16.mxu0 %v985
  %1688 = vmatmul.mubr.bf16.gmra.mxu0 %v984
  %v1689 = vpop.f32.mrf.mxu0
  %v1690 = vadd.f32 %v312, %v1689
  %v1691 = vpop.f32.mrf.mxu0
  %v1692 = vpop.f32.mrf.mxu0
  %v1693 = vadd.f32 %v312, %v1692
  %v1694 = vpop.f32.mrf.mxu0
  %1695 = vmatprep.mubr.bf16.mxu0 %v988
  %1696 = vmatmul.mubr.bf16.gmra.mxu0 %v987
  %v1697 = vpop.f32.mrf.mxu0
  %v1698 = vadd.f32 %v312, %v1697
  %v1699 = vpop.f32.mrf.mxu0
  %v1700 = vpop.f32.mrf.mxu0
  %v1701 = vadd.f32 %v312, %v1700
  %v1702 = vpop.f32.mrf.mxu0
  %1703 = vmatprep.mubr.bf16.mxu0 %v991
  %1704 = vmatmul.mubr.bf16.gmra.mxu0 %v990
  %v1705 = vpop.f32.mrf.mxu0
  %v1706 = vadd.f32 %v312, %v1705
  %v1707 = vpop.f32.mrf.mxu0
  %v1708 = vpop.f32.mrf.mxu0
  %v1709 = vadd.f32 %v312, %v1708
  %v1710 = vpop.f32.mrf.mxu0
  %1711 = vmatprep.mubr.bf16.mxu0 %v994
  %1712 = vmatmul.mubr.bf16.gmra.mxu0 %v993
  %v1713 = vpop.f32.mrf.mxu0
  %v1714 = vadd.f32 %v312, %v1713
  %v1715 = vpop.f32.mrf.mxu0
  %v1716 = vpop.f32.mrf.mxu0
  %v1717 = vadd.f32 %v312, %v1716
  %v1718 = vpop.f32.mrf.mxu0
  %1719 = vmatprep.mubr.bf16.mxu0 %v997
  %1720 = vmatmul.mubr.bf16.gmra.mxu0 %v996
  %v1721 = vpop.f32.mrf.mxu0
  %v1722 = vadd.f32 %v312, %v1721
  %v1723 = vpop.f32.mrf.mxu0
  %v1724 = vpop.f32.mrf.mxu0
  %v1725 = vadd.f32 %v312, %v1724
  %v1726 = vpop.f32.mrf.mxu0
  %1727 = vmatprep.mubr.bf16.mxu0 %v1000
  %1728 = vmatmul.mubr.bf16.gmra.mxu0 %v999
  %v1729 = vpop.f32.mrf.mxu0
  %v1730 = vadd.f32 %v312, %v1729
  %v1731 = vpop.f32.mrf.mxu0
  %v1732 = vpop.f32.mrf.mxu0
  %v1733 = vadd.f32 %v312, %v1732
  %v1734 = vpop.f32.mrf.mxu0
  %1735 = vmatprep.mubr.bf16.mxu0 %v1003
  %1736 = vmatmul.mubr.bf16.gmra.mxu0 %v1002
  %v1737 = vpop.f32.mrf.mxu0
  %v1738 = vadd.f32 %v312, %v1737
  %v1739 = vpop.f32.mrf.mxu0
  %v1740 = vpop.f32.mrf.mxu0
  %v1741 = vadd.f32 %v312, %v1740
  %v1742 = vpop.f32.mrf.mxu0
  %1743 = vmatprep.mubr.bf16.mxu0 %v1006
  %1744 = vmatmul.mubr.bf16.gmra.mxu0 %v1005
  %v1745 = vpop.f32.mrf.mxu0
  %v1746 = vadd.f32 %v312, %v1745
  %v1747 = vpop.f32.mrf.mxu0
  %v1748 = vpop.f32.mrf.mxu0
  %v1749 = vadd.f32 %v312, %v1748
  %v1750 = vpop.f32.mrf.mxu0
  %1751 = vmatprep.mubr.bf16.mxu0 %v1009
  %1752 = vmatmul.mubr.bf16.gmra.mxu0 %v1008
  %v1753 = vpop.f32.mrf.mxu0
  %v1754 = vadd.f32 %v312, %v1753
  %v1755 = vpop.f32.mrf.mxu0
  %v1756 = vpop.f32.mrf.mxu0
  %v1757 = vadd.f32 %v312, %v1756
  %v1758 = vpop.f32.mrf.mxu0
  %1759 = vmatprep.mubr.bf16.mxu0 %v1012
  %1760 = vmatmul.mubr.bf16.gmra.mxu0 %v1011
  %v1761 = vpop.f32.mrf.mxu0
  %v1762 = vadd.f32 %v312, %v1761
  %v1763 = vpop.f32.mrf.mxu0
  %v1764 = vpop.f32.mrf.mxu0
  %v1765 = vadd.f32 %v312, %v1764
  %v1766 = vpop.f32.mrf.mxu0
  %1767 = vmatprep.mubr.bf16.mxu0 %v1015
  %1768 = vmatmul.mubr.bf16.gmra.mxu0 %v1014
  %v1769 = vpop.f32.mrf.mxu0
  %v1770 = vadd.f32 %v312, %v1769
  %v1771 = vpop.f32.mrf.mxu0
  %v1772 = vpop.f32.mrf.mxu0
  %v1773 = vadd.f32 %v312, %v1772
  %v1774 = vpop.f32.mrf.mxu0
  %1775 = vmatprep.mubr.bf16.mxu0 %v1018
  %1776 = vmatmul.mubr.bf16.gmra.mxu0 %v1017
  %v1777 = vpop.f32.mrf.mxu0
  %v1778 = vadd.f32 %v312, %v1777
  %v1779 = vpop.f32.mrf.mxu0
  %v1780 = vpop.f32.mrf.mxu0
  %v1781 = vadd.f32 %v312, %v1780
  %v1782 = vpop.f32.mrf.mxu0
  %1783 = vmatprep.mubr.bf16.mxu0 %v1021
  %1784 = vmatmul.mubr.bf16.gmra.mxu0 %v1020
  %v1785 = vpop.f32.mrf.mxu0
  %v1786 = vadd.f32 %v312, %v1785
  %v1787 = vpop.f32.mrf.mxu0
  %v1788 = vpop.f32.mrf.mxu0
  %v1789 = vadd.f32 %v312, %v1788
  %v1790 = vpop.f32.mrf.mxu0
  %1791 = vmatprep.mubr.bf16.mxu0 %v1024
  %1792 = vmatmul.mubr.bf16.gmra.mxu0 %v1023
  %v1793 = vpop.f32.mrf.mxu0
  %v1794 = vadd.f32 %v312, %v1793
  %v1795 = vpop.f32.mrf.mxu0
  %v1796 = vpop.f32.mrf.mxu0
  %v1797 = vadd.f32 %v312, %v1796
  %v1798 = vpop.f32.mrf.mxu0
  %1799 = vmatprep.mubr.bf16.mxu0 %v1027
  %1800 = vmatmul.mubr.bf16.gmra.mxu0 %v1026
  %v1801 = vpop.f32.mrf.mxu0
  %v1802 = vadd.f32 %v312, %v1801
  %v1803 = vpop.f32.mrf.mxu0
  %v1804 = vpop.f32.mrf.mxu0
  %v1805 = vadd.f32 %v312, %v1804
  %v1806 = vpop.f32.mrf.mxu0
  %1807 = vmatprep.mubr.bf16.mxu0 %v1030
  %1808 = vmatmul.mubr.bf16.gmra.mxu0 %v1029
  %v1809 = vpop.f32.mrf.mxu0
  %v1810 = vadd.f32 %v312, %v1809
  %v1811 = vpop.f32.mrf.mxu0
  %v1812 = vpop.f32.mrf.mxu0
  %v1813 = vadd.f32 %v312, %v1812
  %v1814 = vpop.f32.mrf.mxu0
  %1815 = vmatprep.mubr.bf16.mxu0 %v1033
  %1816 = vmatmul.mubr.bf16.gmra.mxu0 %v1032
  %v1817 = vpop.f32.mrf.mxu0
  %v1818 = vadd.f32 %v312, %v1817
  %v1819 = vpop.f32.mrf.mxu0
  %v1820 = vpop.f32.mrf.mxu0
  %v1821 = vadd.f32 %v312, %v1820
  %v1822 = vpop.f32.mrf.mxu0
  %1823 = vmatprep.mubr.bf16.mxu0 %v1036
  %1824 = vmatmul.mubr.bf16.gmra.mxu0 %v1035
  %v1825 = vpop.f32.mrf.mxu0
  %v1826 = vadd.f32 %v312, %v1825
  %v1827 = vpop.f32.mrf.mxu0
  %v1828 = vpop.f32.mrf.mxu0
  %v1829 = vadd.f32 %v312, %v1828
  %v1830 = vpop.f32.mrf.mxu0
  %1831 = vmatprep.mubr.bf16.mxu0 %v1039
  %1832 = vmatmul.mubr.bf16.gmra.mxu0 %v1038
  %v1833 = vpop.f32.mrf.mxu0
  %v1834 = vadd.f32 %v312, %v1833
  %v1835 = vpop.f32.mrf.mxu0
  %v1836 = vpop.f32.mrf.mxu0
  %v1837 = vadd.f32 %v312, %v1836
  %v1838 = vpop.f32.mrf.mxu0
  %1839 = vmatprep.mubr.bf16.mxu0 %v1042
  %1840 = vmatmul.mubr.bf16.gmra.mxu0 %v1041
  %v1841 = vpop.f32.mrf.mxu0
  %v1842 = vadd.f32 %v312, %v1841
  %v1843 = vpop.f32.mrf.mxu0
  %v1844 = vpop.f32.mrf.mxu0
  %v1845 = vadd.f32 %v312, %v1844
  %v1846 = vpop.f32.mrf.mxu0
  %1847 = vmatprep.mubr.bf16.mxu0 %v1045
  %1848 = vmatmul.mubr.bf16.gmra.mxu0 %v1044
  %v1849 = vpop.f32.mrf.mxu0
  %v1850 = vadd.f32 %v312, %v1849
  %v1851 = vpop.f32.mrf.mxu0
  %v1852 = vpop.f32.mrf.mxu0
  %v1853 = vadd.f32 %v312, %v1852
  %v1854 = vpop.f32.mrf.mxu0
  %1855 = vmatprep.mubr.bf16.mxu0 %v1048
  %1856 = vmatmul.mubr.bf16.gmra.mxu0 %v1047
  %v1857 = vpop.f32.mrf.mxu0
  %v1858 = vadd.f32 %v312, %v1857
  %v1859 = vpop.f32.mrf.mxu0
  %v1860 = vpop.f32.mrf.mxu0
  %v1861 = vadd.f32 %v312, %v1860
  %v1862 = vpop.f32.mrf.mxu0
  %1863 = vmatprep.mubr.bf16.mxu0 %v1051
  %1864 = vmatmul.mubr.bf16.gmra.mxu0 %v1050
  %v1865 = vpop.f32.mrf.mxu0
  %v1866 = vadd.f32 %v312, %v1865
  %v1867 = vpop.f32.mrf.mxu0
  %v1868 = vpop.f32.mrf.mxu0
  %v1869 = vadd.f32 %v312, %v1868
  %v1870 = vpop.f32.mrf.mxu0
  %1871 = vmatprep.mubr.bf16.mxu0 %v1054
  %1872 = vmatmul.mubr.bf16.gmra.mxu0 %v1053
  %v1873 = vpop.f32.mrf.mxu0
  %v1874 = vadd.f32 %v312, %v1873
  %v1875 = vpop.f32.mrf.mxu0
  %v1876 = vpop.f32.mrf.mxu0
  %v1877 = vadd.f32 %v312, %v1876
  %v1878 = vpop.f32.mrf.mxu0
  %1879 = vmatprep.mubr.bf16.mxu0 %v1057
  %1880 = vmatmul.mubr.bf16.gmra.mxu0 %v1056
  %v1881 = vpop.f32.mrf.mxu0
  %v1882 = vadd.f32 %v312, %v1881
  %v1883 = vpop.f32.mrf.mxu0
  %v1884 = vpop.f32.mrf.mxu0
  %v1885 = vadd.f32 %v312, %v1884
  %v1886 = vpop.f32.mrf.mxu0
  %1887 = vmatprep.mubr.bf16.mxu0 %v1060
  %1888 = vmatmul.mubr.bf16.gmra.mxu0 %v1059
  %v1889 = vpop.f32.mrf.mxu0
  %v1890 = vadd.f32 %v312, %v1889
  %v1891 = vpop.f32.mrf.mxu0
  %v1892 = vpop.f32.mrf.mxu0
  %v1893 = vadd.f32 %v312, %v1892
  %v1894 = vpop.f32.mrf.mxu0
  %1895 = vmatprep.mubr.bf16.mxu0 %v1063
  %1896 = vmatmul.mubr.bf16.gmra.mxu0 %v1062
  %v1897 = vpop.f32.mrf.mxu0
  %v1898 = vadd.f32 %v312, %v1897
  %v1899 = vpop.f32.mrf.mxu0
  %v1900 = vpop.f32.mrf.mxu0
  %v1901 = vadd.f32 %v312, %v1900
  %v1902 = vpop.f32.mrf.mxu0
  %1903 = vmatprep.mubr.bf16.mxu0 %v1066
  %1904 = vmatmul.mubr.bf16.gmra.mxu0 %v1065
  %v1905 = vpop.f32.mrf.mxu0
  %v1906 = vadd.f32 %v312, %v1905
  %v1907 = vpop.f32.mrf.mxu0
  %v1908 = vpop.f32.mrf.mxu0
  %v1909 = vadd.f32 %v312, %v1908
  %v1910 = vpop.f32.mrf.mxu0
  %1911 = vmatprep.mubr.bf16.mxu0 %v1069
  %1912 = vmatmul.mubr.bf16.gmra.mxu0 %v1068
  %v1913 = vpop.f32.mrf.mxu0
  %v1914 = vadd.f32 %v312, %v1913
  %v1915 = vpop.f32.mrf.mxu0
  %v1916 = vpop.f32.mrf.mxu0
  %v1917 = vadd.f32 %v312, %v1916
  %v1918 = vpop.f32.mrf.mxu0
  %1919 = vmatprep.mubr.bf16.mxu0 %v1072
  %1920 = vmatmul.mubr.bf16.gmra.mxu0 %v1071
  %v1921 = vpop.f32.mrf.mxu0
  %v1922 = vadd.f32 %v312, %v1921
  %v1923 = vpop.f32.mrf.mxu0
  %v1924 = vpop.f32.mrf.mxu0
  %v1925 = vadd.f32 %v312, %v1924
  %v1926 = vpop.f32.mrf.mxu0
  %1927 = vmatprep.mubr.bf16.mxu0 %v1075
  %1928 = vmatmul.mubr.bf16.gmra.mxu0 %v1074
  %v1929 = vpop.f32.mrf.mxu0
  %v1930 = vadd.f32 %v312, %v1929
  %v1931 = vpop.f32.mrf.mxu0
  %v1932 = vpop.f32.mrf.mxu0
  %v1933 = vadd.f32 %v312, %v1932
  %v1934 = vpop.f32.mrf.mxu0
  %1935 = vmatprep.mubr.bf16.mxu0 %v1078
  %1936 = vmatmul.mubr.bf16.gmra.mxu0 %v1077
  %v1937 = vpop.f32.mrf.mxu0
  %v1938 = vadd.f32 %v312, %v1937
  %v1939 = vpop.f32.mrf.mxu0
  %v1940 = vpop.f32.mrf.mxu0
  %v1941 = vadd.f32 %v312, %v1940
  %v1942 = vpop.f32.mrf.mxu0
  %1943 = vmatprep.mubr.bf16.mxu0 %v1081
  %1944 = vmatmul.mubr.bf16.gmra.mxu0 %v1080
  %v1945 = vpop.f32.mrf.mxu0
  %v1946 = vadd.f32 %v312, %v1945
  %v1947 = vpop.f32.mrf.mxu0
  %v1948 = vpop.f32.mrf.mxu0
  %v1949 = vadd.f32 %v312, %v1948
  %v1950 = vpop.f32.mrf.mxu0
  %1951 = vmatprep.mubr.bf16.mxu0 %v1084
  %1952 = vmatmul.mubr.bf16.gmra.mxu0 %v1083
  %v1953 = vpop.f32.mrf.mxu0
  %v1954 = vadd.f32 %v312, %v1953
  %v1955 = vpop.f32.mrf.mxu0
  %v1956 = vpop.f32.mrf.mxu0
  %v1957 = vadd.f32 %v312, %v1956
  %v1958 = vpop.f32.mrf.mxu0
  %1959 = vmatprep.mubr.bf16.mxu0 %v1087
  %1960 = vmatmul.mubr.bf16.gmra.mxu0 %v1086
  %v1961 = vpop.f32.mrf.mxu0
  %v1962 = vadd.f32 %v312, %v1961
  %v1963 = vpop.f32.mrf.mxu0
  %v1964 = vpop.f32.mrf.mxu0
  %v1965 = vadd.f32 %v312, %v1964
  %v1966 = vpop.f32.mrf.mxu0
  %1967 = vmatprep.mubr.bf16.mxu0 %v1090
  %1968 = vmatmul.mubr.bf16.gmra.mxu0 %v1089
  %v1969 = vpop.f32.mrf.mxu0
  %v1970 = vadd.f32 %v312, %v1969
  %v1971 = vpop.f32.mrf.mxu0
  %v1972 = vpop.f32.mrf.mxu0
  %v1973 = vadd.f32 %v312, %v1972
  %v1974 = vpop.f32.mrf.mxu0
  %1975 = vmatprep.mubr.bf16.mxu0 %v1093
  %1976 = vmatmul.mubr.bf16.gmra.mxu0 %v1092
  %v1977 = vpop.f32.mrf.mxu0
  %v1978 = vadd.f32 %v312, %v1977
  %v1979 = vpop.f32.mrf.mxu0
  %v1980 = vpop.f32.mrf.mxu0
  %v1981 = vadd.f32 %v312, %v1980
  %v1982 = vpop.f32.mrf.mxu0
  %1983 = vmatprep.mubr.bf16.mxu0 %v1096
  %1984 = vmatmul.mubr.bf16.gmra.mxu0 %v1095
  %v1985 = vpop.f32.mrf.mxu0
  %v1986 = vadd.f32 %v312, %v1985
  %v1987 = vpop.f32.mrf.mxu0
  %v1988 = vpop.f32.mrf.mxu0
  %v1989 = vadd.f32 %v312, %v1988
  %v1990 = vpop.f32.mrf.mxu0
  %1991 = vmatprep.mubr.bf16.mxu0 %v1099
  %1992 = vmatmul.mubr.bf16.gmra.mxu0 %v1098
  %v1993 = vpop.f32.mrf.mxu0
  %v1994 = vadd.f32 %v312, %v1993
  %v1995 = vpop.f32.mrf.mxu0
  %v1996 = vpop.f32.mrf.mxu0
  %v1997 = vadd.f32 %v312, %v1996
  %v1998 = vpop.f32.mrf.mxu0
  %1999 = vmatprep.mubr.bf16.mxu0 %v1102
  %2000 = vmatmul.mubr.bf16.gmra.mxu0 %v1101
  %v2001 = vpop.f32.mrf.mxu0
  %v2002 = vadd.f32 %v312, %v2001
  %v2003 = vpop.f32.mrf.mxu0
  %v2004 = vpop.f32.mrf.mxu0
  %v2005 = vadd.f32 %v312, %v2004
  %v2006 = vpop.f32.mrf.mxu0
  %2007 = vmatprep.mubr.bf16.mxu0 %v1105
  %2008 = vmatmul.mubr.bf16.gmra.mxu0 %v1104
  %v2009 = vpop.f32.mrf.mxu0
  %v2010 = vadd.f32 %v312, %v2009
  %v2011 = vpop.f32.mrf.mxu0
  %v2012 = vpop.f32.mrf.mxu0
  %v2013 = vadd.f32 %v312, %v2012
  %v2014 = vpop.f32.mrf.mxu0
  %2015 = vmatprep.mubr.bf16.mxu0 %v1108
  %2016 = vmatmul.mubr.bf16.gmra.mxu0 %v1107
  %v2017 = vpop.f32.mrf.mxu0
  %v2018 = vadd.f32 %v312, %v2017
  %v2019 = vpop.f32.mrf.mxu0
  %v2020 = vpop.f32.mrf.mxu0
  %v2021 = vadd.f32 %v312, %v2020
  %v2022 = vpop.f32.mrf.mxu0
  %2023 = vmatprep.mubr.bf16.mxu0 %v1111
  %2024 = vmatmul.mubr.bf16.gmra.mxu0 %v1110
  %v2025 = vpop.f32.mrf.mxu0
  %v2026 = vadd.f32 %v312, %v2025
  %v2027 = vpop.f32.mrf.mxu0
  %v2028 = vpop.f32.mrf.mxu0
  %v2029 = vadd.f32 %v312, %v2028
  %v2030 = vpop.f32.mrf.mxu0
  %2031 = vmatprep.mubr.bf16.mxu0 %v1114
  %2032 = vmatmul.mubr.bf16.gmra.mxu0 %v1113
  %v2033 = vpop.f32.mrf.mxu0
  %v2034 = vadd.f32 %v312, %v2033
  %v2035 = vpop.f32.mrf.mxu0
  %v2036 = vpop.f32.mrf.mxu0
  %v2037 = vadd.f32 %v312, %v2036
  %v2038 = vpop.f32.mrf.mxu0
  %2039 = vmatprep.mubr.bf16.mxu0 %v1117
  %2040 = vmatmul.mubr.bf16.gmra.mxu0 %v1116
  %v2041 = vpop.f32.mrf.mxu0
  %v2042 = vadd.f32 %v312, %v2041
  %v2043 = vpop.f32.mrf.mxu0
  %v2044 = vpop.f32.mrf.mxu0
  %v2045 = vadd.f32 %v312, %v2044
  %v2046 = vpop.f32.mrf.mxu0
  %2047 = vmatprep.mubr.bf16.mxu0 %v1120
  %2048 = vmatmul.mubr.bf16.gmra.mxu0 %v1119
  %v2049 = vpop.f32.mrf.mxu0
  %v2050 = vadd.f32 %v312, %v2049
  %v2051 = vpop.f32.mrf.mxu0
  %v2052 = vpop.f32.mrf.mxu0
  %v2053 = vadd.f32 %v312, %v2052
  %v2054 = vpop.f32.mrf.mxu0
  %2055 = vmatprep.mubr.bf16.mxu0 %v1123
  %2056 = vmatmul.mubr.bf16.gmra.mxu0 %v1122
  %v2057 = vpop.f32.mrf.mxu0
  %v2058 = vadd.f32 %v312, %v2057
  %v2059 = vpop.f32.mrf.mxu0
  %v2060 = vpop.f32.mrf.mxu0
  %v2061 = vadd.f32 %v312, %v2060
  %v2062 = vpop.f32.mrf.mxu0
  %2063 = vmatprep.mubr.bf16.mxu0 %v1126
  %2064 = vmatmul.mubr.bf16.gmra.mxu0 %v1125
  %v2065 = vpop.f32.mrf.mxu0
  %v2066 = vadd.f32 %v312, %v2065
  %v2067 = vpop.f32.mrf.mxu0
  %v2068 = vpop.f32.mrf.mxu0
  %v2069 = vadd.f32 %v312, %v2068
  %v2070 = vpop.f32.mrf.mxu0
  %2071 = vmatprep.mubr.bf16.mxu0 %v1129
  %2072 = vmatmul.mubr.bf16.gmra.mxu0 %v1128
  %v2073 = vpop.f32.mrf.mxu0
  %v2074 = vadd.f32 %v312, %v2073
  %v2075 = vpop.f32.mrf.mxu0
  %v2076 = vpop.f32.mrf.mxu0
  %v2077 = vadd.f32 %v312, %v2076
  %v2078 = vpop.f32.mrf.mxu0
  %2079 = vmatprep.mubr.bf16.mxu0 %v1132
  %2080 = vmatmul.mubr.bf16.gmra.mxu0 %v1131
  %v2081 = vpop.f32.mrf.mxu0
  %v2082 = vadd.f32 %v312, %v2081
  %v2083 = vpop.f32.mrf.mxu0
  %v2084 = vpop.f32.mrf.mxu0
  %v2085 = vadd.f32 %v312, %v2084
  %v2086 = vpop.f32.mrf.mxu0
  %2087 = vmatprep.mubr.bf16.mxu0 %v1135
  %2088 = vmatmul.mubr.bf16.gmra.mxu0 %v1134
  %v2089 = vpop.f32.mrf.mxu0
  %v2090 = vadd.f32 %v312, %v2089
  %v2091 = vpop.f32.mrf.mxu0
  %v2092 = vpop.f32.mrf.mxu0
  %v2093 = vadd.f32 %v312, %v2092
  %v2094 = vpop.f32.mrf.mxu0
  %2095 = vmatprep.mubr.bf16.mxu0 %v1138
  %2096 = vmatmul.mubr.bf16.gmra.mxu0 %v1137
  %v2097 = vpop.f32.mrf.mxu0
  %v2098 = vadd.f32 %v312, %v2097
  %v2099 = vpop.f32.mrf.mxu0
  %v2100 = vpop.f32.mrf.mxu0
  %v2101 = vadd.f32 %v312, %v2100
  %v2102 = vpop.f32.mrf.mxu0
  %2103 = vmatprep.mubr.bf16.mxu0 %v1141
  %2104 = vmatmul.mubr.bf16.gmra.mxu0 %v1140
  %v2105 = vpop.f32.mrf.mxu0
  %v2106 = vadd.f32 %v312, %v2105
  %v2107 = vpop.f32.mrf.mxu0
  %v2108 = vpop.f32.mrf.mxu0
  %v2109 = vadd.f32 %v312, %v2108
  %v2110 = vpop.f32.mrf.mxu0
  %2111 = vmatprep.mubr.bf16.mxu0 %v1144
  %2112 = vmatmul.mubr.bf16.gmra.mxu0 %v1143
  %v2113 = vpop.f32.mrf.mxu0
  %v2114 = vadd.f32 %v312, %v2113
  %v2115 = vpop.f32.mrf.mxu0
  %v2116 = vpop.f32.mrf.mxu0
  %v2117 = vadd.f32 %v312, %v2116
  %v2118 = vpop.f32.mrf.mxu0
  %2119 = vdwg.mxu0
  %2120 = vmatprep.subr.bf16.mxu0 0
  %2121 = vmatpush1.bf16.msra.mxu0 0
  %2122 = vmatprep.subr.bf16.mxu0 0
  %2123 = vmatpush1.bf16.msra.mxu0 0
  %2124 = vmatprep.subr.bf16.mxu0 0
  %2125 = vmatpush1.bf16.msra.mxu0 0
  %2126 = vmatprep.subr.bf16.mxu0 0
  %2127 = vmatpush1.bf16.msra.mxu0 0
  %2128 = vmatprep.subr.bf16.mxu0 0
  %2129 = vmatpush1.bf16.msra.mxu0 0
  %2130 = vmatprep.subr.bf16.mxu0 0
  %2131 = vmatpush1.bf16.msra.mxu0 0
  %2132 = vmatprep.subr.bf16.mxu0 0
  %2133 = vmatpush1.bf16.msra.mxu0 %v1363
  %2134 = vmatprep.subr.bf16.mxu0 0
  %2135 = vmatpush1.bf16.msra.mxu0 %v1362
  %2136 = vmatprep.subr.bf16.mxu0 0
  %2137 = vmatpush2.bf16.msra.mxu0 0
  %2138 = vmatprep.subr.bf16.mxu0 0
  %2139 = vmatpush2.bf16.msra.mxu0 0
  %2140 = vmatprep.subr.bf16.mxu0 0
  %2141 = vmatpush2.bf16.msra.mxu0 0
  %2142 = vmatprep.subr.bf16.mxu0 0
  %2143 = vmatpush2.bf16.msra.mxu0 0
  %2144 = vmatprep.subr.bf16.mxu0 0
  %2145 = vmatpush2.bf16.msra.mxu0 0
  %2146 = vmatprep.subr.bf16.mxu0 0
  %2147 = vmatpush2.bf16.msra.mxu0 0
  %2148 = vmatprep.subr.bf16.mxu0 0
  %2149 = vmatpush2.bf16.msra.mxu0 0
  %2150 = vmatprep.subr.bf16.mxu0 0
  %2151 = vmatpush2.bf16.msra.mxu0 0
  %2152 = vmatprep.mubr.bf16.mxu0 0
  %2153 = vmatmul.mubr.bf16.gmra.mxu0 %v1384
  %v2154 = vpop.f32.mrf.mxu0
  %v2155 = vadd.f32 %v1610, %v2154
  %v2156 = vpop.f32.mrf.mxu0
  %v2157 = vpop.f32.mrf.mxu0
  %v2158 = vadd.f32 %v1613, %v2157
  %v2159 = vpop.f32.mrf.mxu0
  %2160 = vmatprep.mubr.bf16.mxu0 0
  %2161 = vmatmul.mubr.bf16.gmra.mxu0 %v1387
  %v2162 = vpop.f32.mrf.mxu0
  %v2163 = vadd.f32 %v1618, %v2162
  %v2164 = vpop.f32.mrf.mxu0
  %v2165 = vpop.f32.mrf.mxu0
  %v2166 = vadd.f32 %v1621, %v2165
  %v2167 = vpop.f32.mrf.mxu0
  %2168 = vmatprep.mubr.bf16.mxu0 0
  %2169 = vmatmul.mubr.bf16.gmra.mxu0 %v1390
  %v2170 = vpop.f32.mrf.mxu0
  %v2171 = vadd.f32 %v1626, %v2170
  %v2172 = vpop.f32.mrf.mxu0
  %v2173 = vpop.f32.mrf.mxu0
  %v2174 = vadd.f32 %v1629, %v2173
  %v2175 = vpop.f32.mrf.mxu0
  %2176 = vmatprep.mubr.bf16.mxu0 0
  %2177 = vmatmul.mubr.bf16.gmra.mxu0 %v1393
  %v2178 = vpop.f32.mrf.mxu0
  %v2179 = vadd.f32 %v1634, %v2178
  %v2180 = vpop.f32.mrf.mxu0
  %v2181 = vpop.f32.mrf.mxu0
  %v2182 = vadd.f32 %v1637, %v2181
  %v2183 = vpop.f32.mrf.mxu0
  %2184 = vmatprep.mubr.bf16.mxu0 0
  %2185 = vmatmul.mubr.bf16.gmra.mxu0 %v1396
  %v2186 = vpop.f32.mrf.mxu0
  %v2187 = vadd.f32 %v1642, %v2186
  %v2188 = vpop.f32.mrf.mxu0
  %v2189 = vpop.f32.mrf.mxu0
  %v2190 = vadd.f32 %v1645, %v2189
  %v2191 = vpop.f32.mrf.mxu0
  %2192 = vmatprep.mubr.bf16.mxu0 0
  %2193 = vmatmul.mubr.bf16.gmra.mxu0 %v1399
  %v2194 = vpop.f32.mrf.mxu0
  %v2195 = vadd.f32 %v1650, %v2194
  %v2196 = vpop.f32.mrf.mxu0
  %v2197 = vpop.f32.mrf.mxu0
  %v2198 = vadd.f32 %v1653, %v2197
  %v2199 = vpop.f32.mrf.mxu0
  %2200 = vmatprep.mubr.bf16.mxu0 0
  %2201 = vmatmul.mubr.bf16.gmra.mxu0 %v1402
  %v2202 = vpop.f32.mrf.mxu0
  %v2203 = vadd.f32 %v1658, %v2202
  %v2204 = vpop.f32.mrf.mxu0
  %v2205 = vpop.f32.mrf.mxu0
  %v2206 = vadd.f32 %v1661, %v2205
  %v2207 = vpop.f32.mrf.mxu0
  %2208 = vmatprep.mubr.bf16.mxu0 0
  %2209 = vmatmul.mubr.bf16.gmra.mxu0 %v1405
  %v2210 = vpop.f32.mrf.mxu0
  %v2211 = vadd.f32 %v1666, %v2210
  %v2212 = vpop.f32.mrf.mxu0
  %v2213 = vpop.f32.mrf.mxu0
  %v2214 = vadd.f32 %v1669, %v2213
  %v2215 = vpop.f32.mrf.mxu0
  %2216 = vmatprep.mubr.bf16.mxu0 0
  %2217 = vmatmul.mubr.bf16.gmra.mxu0 %v1408
  %v2218 = vpop.f32.mrf.mxu0
  %v2219 = vadd.f32 %v1674, %v2218
  %v2220 = vpop.f32.mrf.mxu0
  %v2221 = vpop.f32.mrf.mxu0
  %v2222 = vadd.f32 %v1677, %v2221
  %v2223 = vpop.f32.mrf.mxu0
  %2224 = vmatprep.mubr.bf16.mxu0 0
  %2225 = vmatmul.mubr.bf16.gmra.mxu0 %v1411
  %v2226 = vpop.f32.mrf.mxu0
  %v2227 = vadd.f32 %v1682, %v2226
  %v2228 = vpop.f32.mrf.mxu0
  %v2229 = vpop.f32.mrf.mxu0
  %v2230 = vadd.f32 %v1685, %v2229
  %v2231 = vpop.f32.mrf.mxu0
  %2232 = vmatprep.mubr.bf16.mxu0 0
  %2233 = vmatmul.mubr.bf16.gmra.mxu0 %v1414
  %v2234 = vpop.f32.mrf.mxu0
  %v2235 = vadd.f32 %v1690, %v2234
  %v2236 = vpop.f32.mrf.mxu0
  %v2237 = vpop.f32.mrf.mxu0
  %v2238 = vadd.f32 %v1693, %v2237
  %v2239 = vpop.f32.mrf.mxu0
  %2240 = vmatprep.mubr.bf16.mxu0 0
  %2241 = vmatmul.mubr.bf16.gmra.mxu0 %v1417
  %v2242 = vpop.f32.mrf.mxu0
  %v2243 = vadd.f32 %v1698, %v2242
  %v2244 = vpop.f32.mrf.mxu0
  %v2245 = vpop.f32.mrf.mxu0
  %v2246 = vadd.f32 %v1701, %v2245
  %v2247 = vpop.f32.mrf.mxu0
  %2248 = vmatprep.mubr.bf16.mxu0 0
  %2249 = vmatmul.mubr.bf16.gmra.mxu0 %v1420
  %v2250 = vpop.f32.mrf.mxu0
  %v2251 = vadd.f32 %v1706, %v2250
  %v2252 = vpop.f32.mrf.mxu0
  %v2253 = vpop.f32.mrf.mxu0
  %v2254 = vadd.f32 %v1709, %v2253
  %v2255 = vpop.f32.mrf.mxu0
  %2256 = vmatprep.mubr.bf16.mxu0 0
  %2257 = vmatmul.mubr.bf16.gmra.mxu0 %v1423
  %v2258 = vpop.f32.mrf.mxu0
  %v2259 = vadd.f32 %v1714, %v2258
  %v2260 = vpop.f32.mrf.mxu0
  %v2261 = vpop.f32.mrf.mxu0
  %v2262 = vadd.f32 %v1717, %v2261
  %v2263 = vpop.f32.mrf.mxu0
  %2264 = vmatprep.mubr.bf16.mxu0 0
  %2265 = vmatmul.mubr.bf16.gmra.mxu0 %v1426
  %v2266 = vpop.f32.mrf.mxu0
  %v2267 = vadd.f32 %v1722, %v2266
  %v2268 = vpop.f32.mrf.mxu0
  %v2269 = vpop.f32.mrf.mxu0
  %v2270 = vadd.f32 %v1725, %v2269
  %v2271 = vpop.f32.mrf.mxu0
  %2272 = vmatprep.mubr.bf16.mxu0 0
  %2273 = vmatmul.mubr.bf16.gmra.mxu0 %v1429
  %v2274 = vpop.f32.mrf.mxu0
  %v2275 = vadd.f32 %v1730, %v2274
  %v2276 = vpop.f32.mrf.mxu0
  %v2277 = vpop.f32.mrf.mxu0
  %v2278 = vadd.f32 %v1733, %v2277
  %v2279 = vpop.f32.mrf.mxu0
  %2280 = vmatprep.mubr.bf16.mxu0 0
  %2281 = vmatmul.mubr.bf16.gmra.mxu0 %v1432
  %v2282 = vpop.f32.mrf.mxu0
  %v2283 = vadd.f32 %v1738, %v2282
  %v2284 = vpop.f32.mrf.mxu0
  %v2285 = vpop.f32.mrf.mxu0
  %v2286 = vadd.f32 %v1741, %v2285
  %v2287 = vpop.f32.mrf.mxu0
  %2288 = vmatprep.mubr.bf16.mxu0 0
  %2289 = vmatmul.mubr.bf16.gmra.mxu0 %v1435
  %v2290 = vpop.f32.mrf.mxu0
  %v2291 = vadd.f32 %v1746, %v2290
  %v2292 = vpop.f32.mrf.mxu0
  %v2293 = vpop.f32.mrf.mxu0
  %v2294 = vadd.f32 %v1749, %v2293
  %v2295 = vpop.f32.mrf.mxu0
  %2296 = vmatprep.mubr.bf16.mxu0 0
  %2297 = vmatmul.mubr.bf16.gmra.mxu0 %v1438
  %v2298 = vpop.f32.mrf.mxu0
  %v2299 = vadd.f32 %v1754, %v2298
  %v2300 = vpop.f32.mrf.mxu0
  %v2301 = vpop.f32.mrf.mxu0
  %v2302 = vadd.f32 %v1757, %v2301
  %v2303 = vpop.f32.mrf.mxu0
  %2304 = vmatprep.mubr.bf16.mxu0 0
  %2305 = vmatmul.mubr.bf16.gmra.mxu0 %v1441
  %v2306 = vpop.f32.mrf.mxu0
  %v2307 = vadd.f32 %v1762, %v2306
  %v2308 = vpop.f32.mrf.mxu0
  %v2309 = vpop.f32.mrf.mxu0
  %v2310 = vadd.f32 %v1765, %v2309
  %v2311 = vpop.f32.mrf.mxu0
  %2312 = vmatprep.mubr.bf16.mxu0 0
  %2313 = vmatmul.mubr.bf16.gmra.mxu0 %v1444
  %v2314 = vpop.f32.mrf.mxu0
  %v2315 = vadd.f32 %v1770, %v2314
  %v2316 = vpop.f32.mrf.mxu0
  %v2317 = vpop.f32.mrf.mxu0
  %v2318 = vadd.f32 %v1773, %v2317
  %v2319 = vpop.f32.mrf.mxu0
  %2320 = vmatprep.mubr.bf16.mxu0 0
  %2321 = vmatmul.mubr.bf16.gmra.mxu0 %v1447
  %v2322 = vpop.f32.mrf.mxu0
  %v2323 = vadd.f32 %v1778, %v2322
  %v2324 = vpop.f32.mrf.mxu0
  %v2325 = vpop.f32.mrf.mxu0
  %v2326 = vadd.f32 %v1781, %v2325
  %v2327 = vpop.f32.mrf.mxu0
  %2328 = vmatprep.mubr.bf16.mxu0 0
  %2329 = vmatmul.mubr.bf16.gmra.mxu0 %v1450
  %v2330 = vpop.f32.mrf.mxu0
  %v2331 = vadd.f32 %v1786, %v2330
  %v2332 = vpop.f32.mrf.mxu0
  %v2333 = vpop.f32.mrf.mxu0
  %v2334 = vadd.f32 %v1789, %v2333
  %v2335 = vpop.f32.mrf.mxu0
  %2336 = vmatprep.mubr.bf16.mxu0 0
  %2337 = vmatmul.mubr.bf16.gmra.mxu0 %v1453
  %v2338 = vpop.f32.mrf.mxu0
  %v2339 = vadd.f32 %v1794, %v2338
  %v2340 = vpop.f32.mrf.mxu0
  %v2341 = vpop.f32.mrf.mxu0
  %v2342 = vadd.f32 %v1797, %v2341
  %v2343 = vpop.f32.mrf.mxu0
  %2344 = vmatprep.mubr.bf16.mxu0 0
  %2345 = vmatmul.mubr.bf16.gmra.mxu0 %v1456
  %v2346 = vpop.f32.mrf.mxu0
  %v2347 = vadd.f32 %v1802, %v2346
  %v2348 = vpop.f32.mrf.mxu0
  %v2349 = vpop.f32.mrf.mxu0
  %v2350 = vadd.f32 %v1805, %v2349
  %v2351 = vpop.f32.mrf.mxu0
  %2352 = vmatprep.mubr.bf16.mxu0 0
  %2353 = vmatmul.mubr.bf16.gmra.mxu0 %v1459
  %v2354 = vpop.f32.mrf.mxu0
  %v2355 = vadd.f32 %v1810, %v2354
  %v2356 = vpop.f32.mrf.mxu0
  %v2357 = vpop.f32.mrf.mxu0
  %v2358 = vadd.f32 %v1813, %v2357
  %v2359 = vpop.f32.mrf.mxu0
  %2360 = vmatprep.mubr.bf16.mxu0 0
  %2361 = vmatmul.mubr.bf16.gmra.mxu0 %v1462
  %v2362 = vpop.f32.mrf.mxu0
  %v2363 = vadd.f32 %v1818, %v2362
  %v2364 = vpop.f32.mrf.mxu0
  %v2365 = vpop.f32.mrf.mxu0
  %v2366 = vadd.f32 %v1821, %v2365
  %v2367 = vpop.f32.mrf.mxu0
  %2368 = vmatprep.mubr.bf16.mxu0 0
  %2369 = vmatmul.mubr.bf16.gmra.mxu0 %v1465
  %v2370 = vpop.f32.mrf.mxu0
  %v2371 = vadd.f32 %v1826, %v2370
  %v2372 = vpop.f32.mrf.mxu0
  %v2373 = vpop.f32.mrf.mxu0
  %v2374 = vadd.f32 %v1829, %v2373
  %v2375 = vpop.f32.mrf.mxu0
  %2376 = vmatprep.mubr.bf16.mxu0 0
  %2377 = vmatmul.mubr.bf16.gmra.mxu0 %v1468
  %v2378 = vpop.f32.mrf.mxu0
  %v2379 = vadd.f32 %v1834, %v2378
  %v2380 = vpop.f32.mrf.mxu0
  %v2381 = vpop.f32.mrf.mxu0
  %v2382 = vadd.f32 %v1837, %v2381
  %v2383 = vpop.f32.mrf.mxu0
  %2384 = vmatprep.mubr.bf16.mxu0 0
  %2385 = vmatmul.mubr.bf16.gmra.mxu0 %v1471
  %v2386 = vpop.f32.mrf.mxu0
  %v2387 = vadd.f32 %v1842, %v2386
  %v2388 = vpop.f32.mrf.mxu0
  %v2389 = vpop.f32.mrf.mxu0
  %v2390 = vadd.f32 %v1845, %v2389
  %v2391 = vpop.f32.mrf.mxu0
  %2392 = vmatprep.mubr.bf16.mxu0 0
  %2393 = vmatmul.mubr.bf16.gmra.mxu0 %v1474
  %v2394 = vpop.f32.mrf.mxu0
  %v2395 = vadd.f32 %v1850, %v2394
  %v2396 = vpop.f32.mrf.mxu0
  %v2397 = vpop.f32.mrf.mxu0
  %v2398 = vadd.f32 %v1853, %v2397
  %v2399 = vpop.f32.mrf.mxu0
  %2400 = vmatprep.mubr.bf16.mxu0 0
  %2401 = vmatmul.mubr.bf16.gmra.mxu0 %v1477
  %v2402 = vpop.f32.mrf.mxu0
  %v2403 = vadd.f32 %v1858, %v2402
  %v2404 = vpop.f32.mrf.mxu0
  %v2405 = vpop.f32.mrf.mxu0
  %v2406 = vadd.f32 %v1861, %v2405
  %v2407 = vpop.f32.mrf.mxu0
  %2408 = vmatprep.mubr.bf16.mxu0 0
  %2409 = vmatmul.mubr.bf16.gmra.mxu0 %v1480
  %v2410 = vpop.f32.mrf.mxu0
  %v2411 = vadd.f32 %v1866, %v2410
  %v2412 = vpop.f32.mrf.mxu0
  %v2413 = vpop.f32.mrf.mxu0
  %v2414 = vadd.f32 %v1869, %v2413
  %v2415 = vpop.f32.mrf.mxu0
  %2416 = vmatprep.mubr.bf16.mxu0 0
  %2417 = vmatmul.mubr.bf16.gmra.mxu0 %v1483
  %v2418 = vpop.f32.mrf.mxu0
  %v2419 = vadd.f32 %v1874, %v2418
  %v2420 = vpop.f32.mrf.mxu0
  %v2421 = vpop.f32.mrf.mxu0
  %v2422 = vadd.f32 %v1877, %v2421
  %v2423 = vpop.f32.mrf.mxu0
  %2424 = vmatprep.mubr.bf16.mxu0 0
  %2425 = vmatmul.mubr.bf16.gmra.mxu0 %v1486
  %v2426 = vpop.f32.mrf.mxu0
  %v2427 = vadd.f32 %v1882, %v2426
  %v2428 = vpop.f32.mrf.mxu0
  %v2429 = vpop.f32.mrf.mxu0
  %v2430 = vadd.f32 %v1885, %v2429
  %v2431 = vpop.f32.mrf.mxu0
  %2432 = vmatprep.mubr.bf16.mxu0 0
  %2433 = vmatmul.mubr.bf16.gmra.mxu0 %v1489
  %v2434 = vpop.f32.mrf.mxu0
  %v2435 = vadd.f32 %v1890, %v2434
  %v2436 = vpop.f32.mrf.mxu0
  %v2437 = vpop.f32.mrf.mxu0
  %v2438 = vadd.f32 %v1893, %v2437
  %v2439 = vpop.f32.mrf.mxu0
  %2440 = vmatprep.mubr.bf16.mxu0 0
  %2441 = vmatmul.mubr.bf16.gmra.mxu0 %v1492
  %v2442 = vpop.f32.mrf.mxu0
  %v2443 = vadd.f32 %v1898, %v2442
  %v2444 = vpop.f32.mrf.mxu0
  %v2445 = vpop.f32.mrf.mxu0
  %v2446 = vadd.f32 %v1901, %v2445
  %v2447 = vpop.f32.mrf.mxu0
  %2448 = vmatprep.mubr.bf16.mxu0 0
  %2449 = vmatmul.mubr.bf16.gmra.mxu0 %v1495
  %v2450 = vpop.f32.mrf.mxu0
  %v2451 = vadd.f32 %v1906, %v2450
  %v2452 = vpop.f32.mrf.mxu0
  %v2453 = vpop.f32.mrf.mxu0
  %v2454 = vadd.f32 %v1909, %v2453
  %v2455 = vpop.f32.mrf.mxu0
  %2456 = vmatprep.mubr.bf16.mxu0 0
  %2457 = vmatmul.mubr.bf16.gmra.mxu0 %v1498
  %v2458 = vpop.f32.mrf.mxu0
  %v2459 = vadd.f32 %v1914, %v2458
  %v2460 = vpop.f32.mrf.mxu0
  %v2461 = vpop.f32.mrf.mxu0
  %v2462 = vadd.f32 %v1917, %v2461
  %v2463 = vpop.f32.mrf.mxu0
  %2464 = vmatprep.mubr.bf16.mxu0 0
  %2465 = vmatmul.mubr.bf16.gmra.mxu0 %v1501
  %v2466 = vpop.f32.mrf.mxu0
  %v2467 = vadd.f32 %v1922, %v2466
  %v2468 = vpop.f32.mrf.mxu0
  %v2469 = vpop.f32.mrf.mxu0
  %v2470 = vadd.f32 %v1925, %v2469
  %v2471 = vpop.f32.mrf.mxu0
  %2472 = vmatprep.mubr.bf16.mxu0 0
  %2473 = vmatmul.mubr.bf16.gmra.mxu0 %v1504
  %v2474 = vpop.f32.mrf.mxu0
  %v2475 = vadd.f32 %v1930, %v2474
  %v2476 = vpop.f32.mrf.mxu0
  %v2477 = vpop.f32.mrf.mxu0
  %v2478 = vadd.f32 %v1933, %v2477
  %v2479 = vpop.f32.mrf.mxu0
  %2480 = vmatprep.mubr.bf16.mxu0 0
  %2481 = vmatmul.mubr.bf16.gmra.mxu0 %v1507
  %v2482 = vpop.f32.mrf.mxu0
  %v2483 = vadd.f32 %v1938, %v2482
  %v2484 = vpop.f32.mrf.mxu0
  %v2485 = vpop.f32.mrf.mxu0
  %v2486 = vadd.f32 %v1941, %v2485
  %v2487 = vpop.f32.mrf.mxu0
  %2488 = vmatprep.mubr.bf16.mxu0 0
  %2489 = vmatmul.mubr.bf16.gmra.mxu0 %v1510
  %v2490 = vpop.f32.mrf.mxu0
  %v2491 = vadd.f32 %v1946, %v2490
  %v2492 = vpop.f32.mrf.mxu0
  %v2493 = vpop.f32.mrf.mxu0
  %v2494 = vadd.f32 %v1949, %v2493
  %v2495 = vpop.f32.mrf.mxu0
  %2496 = vmatprep.mubr.bf16.mxu0 0
  %2497 = vmatmul.mubr.bf16.gmra.mxu0 %v1513
  %v2498 = vpop.f32.mrf.mxu0
  %v2499 = vadd.f32 %v1954, %v2498
  %v2500 = vpop.f32.mrf.mxu0
  %v2501 = vpop.f32.mrf.mxu0
  %v2502 = vadd.f32 %v1957, %v2501
  %v2503 = vpop.f32.mrf.mxu0
  %2504 = vmatprep.mubr.bf16.mxu0 0
  %2505 = vmatmul.mubr.bf16.gmra.mxu0 %v1516
  %v2506 = vpop.f32.mrf.mxu0
  %v2507 = vadd.f32 %v1962, %v2506
  %v2508 = vpop.f32.mrf.mxu0
  %v2509 = vpop.f32.mrf.mxu0
  %v2510 = vadd.f32 %v1965, %v2509
  %v2511 = vpop.f32.mrf.mxu0
  %2512 = vmatprep.mubr.bf16.mxu0 0
  %2513 = vmatmul.mubr.bf16.gmra.mxu0 %v1519
  %v2514 = vpop.f32.mrf.mxu0
  %v2515 = vadd.f32 %v1970, %v2514
  %v2516 = vpop.f32.mrf.mxu0
  %v2517 = vpop.f32.mrf.mxu0
  %v2518 = vadd.f32 %v1973, %v2517
  %v2519 = vpop.f32.mrf.mxu0
  %2520 = vmatprep.mubr.bf16.mxu0 0
  %2521 = vmatmul.mubr.bf16.gmra.mxu0 %v1522
  %v2522 = vpop.f32.mrf.mxu0
  %v2523 = vadd.f32 %v1978, %v2522
  %v2524 = vpop.f32.mrf.mxu0
  %v2525 = vpop.f32.mrf.mxu0
  %v2526 = vadd.f32 %v1981, %v2525
  %v2527 = vpop.f32.mrf.mxu0
  %2528 = vmatprep.mubr.bf16.mxu0 0
  %2529 = vmatmul.mubr.bf16.gmra.mxu0 %v1525
  %v2530 = vpop.f32.mrf.mxu0
  %v2531 = vadd.f32 %v1986, %v2530
  %v2532 = vpop.f32.mrf.mxu0
  %v2533 = vpop.f32.mrf.mxu0
  %v2534 = vadd.f32 %v1989, %v2533
  %v2535 = vpop.f32.mrf.mxu0
  %2536 = vmatprep.mubr.bf16.mxu0 0
  %2537 = vmatmul.mubr.bf16.gmra.mxu0 %v1528
  %v2538 = vpop.f32.mrf.mxu0
  %v2539 = vadd.f32 %v1994, %v2538
  %v2540 = vpop.f32.mrf.mxu0
  %v2541 = vpop.f32.mrf.mxu0
  %v2542 = vadd.f32 %v1997, %v2541
  %v2543 = vpop.f32.mrf.mxu0
  %2544 = vmatprep.mubr.bf16.mxu0 0
  %2545 = vmatmul.mubr.bf16.gmra.mxu0 %v1531
  %v2546 = vpop.f32.mrf.mxu0
  %v2547 = vadd.f32 %v2002, %v2546
  %v2548 = vpop.f32.mrf.mxu0
  %v2549 = vpop.f32.mrf.mxu0
  %v2550 = vadd.f32 %v2005, %v2549
  %v2551 = vpop.f32.mrf.mxu0
  %2552 = vmatprep.mubr.bf16.mxu0 0
  %2553 = vmatmul.mubr.bf16.gmra.mxu0 %v1534
  %v2554 = vpop.f32.mrf.mxu0
  %v2555 = vadd.f32 %v2010, %v2554
  %v2556 = vpop.f32.mrf.mxu0
  %v2557 = vpop.f32.mrf.mxu0
  %v2558 = vadd.f32 %v2013, %v2557
  %v2559 = vpop.f32.mrf.mxu0
  %2560 = vmatprep.mubr.bf16.mxu0 0
  %2561 = vmatmul.mubr.bf16.gmra.mxu0 %v1537
  %v2562 = vpop.f32.mrf.mxu0
  %v2563 = vadd.f32 %v2018, %v2562
  %v2564 = vpop.f32.mrf.mxu0
  %v2565 = vpop.f32.mrf.mxu0
  %v2566 = vadd.f32 %v2021, %v2565
  %v2567 = vpop.f32.mrf.mxu0
  %2568 = vmatprep.mubr.bf16.mxu0 0
  %2569 = vmatmul.mubr.bf16.gmra.mxu0 %v1540
  %v2570 = vpop.f32.mrf.mxu0
  %v2571 = vadd.f32 %v2026, %v2570
  %v2572 = vpop.f32.mrf.mxu0
  %v2573 = vpop.f32.mrf.mxu0
  %v2574 = vadd.f32 %v2029, %v2573
  %v2575 = vpop.f32.mrf.mxu0
  %2576 = vmatprep.mubr.bf16.mxu0 0
  %2577 = vmatmul.mubr.bf16.gmra.mxu0 %v1543
  %v2578 = vpop.f32.mrf.mxu0
  %v2579 = vadd.f32 %v2034, %v2578
  %v2580 = vpop.f32.mrf.mxu0
  %v2581 = vpop.f32.mrf.mxu0
  %v2582 = vadd.f32 %v2037, %v2581
  %v2583 = vpop.f32.mrf.mxu0
  %2584 = vmatprep.mubr.bf16.mxu0 0
  %2585 = vmatmul.mubr.bf16.gmra.mxu0 %v1546
  %v2586 = vpop.f32.mrf.mxu0
  %v2587 = vadd.f32 %v2042, %v2586
  %v2588 = vpop.f32.mrf.mxu0
  %v2589 = vpop.f32.mrf.mxu0
  %v2590 = vadd.f32 %v2045, %v2589
  %v2591 = vpop.f32.mrf.mxu0
  %2592 = vmatprep.mubr.bf16.mxu0 0
  %2593 = vmatmul.mubr.bf16.gmra.mxu0 %v1549
  %v2594 = vpop.f32.mrf.mxu0
  %v2595 = vadd.f32 %v2050, %v2594
  %v2596 = vpop.f32.mrf.mxu0
  %v2597 = vpop.f32.mrf.mxu0
  %v2598 = vadd.f32 %v2053, %v2597
  %v2599 = vpop.f32.mrf.mxu0
  %2600 = vmatprep.mubr.bf16.mxu0 0
  %2601 = vmatmul.mubr.bf16.gmra.mxu0 %v1552
  %v2602 = vpop.f32.mrf.mxu0
  %v2603 = vadd.f32 %v2058, %v2602
  %v2604 = vpop.f32.mrf.mxu0
  %v2605 = vpop.f32.mrf.mxu0
  %v2606 = vadd.f32 %v2061, %v2605
  %v2607 = vpop.f32.mrf.mxu0
  %2608 = vmatprep.mubr.bf16.mxu0 0
  %2609 = vmatmul.mubr.bf16.gmra.mxu0 %v1555
  %v2610 = vpop.f32.mrf.mxu0
  %v2611 = vadd.f32 %v2066, %v2610
  %v2612 = vpop.f32.mrf.mxu0
  %v2613 = vpop.f32.mrf.mxu0
  %v2614 = vadd.f32 %v2069, %v2613
  %v2615 = vpop.f32.mrf.mxu0
  %2616 = vmatprep.mubr.bf16.mxu0 0
  %2617 = vmatmul.mubr.bf16.gmra.mxu0 %v1558
  %v2618 = vpop.f32.mrf.mxu0
  %v2619 = vadd.f32 %v2074, %v2618
  %v2620 = vpop.f32.mrf.mxu0
  %v2621 = vpop.f32.mrf.mxu0
  %v2622 = vadd.f32 %v2077, %v2621
  %v2623 = vpop.f32.mrf.mxu0
  %2624 = vmatprep.mubr.bf16.mxu0 0
  %2625 = vmatmul.mubr.bf16.gmra.mxu0 %v1561
  %v2626 = vpop.f32.mrf.mxu0
  %v2627 = vadd.f32 %v2082, %v2626
  %v2628 = vpop.f32.mrf.mxu0
  %v2629 = vpop.f32.mrf.mxu0
  %v2630 = vadd.f32 %v2085, %v2629
  %v2631 = vpop.f32.mrf.mxu0
  %2632 = vmatprep.mubr.bf16.mxu0 0
  %2633 = vmatmul.mubr.bf16.gmra.mxu0 %v1564
  %v2634 = vpop.f32.mrf.mxu0
  %v2635 = vadd.f32 %v2090, %v2634
  %v2636 = vpop.f32.mrf.mxu0
  %v2637 = vpop.f32.mrf.mxu0
  %v2638 = vadd.f32 %v2093, %v2637
  %v2639 = vpop.f32.mrf.mxu0
  %2640 = vmatprep.mubr.bf16.mxu0 0
  %2641 = vmatmul.mubr.bf16.gmra.mxu0 %v1567
  %v2642 = vpop.f32.mrf.mxu0
  %v2643 = vadd.f32 %v2098, %v2642
  %v2644 = vpop.f32.mrf.mxu0
  %v2645 = vpop.f32.mrf.mxu0
  %v2646 = vadd.f32 %v2101, %v2645
  %v2647 = vpop.f32.mrf.mxu0
  %2648 = vmatprep.mubr.bf16.mxu0 0
  %2649 = vmatmul.mubr.bf16.gmra.mxu0 %v1570
  %v2650 = vpop.f32.mrf.mxu0
  %v2651 = vadd.f32 %v2106, %v2650
  %v2652 = vpop.f32.mrf.mxu0
  %v2653 = vpop.f32.mrf.mxu0
  %v2654 = vadd.f32 %v2109, %v2653
  %v2655 = vpop.f32.mrf.mxu0
  %2656 = vmatprep.mubr.bf16.mxu0 0
  %2657 = vmatmul.mubr.bf16.gmra.mxu0 %v1573
  %v2658 = vpop.f32.mrf.mxu0
  %v2659 = vadd.f32 %v2114, %v2658
  %v2660 = vpop.f32.mrf.mxu0
  %v2661 = vpop.f32.mrf.mxu0
  %v2662 = vadd.f32 %v2117, %v2661
  %v2663 = vpop.f32.mrf.mxu0
  %2664 = vdwg.mxu0
  %v2665 = vtanh.pop %v2155
  %v2666 = vtanh.pop %v2158
  %v2667 = vtanh.pop %v2163
  %v2668 = vtanh.pop %v2166
  %v2669 = vtanh.pop %v2171
  %v2670 = vtanh.pop %v2174
  %v2671 = vtanh.pop %v2179
  %v2672 = vtanh.pop %v2182
  %v2673 = vtanh.pop %v2187
  %v2674 = vtanh.pop %v2190
  %v2675 = vtanh.pop %v2195
  %v2676 = vtanh.pop %v2198
  %v2677 = vtanh.pop %v2203
  %v2678 = vtanh.pop %v2206
  %v2679 = vtanh.pop %v2211
  %v2680 = vtanh.pop %v2214
  %v2681 = vtanh.pop %v2219
  %v2682 = vtanh.pop %v2222
  %v2683 = vtanh.pop %v2227
  %v2684 = vtanh.pop %v2230
  %v2685 = vtanh.pop %v2235
  %v2686 = vtanh.pop %v2238
  %v2687 = vtanh.pop %v2243
  %v2688 = vtanh.pop %v2246
  %v2689 = vtanh.pop %v2251
  %v2690 = vtanh.pop %v2254
  %v2691 = vtanh.pop %v2259
  %v2692 = vtanh.pop %v2262
  %v2693 = vtanh.pop %v2267
  %v2694 = vtanh.pop %v2270
  %v2695 = vtanh.pop %v2275
  %v2696 = vtanh.pop %v2278
  %v2697 = vtanh.pop %v2283
  %v2698 = vtanh.pop %v2286
  %v2699 = vtanh.pop %v2291
  %v2700 = vtanh.pop %v2294
  %v2701 = vtanh.pop %v2299
  %v2702 = vtanh.pop %v2302
  %v2703 = vtanh.pop %v2307
  %v2704 = vtanh.pop %v2310
  %v2705 = vtanh.pop %v2315
  %v2706 = vtanh.pop %v2318
  %v2707 = vtanh.pop %v2323
  %v2708 = vtanh.pop %v2326
  %v2709 = vtanh.pop %v2331
  %v2710 = vtanh.pop %v2334
  %v2711 = vtanh.pop %v2339
  %v2712 = vtanh.pop %v2342
  %v2713 = vtanh.pop %v2347
  %v2714 = vtanh.pop %v2350
  %v2715 = vtanh.pop %v2355
  %v2716 = vtanh.pop %v2358
  %v2717 = vtanh.pop %v2363
  %v2718 = vtanh.pop %v2366
  %v2719 = vtanh.pop %v2371
  %v2720 = vtanh.pop %v2374
  %v2721 = vtanh.pop %v2379
  %v2722 = vtanh.pop %v2382
  %v2723 = vtanh.pop %v2387
  %v2724 = vtanh.pop %v2390
  %v2725 = vtanh.pop %v2395
  %v2726 = vtanh.pop %v2398
  %v2727 = vtanh.pop %v2403
  %v2728 = vtanh.pop %v2406
  %v2729 = vtanh.pop %v2411
  %v2730 = vtanh.pop %v2414
  %v2731 = vtanh.pop %v2419
  %v2732 = vtanh.pop %v2422
  %v2733 = vtanh.pop %v2427
  %v2734 = vtanh.pop %v2430
  %v2735 = vtanh.pop %v2435
  %v2736 = vtanh.pop %v2438
  %v2737 = vtanh.pop %v2443
  %v2738 = vtanh.pop %v2446
  %v2739 = vtanh.pop %v2451
  %v2740 = vtanh.pop %v2454
  %v2741 = vtanh.pop %v2459
  %v2742 = vtanh.pop %v2462
  %v2743 = vtanh.pop %v2467
  %v2744 = vtanh.pop %v2470
  %v2745 = vtanh.pop %v2475
  %v2746 = vtanh.pop %v2478
  %v2747 = vtanh.pop %v2483
  %v2748 = vtanh.pop %v2486
  %v2749 = vtanh.pop %v2491
  %v2750 = vtanh.pop %v2494
  %v2751 = vtanh.pop %v2499
  %v2752 = vtanh.pop %v2502
  %v2753 = vtanh.pop %v2507
  %v2754 = vtanh.pop %v2510
  %v2755 = vtanh.pop %v2515
  %v2756 = vtanh.pop %v2518
  %v2757 = vtanh.pop %v2523
  %v2758 = vtanh.pop %v2526
  %v2759 = vtanh.pop %v2531
  %v2760 = vtanh.pop %v2534
  %v2761 = vtanh.pop %v2539
  %v2762 = vtanh.pop %v2542
  %v2763 = vtanh.pop %v2547
  %v2764 = vtanh.pop %v2550
  %v2765 = vtanh.pop %v2555
  %v2766 = vtanh.pop %v2558
  %v2767 = vtanh.pop %v2563
  %v2768 = vtanh.pop %v2566
  %v2769 = vtanh.pop %v2571
  %v2770 = vtanh.pop %v2574
  %v2771 = vtanh.pop %v2579
  %v2772 = vtanh.pop %v2582
  %v2773 = vtanh.pop %v2587
  %v2774 = vtanh.pop %v2590
  %v2775 = vtanh.pop %v2595
  %v2776 = vtanh.pop %v2598
  %v2777 = vtanh.pop %v2603
  %v2778 = vtanh.pop %v2606
  %v2779 = vtanh.pop %v2611
  %v2780 = vtanh.pop %v2614
  %v2781 = vtanh.pop %v2619
  %v2782 = vtanh.pop %v2622
  %v2783 = vtanh.pop %v2627
  %v2784 = vtanh.pop %v2630
  %v2785 = vtanh.pop %v2635
  %v2786 = vtanh.pop %v2638
  %v2787 = vtanh.pop %v2643
  %v2788 = vtanh.pop %v2646
  %v2789 = vtanh.pop %v2651
  %v2790 = vtanh.pop %v2654
  %v2791 = vtanh.pop %v2659
  %v2792 = vtanh.pop %v2662
  %v2793 = vpack.c.bf16 %v2666, %v2665
  %v2794 = vpack.c.bf16 %v2668, %v2667
  %v2795 = vpack.c.bf16 %v2670, %v2669
  %v2796 = vpack.c.bf16 %v2672, %v2671
  %v2797 = vpack.c.bf16 %v2674, %v2673
  %v2798 = vpack.c.bf16 %v2676, %v2675
  %v2799 = vpack.c.bf16 %v2678, %v2677
  %v2800 = vpack.c.bf16 %v2680, %v2679
  %v2801 = vpack.c.bf16 %v2682, %v2681
  %v2802 = vpack.c.bf16 %v2684, %v2683
  %v2803 = vpack.c.bf16 %v2686, %v2685
  %v2804 = vpack.c.bf16 %v2688, %v2687
  %v2805 = vpack.c.bf16 %v2690, %v2689
  %v2806 = vpack.c.bf16 %v2692, %v2691
  %v2807 = vpack.c.bf16 %v2694, %v2693
  %v2808 = vpack.c.bf16 %v2696, %v2695
  %v2809 = vpack.c.bf16 %v2698, %v2697
  %v2810 = vpack.c.bf16 %v2700, %v2699
  %v2811 = vpack.c.bf16 %v2702, %v2701
  %v2812 = vpack.c.bf16 %v2704, %v2703
  %v2813 = vpack.c.bf16 %v2706, %v2705
  %v2814 = vpack.c.bf16 %v2708, %v2707
  %v2815 = vpack.c.bf16 %v2710, %v2709
  %v2816 = vpack.c.bf16 %v2712, %v2711
  %v2817 = vpack.c.bf16 %v2714, %v2713
  %v2818 = vpack.c.bf16 %v2716, %v2715
  %v2819 = vpack.c.bf16 %v2718, %v2717
  %v2820 = vpack.c.bf16 %v2720, %v2719
  %v2821 = vpack.c.bf16 %v2722, %v2721
  %v2822 = vpack.c.bf16 %v2724, %v2723
  %v2823 = vpack.c.bf16 %v2726, %v2725
  %v2824 = vpack.c.bf16 %v2728, %v2727
  %v2825 = vpack.c.bf16 %v2730, %v2729
  %v2826 = vpack.c.bf16 %v2732, %v2731
  %v2827 = vpack.c.bf16 %v2734, %v2733
  %v2828 = vpack.c.bf16 %v2736, %v2735
  %v2829 = vpack.c.bf16 %v2738, %v2737
  %v2830 = vpack.c.bf16 %v2740, %v2739
  %v2831 = vpack.c.bf16 %v2742, %v2741
  %v2832 = vpack.c.bf16 %v2744, %v2743
  %v2833 = vpack.c.bf16 %v2746, %v2745
  %v2834 = vpack.c.bf16 %v2748, %v2747
  %v2835 = vpack.c.bf16 %v2750, %v2749
  %v2836 = vpack.c.bf16 %v2752, %v2751
  %v2837 = vpack.c.bf16 %v2754, %v2753
  %v2838 = vpack.c.bf16 %v2756, %v2755
  %v2839 = vpack.c.bf16 %v2758, %v2757
  %v2840 = vpack.c.bf16 %v2760, %v2759
  %v2841 = vpack.c.bf16 %v2762, %v2761
  %v2842 = vpack.c.bf16 %v2764, %v2763
  %v2843 = vpack.c.bf16 %v2766, %v2765
  %v2844 = vpack.c.bf16 %v2768, %v2767
  %v2845 = vpack.c.bf16 %v2770, %v2769
  %v2846 = vpack.c.bf16 %v2772, %v2771
  %v2847 = vpack.c.bf16 %v2774, %v2773
  %v2848 = vpack.c.bf16 %v2776, %v2775
  %v2849 = vpack.c.bf16 %v2778, %v2777
  %v2850 = vpack.c.bf16 %v2780, %v2779
  %v2851 = vpack.c.bf16 %v2782, %v2781
  %v2852 = vpack.c.bf16 %v2784, %v2783
  %v2853 = vpack.c.bf16 %v2786, %v2785
  %v2854 = vpack.c.bf16 %v2788, %v2787
  %v2855 = vpack.c.bf16 %v2790, %v2789
  %v2856 = vpack.c.bf16 %v2792, %v2791
  %v2921 = vunpack.c.l.b16 %v2793
  %v2922 = vunpack.c.h.b16 %v2793
  %v2923 = vunpack.c.l.b16 %v2794
  %v2924 = vunpack.c.h.b16 %v2794
  %v2925 = vunpack.c.l.b16 %v2795
  %v2926 = vunpack.c.h.b16 %v2795
  %v2927 = vunpack.c.l.b16 %v2796
  %v2928 = vunpack.c.h.b16 %v2796
  %v2929 = vunpack.c.l.b16 %v2797
  %v2930 = vunpack.c.h.b16 %v2797
  %v2931 = vunpack.c.l.b16 %v2798
  %v2932 = vunpack.c.h.b16 %v2798
  %v2933 = vunpack.c.l.b16 %v2799
  %v2934 = vunpack.c.h.b16 %v2799
  %v2935 = vunpack.c.l.b16 %v2800
  %v2936 = vunpack.c.h.b16 %v2800
  %v2937 = vunpack.c.l.b16 %v2801
  %v2938 = vunpack.c.h.b16 %v2801
  %v2939 = vunpack.c.l.b16 %v2802
  %v2940 = vunpack.c.h.b16 %v2802
  %v2941 = vunpack.c.l.b16 %v2803
  %v2942 = vunpack.c.h.b16 %v2803
  %v2943 = vunpack.c.l.b16 %v2804
  %v2944 = vunpack.c.h.b16 %v2804
  %v2945 = vunpack.c.l.b16 %v2805
  %v2946 = vunpack.c.h.b16 %v2805
  %v2947 = vunpack.c.l.b16 %v2806
  %v2948 = vunpack.c.h.b16 %v2806
  %v2949 = vunpack.c.l.b16 %v2807
  %v2950 = vunpack.c.h.b16 %v2807
  %v2951 = vunpack.c.l.b16 %v2808
  %v2952 = vunpack.c.h.b16 %v2808
  %v2953 = vunpack.c.l.b16 %v2809
  %v2954 = vunpack.c.h.b16 %v2809
  %v2955 = vunpack.c.l.b16 %v2810
  %v2956 = vunpack.c.h.b16 %v2810
  %v2957 = vunpack.c.l.b16 %v2811
  %v2958 = vunpack.c.h.b16 %v2811
  %v2959 = vunpack.c.l.b16 %v2812
  %v2960 = vunpack.c.h.b16 %v2812
  %v2961 = vunpack.c.l.b16 %v2813
  %v2962 = vunpack.c.h.b16 %v2813
  %v2963 = vunpack.c.l.b16 %v2814
  %v2964 = vunpack.c.h.b16 %v2814
  %v2965 = vunpack.c.l.b16 %v2815
  %v2966 = vunpack.c.h.b16 %v2815
  %v2967 = vunpack.c.l.b16 %v2816
  %v2968 = vunpack.c.h.b16 %v2816
  %v2969 = vunpack.c.l.b16 %v2817
  %v2970 = vunpack.c.h.b16 %v2817
  %v2971 = vunpack.c.l.b16 %v2818
  %v2972 = vunpack.c.h.b16 %v2818
  %v2973 = vunpack.c.l.b16 %v2819
  %v2974 = vunpack.c.h.b16 %v2819
  %v2975 = vunpack.c.l.b16 %v2820
  %v2976 = vunpack.c.h.b16 %v2820
  %v2977 = vunpack.c.l.b16 %v2821
  %v2978 = vunpack.c.h.b16 %v2821
  %v2979 = vunpack.c.l.b16 %v2822
  %v2980 = vunpack.c.h.b16 %v2822
  %v2981 = vunpack.c.l.b16 %v2823
  %v2982 = vunpack.c.h.b16 %v2823
  %v2983 = vunpack.c.l.b16 %v2824
  %v2984 = vunpack.c.h.b16 %v2824
  %v2985 = vunpack.c.l.b16 %v2825
  %v2986 = vunpack.c.h.b16 %v2825
  %v2987 = vunpack.c.l.b16 %v2826
  %v2988 = vunpack.c.h.b16 %v2826
  %v2989 = vunpack.c.l.b16 %v2827
  %v2990 = vunpack.c.h.b16 %v2827
  %v2991 = vunpack.c.l.b16 %v2828
  %v2992 = vunpack.c.h.b16 %v2828
  %v2993 = vunpack.c.l.b16 %v2829
  %v2994 = vunpack.c.h.b16 %v2829
  %v2995 = vunpack.c.l.b16 %v2830
  %v2996 = vunpack.c.h.b16 %v2830
  %v2997 = vunpack.c.l.b16 %v2831
  %v2998 = vunpack.c.h.b16 %v2831
  %v2999 = vunpack.c.l.b16 %v2832
  %v3000 = vunpack.c.h.b16 %v2832
  %v3001 = vunpack.c.l.b16 %v2833
  %v3002 = vunpack.c.h.b16 %v2833
  %v3003 = vunpack.c.l.b16 %v2834
  %v3004 = vunpack.c.h.b16 %v2834
  %v3005 = vunpack.c.l.b16 %v2835
  %v3006 = vunpack.c.h.b16 %v2835
  %v3007 = vunpack.c.l.b16 %v2836
  %v3008 = vunpack.c.h.b16 %v2836
  %v3009 = vunpack.c.l.b16 %v2837
  %v3010 = vunpack.c.h.b16 %v2837
  %v3011 = vunpack.c.l.b16 %v2838
  %v3012 = vunpack.c.h.b16 %v2838
  %v3013 = vunpack.c.l.b16 %v2839
  %v3014 = vunpack.c.h.b16 %v2839
  %v3015 = vunpack.c.l.b16 %v2840
  %v3016 = vunpack.c.h.b16 %v2840
  %v3017 = vunpack.c.l.b16 %v2841
  %v3018 = vunpack.c.h.b16 %v2841
  %v3019 = vunpack.c.l.b16 %v2842
  %v3020 = vunpack.c.h.b16 %v2842
  %v3021 = vunpack.c.l.b16 %v2843
  %v3022 = vunpack.c.h.b16 %v2843
  %v3023 = vunpack.c.l.b16 %v2844
  %v3024 = vunpack.c.h.b16 %v2844
  %v3025 = vunpack.c.l.b16 %v2845
  %v3026 = vunpack.c.h.b16 %v2845
  %v3027 = vunpack.c.l.b16 %v2846
  %v3028 = vunpack.c.h.b16 %v2846
  %v3029 = vunpack.c.l.b16 %v2847
  %v3030 = vunpack.c.h.b16 %v2847
  %v3031 = vunpack.c.l.b16 %v2848
  %v3032 = vunpack.c.h.b16 %v2848
  %v3033 = vunpack.c.l.b16 %v2849
  %v3034 = vunpack.c.h.b16 %v2849
  %v3035 = vunpack.c.l.b16 %v2850
  %v3036 = vunpack.c.h.b16 %v2850
  %v3037 = vunpack.c.l.b16 %v2851
  %v3038 = vunpack.c.h.b16 %v2851
  %v3039 = vunpack.c.l.b16 %v2852
  %v3040 = vunpack.c.h.b16 %v2852
  %v3041 = vunpack.c.l.b16 %v2853
  %v3042 = vunpack.c.h.b16 %v2853
  %v3043 = vunpack.c.l.b16 %v2854
  %v3044 = vunpack.c.h.b16 %v2854
  %v3045 = vunpack.c.l.b16 %v2855
  %v3046 = vunpack.c.h.b16 %v2855
  %v3047 = vunpack.c.l.b16 %v2856
  %v3048 = vunpack.c.h.b16 %v2856
  %v3049 = vpack.c.b16 %v2921, %v2921
  %v3050 = vpack.c.b16 %v2922, %v2922
  %v3051 = vpack.c.b16 %v2923, %v2923
  %v3052 = vpack.c.b16 %v2924, %v2924
  %v3053 = vpack.c.b16 %v2925, %v2925
  %v3054 = vpack.c.b16 %v2926, %v2926
  %v3055 = vpack.c.b16 %v2927, %v2927
  %v3056 = vpack.c.b16 %v2928, %v2928
  %v3057 = vpack.c.b16 %v2929, %v2929
  %v3058 = vpack.c.b16 %v2930, %v2930
  %v3059 = vpack.c.b16 %v2931, %v2931
  %v3060 = vpack.c.b16 %v2932, %v2932
  %v3061 = vpack.c.b16 %v2933, %v2933
  %v3062 = vpack.c.b16 %v2934, %v2934
  %v3063 = vpack.c.b16 %v2935, %v2935
  %v3064 = vpack.c.b16 %v2936, %v2936
  %v3065 = vpack.c.b16 %v2937, %v2937
  %v3066 = vpack.c.b16 %v2938, %v2938
  %v3067 = vpack.c.b16 %v2939, %v2939
  %v3068 = vpack.c.b16 %v2940, %v2940
  %v3069 = vpack.c.b16 %v2941, %v2941
  %v3070 = vpack.c.b16 %v2942, %v2942
  %v3071 = vpack.c.b16 %v2943, %v2943
  %v3072 = vpack.c.b16 %v2944, %v2944
  %v3073 = vpack.c.b16 %v2945, %v2945
  %v3074 = vpack.c.b16 %v2946, %v2946
  %v3075 = vpack.c.b16 %v2947, %v2947
  %v3076 = vpack.c.b16 %v2948, %v2948
  %v3077 = vpack.c.b16 %v2949, %v2949
  %v3078 = vpack.c.b16 %v2950, %v2950
  %v3079 = vpack.c.b16 %v2951, %v2951
  %v3080 = vpack.c.b16 %v2952, %v2952
  %v3081 = vpack.c.b16 %v2953, %v2953
  %v3082 = vpack.c.b16 %v2954, %v2954
  %v3083 = vpack.c.b16 %v2955, %v2955
  %v3084 = vpack.c.b16 %v2956, %v2956
  %v3085 = vpack.c.b16 %v2957, %v2957
  %v3086 = vpack.c.b16 %v2958, %v2958
  %v3087 = vpack.c.b16 %v2959, %v2959
  %v3088 = vpack.c.b16 %v2960, %v2960
  %v3089 = vpack.c.b16 %v2961, %v2961
  %v3090 = vpack.c.b16 %v2962, %v2962
  %v3091 = vpack.c.b16 %v2963, %v2963
  %v3092 = vpack.c.b16 %v2964, %v2964
  %v3093 = vpack.c.b16 %v2965, %v2965
  %v3094 = vpack.c.b16 %v2966, %v2966
  %v3095 = vpack.c.b16 %v2967, %v2967
  %v3096 = vpack.c.b16 %v2968, %v2968
  %v3097 = vpack.c.b16 %v2969, %v2969
  %v3098 = vpack.c.b16 %v2970, %v2970
  %v3099 = vpack.c.b16 %v2971, %v2971
  %v3100 = vpack.c.b16 %v2972, %v2972
  %v3101 = vpack.c.b16 %v2973, %v2973
  %v3102 = vpack.c.b16 %v2974, %v2974
  %v3103 = vpack.c.b16 %v2975, %v2975
  %v3104 = vpack.c.b16 %v2976, %v2976
  %v3105 = vpack.c.b16 %v2977, %v2977
  %v3106 = vpack.c.b16 %v2978, %v2978
  %v3107 = vpack.c.b16 %v2979, %v2979
  %v3108 = vpack.c.b16 %v2980, %v2980
  %v3109 = vpack.c.b16 %v2981, %v2981
  %v3110 = vpack.c.b16 %v2982, %v2982
  %v3111 = vpack.c.b16 %v2983, %v2983
  %v3112 = vpack.c.b16 %v2984, %v2984
  %v3113 = vpack.c.b16 %v2985, %v2985
  %v3114 = vpack.c.b16 %v2986, %v2986
  %v3115 = vpack.c.b16 %v2987, %v2987
  %v3116 = vpack.c.b16 %v2988, %v2988
  %v3117 = vpack.c.b16 %v2989, %v2989
  %v3118 = vpack.c.b16 %v2990, %v2990
  %v3119 = vpack.c.b16 %v2991, %v2991
  %v3120 = vpack.c.b16 %v2992, %v2992
  %v3121 = vpack.c.b16 %v2993, %v2993
  %v3122 = vpack.c.b16 %v2994, %v2994
  %v3123 = vpack.c.b16 %v2995, %v2995
  %v3124 = vpack.c.b16 %v2996, %v2996
  %v3125 = vpack.c.b16 %v2997, %v2997
  %v3126 = vpack.c.b16 %v2998, %v2998
  %v3127 = vpack.c.b16 %v2999, %v2999
  %v3128 = vpack.c.b16 %v3000, %v3000
  %v3129 = vpack.c.b16 %v3001, %v3001
  %v3130 = vpack.c.b16 %v3002, %v3002
  %v3131 = vpack.c.b16 %v3003, %v3003
  %v3132 = vpack.c.b16 %v3004, %v3004
  %v3133 = vpack.c.b16 %v3005, %v3005
  %v3134 = vpack.c.b16 %v3006, %v3006
  %v3135 = vpack.c.b16 %v3007, %v3007
  %v3136 = vpack.c.b16 %v3008, %v3008
  %v3137 = vpack.c.b16 %v3009, %v3009
  %v3138 = vpack.c.b16 %v3010, %v3010
  %v3139 = vpack.c.b16 %v3011, %v3011
  %v3140 = vpack.c.b16 %v3012, %v3012
  %v3141 = vpack.c.b16 %v3013, %v3013
  %v3142 = vpack.c.b16 %v3014, %v3014
  %v3143 = vpack.c.b16 %v3015, %v3015
  %v3144 = vpack.c.b16 %v3016, %v3016
  %v3145 = vpack.c.b16 %v3017, %v3017
  %v3146 = vpack.c.b16 %v3018, %v3018
  %v3147 = vpack.c.b16 %v3019, %v3019
  %v3148 = vpack.c.b16 %v3020, %v3020
  %v3149 = vpack.c.b16 %v3021, %v3021
  %v3150 = vpack.c.b16 %v3022, %v3022
  %v3151 = vpack.c.b16 %v3023, %v3023
  %v3152 = vpack.c.b16 %v3024, %v3024
  %v3153 = vpack.c.b16 %v3025, %v3025
  %v3154 = vpack.c.b16 %v3026, %v3026
  %v3155 = vpack.c.b16 %v3027, %v3027
  %v3156 = vpack.c.b16 %v3028, %v3028
  %v3157 = vpack.c.b16 %v3029, %v3029
  %v3158 = vpack.c.b16 %v3030, %v3030
  %v3159 = vpack.c.b16 %v3031, %v3031
  %v3160 = vpack.c.b16 %v3032, %v3032
  %v3161 = vpack.c.b16 %v3033, %v3033
  %v3162 = vpack.c.b16 %v3034, %v3034
  %v3163 = vpack.c.b16 %v3035, %v3035
  %v3164 = vpack.c.b16 %v3036, %v3036
  %v3165 = vpack.c.b16 %v3037, %v3037
  %v3166 = vpack.c.b16 %v3038, %v3038
  %v3167 = vpack.c.b16 %v3039, %v3039
  %v3168 = vpack.c.b16 %v3040, %v3040
  %v3169 = vpack.c.b16 %v3041, %v3041
  %v3170 = vpack.c.b16 %v3042, %v3042
  %v3171 = vpack.c.b16 %v3043, %v3043
  %v3172 = vpack.c.b16 %v3044, %v3044
  %v3173 = vpack.c.b16 %v3045, %v3045
  %v3174 = vpack.c.b16 %v3046, %v3046
  %v3175 = vpack.c.b16 %v3047, %v3047
  %v3176 = vpack.c.b16 %v3048, %v3048
  %3305 = vst [vmem:[%s3] sm:$0xf] %v3049
  %3306 = vst [vmem:[%s3 + $0x4] sm:$0xf] %v3050
  %3307 = vst [vmem:[%s3 + $0x8] sm:$0xf] %v3051
  %3308 = vst [vmem:[%s3 + $0xc] sm:$0xf] %v3052
  %3309 = vst [vmem:[%s3 + $0x10] sm:$0xf] %v3053
  %3310 = vst [vmem:[%s3 + $0x14] sm:$0xf] %v3054
  %3311 = vst [vmem:[%s3 + $0x18] sm:$0xf] %v3055
  %3312 = vst [vmem:[%s3 + $0x1c] sm:$0xf] %v3056
  %3313 = vst [vmem:[%s3 + $0x20] sm:$0xf] %v3057
  %3314 = vst [vmem:[%s3 + $0x24] sm:$0xf] %v3058
  %3315 = vst [vmem:[%s3 + $0x28] sm:$0xf] %v3059
  %3316 = vst [vmem:[%s3 + $0x2c] sm:$0xf] %v3060
  %3317 = vst [vmem:[%s3 + $0x30] sm:$0xf] %v3061
  %3318 = vst [vmem:[%s3 + $0x34] sm:$0xf] %v3062
  %3319 = vst [vmem:[%s3 + $0x38] sm:$0xf] %v3063
  %3320 = vst [vmem:[%s3 + $0x3c] sm:$0xf] %v3064
  %3321 = vst [vmem:[%s3 + $0x40] sm:$0xf] %v3065
  %3322 = vst [vmem:[%s3 + $0x44] sm:$0xf] %v3066
  %3323 = vst [vmem:[%s3 + $0x48] sm:$0xf] %v3067
  %3324 = vst [vmem:[%s3 + $0x4c] sm:$0xf] %v3068
  %3325 = vst [vmem:[%s3 + $0x50] sm:$0xf] %v3069
  %3326 = vst [vmem:[%s3 + $0x54] sm:$0xf] %v3070
  %3327 = vst [vmem:[%s3 + $0x58] sm:$0xf] %v3071
  %3328 = vst [vmem:[%s3 + $0x5c] sm:$0xf] %v3072
  %3329 = vst [vmem:[%s3 + $0x60] sm:$0xf] %v3073
  %3330 = vst [vmem:[%s3 + $0x64] sm:$0xf] %v3074
  %3331 = vst [vmem:[%s3 + $0x68] sm:$0xf] %v3075
  %3332 = vst [vmem:[%s3 + $0x6c] sm:$0xf] %v3076
  %3333 = vst [vmem:[%s3 + $0x70] sm:$0xf] %v3077
  %3334 = vst [vmem:[%s3 + $0x74] sm:$0xf] %v3078
  %3335 = vst [vmem:[%s3 + $0x78] sm:$0xf] %v3079
  %3336 = vst [vmem:[%s3 + $0x7c] sm:$0xf] %v3080
  %3337 = vst [vmem:[%s3 + $0x80] sm:$0xf] %v3081
  %3338 = vst [vmem:[%s3 + $0x84] sm:$0xf] %v3082
  %3339 = vst [vmem:[%s3 + $0x88] sm:$0xf] %v3083
  %3340 = vst [vmem:[%s3 + $0x8c] sm:$0xf] %v3084
  %3341 = vst [vmem:[%s3 + $0x90] sm:$0xf] %v3085
  %3342 = vst [vmem:[%s3 + $0x94] sm:$0xf] %v3086
  %3343 = vst [vmem:[%s3 + $0x98] sm:$0xf] %v3087
  %3344 = vst [vmem:[%s3 + $0x9c] sm:$0xf] %v3088
  %3345 = vst [vmem:[%s3 + $0xa0] sm:$0xf] %v3089
  %3346 = vst [vmem:[%s3 + $0xa4] sm:$0xf] %v3090
  %3347 = vst [vmem:[%s3 + $0xa8] sm:$0xf] %v3091
  %3348 = vst [vmem:[%s3 + $0xac] sm:$0xf] %v3092
  %3349 = vst [vmem:[%s3 + $0xb0] sm:$0xf] %v3093
  %3350 = vst [vmem:[%s3 + $0xb4] sm:$0xf] %v3094
  %3351 = vst [vmem:[%s3 + $0xb8] sm:$0xf] %v3095
  %3352 = vst [vmem:[%s3 + $0xbc] sm:$0xf] %v3096
  %3353 = vst [vmem:[%s3 + $0xc0] sm:$0xf] %v3097
  %3354 = vst [vmem:[%s3 + $0xc4] sm:$0xf] %v3098
  %3355 = vst [vmem:[%s3 + $0xc8] sm:$0xf] %v3099
  %3356 = vst [vmem:[%s3 + $0xcc] sm:$0xf] %v3100
  %3357 = vst [vmem:[%s3 + $0xd0] sm:$0xf] %v3101
  %3358 = vst [vmem:[%s3 + $0xd4] sm:$0xf] %v3102
  %3359 = vst [vmem:[%s3 + $0xd8] sm:$0xf] %v3103
  %3360 = vst [vmem:[%s3 + $0xdc] sm:$0xf] %v3104
  %3361 = vst [vmem:[%s3 + $0xe0] sm:$0xf] %v3105
  %3362 = vst [vmem:[%s3 + $0xe4] sm:$0xf] %v3106
  %3363 = vst [vmem:[%s3 + $0xe8] sm:$0xf] %v3107
  %3364 = vst [vmem:[%s3 + $0xec] sm:$0xf] %v3108
  %3365 = vst [vmem:[%s3 + $0xf0] sm:$0xf] %v3109
  %3366 = vst [vmem:[%s3 + $0xf4] sm:$0xf] %v3110
  %3367 = vst [vmem:[%s3 + $0xf8] sm:$0xf] %v3111
  %3368 = vst [vmem:[%s3 + $0xfc] sm:$0xf] %v3112
  %3369 = vst [vmem:[%s3 + $0x100] sm:$0xf] %v3113
  %3370 = vst [vmem:[%s3 + $0x104] sm:$0xf] %v3114
  %3371 = vst [vmem:[%s3 + $0x108] sm:$0xf] %v3115
  %3372 = vst [vmem:[%s3 + $0x10c] sm:$0xf] %v3116
  %3373 = vst [vmem:[%s3 + $0x110] sm:$0xf] %v3117
  %3374 = vst [vmem:[%s3 + $0x114] sm:$0xf] %v3118
  %3375 = vst [vmem:[%s3 + $0x118] sm:$0xf] %v3119
  %3376 = vst [vmem:[%s3 + $0x11c] sm:$0xf] %v3120
  %3377 = vst [vmem:[%s3 + $0x120] sm:$0xf] %v3121
  %3378 = vst [vmem:[%s3 + $0x124] sm:$0xf] %v3122
  %3379 = vst [vmem:[%s3 + $0x128] sm:$0xf] %v3123
  %3380 = vst [vmem:[%s3 + $0x12c] sm:$0xf] %v3124
  %3381 = vst [vmem:[%s3 + $0x130] sm:$0xf] %v3125
  %3382 = vst [vmem:[%s3 + $0x134] sm:$0xf] %v3126
  %3383 = vst [vmem:[%s3 + $0x138] sm:$0xf] %v3127
  %3384 = vst [vmem:[%s3 + $0x13c] sm:$0xf] %v3128
  %3385 = vst [vmem:[%s3 + $0x140] sm:$0xf] %v3129
  %3386 = vst [vmem:[%s3 + $0x144] sm:$0xf] %v3130
  %3387 = vst [vmem:[%s3 + $0x148] sm:$0xf] %v3131
  %3388 = vst [vmem:[%s3 + $0x14c] sm:$0xf] %v3132
  %3389 = vst [vmem:[%s3 + $0x150] sm:$0xf] %v3133
  %3390 = vst [vmem:[%s3 + $0x154] sm:$0xf] %v3134
  %3391 = vst [vmem:[%s3 + $0x158] sm:$0xf] %v3135
  %3392 = vst [vmem:[%s3 + $0x15c] sm:$0xf] %v3136
  %3393 = vst [vmem:[%s3 + $0x160] sm:$0xf] %v3137
  %3394 = vst [vmem:[%s3 + $0x164] sm:$0xf] %v3138
  %3395 = vst [vmem:[%s3 + $0x168] sm:$0xf] %v3139
  %3396 = vst [vmem:[%s3 + $0x16c] sm:$0xf] %v3140
  %3397 = vst [vmem:[%s3 + $0x170] sm:$0xf] %v3141
  %3398 = vst [vmem:[%s3 + $0x174] sm:$0xf] %v3142
  %3399 = vst [vmem:[%s3 + $0x178] sm:$0xf] %v3143
  %3400 = vst [vmem:[%s3 + $0x17c] sm:$0xf] %v3144
  %3401 = vst [vmem:[%s3 + $0x180] sm:$0xf] %v3145
  %3402 = vst [vmem:[%s3 + $0x184] sm:$0xf] %v3146
  %3403 = vst [vmem:[%s3 + $0x188] sm:$0xf] %v3147
  %3404 = vst [vmem:[%s3 + $0x18c] sm:$0xf] %v3148
  %3405 = vst [vmem:[%s3 + $0x190] sm:$0xf] %v3149
  %3406 = vst [vmem:[%s3 + $0x194] sm:$0xf] %v3150
  %3407 = vst [vmem:[%s3 + $0x198] sm:$0xf] %v3151
  %3408 = vst [vmem:[%s3 + $0x19c] sm:$0xf] %v3152
  %3409 = vst [vmem:[%s3 + $0x1a0] sm:$0xf] %v3153
  %3410 = vst [vmem:[%s3 + $0x1a4] sm:$0xf] %v3154
  %3411 = vst [vmem:[%s3 + $0x1a8] sm:$0xf] %v3155
  %3412 = vst [vmem:[%s3 + $0x1ac] sm:$0xf] %v3156
  %3413 = vst [vmem:[%s3 + $0x1b0] sm:$0xf] %v3157
  %3414 = vst [vmem:[%s3 + $0x1b4] sm:$0xf] %v3158
  %3415 = vst [vmem:[%s3 + $0x1b8] sm:$0xf] %v3159
  %3416 = vst [vmem:[%s3 + $0x1bc] sm:$0xf] %v3160
  %3417 = vst [vmem:[%s3 + $0x1c0] sm:$0xf] %v3161
  %3418 = vst [vmem:[%s3 + $0x1c4] sm:$0xf] %v3162
  %3419 = vst [vmem:[%s3 + $0x1c8] sm:$0xf] %v3163
  %3420 = vst [vmem:[%s3 + $0x1cc] sm:$0xf] %v3164
  %3421 = vst [vmem:[%s3 + $0x1d0] sm:$0xf] %v3165
  %3422 = vst [vmem:[%s3 + $0x1d4] sm:$0xf] %v3166
  %3423 = vst [vmem:[%s3 + $0x1d8] sm:$0xf] %v3167
  %3424 = vst [vmem:[%s3 + $0x1dc] sm:$0xf] %v3168
  %3425 = vst [vmem:[%s3 + $0x1e0] sm:$0xf] %v3169
  %3426 = vst [vmem:[%s3 + $0x1e4] sm:$0xf] %v3170
  %3427 = vst [vmem:[%s3 + $0x1e8] sm:$0xf] %v3171
  %3428 = vst [vmem:[%s3 + $0x1ec] sm:$0xf] %v3172
  %3429 = vst [vmem:[%s3 + $0x1f0] sm:$0xf] %v3173
  %3430 = vst [vmem:[%s3 + $0x1f4] sm:$0xf] %v3174
  %3431 = vst [vmem:[%s3 + $0x1f8] sm:$0xf] %v3175
  %3432 = vst [vmem:[%s3 + $0x1fc] sm:$0xf] %v3176
  // Predicated region
  $region14: #{bicycle_gan_forward.20} parent=0 // pred_check
    _
  $region15: #{bicycle_gan_forward.20} parent=0 // pred_check_branch
    %3434 = sbr.rel (0) target = $region17
  $region16: #{bicycle_gan_forward.20} parent=0 // pred_region
    _
  $region17: #{bicycle_gan_forward.20} parent=0 // pred_fallthru
    _
  // Predicated region
  $region18: #{bicycle_gan_forward.20} parent=0 // pred_check
    _
  $region19: #{bicycle_gan_forward.20} parent=0 // pred_check_branch
    %3436 = sbr.rel (0) target = $region21
  $region20: #{bicycle_gan_forward.20} parent=0 // pred_region
    _
  $region21: #{bicycle_gan_forward.20} parent=0 // pred_fallthru
    _

// kernel: bicycle_gan_forward.26
$region0: #{bicycle_gan_forward.26}
  #allocation0 [shape = 'u32[]', space=smem, size = 0x4, offset = 0x4, fixed_abs, tag = 'smem constant byte address 0x4 - core index']
  #allocation1 [shape = 'u32[144,128]{1,0:T(1,128)}', space=vmem, size = 0x12000, scoped, tag = 'internal scratch']
  %s0 = inlined_call_operand.vmem [shape: bf16[64,27], index: 0, kind: input, shape index: {}]
  %s1 = inlined_call_operand.vmem [shape: bf16[27,128], index: 1, kind: input, shape index: {}]
  %s2 = inlined_call_operand.vmem [shape: f32[1,128], index: 2, kind: input, shape index: {}]
  %s3 = inlined_call_operand.vmem [shape: bf16[64,128], index: 3, kind: output, shape index: {}]
  %s4 = sld [smem:[#allocation0]]
  $region22: #{bicycle_gan_forward.26} parent=0
    _
  %s6 = ssub.s32 1, %s4
  %s7 = scalar_select 0, %s6, %s4
  // Predicated region
  $region2: #{bicycle_gan_forward.26} parent=0 // pred_check
    _
  $region3: #{bicycle_gan_forward.26} parent=0 // pred_check_branch
    %9 = sbr.rel (0) target = $region5
  $region4: #{bicycle_gan_forward.26} parent=0 // pred_region
    _
  $region5: #{bicycle_gan_forward.26} parent=0 // pred_fallthru
    _
  // Predicated region
  $region6: #{bicycle_gan_forward.26} parent=0 // pred_check
    _
  $region7: #{bicycle_gan_forward.26} parent=0 // pred_check_branch
    %11 = sbr.rel (0) target = $region9
  $region8: #{bicycle_gan_forward.26} parent=0 // pred_region
    _
  $region9: #{bicycle_gan_forward.26} parent=0 // pred_fallthru
    _
  // Predicated region
  $region10: #{bicycle_gan_forward.26} parent=0 // pred_check
    _
  $region11: #{bicycle_gan_forward.26} parent=0 // pred_check_branch
    %13 = sbr.rel (0) target = $region13
  $region12: #{bicycle_gan_forward.26} parent=0 // pred_region
    _
  $region13: #{bicycle_gan_forward.26} parent=0 // pred_fallthru
    _
  %v15 = vld [vmem:[%s0] sm:$0xf]
  %v16 = vld [vmem:[%s0 + $0x4] sm:$0xf]
  %v17 = vld [vmem:[%s0 + $0x8] sm:$0xf]
  %v18 = vld [vmem:[%s0 + $0xc] sm:$0xf]
  %v19 = vld [vmem:[%s0 + $0x10] sm:$0xf]
  %v20 = vld [vmem:[%s0 + $0x14] sm:$0xf]
  %v21 = vld [vmem:[%s0 + $0x18] sm:$0xf]
  %v22 = vld [vmem:[%s0 + $0x1c] sm:$0xf]
  %v23 = vld [vmem:[%s1] sm:$0xf]
  %v24 = vld [vmem:[%s1 + $0x4] sm:$0xf]
  %v25 = vld [vmem:[%s1 + $0x8] sm:$0xf]
  %v26 = vld [vmem:[%s1 + $0xc] sm:$0x3]
  %v27 = vld [vmem:[%s2] sm:$0x1]
  %v29 = vlaneseq
  %v30 = vshrl.u32 %v29, 7
  %v31 = vsub.s32 0, %v30
  %v32 = vrot.slane %v27, %v31
  %v42 = vunpack.c.l.b16 %v15
  %v43 = vunpack.c.l.b16 %v16
  %v44 = vunpack.c.l.b16 %v17
  %v45 = vunpack.c.l.b16 %v18
  %v46 = vunpack.c.l.b16 %v19
  %v47 = vunpack.c.l.b16 %v20
  %v48 = vunpack.c.l.b16 %v21
  %v49 = vunpack.c.l.b16 %v22
  %v50 = vpack.c.b16 %v43, %v42
  %v51 = vpack.c.b16 %v45, %v44
  %v52 = vpack.c.b16 %v47, %v46
  %v53 = vpack.c.b16 %v49, %v48
  %v58 = vunpack.c.l.b16 %v23
  %v59 = vunpack.c.l.b16 %v24
  %v60 = vunpack.c.l.b16 %v25
  %v61 = vunpack.c.l.b16 %v26
  %v62 = vpack.c.b16 %v59, %v58
  %v63 = vpack.c.b16 %v61, %v60
  %vm65 = vcmask 220160
  %v67 = vsel %vm65, %v50, 0
  %v70 = vsel %vm65, %v51, 0
  %v73 = vsel %vm65, %v52, 0
  %v76 = vsel %vm65, %v53, 0
  %vm78 = vcmask 1044480
  %vm79 = vcmask 1045504
  %v80 = vsel %vm78, 4294967295, 65535
  %v81 = vsel %vm79, %v80, 0
  %v83 = vand.u32 %v63, %v81
  %85 = vmatprep.subr.bf16.mxu0 0
  %86 = vmatpush1.bf16.msra.mxu0 0
  %87 = vmatprep.subr.bf16.mxu0 0
  %88 = vmatpush1.bf16.msra.mxu0 0
  %89 = vmatprep.subr.bf16.mxu0 0
  %90 = vmatpush1.bf16.msra.mxu0 0
  %91 = vmatprep.subr.bf16.mxu0 0
  %92 = vmatpush1.bf16.msra.mxu0 0
  %93 = vmatprep.subr.bf16.mxu0 0
  %94 = vmatpush1.bf16.msra.mxu0 0
  %95 = vmatprep.subr.bf16.mxu0 0
  %96 = vmatpush1.bf16.msra.mxu0 0
  %97 = vmatprep.subr.bf16.mxu0 0
  %98 = vmatpush1.bf16.msra.mxu0 %v83
  %99 = vmatprep.subr.bf16.mxu0 0
  %100 = vmatpush1.bf16.msra.mxu0 %v62
  %101 = vmatprep.subr.bf16.mxu0 0
  %102 = vmatpush2.bf16.msra.mxu0 0
  %103 = vmatprep.subr.bf16.mxu0 0
  %104 = vmatpush2.bf16.msra.mxu0 0
  %105 = vmatprep.subr.bf16.mxu0 0
  %106 = vmatpush2.bf16.msra.mxu0 0
  %107 = vmatprep.subr.bf16.mxu0 0
  %108 = vmatpush2.bf16.msra.mxu0 0
  %109 = vmatprep.subr.bf16.mxu0 0
  %110 = vmatpush2.bf16.msra.mxu0 0
  %111 = vmatprep.subr.bf16.mxu0 0
  %112 = vmatpush2.bf16.msra.mxu0 0
  %113 = vmatprep.subr.bf16.mxu0 0
  %114 = vmatpush2.bf16.msra.mxu0 0
  %115 = vmatprep.subr.bf16.mxu0 0
  %116 = vmatpush2.bf16.msra.mxu0 0
  %117 = vmatprep.mubr.bf16.mxu0 0
  %118 = vmatmul.mubr.bf16.gmra.mxu0 %v67
  %v119 = vpop.f32.mrf.mxu0
  %v120 = vadd.f32 %v32, %v119
  %v121 = vpop.f32.mrf.mxu0
  %v122 = vpop.f32.mrf.mxu0
  %v123 = vadd.f32 %v32, %v122
  %v124 = vpop.f32.mrf.mxu0
  %125 = vmatprep.mubr.bf16.mxu0 0
  %126 = vmatmul.mubr.bf16.gmra.mxu0 %v70
  %v127 = vpop.f32.mrf.mxu0
  %v128 = vadd.f32 %v32, %v127
  %v129 = vpop.f32.mrf.mxu0
  %v130 = vpop.f32.mrf.mxu0
  %v131 = vadd.f32 %v32, %v130
  %v132 = vpop.f32.mrf.mxu0
  %133 = vmatprep.mubr.bf16.mxu0 0
  %134 = vmatmul.mubr.bf16.gmra.mxu0 %v73
  %v135 = vpop.f32.mrf.mxu0
  %v136 = vadd.f32 %v32, %v135
  %v137 = vpop.f32.mrf.mxu0
  %v138 = vpop.f32.mrf.mxu0
  %v139 = vadd.f32 %v32, %v138
  %v140 = vpop.f32.mrf.mxu0
  %141 = vmatprep.mubr.bf16.mxu0 0
  %142 = vmatmul.mubr.bf16.gmra.mxu0 %v76
  %v143 = vpop.f32.mrf.mxu0
  %v144 = vadd.f32 %v32, %v143
  %v145 = vpop.f32.mrf.mxu0
  %v146 = vpop.f32.mrf.mxu0
  %v147 = vadd.f32 %v32, %v146
  %v148 = vpop.f32.mrf.mxu0
  %149 = vdwg.mxu0
  %v150 = vmul.f32 %v120, 0.2
  %v151 = vmul.f32 %v123, 0.2
  %v152 = vmul.f32 %v128, 0.2
  %v153 = vmul.f32 %v131, 0.2
  %v154 = vmul.f32 %v136, 0.2
  %v155 = vmul.f32 %v139, 0.2
  %v156 = vmul.f32 %v144, 0.2
  %v157 = vmul.f32 %v147, 0.2
  %v158 = vmax.f32 %v120, %v150
  %v159 = vmax.f32 %v123, %v151
  %v160 = vmax.f32 %v128, %v152
  %v161 = vmax.f32 %v131, %v153
  %v162 = vmax.f32 %v136, %v154
  %v163 = vmax.f32 %v139, %v155
  %v164 = vmax.f32 %v144, %v156
  %v165 = vmax.f32 %v147, %v157
  %v166 = vpack.c.bf16 %v159, %v158
  %v167 = vpack.c.bf16 %v161, %v160
  %v168 = vpack.c.bf16 %v163, %v162
  %v169 = vpack.c.bf16 %v165, %v164
  %v174 = vunpack.c.l.b16 %v166
  %v175 = vunpack.c.h.b16 %v166
  %v176 = vunpack.c.l.b16 %v167
  %v177 = vunpack.c.h.b16 %v167
  %v178 = vunpack.c.l.b16 %v168
  %v179 = vunpack.c.h.b16 %v168
  %v180 = vunpack.c.l.b16 %v169
  %v181 = vunpack.c.h.b16 %v169
  %v182 = vpack.c.b16 %v174, %v174
  %v183 = vpack.c.b16 %v175, %v175
  %v184 = vpack.c.b16 %v176, %v176
  %v185 = vpack.c.b16 %v177, %v177
  %v186 = vpack.c.b16 %v178, %v178
  %v187 = vpack.c.b16 %v179, %v179
  %v188 = vpack.c.b16 %v180, %v180
  %v189 = vpack.c.b16 %v181, %v181
  %198 = vst [vmem:[%s3] sm:$0xf] %v182
  %199 = vst [vmem:[%s3 + $0x4] sm:$0xf] %v183
  %200 = vst [vmem:[%s3 + $0x8] sm:$0xf] %v184
  %201 = vst [vmem:[%s3 + $0xc] sm:$0xf] %v185
  %202 = vst [vmem:[%s3 + $0x10] sm:$0xf] %v186
  %203 = vst [vmem:[%s3 + $0x14] sm:$0xf] %v187
  %204 = vst [vmem:[%s3 + $0x18] sm:$0xf] %v188
  %205 = vst [vmem:[%s3 + $0x1c] sm:$0xf] %v189
  // Predicated region
  $region14: #{bicycle_gan_forward.26} parent=0 // pred_check
    _
  $region15: #{bicycle_gan_forward.26} parent=0 // pred_check_branch
    %207 = sbr.rel (0) target = $region17
  $region16: #{bicycle_gan_forward.26} parent=0 // pred_region
    _
  $region17: #{bicycle_gan_forward.26} parent=0 // pred_fallthru
    _
  // Predicated region
  $region18: #{bicycle_gan_forward.26} parent=0 // pred_check
    _
  $region19: #{bicycle_gan_forward.26} parent=0 // pred_check_branch
    %209 = sbr.rel (0) target = $region21
  $region20: #{bicycle_gan_forward.26} parent=0 // pred_region
    _
  $region21: #{bicycle_gan_forward.26} parent=0 // pred_fallthru
    _

// kernel: bicycle_gan_forward.27
$region0: #{bicycle_gan_forward.27}
  #allocation0 [shape = 'u32[]', space=smem, size = 0x4, offset = 0x4, fixed_abs, tag = 'smem constant byte address 0x4 - core index']
  #allocation1 [shape = 'u32[144,128]{1,0:T(1,128)}', space=vmem, size = 0x12000, scoped, tag = 'internal scratch']
  %s0 = inlined_call_operand.vmem [shape: bf16[64,288], index: 0, kind: input, shape index: {}]
  %s1 = inlined_call_operand.vmem [shape: bf16[288,128], index: 1, kind: input, shape index: {}]
  %s2 = inlined_call_operand.vmem [shape: f32[1,128], index: 2, kind: input, shape index: {}]
  %s3 = inlined_call_operand.vmem [shape: bf16[64,128], index: 3, kind: output, shape index: {}]
  %s4 = sld [smem:[#allocation0]]
  $region22: #{bicycle_gan_forward.27} parent=0
    _
  %s6 = ssub.s32 1, %s4
  %s7 = scalar_select 0, %s6, %s4
  // Predicated region
  $region2: #{bicycle_gan_forward.27} parent=0 // pred_check
    _
  $region3: #{bicycle_gan_forward.27} parent=0 // pred_check_branch
    %9 = sbr.rel (0) target = $region5
  $region4: #{bicycle_gan_forward.27} parent=0 // pred_region
    _
  $region5: #{bicycle_gan_forward.27} parent=0 // pred_fallthru
    _
  // Predicated region
  $region6: #{bicycle_gan_forward.27} parent=0 // pred_check
    _
  $region7: #{bicycle_gan_forward.27} parent=0 // pred_check_branch
    %11 = sbr.rel (0) target = $region9
  $region8: #{bicycle_gan_forward.27} parent=0 // pred_region
    _
  $region9: #{bicycle_gan_forward.27} parent=0 // pred_fallthru
    _
  // Predicated region
  $region10: #{bicycle_gan_forward.27} parent=0 // pred_check
    _
  $region11: #{bicycle_gan_forward.27} parent=0 // pred_check_branch
    %13 = sbr.rel (0) target = $region13
  $region12: #{bicycle_gan_forward.27} parent=0 // pred_region
    _
  $region13: #{bicycle_gan_forward.27} parent=0 // pred_fallthru
    _
  %v15 = vld [vmem:[%s0] sm:$0xff]
  %v16 = vld [vmem:[%s0 + $0x8] sm:$0xf]
  %v17 = vld [vmem:[%s0 + $0xc] sm:$0xff]
  %v18 = vld [vmem:[%s0 + $0x14] sm:$0xf]
  %v19 = vld [vmem:[%s0 + $0x18] sm:$0xff]
  %v20 = vld [vmem:[%s0 + $0x20] sm:$0xf]
  %v21 = vld [vmem:[%s0 + $0x24] sm:$0xff]
  %v22 = vld [vmem:[%s0 + $0x2c] sm:$0xf]
  %v23 = vld [vmem:[%s0 + $0x30] sm:$0xff]
  %v24 = vld [vmem:[%s0 + $0x38] sm:$0xf]
  %v25 = vld [vmem:[%s0 + $0x3c] sm:$0xff]
  %v26 = vld [vmem:[%s0 + $0x44] sm:$0xf]
  %v27 = vld [vmem:[%s0 + $0x48] sm:$0xff]
  %v28 = vld [vmem:[%s0 + $0x50] sm:$0xf]
  %v29 = vld [vmem:[%s0 + $0x54] sm:$0xff]
  %v30 = vld [vmem:[%s0 + $0x5c] sm:$0xf]
  %v31 = vld [vmem:[%s1] sm:$0xf]
  %v32 = vld [vmem:[%s1 + $0x4] sm:$0xf]
  %v33 = vld [vmem:[%s1 + $0x8] sm:$0xf]
  %v34 = vld [vmem:[%s1 + $0xc] sm:$0xf]
  %v35 = vld [vmem:[%s1 + $0x10] sm:$0xf]
  %v36 = vld [vmem:[%s1 + $0x14] sm:$0xf]
  %v37 = vld [vmem:[%s1 + $0x18] sm:$0xf]
  %v38 = vld [vmem:[%s1 + $0x1c] sm:$0xf]
  %v39 = vld [vmem:[%s1 + $0x20] sm:$0xf]
  %v40 = vld [vmem:[%s1 + $0x24] sm:$0xf]
  %v41 = vld [vmem:[%s1 + $0x28] sm:$0xf]
  %v42 = vld [vmem:[%s1 + $0x2c] sm:$0xf]
  %v43 = vld [vmem:[%s1 + $0x30] sm:$0xf]
  %v44 = vld [vmem:[%s1 + $0x34] sm:$0xf]
  %v45 = vld [vmem:[%s1 + $0x38] sm:$0xf]
  %v46 = vld [vmem:[%s1 + $0x3c] sm:$0xf]
  %v47 = vld [vmem:[%s1 + $0x40] sm:$0xf]
  %v48 = vld [vmem:[%s1 + $0x44] sm:$0xf]
  %v49 = vld [vmem:[%s1 + $0x48] sm:$0xf]
  %v50 = vld [vmem:[%s1 + $0x4c] sm:$0xf]
  %v51 = vld [vmem:[%s1 + $0x50] sm:$0xf]
  %v52 = vld [vmem:[%s1 + $0x54] sm:$0xf]
  %v53 = vld [vmem:[%s1 + $0x58] sm:$0xf]
  %v54 = vld [vmem:[%s1 + $0x5c] sm:$0xf]
  %v55 = vld [vmem:[%s1 + $0x60] sm:$0xf]
  %v56 = vld [vmem:[%s1 + $0x64] sm:$0xf]
  %v57 = vld [vmem:[%s1 + $0x68] sm:$0xf]
  %v58 = vld [vmem:[%s1 + $0x6c] sm:$0xf]
  %v59 = vld [vmem:[%s1 + $0x70] sm:$0xf]
  %v60 = vld [vmem:[%s1 + $0x74] sm:$0xf]
  %v61 = vld [vmem:[%s1 + $0x78] sm:$0xf]
  %v62 = vld [vmem:[%s1 + $0x7c] sm:$0xf]
  %v63 = vld [vmem:[%s1 + $0x80] sm:$0xf]
  %v64 = vld [vmem:[%s1 + $0x84] sm:$0xf]
  %v65 = vld [vmem:[%s1 + $0x88] sm:$0xf]
  %v66 = vld [vmem:[%s1 + $0x8c] sm:$0xf]
  %v67 = vld [vmem:[%s2] sm:$0x1]
  %v69 = vlaneseq
  %v70 = vshrl.u32 %v69, 7
  %v71 = vsub.s32 0, %v70
  %v72 = vrot.slane %v67, %v71
  %v90 = vunpack.c.l.b16 %v15
  %v91 = vunpack.c.h.b16 %v15
  %v92 = vunpack.c.l.b16 %v16
  %v93 = vunpack.c.l.b16 %v17
  %v94 = vunpack.c.h.b16 %v17
  %v95 = vunpack.c.l.b16 %v18
  %v96 = vunpack.c.l.b16 %v19
  %v97 = vunpack.c.h.b16 %v19
  %v98 = vunpack.c.l.b16 %v20
  %v99 = vunpack.c.l.b16 %v21
  %v100 = vunpack.c.h.b16 %v21
  %v101 = vunpack.c.l.b16 %v22
  %v102 = vunpack.c.l.b16 %v23
  %v103 = vunpack.c.h.b16 %v23
  %v104 = vunpack.c.l.b16 %v24
  %v105 = vunpack.c.l.b16 %v25
  %v106 = vunpack.c.h.b16 %v25
  %v107 = vunpack.c.l.b16 %v26
  %v108 = vunpack.c.l.b16 %v27
  %v109 = vunpack.c.h.b16 %v27
  %v110 = vunpack.c.l.b16 %v28
  %v111 = vunpack.c.l.b16 %v29
  %v112 = vunpack.c.h.b16 %v29
  %v113 = vunpack.c.l.b16 %v30
  %v114 = vpack.c.b16 %v93, %v90
  %v115 = vpack.c.b16 %v94, %v91
  %v116 = vpack.c.b16 %v95, %v92
  %v117 = vpack.c.b16 %v99, %v96
  %v118 = vpack.c.b16 %v100, %v97
  %v119 = vpack.c.b16 %v101, %v98
  %v120 = vpack.c.b16 %v105, %v102
  %v121 = vpack.c.b16 %v106, %v103
  %v122 = vpack.c.b16 %v107, %v104
  %v123 = vpack.c.b16 %v111, %v108
  %v124 = vpack.c.b16 %v112, %v109
  %v125 = vpack.c.b16 %v113, %v110
  %v170 = vunpack.c.l.b16 %v31
  %v171 = vunpack.c.l.b16 %v32
  %v172 = vunpack.c.l.b16 %v33
  %v173 = vunpack.c.l.b16 %v34
  %v174 = vunpack.c.l.b16 %v35
  %v175 = vunpack.c.l.b16 %v36
  %v176 = vunpack.c.l.b16 %v37
  %v177 = vunpack.c.l.b16 %v38
  %v178 = vunpack.c.l.b16 %v39
  %v179 = vunpack.c.l.b16 %v40
  %v180 = vunpack.c.l.b16 %v41
  %v181 = vunpack.c.l.b16 %v42
  %v182 = vunpack.c.l.b16 %v43
  %v183 = vunpack.c.l.b16 %v44
  %v184 = vunpack.c.l.b16 %v45
  %v185 = vunpack.c.l.b16 %v46
  %v186 = vunpack.c.l.b16 %v47
  %v187 = vunpack.c.l.b16 %v48
  %v188 = vunpack.c.l.b16 %v49
  %v189 = vunpack.c.l.b16 %v50
  %v190 = vunpack.c.l.b16 %v51
  %v191 = vunpack.c.l.b16 %v52
  %v192 = vunpack.c.l.b16 %v53
  %v193 = vunpack.c.l.b16 %v54
  %v194 = vunpack.c.l.b16 %v55
  %v195 = vunpack.c.l.b16 %v56
  %v196 = vunpack.c.l.b16 %v57
  %v197 = vunpack.c.l.b16 %v58
  %v198 = vunpack.c.l.b16 %v59
  %v199 = vunpack.c.l.b16 %v60
  %v200 = vunpack.c.l.b16 %v61
  %v201 = vunpack.c.l.b16 %v62
  %v202 = vunpack.c.l.b16 %v63
  %v203 = vunpack.c.l.b16 %v64
  %v204 = vunpack.c.l.b16 %v65
  %v205 = vunpack.c.l.b16 %v66
  %v206 = vpack.c.b16 %v171, %v170
  %v207 = vpack.c.b16 %v173, %v172
  %v208 = vpack.c.b16 %v175, %v174
  %v209 = vpack.c.b16 %v177, %v176
  %v210 = vpack.c.b16 %v179, %v178
  %v211 = vpack.c.b16 %v181, %v180
  %v212 = vpack.c.b16 %v183, %v182
  %v213 = vpack.c.b16 %v185, %v184
  %v214 = vpack.c.b16 %v187, %v186
  %v215 = vpack.c.b16 %v189, %v188
  %v216 = vpack.c.b16 %v191, %v190
  %v217 = vpack.c.b16 %v193, %v192
  %v218 = vpack.c.b16 %v195, %v194
  %v219 = vpack.c.b16 %v197, %v196
  %v220 = vpack.c.b16 %v199, %v198
  %v221 = vpack.c.b16 %v201, %v200
  %v222 = vpack.c.b16 %v203, %v202
  %v223 = vpack.c.b16 %v205, %v204
  %vm242 = vcmask 261120
  %v244 = vsel %vm242, %v116, 0
  %v247 = vsel %vm242, %v119, 0
  %v250 = vsel %vm242, %v122, 0
  %v253 = vsel %vm242, %v125, 0
  %255 = vmatprep.subr.bf16.mxu0 0
  %256 = vmatpush1.bf16.msra.mxu0 %v213
  %257 = vmatprep.subr.bf16.mxu0 0
  %258 = vmatpush1.bf16.msra.mxu0 %v212
  %259 = vmatprep.subr.bf16.mxu0 0
  %260 = vmatpush1.bf16.msra.mxu0 %v211
  %261 = vmatprep.subr.bf16.mxu0 0
  %262 = vmatpush1.bf16.msra.mxu0 %v210
  %263 = vmatprep.subr.bf16.mxu0 0
  %264 = vmatpush1.bf16.msra.mxu0 %v209
  %265 = vmatprep.subr.bf16.mxu0 0
  %266 = vmatpush1.bf16.msra.mxu0 %v208
  %267 = vmatprep.subr.bf16.mxu0 0
  %268 = vmatpush1.bf16.msra.mxu0 %v207
  %269 = vmatprep.subr.bf16.mxu0 0
  %270 = vmatpush1.bf16.msra.mxu0 %v206
  %271 = vmatprep.subr.bf16.mxu0 0
  %272 = vmatpush2.bf16.msra.mxu0 %v221
  %273 = vmatprep.subr.bf16.mxu0 0
  %274 = vmatpush2.bf16.msra.mxu0 %v220
  %275 = vmatprep.subr.bf16.mxu0 0
  %276 = vmatpush2.bf16.msra.mxu0 %v219
  %277 = vmatprep.subr.bf16.mxu0 0
  %278 = vmatpush2.bf16.msra.mxu0 %v218
  %279 = vmatprep.subr.bf16.mxu0 0
  %280 = vmatpush2.bf16.msra.mxu0 %v217
  %281 = vmatprep.subr.bf16.mxu0 0
  %282 = vmatpush2.bf16.msra.mxu0 %v216
  %283 = vmatprep.subr.bf16.mxu0 0
  %284 = vmatpush2.bf16.msra.mxu0 %v215
  %285 = vmatprep.subr.bf16.mxu0 0
  %286 = vmatpush2.bf16.msra.mxu0 %v214
  %287 = vmatprep.mubr.bf16.mxu0 %v115
  %288 = vmatmul.mubr.bf16.gmra.mxu0 %v114
  %v289 = vpop.f32.mrf.mxu0
  %v290 = vadd.f32 %v72, %v289
  %v291 = vpop.f32.mrf.mxu0
  %v292 = vpop.f32.mrf.mxu0
  %v293 = vadd.f32 %v72, %v292
  %v294 = vpop.f32.mrf.mxu0
  %295 = vmatprep.mubr.bf16.mxu0 %v118
  %296 = vmatmul.mubr.bf16.gmra.mxu0 %v117
  %v297 = vpop.f32.mrf.mxu0
  %v298 = vadd.f32 %v72, %v297
  %v299 = vpop.f32.mrf.mxu0
  %v300 = vpop.f32.mrf.mxu0
  %v301 = vadd.f32 %v72, %v300
  %v302 = vpop.f32.mrf.mxu0
  %303 = vmatprep.mubr.bf16.mxu0 %v121
  %304 = vmatmul.mubr.bf16.gmra.mxu0 %v120
  %v305 = vpop.f32.mrf.mxu0
  %v306 = vadd.f32 %v72, %v305
  %v307 = vpop.f32.mrf.mxu0
  %v308 = vpop.f32.mrf.mxu0
  %v309 = vadd.f32 %v72, %v308
  %v310 = vpop.f32.mrf.mxu0
  %311 = vmatprep.mubr.bf16.mxu0 %v124
  %312 = vmatmul.mubr.bf16.gmra.mxu0 %v123
  %v313 = vpop.f32.mrf.mxu0
  %v314 = vadd.f32 %v72, %v313
  %v315 = vpop.f32.mrf.mxu0
  %v316 = vpop.f32.mrf.mxu0
  %v317 = vadd.f32 %v72, %v316
  %v318 = vpop.f32.mrf.mxu0
  %319 = vdwg.mxu0
  %320 = vmatprep.subr.bf16.mxu0 0
  %321 = vmatpush1.bf16.msra.mxu0 0
  %322 = vmatprep.subr.bf16.mxu0 0
  %323 = vmatpush1.bf16.msra.mxu0 0
  %324 = vmatprep.subr.bf16.mxu0 0
  %325 = vmatpush1.bf16.msra.mxu0 0
  %326 = vmatprep.subr.bf16.mxu0 0
  %327 = vmatpush1.bf16.msra.mxu0 0
  %328 = vmatprep.subr.bf16.mxu0 0
  %329 = vmatpush1.bf16.msra.mxu0 0
  %330 = vmatprep.subr.bf16.mxu0 0
  %331 = vmatpush1.bf16.msra.mxu0 0
  %332 = vmatprep.subr.bf16.mxu0 0
  %333 = vmatpush1.bf16.msra.mxu0 %v223
  %334 = vmatprep.subr.bf16.mxu0 0
  %335 = vmatpush1.bf16.msra.mxu0 %v222
  %336 = vmatprep.subr.bf16.mxu0 0
  %337 = vmatpush2.bf16.msra.mxu0 0
  %338 = vmatprep.subr.bf16.mxu0 0
  %339 = vmatpush2.bf16.msra.mxu0 0
  %340 = vmatprep.subr.bf16.mxu0 0
  %341 = vmatpush2.bf16.msra.mxu0 0
  %342 = vmatprep.subr.bf16.mxu0 0
  %343 = vmatpush2.bf16.msra.mxu0 0
  %344 = vmatprep.subr.bf16.mxu0 0
  %345 = vmatpush2.bf16.msra.mxu0 0
  %346 = vmatprep.subr.bf16.mxu0 0
  %347 = vmatpush2.bf16.msra.mxu0 0
  %348 = vmatprep.subr.bf16.mxu0 0
  %349 = vmatpush2.bf16.msra.mxu0 0
  %350 = vmatprep.subr.bf16.mxu0 0
  %351 = vmatpush2.bf16.msra.mxu0 0
  %352 = vmatprep.mubr.bf16.mxu0 0
  %353 = vmatmul.mubr.bf16.gmra.mxu0 %v244
  %v354 = vpop.f32.mrf.mxu0
  %v355 = vadd.f32 %v290, %v354
  %v356 = vpop.f32.mrf.mxu0
  %v357 = vpop.f32.mrf.mxu0
  %v358 = vadd.f32 %v293, %v357
  %v359 = vpop.f32.mrf.mxu0
  %360 = vmatprep.mubr.bf16.mxu0 0
  %361 = vmatmul.mubr.bf16.gmra.mxu0 %v247
  %v362 = vpop.f32.mrf.mxu0
  %v363 = vadd.f32 %v298, %v362
  %v364 = vpop.f32.mrf.mxu0
  %v365 = vpop.f32.mrf.mxu0
  %v366 = vadd.f32 %v301, %v365
  %v367 = vpop.f32.mrf.mxu0
  %368 = vmatprep.mubr.bf16.mxu0 0
  %369 = vmatmul.mubr.bf16.gmra.mxu0 %v250
  %v370 = vpop.f32.mrf.mxu0
  %v371 = vadd.f32 %v306, %v370
  %v372 = vpop.f32.mrf.mxu0
  %v373 = vpop.f32.mrf.mxu0
  %v374 = vadd.f32 %v309, %v373
  %v375 = vpop.f32.mrf.mxu0
  %376 = vmatprep.mubr.bf16.mxu0 0
  %377 = vmatmul.mubr.bf16.gmra.mxu0 %v253
  %v378 = vpop.f32.mrf.mxu0
  %v379 = vadd.f32 %v314, %v378
  %v380 = vpop.f32.mrf.mxu0
  %v381 = vpop.f32.mrf.mxu0
  %v382 = vadd.f32 %v317, %v381
  %v383 = vpop.f32.mrf.mxu0
  %384 = vdwg.mxu0
  %v385 = vpack.c.bf16 %v358, %v355
  %v386 = vpack.c.bf16 %v366, %v363
  %v387 = vpack.c.bf16 %v374, %v371
  %v388 = vpack.c.bf16 %v382, %v379
  %v393 = vunpack.c.l.b16 %v385
  %v394 = vunpack.c.h.b16 %v385
  %v395 = vunpack.c.l.b16 %v386
  %v396 = vunpack.c.h.b16 %v386
  %v397 = vunpack.c.l.b16 %v387
  %v398 = vunpack.c.h.b16 %v387
  %v399 = vunpack.c.l.b16 %v388
  %v400 = vunpack.c.h.b16 %v388
  %v401 = vpack.c.b16 %v393, %v393
  %v402 = vpack.c.b16 %v394, %v394
  %v403 = vpack.c.b16 %v395, %v395
  %v404 = vpack.c.b16 %v396, %v396
  %v405 = vpack.c.b16 %v397, %v397
  %v406 = vpack.c.b16 %v398, %v398
  %v407 = vpack.c.b16 %v399, %v399
  %v408 = vpack.c.b16 %v400, %v400
  %417 = vst [vmem:[%s3] sm:$0xf] %v401
  %418 = vst [vmem:[%s3 + $0x4] sm:$0xf] %v402
  %419 = vst [vmem:[%s3 + $0x8] sm:$0xf] %v403
  %420 = vst [vmem:[%s3 + $0xc] sm:$0xf] %v404
  %421 = vst [vmem:[%s3 + $0x10] sm:$0xf] %v405
  %422 = vst [vmem:[%s3 + $0x14] sm:$0xf] %v406
  %423 = vst [vmem:[%s3 + $0x18] sm:$0xf] %v407
  %424 = vst [vmem:[%s3 + $0x1c] sm:$0xf] %v408
  // Predicated region
  $region14: #{bicycle_gan_forward.27} parent=0 // pred_check
    _
  $region15: #{bicycle_gan_forward.27} parent=0 // pred_check_branch
    %426 = sbr.rel (0) target = $region17
  $region16: #{bicycle_gan_forward.27} parent=0 // pred_region
    _
  $region17: #{bicycle_gan_forward.27} parent=0 // pred_fallthru
    _
  // Predicated region
  $region18: #{bicycle_gan_forward.27} parent=0 // pred_check
    _
  $region19: #{bicycle_gan_forward.27} parent=0 // pred_check_branch
    %428 = sbr.rel (0) target = $region21
  $region20: #{bicycle_gan_forward.27} parent=0 // pred_region
    _
  $region21: #{bicycle_gan_forward.27} parent=0 // pred_fallthru
    _

// kernel: bicycle_gan_forward.24
$region0: #{bicycle_gan_forward.24}
  #allocation0 [shape = 'u32[]', space=smem, size = 0x4, offset = 0x4, fixed_abs, tag = 'smem constant byte address 0x4 - core index']
  #allocation1 [shape = 'u32[144,128]{1,0:T(1,128)}', space=vmem, size = 0x12000, scoped, tag = 'internal scratch']
  %s0 = inlined_call_operand.vmem [shape: bf16[256,27], index: 0, kind: input, shape index: {}]
  %s1 = inlined_call_operand.vmem [shape: bf16[27,128], index: 1, kind: input, shape index: {}]
  %s2 = inlined_call_operand.vmem [shape: f32[1,128], index: 2, kind: input, shape index: {}]
  %s3 = inlined_call_operand.vmem [shape: bf16[256,128], index: 3, kind: output, shape index: {}]
  %s4 = sld [smem:[#allocation0]]
  $region22: #{bicycle_gan_forward.24} parent=0
    _
  %s6 = ssub.s32 1, %s4
  %s7 = scalar_select 0, %s6, %s4
  // Predicated region
  $region2: #{bicycle_gan_forward.24} parent=0 // pred_check
    _
  $region3: #{bicycle_gan_forward.24} parent=0 // pred_check_branch
    %9 = sbr.rel (0) target = $region5
  $region4: #{bicycle_gan_forward.24} parent=0 // pred_region
    _
  $region5: #{bicycle_gan_forward.24} parent=0 // pred_fallthru
    _
  // Predicated region
  $region6: #{bicycle_gan_forward.24} parent=0 // pred_check
    _
  $region7: #{bicycle_gan_forward.24} parent=0 // pred_check_branch
    %11 = sbr.rel (0) target = $region9
  $region8: #{bicycle_gan_forward.24} parent=0 // pred_region
    _
  $region9: #{bicycle_gan_forward.24} parent=0 // pred_fallthru
    _
  // Predicated region
  $region10: #{bicycle_gan_forward.24} parent=0 // pred_check
    _
  $region11: #{bicycle_gan_forward.24} parent=0 // pred_check_branch
    %13 = sbr.rel (0) target = $region13
  $region12: #{bicycle_gan_forward.24} parent=0 // pred_region
    _
  $region13: #{bicycle_gan_forward.24} parent=0 // pred_fallthru
    _
  %v15 = vld [vmem:[%s0] sm:$0xf]
  %v16 = vld [vmem:[%s0 + $0x4] sm:$0xf]
  %v17 = vld [vmem:[%s0 + $0x8] sm:$0xf]
  %v18 = vld [vmem:[%s0 + $0xc] sm:$0xf]
  %v19 = vld [vmem:[%s0 + $0x10] sm:$0xf]
  %v20 = vld [vmem:[%s0 + $0x14] sm:$0xf]
  %v21 = vld [vmem:[%s0 + $0x18] sm:$0xf]
  %v22 = vld [vmem:[%s0 + $0x1c] sm:$0xf]
  %v23 = vld [vmem:[%s0 + $0x20] sm:$0xf]
  %v24 = vld [vmem:[%s0 + $0x24] sm:$0xf]
  %v25 = vld [vmem:[%s0 + $0x28] sm:$0xf]
  %v26 = vld [vmem:[%s0 + $0x2c] sm:$0xf]
  %v27 = vld [vmem:[%s0 + $0x30] sm:$0xf]
  %v28 = vld [vmem:[%s0 + $0x34] sm:$0xf]
  %v29 = vld [vmem:[%s0 + $0x38] sm:$0xf]
  %v30 = vld [vmem:[%s0 + $0x3c] sm:$0xf]
  %v31 = vld [vmem:[%s0 + $0x40] sm:$0xf]
  %v32 = vld [vmem:[%s0 + $0x44] sm:$0xf]
  %v33 = vld [vmem:[%s0 + $0x48] sm:$0xf]
  %v34 = vld [vmem:[%s0 + $0x4c] sm:$0xf]
  %v35 = vld [vmem:[%s0 + $0x50] sm:$0xf]
  %v36 = vld [vmem:[%s0 + $0x54] sm:$0xf]
  %v37 = vld [vmem:[%s0 + $0x58] sm:$0xf]
  %v38 = vld [vmem:[%s0 + $0x5c] sm:$0xf]
  %v39 = vld [vmem:[%s0 + $0x60] sm:$0xf]
  %v40 = vld [vmem:[%s0 + $0x64] sm:$0xf]
  %v41 = vld [vmem:[%s0 + $0x68] sm:$0xf]
  %v42 = vld [vmem:[%s0 + $0x6c] sm:$0xf]
  %v43 = vld [vmem:[%s0 + $0x70] sm:$0xf]
  %v44 = vld [vmem:[%s0 + $0x74] sm:$0xf]
  %v45 = vld [vmem:[%s0 + $0x78] sm:$0xf]
  %v46 = vld [vmem:[%s0 + $0x7c] sm:$0xf]
  %v47 = vld [vmem:[%s1] sm:$0xf]
  %v48 = vld [vmem:[%s1 + $0x4] sm:$0xf]
  %v49 = vld [vmem:[%s1 + $0x8] sm:$0xf]
  %v50 = vld [vmem:[%s1 + $0xc] sm:$0x3]
  %v51 = vld [vmem:[%s2] sm:$0x1]
  %v53 = vlaneseq
  %v54 = vshrl.u32 %v53, 7
  %v55 = vsub.s32 0, %v54
  %v56 = vrot.slane %v51, %v55
  %v90 = vunpack.c.l.b16 %v15
  %v91 = vunpack.c.l.b16 %v16
  %v92 = vunpack.c.l.b16 %v17
  %v93 = vunpack.c.l.b16 %v18
  %v94 = vunpack.c.l.b16 %v19
  %v95 = vunpack.c.l.b16 %v20
  %v96 = vunpack.c.l.b16 %v21
  %v97 = vunpack.c.l.b16 %v22
  %v98 = vunpack.c.l.b16 %v23
  %v99 = vunpack.c.l.b16 %v24
  %v100 = vunpack.c.l.b16 %v25
  %v101 = vunpack.c.l.b16 %v26
  %v102 = vunpack.c.l.b16 %v27
  %v103 = vunpack.c.l.b16 %v28
  %v104 = vunpack.c.l.b16 %v29
  %v105 = vunpack.c.l.b16 %v30
  %v106 = vunpack.c.l.b16 %v31
  %v107 = vunpack.c.l.b16 %v32
  %v108 = vunpack.c.l.b16 %v33
  %v109 = vunpack.c.l.b16 %v34
  %v110 = vunpack.c.l.b16 %v35
  %v111 = vunpack.c.l.b16 %v36
  %v112 = vunpack.c.l.b16 %v37
  %v113 = vunpack.c.l.b16 %v38
  %v114 = vunpack.c.l.b16 %v39
  %v115 = vunpack.c.l.b16 %v40
  %v116 = vunpack.c.l.b16 %v41
  %v117 = vunpack.c.l.b16 %v42
  %v118 = vunpack.c.l.b16 %v43
  %v119 = vunpack.c.l.b16 %v44
  %v120 = vunpack.c.l.b16 %v45
  %v121 = vunpack.c.l.b16 %v46
  %v122 = vpack.c.b16 %v91, %v90
  %v123 = vpack.c.b16 %v93, %v92
  %v124 = vpack.c.b16 %v95, %v94
  %v125 = vpack.c.b16 %v97, %v96
  %v126 = vpack.c.b16 %v99, %v98
  %v127 = vpack.c.b16 %v101, %v100
  %v128 = vpack.c.b16 %v103, %v102
  %v129 = vpack.c.b16 %v105, %v104
  %v130 = vpack.c.b16 %v107, %v106
  %v131 = vpack.c.b16 %v109, %v108
  %v132 = vpack.c.b16 %v111, %v110
  %v133 = vpack.c.b16 %v113, %v112
  %v134 = vpack.c.b16 %v115, %v114
  %v135 = vpack.c.b16 %v117, %v116
  %v136 = vpack.c.b16 %v119, %v118
  %v137 = vpack.c.b16 %v121, %v120
  %v142 = vunpack.c.l.b16 %v47
  %v143 = vunpack.c.l.b16 %v48
  %v144 = vunpack.c.l.b16 %v49
  %v145 = vunpack.c.l.b16 %v50
  %v146 = vpack.c.b16 %v143, %v142
  %v147 = vpack.c.b16 %v145, %v144
  %vm149 = vcmask 220160
  %v151 = vsel %vm149, %v122, 0
  %v154 = vsel %vm149, %v123, 0
  %v157 = vsel %vm149, %v124, 0
  %v160 = vsel %vm149, %v125, 0
  %v163 = vsel %vm149, %v126, 0
  %v166 = vsel %vm149, %v127, 0
  %v169 = vsel %vm149, %v128, 0
  %v172 = vsel %vm149, %v129, 0
  %v175 = vsel %vm149, %v130, 0
  %v178 = vsel %vm149, %v131, 0
  %v181 = vsel %vm149, %v132, 0
  %v184 = vsel %vm149, %v133, 0
  %v187 = vsel %vm149, %v134, 0
  %v190 = vsel %vm149, %v135, 0
  %v193 = vsel %vm149, %v136, 0
  %v196 = vsel %vm149, %v137, 0
  %vm198 = vcmask 1044480
  %vm199 = vcmask 1045504
  %v200 = vsel %vm198, 4294967295, 65535
  %v201 = vsel %vm199, %v200, 0
  %v203 = vand.u32 %v147, %v201
  %205 = vmatprep.subr.bf16.mxu0 0
  %206 = vmatpush1.bf16.msra.mxu0 0
  %207 = vmatprep.subr.bf16.mxu0 0
  %208 = vmatpush1.bf16.msra.mxu0 0
  %209 = vmatprep.subr.bf16.mxu0 0
  %210 = vmatpush1.bf16.msra.mxu0 0
  %211 = vmatprep.subr.bf16.mxu0 0
  %212 = vmatpush1.bf16.msra.mxu0 0
  %213 = vmatprep.subr.bf16.mxu0 0
  %214 = vmatpush1.bf16.msra.mxu0 0
  %215 = vmatprep.subr.bf16.mxu0 0
  %216 = vmatpush1.bf16.msra.mxu0 0
  %217 = vmatprep.subr.bf16.mxu0 0
  %218 = vmatpush1.bf16.msra.mxu0 %v203
  %219 = vmatprep.subr.bf16.mxu0 0
  %220 = vmatpush1.bf16.msra.mxu0 %v146
  %221 = vmatprep.subr.bf16.mxu0 0
  %222 = vmatpush2.bf16.msra.mxu0 0
  %223 = vmatprep.subr.bf16.mxu0 0
  %224 = vmatpush2.bf16.msra.mxu0 0
  %225 = vmatprep.subr.bf16.mxu0 0
  %226 = vmatpush2.bf16.msra.mxu0 0
  %227 = vmatprep.subr.bf16.mxu0 0
  %228 = vmatpush2.bf16.msra.mxu0 0
  %229 = vmatprep.subr.bf16.mxu0 0
  %230 = vmatpush2.bf16.msra.mxu0 0
  %231 = vmatprep.subr.bf16.mxu0 0
  %232 = vmatpush2.bf16.msra.mxu0 0
  %233 = vmatprep.subr.bf16.mxu0 0
  %234 = vmatpush2.bf16.msra.mxu0 0
  %235 = vmatprep.subr.bf16.mxu0 0
  %236 = vmatpush2.bf16.msra.mxu0 0
  %237 = vmatprep.mubr.bf16.mxu0 0
  %238 = vmatmul.mubr.bf16.gmra.mxu0 %v151
  %v239 = vpop.f32.mrf.mxu0
  %v240 = vadd.f32 %v56, %v239
  %v241 = vpop.f32.mrf.mxu0
  %v242 = vpop.f32.mrf.mxu0
  %v243 = vadd.f32 %v56, %v242
  %v244 = vpop.f32.mrf.mxu0
  %245 = vmatprep.mubr.bf16.mxu0 0
  %246 = vmatmul.mubr.bf16.gmra.mxu0 %v154
  %v247 = vpop.f32.mrf.mxu0
  %v248 = vadd.f32 %v56, %v247
  %v249 = vpop.f32.mrf.mxu0
  %v250 = vpop.f32.mrf.mxu0
  %v251 = vadd.f32 %v56, %v250
  %v252 = vpop.f32.mrf.mxu0
  %253 = vmatprep.mubr.bf16.mxu0 0
  %254 = vmatmul.mubr.bf16.gmra.mxu0 %v157
  %v255 = vpop.f32.mrf.mxu0
  %v256 = vadd.f32 %v56, %v255
  %v257 = vpop.f32.mrf.mxu0
  %v258 = vpop.f32.mrf.mxu0
  %v259 = vadd.f32 %v56, %v258
  %v260 = vpop.f32.mrf.mxu0
  %261 = vmatprep.mubr.bf16.mxu0 0
  %262 = vmatmul.mubr.bf16.gmra.mxu0 %v160
  %v263 = vpop.f32.mrf.mxu0
  %v264 = vadd.f32 %v56, %v263
  %v265 = vpop.f32.mrf.mxu0
  %v266 = vpop.f32.mrf.mxu0
  %v267 = vadd.f32 %v56, %v266
  %v268 = vpop.f32.mrf.mxu0
  %269 = vmatprep.mubr.bf16.mxu0 0
  %270 = vmatmul.mubr.bf16.gmra.mxu0 %v163
  %v271 = vpop.f32.mrf.mxu0
  %v272 = vadd.f32 %v56, %v271
  %v273 = vpop.f32.mrf.mxu0
  %v274 = vpop.f32.mrf.mxu0
  %v275 = vadd.f32 %v56, %v274
  %v276 = vpop.f32.mrf.mxu0
  %277 = vmatprep.mubr.bf16.mxu0 0
  %278 = vmatmul.mubr.bf16.gmra.mxu0 %v166
  %v279 = vpop.f32.mrf.mxu0
  %v280 = vadd.f32 %v56, %v279
  %v281 = vpop.f32.mrf.mxu0
  %v282 = vpop.f32.mrf.mxu0
  %v283 = vadd.f32 %v56, %v282
  %v284 = vpop.f32.mrf.mxu0
  %285 = vmatprep.mubr.bf16.mxu0 0
  %286 = vmatmul.mubr.bf16.gmra.mxu0 %v169
  %v287 = vpop.f32.mrf.mxu0
  %v288 = vadd.f32 %v56, %v287
  %v289 = vpop.f32.mrf.mxu0
  %v290 = vpop.f32.mrf.mxu0
  %v291 = vadd.f32 %v56, %v290
  %v292 = vpop.f32.mrf.mxu0
  %293 = vmatprep.mubr.bf16.mxu0 0
  %294 = vmatmul.mubr.bf16.gmra.mxu0 %v172
  %v295 = vpop.f32.mrf.mxu0
  %v296 = vadd.f32 %v56, %v295
  %v297 = vpop.f32.mrf.mxu0
  %v298 = vpop.f32.mrf.mxu0
  %v299 = vadd.f32 %v56, %v298
  %v300 = vpop.f32.mrf.mxu0
  %301 = vmatprep.mubr.bf16.mxu0 0
  %302 = vmatmul.mubr.bf16.gmra.mxu0 %v175
  %v303 = vpop.f32.mrf.mxu0
  %v304 = vadd.f32 %v56, %v303
  %v305 = vpop.f32.mrf.mxu0
  %v306 = vpop.f32.mrf.mxu0
  %v307 = vadd.f32 %v56, %v306
  %v308 = vpop.f32.mrf.mxu0
  %309 = vmatprep.mubr.bf16.mxu0 0
  %310 = vmatmul.mubr.bf16.gmra.mxu0 %v178
  %v311 = vpop.f32.mrf.mxu0
  %v312 = vadd.f32 %v56, %v311
  %v313 = vpop.f32.mrf.mxu0
  %v314 = vpop.f32.mrf.mxu0
  %v315 = vadd.f32 %v56, %v314
  %v316 = vpop.f32.mrf.mxu0
  %317 = vmatprep.mubr.bf16.mxu0 0
  %318 = vmatmul.mubr.bf16.gmra.mxu0 %v181
  %v319 = vpop.f32.mrf.mxu0
  %v320 = vadd.f32 %v56, %v319
  %v321 = vpop.f32.mrf.mxu0
  %v322 = vpop.f32.mrf.mxu0
  %v323 = vadd.f32 %v56, %v322
  %v324 = vpop.f32.mrf.mxu0
  %325 = vmatprep.mubr.bf16.mxu0 0
  %326 = vmatmul.mubr.bf16.gmra.mxu0 %v184
  %v327 = vpop.f32.mrf.mxu0
  %v328 = vadd.f32 %v56, %v327
  %v329 = vpop.f32.mrf.mxu0
  %v330 = vpop.f32.mrf.mxu0
  %v331 = vadd.f32 %v56, %v330
  %v332 = vpop.f32.mrf.mxu0
  %333 = vmatprep.mubr.bf16.mxu0 0
  %334 = vmatmul.mubr.bf16.gmra.mxu0 %v187
  %v335 = vpop.f32.mrf.mxu0
  %v336 = vadd.f32 %v56, %v335
  %v337 = vpop.f32.mrf.mxu0
  %v338 = vpop.f32.mrf.mxu0
  %v339 = vadd.f32 %v56, %v338
  %v340 = vpop.f32.mrf.mxu0
  %341 = vmatprep.mubr.bf16.mxu0 0
  %342 = vmatmul.mubr.bf16.gmra.mxu0 %v190
  %v343 = vpop.f32.mrf.mxu0
  %v344 = vadd.f32 %v56, %v343
  %v345 = vpop.f32.mrf.mxu0
  %v346 = vpop.f32.mrf.mxu0
  %v347 = vadd.f32 %v56, %v346
  %v348 = vpop.f32.mrf.mxu0
  %349 = vmatprep.mubr.bf16.mxu0 0
  %350 = vmatmul.mubr.bf16.gmra.mxu0 %v193
  %v351 = vpop.f32.mrf.mxu0
  %v352 = vadd.f32 %v56, %v351
  %v353 = vpop.f32.mrf.mxu0
  %v354 = vpop.f32.mrf.mxu0
  %v355 = vadd.f32 %v56, %v354
  %v356 = vpop.f32.mrf.mxu0
  %357 = vmatprep.mubr.bf16.mxu0 0
  %358 = vmatmul.mubr.bf16.gmra.mxu0 %v196
  %v359 = vpop.f32.mrf.mxu0
  %v360 = vadd.f32 %v56, %v359
  %v361 = vpop.f32.mrf.mxu0
  %v362 = vpop.f32.mrf.mxu0
  %v363 = vadd.f32 %v56, %v362
  %v364 = vpop.f32.mrf.mxu0
  %365 = vdwg.mxu0
  %v366 = vmul.f32 %v240, 0.2
  %v367 = vmul.f32 %v243, 0.2
  %v368 = vmul.f32 %v248, 0.2
  %v369 = vmul.f32 %v251, 0.2
  %v370 = vmul.f32 %v256, 0.2
  %v371 = vmul.f32 %v259, 0.2
  %v372 = vmul.f32 %v264, 0.2
  %v373 = vmul.f32 %v267, 0.2
  %v374 = vmul.f32 %v272, 0.2
  %v375 = vmul.f32 %v275, 0.2
  %v376 = vmul.f32 %v280, 0.2
  %v377 = vmul.f32 %v283, 0.2
  %v378 = vmul.f32 %v288, 0.2
  %v379 = vmul.f32 %v291, 0.2
  %v380 = vmul.f32 %v296, 0.2
  %v381 = vmul.f32 %v299, 0.2
  %v382 = vmul.f32 %v304, 0.2
  %v383 = vmul.f32 %v307, 0.2
  %v384 = vmul.f32 %v312, 0.2
  %v385 = vmul.f32 %v315, 0.2
  %v386 = vmul.f32 %v320, 0.2
  %v387 = vmul.f32 %v323, 0.2
  %v388 = vmul.f32 %v328, 0.2
  %v389 = vmul.f32 %v331, 0.2
  %v390 = vmul.f32 %v336, 0.2
  %v391 = vmul.f32 %v339, 0.2
  %v392 = vmul.f32 %v344, 0.2
  %v393 = vmul.f32 %v347, 0.2
  %v394 = vmul.f32 %v352, 0.2
  %v395 = vmul.f32 %v355, 0.2
  %v396 = vmul.f32 %v360, 0.2
  %v397 = vmul.f32 %v363, 0.2
  %v398 = vmax.f32 %v240, %v366
  %v399 = vmax.f32 %v243, %v367
  %v400 = vmax.f32 %v248, %v368
  %v401 = vmax.f32 %v251, %v369
  %v402 = vmax.f32 %v256, %v370
  %v403 = vmax.f32 %v259, %v371
  %v404 = vmax.f32 %v264, %v372
  %v405 = vmax.f32 %v267, %v373
  %v406 = vmax.f32 %v272, %v374
  %v407 = vmax.f32 %v275, %v375
  %v408 = vmax.f32 %v280, %v376
  %v409 = vmax.f32 %v283, %v377
  %v410 = vmax.f32 %v288, %v378
  %v411 = vmax.f32 %v291, %v379
  %v412 = vmax.f32 %v296, %v380
  %v413 = vmax.f32 %v299, %v381
  %v414 = vmax.f32 %v304, %v382
  %v415 = vmax.f32 %v307, %v383
  %v416 = vmax.f32 %v312, %v384
  %v417 = vmax.f32 %v315, %v385
  %v418 = vmax.f32 %v320, %v386
  %v419 = vmax.f32 %v323, %v387
  %v420 = vmax.f32 %v328, %v388
  %v421 = vmax.f32 %v331, %v389
  %v422 = vmax.f32 %v336, %v390
  %v423 = vmax.f32 %v339, %v391
  %v424 = vmax.f32 %v344, %v392
  %v425 = vmax.f32 %v347, %v393
  %v426 = vmax.f32 %v352, %v394
  %v427 = vmax.f32 %v355, %v395
  %v428 = vmax.f32 %v360, %v396
  %v429 = vmax.f32 %v363, %v397
  %v430 = vpack.c.bf16 %v399, %v398
  %v431 = vpack.c.bf16 %v401, %v400
  %v432 = vpack.c.bf16 %v403, %v402
  %v433 = vpack.c.bf16 %v405, %v404
  %v434 = vpack.c.bf16 %v407, %v406
  %v435 = vpack.c.bf16 %v409, %v408
  %v436 = vpack.c.bf16 %v411, %v410
  %v437 = vpack.c.bf16 %v413, %v412
  %v438 = vpack.c.bf16 %v415, %v414
  %v439 = vpack.c.bf16 %v417, %v416
  %v440 = vpack.c.bf16 %v419, %v418
  %v441 = vpack.c.bf16 %v421, %v420
  %v442 = vpack.c.bf16 %v423, %v422
  %v443 = vpack.c.bf16 %v425, %v424
  %v444 = vpack.c.bf16 %v427, %v426
  %v445 = vpack.c.bf16 %v429, %v428
  %v462 = vunpack.c.l.b16 %v430
  %v463 = vunpack.c.h.b16 %v430
  %v464 = vunpack.c.l.b16 %v431
  %v465 = vunpack.c.h.b16 %v431
  %v466 = vunpack.c.l.b16 %v432
  %v467 = vunpack.c.h.b16 %v432
  %v468 = vunpack.c.l.b16 %v433
  %v469 = vunpack.c.h.b16 %v433
  %v470 = vunpack.c.l.b16 %v434
  %v471 = vunpack.c.h.b16 %v434
  %v472 = vunpack.c.l.b16 %v435
  %v473 = vunpack.c.h.b16 %v435
  %v474 = vunpack.c.l.b16 %v436
  %v475 = vunpack.c.h.b16 %v436
  %v476 = vunpack.c.l.b16 %v437
  %v477 = vunpack.c.h.b16 %v437
  %v478 = vunpack.c.l.b16 %v438
  %v479 = vunpack.c.h.b16 %v438
  %v480 = vunpack.c.l.b16 %v439
  %v481 = vunpack.c.h.b16 %v439
  %v482 = vunpack.c.l.b16 %v440
  %v483 = vunpack.c.h.b16 %v440
  %v484 = vunpack.c.l.b16 %v441
  %v485 = vunpack.c.h.b16 %v441
  %v486 = vunpack.c.l.b16 %v442
  %v487 = vunpack.c.h.b16 %v442
  %v488 = vunpack.c.l.b16 %v443
  %v489 = vunpack.c.h.b16 %v443
  %v490 = vunpack.c.l.b16 %v444
  %v491 = vunpack.c.h.b16 %v444
  %v492 = vunpack.c.l.b16 %v445
  %v493 = vunpack.c.h.b16 %v445
  %v494 = vpack.c.b16 %v462, %v462
  %v495 = vpack.c.b16 %v463, %v463
  %v496 = vpack.c.b16 %v464, %v464
  %v497 = vpack.c.b16 %v465, %v465
  %v498 = vpack.c.b16 %v466, %v466
  %v499 = vpack.c.b16 %v467, %v467
  %v500 = vpack.c.b16 %v468, %v468
  %v501 = vpack.c.b16 %v469, %v469
  %v502 = vpack.c.b16 %v470, %v470
  %v503 = vpack.c.b16 %v471, %v471
  %v504 = vpack.c.b16 %v472, %v472
  %v505 = vpack.c.b16 %v473, %v473
  %v506 = vpack.c.b16 %v474, %v474
  %v507 = vpack.c.b16 %v475, %v475
  %v508 = vpack.c.b16 %v476, %v476
  %v509 = vpack.c.b16 %v477, %v477
  %v510 = vpack.c.b16 %v478, %v478
  %v511 = vpack.c.b16 %v479, %v479
  %v512 = vpack.c.b16 %v480, %v480
  %v513 = vpack.c.b16 %v481, %v481
  %v514 = vpack.c.b16 %v482, %v482
  %v515 = vpack.c.b16 %v483, %v483
  %v516 = vpack.c.b16 %v484, %v484
  %v517 = vpack.c.b16 %v485, %v485
  %v518 = vpack.c.b16 %v486, %v486
  %v519 = vpack.c.b16 %v487, %v487
  %v520 = vpack.c.b16 %v488, %v488
  %v521 = vpack.c.b16 %v489, %v489
  %v522 = vpack.c.b16 %v490, %v490
  %v523 = vpack.c.b16 %v491, %v491
  %v524 = vpack.c.b16 %v492, %v492
  %v525 = vpack.c.b16 %v493, %v493
  %558 = vst [vmem:[%s3] sm:$0xf] %v494
  %559 = vst [vmem:[%s3 + $0x4] sm:$0xf] %v495
  %560 = vst [vmem:[%s3 + $0x8] sm:$0xf] %v496
  %561 = vst [vmem:[%s3 + $0xc] sm:$0xf] %v497
  %562 = vst [vmem:[%s3 + $0x10] sm:$0xf] %v498
  %563 = vst [vmem:[%s3 + $0x14] sm:$0xf] %v499
  %564 = vst [vmem:[%s3 + $0x18] sm:$0xf] %v500
  %565 = vst [vmem:[%s3 + $0x1c] sm:$0xf] %v501
  %566 = vst [vmem:[%s3 + $0x20] sm:$0xf] %v502
  %567 = vst [vmem:[%s3 + $0x24] sm:$0xf] %v503
  %568 = vst [vmem:[%s3 + $0x28] sm:$0xf] %v504
  %569 = vst [vmem:[%s3 + $0x2c] sm:$0xf] %v505
  %570 = vst [vmem:[%s3 + $0x30] sm:$0xf] %v506
  %571 = vst [vmem:[%s3 + $0x34] sm:$0xf] %v507
  %572 = vst [vmem:[%s3 + $0x38] sm:$0xf] %v508
  %573 = vst [vmem:[%s3 + $0x3c] sm:$0xf] %v509
  %574 = vst [vmem:[%s3 + $0x40] sm:$0xf] %v510
  %575 = vst [vmem:[%s3 + $0x44] sm:$0xf] %v511
  %576 = vst [vmem:[%s3 + $0x48] sm:$0xf] %v512
  %577 = vst [vmem:[%s3 + $0x4c] sm:$0xf] %v513
  %578 = vst [vmem:[%s3 + $0x50] sm:$0xf] %v514
  %579 = vst [vmem:[%s3 + $0x54] sm:$0xf] %v515
  %580 = vst [vmem:[%s3 + $0x58] sm:$0xf] %v516
  %581 = vst [vmem:[%s3 + $0x5c] sm:$0xf] %v517
  %582 = vst [vmem:[%s3 + $0x60] sm:$0xf] %v518
  %583 = vst [vmem:[%s3 + $0x64] sm:$0xf] %v519
  %584 = vst [vmem:[%s3 + $0x68] sm:$0xf] %v520
  %585 = vst [vmem:[%s3 + $0x6c] sm:$0xf] %v521
  %586 = vst [vmem:[%s3 + $0x70] sm:$0xf] %v522
  %587 = vst [vmem:[%s3 + $0x74] sm:$0xf] %v523
  %588 = vst [vmem:[%s3 + $0x78] sm:$0xf] %v524
  %589 = vst [vmem:[%s3 + $0x7c] sm:$0xf] %v525
  // Predicated region
  $region14: #{bicycle_gan_forward.24} parent=0 // pred_check
    _
  $region15: #{bicycle_gan_forward.24} parent=0 // pred_check_branch
    %591 = sbr.rel (0) target = $region17
  $region16: #{bicycle_gan_forward.24} parent=0 // pred_region
    _
  $region17: #{bicycle_gan_forward.24} parent=0 // pred_fallthru
    _
  // Predicated region
  $region18: #{bicycle_gan_forward.24} parent=0 // pred_check
    _
  $region19: #{bicycle_gan_forward.24} parent=0 // pred_check_branch
    %593 = sbr.rel (0) target = $region21
  $region20: #{bicycle_gan_forward.24} parent=0 // pred_region
    _
  $region21: #{bicycle_gan_forward.24} parent=0 // pred_fallthru
    _

// kernel: bicycle_gan_forward.25
$region0: #{bicycle_gan_forward.25}
  #allocation0 [shape = 'u32[]', space=smem, size = 0x4, offset = 0x4, fixed_abs, tag = 'smem constant byte address 0x4 - core index']
  #allocation1 [shape = 'u32[144,128]{1,0:T(1,128)}', space=vmem, size = 0x12000, scoped, tag = 'internal scratch']
  %s0 = inlined_call_operand.vmem [shape: bf16[256,288], index: 0, kind: input, shape index: {}]
  %s1 = inlined_call_operand.vmem [shape: bf16[288,128], index: 1, kind: input, shape index: {}]
  %s2 = inlined_call_operand.vmem [shape: f32[1,128], index: 2, kind: input, shape index: {}]
  %s3 = inlined_call_operand.vmem [shape: bf16[256,128], index: 3, kind: output, shape index: {}]
  %s4 = sld [smem:[#allocation0]]
  $region22: #{bicycle_gan_forward.25} parent=0
    _
  %s6 = ssub.s32 1, %s4
  %s7 = scalar_select 0, %s6, %s4
  // Predicated region
  $region2: #{bicycle_gan_forward.25} parent=0 // pred_check
    _
  $region3: #{bicycle_gan_forward.25} parent=0 // pred_check_branch
    %9 = sbr.rel (0) target = $region5
  $region4: #{bicycle_gan_forward.25} parent=0 // pred_region
    _
  $region5: #{bicycle_gan_forward.25} parent=0 // pred_fallthru
    _
  // Predicated region
  $region6: #{bicycle_gan_forward.25} parent=0 // pred_check
    _
  $region7: #{bicycle_gan_forward.25} parent=0 // pred_check_branch
    %11 = sbr.rel (0) target = $region9
  $region8: #{bicycle_gan_forward.25} parent=0 // pred_region
    _
  $region9: #{bicycle_gan_forward.25} parent=0 // pred_fallthru
    _
  // Predicated region
  $region10: #{bicycle_gan_forward.25} parent=0 // pred_check
    _
  $region11: #{bicycle_gan_forward.25} parent=0 // pred_check_branch
    %13 = sbr.rel (0) target = $region13
  $region12: #{bicycle_gan_forward.25} parent=0 // pred_region
    _
  $region13: #{bicycle_gan_forward.25} parent=0 // pred_fallthru
    _
  %v15 = vld [vmem:[%s0] sm:$0xff]
  %v16 = vld [vmem:[%s0 + $0x8] sm:$0xf]
  %v17 = vld [vmem:[%s0 + $0xc] sm:$0xff]
  %v18 = vld [vmem:[%s0 + $0x14] sm:$0xf]
  %v19 = vld [vmem:[%s0 + $0x18] sm:$0xff]
  %v20 = vld [vmem:[%s0 + $0x20] sm:$0xf]
  %v21 = vld [vmem:[%s0 + $0x24] sm:$0xff]
  %v22 = vld [vmem:[%s0 + $0x2c] sm:$0xf]
  %v23 = vld [vmem:[%s0 + $0x30] sm:$0xff]
  %v24 = vld [vmem:[%s0 + $0x38] sm:$0xf]
  %v25 = vld [vmem:[%s0 + $0x3c] sm:$0xff]
  %v26 = vld [vmem:[%s0 + $0x44] sm:$0xf]
  %v27 = vld [vmem:[%s0 + $0x48] sm:$0xff]
  %v28 = vld [vmem:[%s0 + $0x50] sm:$0xf]
  %v29 = vld [vmem:[%s0 + $0x54] sm:$0xff]
  %v30 = vld [vmem:[%s0 + $0x5c] sm:$0xf]
  %v31 = vld [vmem:[%s0 + $0x60] sm:$0xff]
  %v32 = vld [vmem:[%s0 + $0x68] sm:$0xf]
  %v33 = vld [vmem:[%s0 + $0x6c] sm:$0xff]
  %v34 = vld [vmem:[%s0 + $0x74] sm:$0xf]
  %v35 = vld [vmem:[%s0 + $0x78] sm:$0xff]
  %v36 = vld [vmem:[%s0 + $0x80] sm:$0xf]
  %v37 = vld [vmem:[%s0 + $0x84] sm:$0xff]
  %v38 = vld [vmem:[%s0 + $0x8c] sm:$0xf]
  %v39 = vld [vmem:[%s0 + $0x90] sm:$0xff]
  %v40 = vld [vmem:[%s0 + $0x98] sm:$0xf]
  %v41 = vld [vmem:[%s0 + $0x9c] sm:$0xff]
  %v42 = vld [vmem:[%s0 + $0xa4] sm:$0xf]
  %v43 = vld [vmem:[%s0 + $0xa8] sm:$0xff]
  %v44 = vld [vmem:[%s0 + $0xb0] sm:$0xf]
  %v45 = vld [vmem:[%s0 + $0xb4] sm:$0xff]
  %v46 = vld [vmem:[%s0 + $0xbc] sm:$0xf]
  %v47 = vld [vmem:[%s0 + $0xc0] sm:$0xff]
  %v48 = vld [vmem:[%s0 + $0xc8] sm:$0xf]
  %v49 = vld [vmem:[%s0 + $0xcc] sm:$0xff]
  %v50 = vld [vmem:[%s0 + $0xd4] sm:$0xf]
  %v51 = vld [vmem:[%s0 + $0xd8] sm:$0xff]
  %v52 = vld [vmem:[%s0 + $0xe0] sm:$0xf]
  %v53 = vld [vmem:[%s0 + $0xe4] sm:$0xff]
  %v54 = vld [vmem:[%s0 + $0xec] sm:$0xf]
  %v55 = vld [vmem:[%s0 + $0xf0] sm:$0xff]
  %v56 = vld [vmem:[%s0 + $0xf8] sm:$0xf]
  %v57 = vld [vmem:[%s0 + $0xfc] sm:$0xff]
  %v58 = vld [vmem:[%s0 + $0x104] sm:$0xf]
  %v59 = vld [vmem:[%s0 + $0x108] sm:$0xff]
  %v60 = vld [vmem:[%s0 + $0x110] sm:$0xf]
  %v61 = vld [vmem:[%s0 + $0x114] sm:$0xff]
  %v62 = vld [vmem:[%s0 + $0x11c] sm:$0xf]
  %v63 = vld [vmem:[%s0 + $0x120] sm:$0xff]
  %v64 = vld [vmem:[%s0 + $0x128] sm:$0xf]
  %v65 = vld [vmem:[%s0 + $0x12c] sm:$0xff]
  %v66 = vld [vmem:[%s0 + $0x134] sm:$0xf]
  %v67 = vld [vmem:[%s0 + $0x138] sm:$0xff]
  %v68 = vld [vmem:[%s0 + $0x140] sm:$0xf]
  %v69 = vld [vmem:[%s0 + $0x144] sm:$0xff]
  %v70 = vld [vmem:[%s0 + $0x14c] sm:$0xf]
  %v71 = vld [vmem:[%s0 + $0x150] sm:$0xff]
  %v72 = vld [vmem:[%s0 + $0x158] sm:$0xf]
  %v73 = vld [vmem:[%s0 + $0x15c] sm:$0xff]
  %v74 = vld [vmem:[%s0 + $0x164] sm:$0xf]
  %v75 = vld [vmem:[%s0 + $0x168] sm:$0xff]
  %v76 = vld [vmem:[%s0 + $0x170] sm:$0xf]
  %v77 = vld [vmem:[%s0 + $0x174] sm:$0xff]
  %v78 = vld [vmem:[%s0 + $0x17c] sm:$0xf]
  %v79 = vld [vmem:[%s1] sm:$0xf]
  %v80 = vld [vmem:[%s1 + $0x4] sm:$0xf]
  %v81 = vld [vmem:[%s1 + $0x8] sm:$0xf]
  %v82 = vld [vmem:[%s1 + $0xc] sm:$0xf]
  %v83 = vld [vmem:[%s1 + $0x10] sm:$0xf]
  %v84 = vld [vmem:[%s1 + $0x14] sm:$0xf]
  %v85 = vld [vmem:[%s1 + $0x18] sm:$0xf]
  %v86 = vld [vmem:[%s1 + $0x1c] sm:$0xf]
  %v87 = vld [vmem:[%s1 + $0x20] sm:$0xf]
  %v88 = vld [vmem:[%s1 + $0x24] sm:$0xf]
  %v89 = vld [vmem:[%s1 + $0x28] sm:$0xf]
  %v90 = vld [vmem:[%s1 + $0x2c] sm:$0xf]
  %v91 = vld [vmem:[%s1 + $0x30] sm:$0xf]
  %v92 = vld [vmem:[%s1 + $0x34] sm:$0xf]
  %v93 = vld [vmem:[%s1 + $0x38] sm:$0xf]
  %v94 = vld [vmem:[%s1 + $0x3c] sm:$0xf]
  %v95 = vld [vmem:[%s1 + $0x40] sm:$0xf]
  %v96 = vld [vmem:[%s1 + $0x44] sm:$0xf]
  %v97 = vld [vmem:[%s1 + $0x48] sm:$0xf]
  %v98 = vld [vmem:[%s1 + $0x4c] sm:$0xf]
  %v99 = vld [vmem:[%s1 + $0x50] sm:$0xf]
  %v100 = vld [vmem:[%s1 + $0x54] sm:$0xf]
  %v101 = vld [vmem:[%s1 + $0x58] sm:$0xf]
  %v102 = vld [vmem:[%s1 + $0x5c] sm:$0xf]
  %v103 = vld [vmem:[%s1 + $0x60] sm:$0xf]
  %v104 = vld [vmem:[%s1 + $0x64] sm:$0xf]
  %v105 = vld [vmem:[%s1 + $0x68] sm:$0xf]
  %v106 = vld [vmem:[%s1 + $0x6c] sm:$0xf]
  %v107 = vld [vmem:[%s1 + $0x70] sm:$0xf]
  %v108 = vld [vmem:[%s1 + $0x74] sm:$0xf]
  %v109 = vld [vmem:[%s1 + $0x78] sm:$0xf]
  %v110 = vld [vmem:[%s1 + $0x7c] sm:$0xf]
  %v111 = vld [vmem:[%s1 + $0x80] sm:$0xf]
  %v112 = vld [vmem:[%s1 + $0x84] sm:$0xf]
  %v113 = vld [vmem:[%s1 + $0x88] sm:$0xf]
  %v114 = vld [vmem:[%s1 + $0x8c] sm:$0xf]
  %v115 = vld [vmem:[%s2] sm:$0x1]
  %v117 = vlaneseq
  %v118 = vshrl.u32 %v117, 7
  %v119 = vsub.s32 0, %v118
  %v120 = vrot.slane %v115, %v119
  %v186 = vunpack.c.l.b16 %v15
  %v187 = vunpack.c.h.b16 %v15
  %v188 = vunpack.c.l.b16 %v16
  %v189 = vunpack.c.l.b16 %v17
  %v190 = vunpack.c.h.b16 %v17
  %v191 = vunpack.c.l.b16 %v18
  %v192 = vunpack.c.l.b16 %v19
  %v193 = vunpack.c.h.b16 %v19
  %v194 = vunpack.c.l.b16 %v20
  %v195 = vunpack.c.l.b16 %v21
  %v196 = vunpack.c.h.b16 %v21
  %v197 = vunpack.c.l.b16 %v22
  %v198 = vunpack.c.l.b16 %v23
  %v199 = vunpack.c.h.b16 %v23
  %v200 = vunpack.c.l.b16 %v24
  %v201 = vunpack.c.l.b16 %v25
  %v202 = vunpack.c.h.b16 %v25
  %v203 = vunpack.c.l.b16 %v26
  %v204 = vunpack.c.l.b16 %v27
  %v205 = vunpack.c.h.b16 %v27
  %v206 = vunpack.c.l.b16 %v28
  %v207 = vunpack.c.l.b16 %v29
  %v208 = vunpack.c.h.b16 %v29
  %v209 = vunpack.c.l.b16 %v30
  %v210 = vunpack.c.l.b16 %v31
  %v211 = vunpack.c.h.b16 %v31
  %v212 = vunpack.c.l.b16 %v32
  %v213 = vunpack.c.l.b16 %v33
  %v214 = vunpack.c.h.b16 %v33
  %v215 = vunpack.c.l.b16 %v34
  %v216 = vunpack.c.l.b16 %v35
  %v217 = vunpack.c.h.b16 %v35
  %v218 = vunpack.c.l.b16 %v36
  %v219 = vunpack.c.l.b16 %v37
  %v220 = vunpack.c.h.b16 %v37
  %v221 = vunpack.c.l.b16 %v38
  %v222 = vunpack.c.l.b16 %v39
  %v223 = vunpack.c.h.b16 %v39
  %v224 = vunpack.c.l.b16 %v40
  %v225 = vunpack.c.l.b16 %v41
  %v226 = vunpack.c.h.b16 %v41
  %v227 = vunpack.c.l.b16 %v42
  %v228 = vunpack.c.l.b16 %v43
  %v229 = vunpack.c.h.b16 %v43
  %v230 = vunpack.c.l.b16 %v44
  %v231 = vunpack.c.l.b16 %v45
  %v232 = vunpack.c.h.b16 %v45
  %v233 = vunpack.c.l.b16 %v46
  %v234 = vunpack.c.l.b16 %v47
  %v235 = vunpack.c.h.b16 %v47
  %v236 = vunpack.c.l.b16 %v48
  %v237 = vunpack.c.l.b16 %v49
  %v238 = vunpack.c.h.b16 %v49
  %v239 = vunpack.c.l.b16 %v50
  %v240 = vunpack.c.l.b16 %v51
  %v241 = vunpack.c.h.b16 %v51
  %v242 = vunpack.c.l.b16 %v52
  %v243 = vunpack.c.l.b16 %v53
  %v244 = vunpack.c.h.b16 %v53
  %v245 = vunpack.c.l.b16 %v54
  %v246 = vunpack.c.l.b16 %v55
  %v247 = vunpack.c.h.b16 %v55
  %v248 = vunpack.c.l.b16 %v56
  %v249 = vunpack.c.l.b16 %v57
  %v250 = vunpack.c.h.b16 %v57
  %v251 = vunpack.c.l.b16 %v58
  %v252 = vunpack.c.l.b16 %v59
  %v253 = vunpack.c.h.b16 %v59
  %v254 = vunpack.c.l.b16 %v60
  %v255 = vunpack.c.l.b16 %v61
  %v256 = vunpack.c.h.b16 %v61
  %v257 = vunpack.c.l.b16 %v62
  %v258 = vunpack.c.l.b16 %v63
  %v259 = vunpack.c.h.b16 %v63
  %v260 = vunpack.c.l.b16 %v64
  %v261 = vunpack.c.l.b16 %v65
  %v262 = vunpack.c.h.b16 %v65
  %v263 = vunpack.c.l.b16 %v66
  %v264 = vunpack.c.l.b16 %v67
  %v265 = vunpack.c.h.b16 %v67
  %v266 = vunpack.c.l.b16 %v68
  %v267 = vunpack.c.l.b16 %v69
  %v268 = vunpack.c.h.b16 %v69
  %v269 = vunpack.c.l.b16 %v70
  %v270 = vunpack.c.l.b16 %v71
  %v271 = vunpack.c.h.b16 %v71
  %v272 = vunpack.c.l.b16 %v72
  %v273 = vunpack.c.l.b16 %v73
  %v274 = vunpack.c.h.b16 %v73
  %v275 = vunpack.c.l.b16 %v74
  %v276 = vunpack.c.l.b16 %v75
  %v277 = vunpack.c.h.b16 %v75
  %v278 = vunpack.c.l.b16 %v76
  %v279 = vunpack.c.l.b16 %v77
  %v280 = vunpack.c.h.b16 %v77
  %v281 = vunpack.c.l.b16 %v78
  %v282 = vpack.c.b16 %v189, %v186
  %v283 = vpack.c.b16 %v190, %v187
  %v284 = vpack.c.b16 %v191, %v188
  %v285 = vpack.c.b16 %v195, %v192
  %v286 = vpack.c.b16 %v196, %v193
  %v287 = vpack.c.b16 %v197, %v194
  %v288 = vpack.c.b16 %v201, %v198
  %v289 = vpack.c.b16 %v202, %v199
  %v290 = vpack.c.b16 %v203, %v200
  %v291 = vpack.c.b16 %v207, %v204
  %v292 = vpack.c.b16 %v208, %v205
  %v293 = vpack.c.b16 %v209, %v206
  %v294 = vpack.c.b16 %v213, %v210
  %v295 = vpack.c.b16 %v214, %v211
  %v296 = vpack.c.b16 %v215, %v212
  %v297 = vpack.c.b16 %v219, %v216
  %v298 = vpack.c.b16 %v220, %v217
  %v299 = vpack.c.b16 %v221, %v218
  %v300 = vpack.c.b16 %v225, %v222
  %v301 = vpack.c.b16 %v226, %v223
  %v302 = vpack.c.b16 %v227, %v224
  %v303 = vpack.c.b16 %v231, %v228
  %v304 = vpack.c.b16 %v232, %v229
  %v305 = vpack.c.b16 %v233, %v230
  %v306 = vpack.c.b16 %v237, %v234
  %v307 = vpack.c.b16 %v238, %v235
  %v308 = vpack.c.b16 %v239, %v236
  %v309 = vpack.c.b16 %v243, %v240
  %v310 = vpack.c.b16 %v244, %v241
  %v311 = vpack.c.b16 %v245, %v242
  %v312 = vpack.c.b16 %v249, %v246
  %v313 = vpack.c.b16 %v250, %v247
  %v314 = vpack.c.b16 %v251, %v248
  %v315 = vpack.c.b16 %v255, %v252
  %v316 = vpack.c.b16 %v256, %v253
  %v317 = vpack.c.b16 %v257, %v254
  %v318 = vpack.c.b16 %v261, %v258
  %v319 = vpack.c.b16 %v262, %v259
  %v320 = vpack.c.b16 %v263, %v260
  %v321 = vpack.c.b16 %v267, %v264
  %v322 = vpack.c.b16 %v268, %v265
  %v323 = vpack.c.b16 %v269, %v266
  %v324 = vpack.c.b16 %v273, %v270
  %v325 = vpack.c.b16 %v274, %v271
  %v326 = vpack.c.b16 %v275, %v272
  %v327 = vpack.c.b16 %v279, %v276
  %v328 = vpack.c.b16 %v280, %v277
  %v329 = vpack.c.b16 %v281, %v278
  %v398 = vunpack.c.l.b16 %v79
  %v399 = vunpack.c.l.b16 %v80
  %v400 = vunpack.c.l.b16 %v81
  %v401 = vunpack.c.l.b16 %v82
  %v402 = vunpack.c.l.b16 %v83
  %v403 = vunpack.c.l.b16 %v84
  %v404 = vunpack.c.l.b16 %v85
  %v405 = vunpack.c.l.b16 %v86
  %v406 = vunpack.c.l.b16 %v87
  %v407 = vunpack.c.l.b16 %v88
  %v408 = vunpack.c.l.b16 %v89
  %v409 = vunpack.c.l.b16 %v90
  %v410 = vunpack.c.l.b16 %v91
  %v411 = vunpack.c.l.b16 %v92
  %v412 = vunpack.c.l.b16 %v93
  %v413 = vunpack.c.l.b16 %v94
  %v414 = vunpack.c.l.b16 %v95
  %v415 = vunpack.c.l.b16 %v96
  %v416 = vunpack.c.l.b16 %v97
  %v417 = vunpack.c.l.b16 %v98
  %v418 = vunpack.c.l.b16 %v99
  %v419 = vunpack.c.l.b16 %v100
  %v420 = vunpack.c.l.b16 %v101
  %v421 = vunpack.c.l.b16 %v102
  %v422 = vunpack.c.l.b16 %v103
  %v423 = vunpack.c.l.b16 %v104
  %v424 = vunpack.c.l.b16 %v105
  %v425 = vunpack.c.l.b16 %v106
  %v426 = vunpack.c.l.b16 %v107
  %v427 = vunpack.c.l.b16 %v108
  %v428 = vunpack.c.l.b16 %v109
  %v429 = vunpack.c.l.b16 %v110
  %v430 = vunpack.c.l.b16 %v111
  %v431 = vunpack.c.l.b16 %v112
  %v432 = vunpack.c.l.b16 %v113
  %v433 = vunpack.c.l.b16 %v114
  %v434 = vpack.c.b16 %v399, %v398
  %v435 = vpack.c.b16 %v401, %v400
  %v436 = vpack.c.b16 %v403, %v402
  %v437 = vpack.c.b16 %v405, %v404
  %v438 = vpack.c.b16 %v407, %v406
  %v439 = vpack.c.b16 %v409, %v408
  %v440 = vpack.c.b16 %v411, %v410
  %v441 = vpack.c.b16 %v413, %v412
  %v442 = vpack.c.b16 %v415, %v414
  %v443 = vpack.c.b16 %v417, %v416
  %v444 = vpack.c.b16 %v419, %v418
  %v445 = vpack.c.b16 %v421, %v420
  %v446 = vpack.c.b16 %v423, %v422
  %v447 = vpack.c.b16 %v425, %v424
  %v448 = vpack.c.b16 %v427, %v426
  %v449 = vpack.c.b16 %v429, %v428
  %v450 = vpack.c.b16 %v431, %v430
  %v451 = vpack.c.b16 %v433, %v432
  %vm470 = vcmask 261120
  %v472 = vsel %vm470, %v284, 0
  %v475 = vsel %vm470, %v287, 0
  %v478 = vsel %vm470, %v290, 0
  %v481 = vsel %vm470, %v293, 0
  %v484 = vsel %vm470, %v296, 0
  %v487 = vsel %vm470, %v299, 0
  %v490 = vsel %vm470, %v302, 0
  %v493 = vsel %vm470, %v305, 0
  %v496 = vsel %vm470, %v308, 0
  %v499 = vsel %vm470, %v311, 0
  %v502 = vsel %vm470, %v314, 0
  %v505 = vsel %vm470, %v317, 0
  %v508 = vsel %vm470, %v320, 0
  %v511 = vsel %vm470, %v323, 0
  %v514 = vsel %vm470, %v326, 0
  %v517 = vsel %vm470, %v329, 0
  %519 = vmatprep.subr.bf16.mxu0 0
  %520 = vmatpush1.bf16.msra.mxu0 %v441
  %521 = vmatprep.subr.bf16.mxu0 0
  %522 = vmatpush1.bf16.msra.mxu0 %v440
  %523 = vmatprep.subr.bf16.mxu0 0
  %524 = vmatpush1.bf16.msra.mxu0 %v439
  %525 = vmatprep.subr.bf16.mxu0 0
  %526 = vmatpush1.bf16.msra.mxu0 %v438
  %527 = vmatprep.subr.bf16.mxu0 0
  %528 = vmatpush1.bf16.msra.mxu0 %v437
  %529 = vmatprep.subr.bf16.mxu0 0
  %530 = vmatpush1.bf16.msra.mxu0 %v436
  %531 = vmatprep.subr.bf16.mxu0 0
  %532 = vmatpush1.bf16.msra.mxu0 %v435
  %533 = vmatprep.subr.bf16.mxu0 0
  %534 = vmatpush1.bf16.msra.mxu0 %v434
  %535 = vmatprep.subr.bf16.mxu0 0
  %536 = vmatpush2.bf16.msra.mxu0 %v449
  %537 = vmatprep.subr.bf16.mxu0 0
  %538 = vmatpush2.bf16.msra.mxu0 %v448
  %539 = vmatprep.subr.bf16.mxu0 0
  %540 = vmatpush2.bf16.msra.mxu0 %v447
  %541 = vmatprep.subr.bf16.mxu0 0
  %542 = vmatpush2.bf16.msra.mxu0 %v446
  %543 = vmatprep.subr.bf16.mxu0 0
  %544 = vmatpush2.bf16.msra.mxu0 %v445
  %545 = vmatprep.subr.bf16.mxu0 0
  %546 = vmatpush2.bf16.msra.mxu0 %v444
  %547 = vmatprep.subr.bf16.mxu0 0
  %548 = vmatpush2.bf16.msra.mxu0 %v443
  %549 = vmatprep.subr.bf16.mxu0 0
  %550 = vmatpush2.bf16.msra.mxu0 %v442
  %551 = vmatprep.mubr.bf16.mxu0 %v283
  %552 = vmatmul.mubr.bf16.gmra.mxu0 %v282
  %v553 = vpop.f32.mrf.mxu0
  %v554 = vadd.f32 %v120, %v553
  %v555 = vpop.f32.mrf.mxu0
  %v556 = vpop.f32.mrf.mxu0
  %v557 = vadd.f32 %v120, %v556
  %v558 = vpop.f32.mrf.mxu0
  %559 = vmatprep.mubr.bf16.mxu0 %v286
  %560 = vmatmul.mubr.bf16.gmra.mxu0 %v285
  %v561 = vpop.f32.mrf.mxu0
  %v562 = vadd.f32 %v120, %v561
  %v563 = vpop.f32.mrf.mxu0
  %v564 = vpop.f32.mrf.mxu0
  %v565 = vadd.f32 %v120, %v564
  %v566 = vpop.f32.mrf.mxu0
  %567 = vmatprep.mubr.bf16.mxu0 %v289
  %568 = vmatmul.mubr.bf16.gmra.mxu0 %v288
  %v569 = vpop.f32.mrf.mxu0
  %v570 = vadd.f32 %v120, %v569
  %v571 = vpop.f32.mrf.mxu0
  %v572 = vpop.f32.mrf.mxu0
  %v573 = vadd.f32 %v120, %v572
  %v574 = vpop.f32.mrf.mxu0
  %575 = vmatprep.mubr.bf16.mxu0 %v292
  %576 = vmatmul.mubr.bf16.gmra.mxu0 %v291
  %v577 = vpop.f32.mrf.mxu0
  %v578 = vadd.f32 %v120, %v577
  %v579 = vpop.f32.mrf.mxu0
  %v580 = vpop.f32.mrf.mxu0
  %v581 = vadd.f32 %v120, %v580
  %v582 = vpop.f32.mrf.mxu0
  %583 = vmatprep.mubr.bf16.mxu0 %v295
  %584 = vmatmul.mubr.bf16.gmra.mxu0 %v294
  %v585 = vpop.f32.mrf.mxu0
  %v586 = vadd.f32 %v120, %v585
  %v587 = vpop.f32.mrf.mxu0
  %v588 = vpop.f32.mrf.mxu0
  %v589 = vadd.f32 %v120, %v588
  %v590 = vpop.f32.mrf.mxu0
  %591 = vmatprep.mubr.bf16.mxu0 %v298
  %592 = vmatmul.mubr.bf16.gmra.mxu0 %v297
  %v593 = vpop.f32.mrf.mxu0
  %v594 = vadd.f32 %v120, %v593
  %v595 = vpop.f32.mrf.mxu0
  %v596 = vpop.f32.mrf.mxu0
  %v597 = vadd.f32 %v120, %v596
  %v598 = vpop.f32.mrf.mxu0
  %599 = vmatprep.mubr.bf16.mxu0 %v301
  %600 = vmatmul.mubr.bf16.gmra.mxu0 %v300
  %v601 = vpop.f32.mrf.mxu0
  %v602 = vadd.f32 %v120, %v601
  %v603 = vpop.f32.mrf.mxu0
  %v604 = vpop.f32.mrf.mxu0
  %v605 = vadd.f32 %v120, %v604
  %v606 = vpop.f32.mrf.mxu0
  %607 = vmatprep.mubr.bf16.mxu0 %v304
  %608 = vmatmul.mubr.bf16.gmra.mxu0 %v303
  %v609 = vpop.f32.mrf.mxu0
  %v610 = vadd.f32 %v120, %v609
  %v611 = vpop.f32.mrf.mxu0
  %v612 = vpop.f32.mrf.mxu0
  %v613 = vadd.f32 %v120, %v612
  %v614 = vpop.f32.mrf.mxu0
  %615 = vmatprep.mubr.bf16.mxu0 %v307
  %616 = vmatmul.mubr.bf16.gmra.mxu0 %v306
  %v617 = vpop.f32.mrf.mxu0
  %v618 = vadd.f32 %v120, %v617
  %v619 = vpop.f32.mrf.mxu0
  %v620 = vpop.f32.mrf.mxu0
  %v621 = vadd.f32 %v120, %v620
  %v622 = vpop.f32.mrf.mxu0
  %623 = vmatprep.mubr.bf16.mxu0 %v310
  %624 = vmatmul.mubr.bf16.gmra.mxu0 %v309
  %v625 = vpop.f32.mrf.mxu0
  %v626 = vadd.f32 %v120, %v625
  %v627 = vpop.f32.mrf.mxu0
  %v628 = vpop.f32.mrf.mxu0
  %v629 = vadd.f32 %v120, %v628
  %v630 = vpop.f32.mrf.mxu0
  %631 = vmatprep.mubr.bf16.mxu0 %v313
  %632 = vmatmul.mubr.bf16.gmra.mxu0 %v312
  %v633 = vpop.f32.mrf.mxu0
  %v634 = vadd.f32 %v120, %v633
  %v635 = vpop.f32.mrf.mxu0
  %v636 = vpop.f32.mrf.mxu0
  %v637 = vadd.f32 %v120, %v636
  %v638 = vpop.f32.mrf.mxu0
  %639 = vmatprep.mubr.bf16.mxu0 %v316
  %640 = vmatmul.mubr.bf16.gmra.mxu0 %v315
  %v641 = vpop.f32.mrf.mxu0
  %v642 = vadd.f32 %v120, %v641
  %v643 = vpop.f32.mrf.mxu0
  %v644 = vpop.f32.mrf.mxu0
  %v645 = vadd.f32 %v120, %v644
  %v646 = vpop.f32.mrf.mxu0
  %647 = vmatprep.mubr.bf16.mxu0 %v319
  %648 = vmatmul.mubr.bf16.gmra.mxu0 %v318
  %v649 = vpop.f32.mrf.mxu0
  %v650 = vadd.f32 %v120, %v649
  %v651 = vpop.f32.mrf.mxu0
  %v652 = vpop.f32.mrf.mxu0
  %v653 = vadd.f32 %v120, %v652
  %v654 = vpop.f32.mrf.mxu0
  %655 = vmatprep.mubr.bf16.mxu0 %v322
  %656 = vmatmul.mubr.bf16.gmra.mxu0 %v321
  %v657 = vpop.f32.mrf.mxu0
  %v658 = vadd.f32 %v120, %v657
  %v659 = vpop.f32.mrf.mxu0
  %v660 = vpop.f32.mrf.mxu0
  %v661 = vadd.f32 %v120, %v660
  %v662 = vpop.f32.mrf.mxu0
  %663 = vmatprep.mubr.bf16.mxu0 %v325
  %664 = vmatmul.mubr.bf16.gmra.mxu0 %v324
  %v665 = vpop.f32.mrf.mxu0
  %v666 = vadd.f32 %v120, %v665
  %v667 = vpop.f32.mrf.mxu0
  %v668 = vpop.f32.mrf.mxu0
  %v669 = vadd.f32 %v120, %v668
  %v670 = vpop.f32.mrf.mxu0
  %671 = vmatprep.mubr.bf16.mxu0 %v328
  %672 = vmatmul.mubr.bf16.gmra.mxu0 %v327
  %v673 = vpop.f32.mrf.mxu0
  %v674 = vadd.f32 %v120, %v673
  %v675 = vpop.f32.mrf.mxu0
  %v676 = vpop.f32.mrf.mxu0
  %v677 = vadd.f32 %v120, %v676
  %v678 = vpop.f32.mrf.mxu0
  %679 = vdwg.mxu0
  %680 = vmatprep.subr.bf16.mxu0 0
  %681 = vmatpush1.bf16.msra.mxu0 0
  %682 = vmatprep.subr.bf16.mxu0 0
  %683 = vmatpush1.bf16.msra.mxu0 0
  %684 = vmatprep.subr.bf16.mxu0 0
  %685 = vmatpush1.bf16.msra.mxu0 0
  %686 = vmatprep.subr.bf16.mxu0 0
  %687 = vmatpush1.bf16.msra.mxu0 0
  %688 = vmatprep.subr.bf16.mxu0 0
  %689 = vmatpush1.bf16.msra.mxu0 0
  %690 = vmatprep.subr.bf16.mxu0 0
  %691 = vmatpush1.bf16.msra.mxu0 0
  %692 = vmatprep.subr.bf16.mxu0 0
  %693 = vmatpush1.bf16.msra.mxu0 %v451
  %694 = vmatprep.subr.bf16.mxu0 0
  %695 = vmatpush1.bf16.msra.mxu0 %v450
  %696 = vmatprep.subr.bf16.mxu0 0
  %697 = vmatpush2.bf16.msra.mxu0 0
  %698 = vmatprep.subr.bf16.mxu0 0
  %699 = vmatpush2.bf16.msra.mxu0 0
  %700 = vmatprep.subr.bf16.mxu0 0
  %701 = vmatpush2.bf16.msra.mxu0 0
  %702 = vmatprep.subr.bf16.mxu0 0
  %703 = vmatpush2.bf16.msra.mxu0 0
  %704 = vmatprep.subr.bf16.mxu0 0
  %705 = vmatpush2.bf16.msra.mxu0 0
  %706 = vmatprep.subr.bf16.mxu0 0
  %707 = vmatpush2.bf16.msra.mxu0 0
  %708 = vmatprep.subr.bf16.mxu0 0
  %709 = vmatpush2.bf16.msra.mxu0 0
  %710 = vmatprep.subr.bf16.mxu0 0
  %711 = vmatpush2.bf16.msra.mxu0 0
  %712 = vmatprep.mubr.bf16.mxu0 0
  %713 = vmatmul.mubr.bf16.gmra.mxu0 %v472
  %v714 = vpop.f32.mrf.mxu0
  %v715 = vadd.f32 %v554, %v714
  %v716 = vpop.f32.mrf.mxu0
  %v717 = vpop.f32.mrf.mxu0
  %v718 = vadd.f32 %v557, %v717
  %v719 = vpop.f32.mrf.mxu0
  %720 = vmatprep.mubr.bf16.mxu0 0
  %721 = vmatmul.mubr.bf16.gmra.mxu0 %v475
  %v722 = vpop.f32.mrf.mxu0
  %v723 = vadd.f32 %v562, %v722
  %v724 = vpop.f32.mrf.mxu0
  %v725 = vpop.f32.mrf.mxu0
  %v726 = vadd.f32 %v565, %v725
  %v727 = vpop.f32.mrf.mxu0
  %728 = vmatprep.mubr.bf16.mxu0 0
  %729 = vmatmul.mubr.bf16.gmra.mxu0 %v478
  %v730 = vpop.f32.mrf.mxu0
  %v731 = vadd.f32 %v570, %v730
  %v732 = vpop.f32.mrf.mxu0
  %v733 = vpop.f32.mrf.mxu0
  %v734 = vadd.f32 %v573, %v733
  %v735 = vpop.f32.mrf.mxu0
  %736 = vmatprep.mubr.bf16.mxu0 0
  %737 = vmatmul.mubr.bf16.gmra.mxu0 %v481
  %v738 = vpop.f32.mrf.mxu0
  %v739 = vadd.f32 %v578, %v738
  %v740 = vpop.f32.mrf.mxu0
  %v741 = vpop.f32.mrf.mxu0
  %v742 = vadd.f32 %v581, %v741
  %v743 = vpop.f32.mrf.mxu0
  %744 = vmatprep.mubr.bf16.mxu0 0
  %745 = vmatmul.mubr.bf16.gmra.mxu0 %v484
  %v746 = vpop.f32.mrf.mxu0
  %v747 = vadd.f32 %v586, %v746
  %v748 = vpop.f32.mrf.mxu0
  %v749 = vpop.f32.mrf.mxu0
  %v750 = vadd.f32 %v589, %v749
  %v751 = vpop.f32.mrf.mxu0
  %752 = vmatprep.mubr.bf16.mxu0 0
  %753 = vmatmul.mubr.bf16.gmra.mxu0 %v487
  %v754 = vpop.f32.mrf.mxu0
  %v755 = vadd.f32 %v594, %v754
  %v756 = vpop.f32.mrf.mxu0
  %v757 = vpop.f32.mrf.mxu0
  %v758 = vadd.f32 %v597, %v757
  %v759 = vpop.f32.mrf.mxu0
  %760 = vmatprep.mubr.bf16.mxu0 0
  %761 = vmatmul.mubr.bf16.gmra.mxu0 %v490
  %v762 = vpop.f32.mrf.mxu0
  %v763 = vadd.f32 %v602, %v762
  %v764 = vpop.f32.mrf.mxu0
  %v765 = vpop.f32.mrf.mxu0
  %v766 = vadd.f32 %v605, %v765
  %v767 = vpop.f32.mrf.mxu0
  %768 = vmatprep.mubr.bf16.mxu0 0
  %769 = vmatmul.mubr.bf16.gmra.mxu0 %v493
  %v770 = vpop.f32.mrf.mxu0
  %v771 = vadd.f32 %v610, %v770
  %v772 = vpop.f32.mrf.mxu0
  %v773 = vpop.f32.mrf.mxu0
  %v774 = vadd.f32 %v613, %v773
  %v775 = vpop.f32.mrf.mxu0
  %776 = vmatprep.mubr.bf16.mxu0 0
  %777 = vmatmul.mubr.bf16.gmra.mxu0 %v496
  %v778 = vpop.f32.mrf.mxu0
  %v779 = vadd.f32 %v618, %v778
  %v780 = vpop.f32.mrf.mxu0
  %v781 = vpop.f32.mrf.mxu0
  %v782 = vadd.f32 %v621, %v781
  %v783 = vpop.f32.mrf.mxu0
  %784 = vmatprep.mubr.bf16.mxu0 0
  %785 = vmatmul.mubr.bf16.gmra.mxu0 %v499
  %v786 = vpop.f32.mrf.mxu0
  %v787 = vadd.f32 %v626, %v786
  %v788 = vpop.f32.mrf.mxu0
  %v789 = vpop.f32.mrf.mxu0
  %v790 = vadd.f32 %v629, %v789
  %v791 = vpop.f32.mrf.mxu0
  %792 = vmatprep.mubr.bf16.mxu0 0
  %793 = vmatmul.mubr.bf16.gmra.mxu0 %v502
  %v794 = vpop.f32.mrf.mxu0
  %v795 = vadd.f32 %v634, %v794
  %v796 = vpop.f32.mrf.mxu0
  %v797 = vpop.f32.mrf.mxu0
  %v798 = vadd.f32 %v637, %v797
  %v799 = vpop.f32.mrf.mxu0
  %800 = vmatprep.mubr.bf16.mxu0 0
  %801 = vmatmul.mubr.bf16.gmra.mxu0 %v505
  %v802 = vpop.f32.mrf.mxu0
  %v803 = vadd.f32 %v642, %v802
  %v804 = vpop.f32.mrf.mxu0
  %v805 = vpop.f32.mrf.mxu0
  %v806 = vadd.f32 %v645, %v805
  %v807 = vpop.f32.mrf.mxu0
  %808 = vmatprep.mubr.bf16.mxu0 0
  %809 = vmatmul.mubr.bf16.gmra.mxu0 %v508
  %v810 = vpop.f32.mrf.mxu0
  %v811 = vadd.f32 %v650, %v810
  %v812 = vpop.f32.mrf.mxu0
  %v813 = vpop.f32.mrf.mxu0
  %v814 = vadd.f32 %v653, %v813
  %v815 = vpop.f32.mrf.mxu0
  %816 = vmatprep.mubr.bf16.mxu0 0
  %817 = vmatmul.mubr.bf16.gmra.mxu0 %v511
  %v818 = vpop.f32.mrf.mxu0
  %v819 = vadd.f32 %v658, %v818
  %v820 = vpop.f32.mrf.mxu0
  %v821 = vpop.f32.mrf.mxu0
  %v822 = vadd.f32 %v661, %v821
  %v823 = vpop.f32.mrf.mxu0
  %824 = vmatprep.mubr.bf16.mxu0 0
  %825 = vmatmul.mubr.bf16.gmra.mxu0 %v514
  %v826 = vpop.f32.mrf.mxu0
  %v827 = vadd.f32 %v666, %v826
  %v828 = vpop.f32.mrf.mxu0
  %v829 = vpop.f32.mrf.mxu0
  %v830 = vadd.f32 %v669, %v829
  %v831 = vpop.f32.mrf.mxu0
  %832 = vmatprep.mubr.bf16.mxu0 0
  %833 = vmatmul.mubr.bf16.gmra.mxu0 %v517
  %v834 = vpop.f32.mrf.mxu0
  %v835 = vadd.f32 %v674, %v834
  %v836 = vpop.f32.mrf.mxu0
  %v837 = vpop.f32.mrf.mxu0
  %v838 = vadd.f32 %v677, %v837
  %v839 = vpop.f32.mrf.mxu0
  %840 = vdwg.mxu0
  %v841 = vpack.c.bf16 %v718, %v715
  %v842 = vpack.c.bf16 %v726, %v723
  %v843 = vpack.c.bf16 %v734, %v731
  %v844 = vpack.c.bf16 %v742, %v739
  %v845 = vpack.c.bf16 %v750, %v747
  %v846 = vpack.c.bf16 %v758, %v755
  %v847 = vpack.c.bf16 %v766, %v763
  %v848 = vpack.c.bf16 %v774, %v771
  %v849 = vpack.c.bf16 %v782, %v779
  %v850 = vpack.c.bf16 %v790, %v787
  %v851 = vpack.c.bf16 %v798, %v795
  %v852 = vpack.c.bf16 %v806, %v803
  %v853 = vpack.c.bf16 %v814, %v811
  %v854 = vpack.c.bf16 %v822, %v819
  %v855 = vpack.c.bf16 %v830, %v827
  %v856 = vpack.c.bf16 %v838, %v835
  %v873 = vunpack.c.l.b16 %v841
  %v874 = vunpack.c.h.b16 %v841
  %v875 = vunpack.c.l.b16 %v842
  %v876 = vunpack.c.h.b16 %v842
  %v877 = vunpack.c.l.b16 %v843
  %v878 = vunpack.c.h.b16 %v843
  %v879 = vunpack.c.l.b16 %v844
  %v880 = vunpack.c.h.b16 %v844
  %v881 = vunpack.c.l.b16 %v845
  %v882 = vunpack.c.h.b16 %v845
  %v883 = vunpack.c.l.b16 %v846
  %v884 = vunpack.c.h.b16 %v846
  %v885 = vunpack.c.l.b16 %v847
  %v886 = vunpack.c.h.b16 %v847
  %v887 = vunpack.c.l.b16 %v848
  %v888 = vunpack.c.h.b16 %v848
  %v889 = vunpack.c.l.b16 %v849
  %v890 = vunpack.c.h.b16 %v849
  %v891 = vunpack.c.l.b16 %v850
  %v892 = vunpack.c.h.b16 %v850
  %v893 = vunpack.c.l.b16 %v851
  %v894 = vunpack.c.h.b16 %v851
  %v895 = vunpack.c.l.b16 %v852
  %v896 = vunpack.c.h.b16 %v852
  %v897 = vunpack.c.l.b16 %v853
  %v898 = vunpack.c.h.b16 %v853
  %v899 = vunpack.c.l.b16 %v854
  %v900 = vunpack.c.h.b16 %v854
  %v901 = vunpack.c.l.b16 %v855
  %v902 = vunpack.c.h.b16 %v855
  %v903 = vunpack.c.l.b16 %v856
  %v904 = vunpack.c.h.b16 %v856
  %v905 = vpack.c.b16 %v873, %v873
  %v906 = vpack.c.b16 %v874, %v874
  %v907 = vpack.c.b16 %v875, %v875
  %v908 = vpack.c.b16 %v876, %v876
  %v909 = vpack.c.b16 %v877, %v877
  %v910 = vpack.c.b16 %v878, %v878
  %v911 = vpack.c.b16 %v879, %v879
  %v912 = vpack.c.b16 %v880, %v880
  %v913 = vpack.c.b16 %v881, %v881
  %v914 = vpack.c.b16 %v882, %v882
  %v915 = vpack.c.b16 %v883, %v883
  %v916 = vpack.c.b16 %v884, %v884
  %v917 = vpack.c.b16 %v885, %v885
  %v918 = vpack.c.b16 %v886, %v886
  %v919 = vpack.c.b16 %v887, %v887
  %v920 = vpack.c.b16 %v888, %v888
  %v921 = vpack.c.b16 %v889, %v889
  %v922 = vpack.c.b16 %v890, %v890
  %v923 = vpack.c.b16 %v891, %v891
  %v924 = vpack.c.b16 %v892, %v892
  %v925 = vpack.c.b16 %v893, %v893
  %v926 = vpack.c.b16 %v894, %v894
  %v927 = vpack.c.b16 %v895, %v895
  %v928 = vpack.c.b16 %v896, %v896
  %v929 = vpack.c.b16 %v897, %v897
  %v930 = vpack.c.b16 %v898, %v898
  %v931 = vpack.c.b16 %v899, %v899
  %v932 = vpack.c.b16 %v900, %v900
  %v933 = vpack.c.b16 %v901, %v901
  %v934 = vpack.c.b16 %v902, %v902
  %v935 = vpack.c.b16 %v903, %v903
  %v936 = vpack.c.b16 %v904, %v904
  %969 = vst [vmem:[%s3] sm:$0xf] %v905
  %970 = vst [vmem:[%s3 + $0x4] sm:$0xf] %v906
  %971 = vst [vmem:[%s3 + $0x8] sm:$0xf] %v907
  %972 = vst [vmem:[%s3 + $0xc] sm:$0xf] %v908
  %973 = vst [vmem:[%s3 + $0x10] sm:$0xf] %v909
  %974 = vst [vmem:[%s3 + $0x14] sm:$0xf] %v910
  %975 = vst [vmem:[%s3 + $0x18] sm:$0xf] %v911
  %976 = vst [vmem:[%s3 + $0x1c] sm:$0xf] %v912
  %977 = vst [vmem:[%s3 + $0x20] sm:$0xf] %v913
  %978 = vst [vmem:[%s3 + $0x24] sm:$0xf] %v914
  %979 = vst [vmem:[%s3 + $0x28] sm:$0xf] %v915
  %980 = vst [vmem:[%s3 + $0x2c] sm:$0xf] %v916
  %981 = vst [vmem:[%s3 + $0x30] sm:$0xf] %v917
  %982 = vst [vmem:[%s3 + $0x34] sm:$0xf] %v918
  %983 = vst [vmem:[%s3 + $0x38] sm:$0xf] %v919
  %984 = vst [vmem:[%s3 + $0x3c] sm:$0xf] %v920
  %985 = vst [vmem:[%s3 + $0x40] sm:$0xf] %v921
  %986 = vst [vmem:[%s3 + $0x44] sm:$0xf] %v922
  %987 = vst [vmem:[%s3 + $0x48] sm:$0xf] %v923
  %988 = vst [vmem:[%s3 + $0x4c] sm:$0xf] %v924
  %989 = vst [vmem:[%s3 + $0x50] sm:$0xf] %v925
  %990 = vst [vmem:[%s3 + $0x54] sm:$0xf] %v926
  %991 = vst [vmem:[%s3 + $0x58] sm:$0xf] %v927
  %992 = vst [vmem:[%s3 + $0x5c] sm:$0xf] %v928
  %993 = vst [vmem:[%s3 + $0x60] sm:$0xf] %v929
  %994 = vst [vmem:[%s3 + $0x64] sm:$0xf] %v930
  %995 = vst [vmem:[%s3 + $0x68] sm:$0xf] %v931
  %996 = vst [vmem:[%s3 + $0x6c] sm:$0xf] %v932
  %997 = vst [vmem:[%s3 + $0x70] sm:$0xf] %v933
  %998 = vst [vmem:[%s3 + $0x74] sm:$0xf] %v934
  %999 = vst [vmem:[%s3 + $0x78] sm:$0xf] %v935
  %1000 = vst [vmem:[%s3 + $0x7c] sm:$0xf] %v936
  // Predicated region
  $region14: #{bicycle_gan_forward.25} parent=0 // pred_check
    _
  $region15: #{bicycle_gan_forward.25} parent=0 // pred_check_branch
    %1002 = sbr.rel (0) target = $region17
  $region16: #{bicycle_gan_forward.25} parent=0 // pred_region
    _
  $region17: #{bicycle_gan_forward.25} parent=0 // pred_fallthru
    _
  // Predicated region
  $region18: #{bicycle_gan_forward.25} parent=0 // pred_check
    _
  $region19: #{bicycle_gan_forward.25} parent=0 // pred_check_branch
    %1004 = sbr.rel (0) target = $region21
  $region20: #{bicycle_gan_forward.25} parent=0 // pred_region
    _
  $region21: #{bicycle_gan_forward.25} parent=0 // pred_fallthru
    _

</llo_original>
